<compile_context>
chip_gen: v6e
topology: v6e:2x2x1
jax: 0.10.0
libtpu: 0.0.40
codegen_flags: <defaults>
</compile_context>

<pallas_src>
import jax
import jax.numpy as jnp
from jax.experimental import pallas as pl
from jax.experimental.pallas import tpu as pltpu

FEAT_DIM = 768      # backbone output dim (fixed by the module: Linear(768, 1024))
HIDDEN = 1024       # head hidden dim
FINAL_DIM = 67      # final_dim (MIT-67 indoor scene classes, small example choice)
FINAL_PAD = 128     # lane-dense padded output width (multiple of 128 >= FINAL_DIM)


def _round_up(n, m):
    return ((n + m - 1) // m) * m


def scene_classifier_kernel(x_ref, ws_ref, bs_ref, w1_ref, b1_ref, w2_ref, b2_ref, out_ref):
    """One batch tile per grid step; weights/biases are VMEM-resident.

    x_ref : (TILE_B, K_in)   bfloat16   (K_in = C*HW fused-pool slab, or C pooled)
    ws_ref: (K_in, 768)      bfloat16   (mean-pool scale folded in when fused)
    bs_ref: (1, 768)         float32
    w1_ref: (768, 1024)      bfloat16
    b1_ref: (1, 1024)        float32
    w2_ref: (1024, 128)      bfloat16   (columns >= FINAL_DIM are zero)
    b2_ref: (1, 128)         float32    (columns >= FINAL_DIM are zero)
    out_ref: (TILE_B, 128)   float32    (lane-dense; wrapper slices [:, :67])
    """
    # --- synthetic backbone stand-in: (pool +) linear to 768, f32 accumulation ---
    # TODO(synk): the real self.net is a pretrained SWAG (ViT) hub model; it has
    # no clean in-script Pallas equivalent, so a pooled-feature stem is used.
    feat = jnp.dot(x_ref[...], ws_ref[...],
                   preferred_element_type=jnp.float32) + bs_ref[...]       # (TILE_B, 768) f32

    # --- head: Linear(768,1024) -> ReLU -> Dropout(eval=identity) -> Linear(1024,128pad) -> ReLU ---
    h = jnp.dot(feat.astype(jnp.bfloat16), w1_ref[...],
                preferred_element_type=jnp.float32) + b1_ref[...]          # (TILE_B, 1024) f32
    h = jnp.maximum(h, 0.0)
    # TODO(synk): nn.Dropout is identity in eval mode; training-mode stochastic
    # masking (pltpu.prng_*) is not implemented here.
    out = jnp.dot(h.astype(jnp.bfloat16), w2_ref[...],
                  preferred_element_type=jnp.float32) + b2_ref[...]        # (TILE_B, 128) f32
    out_ref[...] = jnp.maximum(out, 0.0)                                   # lane-dense unmasked store


def init_params(key, in_channels):
    """f32 "PyTorch-like" parameters (also used by the pure-JAX reference)."""
    k0, k1, k2, k3, k4, k5 = jax.random.split(key, 6)
    ws = jax.random.normal(k0, (in_channels, FEAT_DIM), jnp.float32) / (in_channels ** 0.5)
    bs = jax.random.normal(k1, (FEAT_DIM,), jnp.float32) * 0.1
    w1 = jax.random.normal(k2, (FEAT_DIM, HIDDEN), jnp.float32) / (FEAT_DIM ** 0.5)
    b1 = jax.random.normal(k3, (HIDDEN,), jnp.float32) * 0.1
    w2 = jax.random.normal(k4, (HIDDEN, FINAL_DIM), jnp.float32) / (HIDDEN ** 0.5)
    b2 = jax.random.normal(k5, (FINAL_DIM,), jnp.float32) * 0.1
    return ws, bs, w1, b1, w2, b2


def prepare_kernel_params(params, hw, fuse_pool=True):
    """Kernel-ready params: bf16 weights, f32 biases, lane-padded final layer."""
    ws, bs, w1, b1, w2, b2 = params
    if fuse_pool:
        # Fold the 1/(H*W) mean-pool into a repeated-row stem weight so the
        # pooling becomes part of the stem matmul (MXU, ~free on v6e/v7x).
        ws_k = (jnp.repeat(ws, hw, axis=0) / float(hw)).astype(jnp.bfloat16)   # (C*HW, 768)
    else:
        # Pool is done in XLA by the wrapper; stem weight stays (C, 768).
        ws_k = ws.astype(jnp.bfloat16)
    w2_pad = jnp.pad(w2, ((0, 0), (0, FINAL_PAD - FINAL_DIM))).astype(jnp.bfloat16)
    b2_pad = jnp.pad(b2, (0, FINAL_PAD - FINAL_DIM)).reshape(1, FINAL_PAD).astype(jnp.float32)
    return (ws_k,
            bs.reshape(1, FEAT_DIM).astype(jnp.float32),
            w1.astype(jnp.bfloat16),
            b1.reshape(1, HIDDEN).astype(jnp.float32),
            w2_pad,
            b2_pad)


def scene_classifier_reference(x, params):
    """Pure-JAX f32 reference of the same forward (for tolerance checking)."""
    ws, bs, w1, b1, w2, b2 = params
    B, C, H, W = x.shape
    pooled = jnp.mean(x.reshape(B, C, H * W), axis=-1)
    feat = pooled @ ws + bs
    h = jnp.maximum(feat @ w1 + b1, 0.0)
    return jnp.maximum(h @ w2 + b2, 0.0)


def scene_classifier_forward(x, kernel_params, *, fuse_pool=True, tile_b=512):
    """x: (B, C, H, W) float32 NCHW  ->  (B, FINAL_DIM) float32."""
    B, C, H, W = x.shape
    HW = H * W
    ws_k, bs, w1, b1, w2, b2 = kernel_params

    if fuse_pool:
        # Lane-dense bf16 slab; pooling is folded into ws_k (v6e/v7x default).
        x_in = x.reshape(B, C * HW).astype(jnp.bfloat16)
    else:
        # v5e-friendly path: one mem-bound XLA pass pools x; the kernel's
        # per-tile input shrinks to (TILE_B, C).
        x_in = jnp.mean(x.reshape(B, C, HW).astype(jnp.float32), axis=-1).astype(jnp.bfloat16)
    K_in = x_in.shape[1]
    assert ws_k.shape[0] == K_in, "kernel params prepared for a different fuse_pool / spatial size"

    # Batch tile: sublane-aligned (multiple of 8), clamped to the batch size.
    TILE_B = min(_round_up(tile_b, 8), _round_up(B, 8))
    n_tiles = -(-B // TILE_B)
    # v7x megacore: the batch axis is marked "parallel" and split across the
    # two TensorCores -- prefer an even tile count so both cores stay busy.
    if n_tiles > 1 and n_tiles % 2 == 1 and TILE_B >= 16:
        TILE_B = _round_up(TILE_B // 2, 8)
        n_tiles = -(-B // TILE_B)
    B_pad = n_tiles * TILE_B
    if B_pad != B:
        x_in = jnp.pad(x_in, ((0, B_pad - B), (0, 0)))      # zero rows -> sliced off

    def _const_spec(shape, pipeline_mode):
        idx_map = lambda i: (0,) * len(shape)                # VMEM-resident across all tiles
        if pipeline_mode is None:
            return pl.BlockSpec(shape, idx_map)
        return pl.BlockSpec(shape, idx_map, pipeline_mode=pipeline_mode)

    def _run(weight_pipeline_mode):
        call = pl.pallas_call(
            scene_classifier_kernel,
            out_shape=jax.ShapeDtypeStruct((B_pad, FINAL_PAD), jnp.float32),
            grid_spec=pltpu.PrefetchScalarGridSpec(
                num_scalar_prefetch=0,
                grid=(n_tiles,),
                in_specs=[
                    pl.BlockSpec((TILE_B, K_in), lambda i: (i, 0)),          # batch tile of x (bf16)
                    _const_spec(ws_k.shape, weight_pipeline_mode),
                    _const_spec(bs.shape, weight_pipeline_mode),
                    _const_spec(w1.shape, weight_pipeline_mode),
                    _const_spec(b1.shape, weight_pipeline_mode),
                    _const_spec(w2.shape, weight_pipeline_mode),
                    _const_spec(b2.shape, weight_pipeline_mode),
                ],
                out_specs=pl.BlockSpec((TILE_B, FINAL_PAD), lambda i: (i, 0)),
            ),
            compiler_params=pltpu.CompilerParams(
                # Batch tiles are independent -> megacore-shard them (v7x: 2 TCs).
                dimension_semantics=("parallel",),
            ),
        )
        return call(x_in, ws_k, bs, w1, b1, w2, b2)

    try:
        # Weights/biases are revisited every grid step: single-buffer them to
        # save VMEM (the second pipeline copy is pure waste).
        out = jax.block_until_ready(_run(pl.Buffered(1)))
    except Exception:
        # Fallback for JAX versions without BlockSpec pipeline_mode / Buffered(1).
        out = _run(None)

    return out[:B, :FINAL_DIM]


if __name__ == "__main__":
    key = jax.random.PRNGKey(0)
    kx, kp = jax.random.split(key)

    # Small NCHW image batch: batch=2, channels=4, spatial=16x16.
    B, C, H, W = 2, 4, 16, 16
    x = jax.random.normal(kx, (B, C, H, W), jnp.float32)

    params = init_params(kp, in_channels=C)
    kparams = prepare_kernel_params(params, hw=H * W, fuse_pool=True)

    y = scene_classifier_forward(x, kparams, fuse_pool=True)
    y = jax.block_until_ready(y)

    assert y.shape == (B, FINAL_DIM) and y.dtype == jnp.float32
    assert bool(jnp.all(y >= 0.0))  # final ReLU

    # Tolerance check vs. an f32 pure-JAX reference (bf16 weights/activations
    # in the kernel -> expect <~1% relative error).
    ref = scene_classifier_reference(x, params)
    err = float(jnp.max(jnp.abs(y - ref)))
    scale = float(jnp.max(jnp.abs(ref))) + 1e-6
    assert err <= 5e-2 * scale, f"kernel/reference mismatch: max_err={err}, ref_scale={scale}"

    print("KERNEL_OK")
</pallas_src>

<mosaic_0001>
module attributes {stable_mosaic.version = 11 : i64} {
  func.func @scene_classifier_kernel(%arg0: i32, %arg1: memref<8x1024xbf16, #tpu.memory_space<vmem>>, %arg2: memref<1024x768xbf16, #tpu.memory_space<vmem>>, %arg3: memref<1x768xf32, #tpu.memory_space<vmem>>, %arg4: memref<768x1024xbf16, #tpu.memory_space<vmem>>, %arg5: memref<1x1024xf32, #tpu.memory_space<vmem>>, %arg6: memref<1024x128xbf16, #tpu.memory_space<vmem>>, %arg7: memref<1x128xf32, #tpu.memory_space<vmem>>, %arg8: memref<8x128xf32, #tpu.memory_space<vmem>>) attributes {dimension_semantics = [#tpu.dimension_semantics<parallel>], iteration_bounds = array<i64: 1>, scalar_prefetch = 0 : i64, scratch_operands = 0 : i64, tpu.core_type = #tpu.core_type<tc>, window_params = [{transform_indices = @transform_0, window_bounds = array<i64: 8, 1024>}, {pipeline_mode = #tpu.pipeline_mode<synchronous>, transform_indices = @transform_1, window_bounds = array<i64: 1024, 768>}, {pipeline_mode = #tpu.pipeline_mode<synchronous>, transform_indices = @transform_2, window_bounds = array<i64: 1, 768>}, {pipeline_mode = #tpu.pipeline_mode<synchronous>, transform_indices = @transform_3, window_bounds = array<i64: 768, 1024>}, {pipeline_mode = #tpu.pipeline_mode<synchronous>, transform_indices = @transform_4, window_bounds = array<i64: 1, 1024>}, {pipeline_mode = #tpu.pipeline_mode<synchronous>, transform_indices = @transform_5, window_bounds = array<i64: 1024, 128>}, {pipeline_mode = #tpu.pipeline_mode<synchronous>, transform_indices = @transform_6, window_bounds = array<i64: 1, 128>}, {transform_indices = @transform_7, window_bounds = array<i64: 8, 128>}]} {
    %c0 = arith.constant 0 : index
    %c0_0 = arith.constant 0 : index
    %0 = vector.load %arg1[%c0, %c0_0] : memref<8x1024xbf16, #tpu.memory_space<vmem>>, vector<8x1024xbf16>
    %c0_1 = arith.constant 0 : index
    %c0_2 = arith.constant 0 : index
    %1 = vector.load %arg2[%c0_1, %c0_2] : memref<1024x768xbf16, #tpu.memory_space<vmem>>, vector<1024x768xbf16>
    %cst = arith.constant dense<0.000000e+00> : vector<8x768xf32>
    %2 = tpu.matmul %0, %1, %cst {dimension_numbers = #tpu.dot_dimension_numbers<[1], [0], [0], [1], [0, 0, 1, 1], [], []>} : vector<8x1024xbf16>, vector<1024x768xbf16>, vector<8x768xf32> -> vector<8x768xf32>
    %c0_3 = arith.constant 0 : index
    %c0_4 = arith.constant 0 : index
    %3 = vector.load %arg3[%c0_3, %c0_4] : memref<1x768xf32, #tpu.memory_space<vmem>>, vector<1x768xf32>
    %4 = vector.broadcast %3 : vector<1x768xf32> to vector<8x768xf32>
    %5 = arith.addf %2, %4 : vector<8x768xf32>
    %6 = arith.truncf %5 : vector<8x768xf32> to vector<8x768xbf16>
    %c0_5 = arith.constant 0 : index
    %c0_6 = arith.constant 0 : index
    %7 = vector.load %arg4[%c0_5, %c0_6] : memref<768x1024xbf16, #tpu.memory_space<vmem>>, vector<768x1024xbf16>
    %cst_7 = arith.constant dense<0.000000e+00> : vector<8x1024xf32>
    %8 = tpu.matmul %6, %7, %cst_7 {dimension_numbers = #tpu.dot_dimension_numbers<[1], [0], [0], [1], [0, 0, 1, 1], [], []>} : vector<8x768xbf16>, vector<768x1024xbf16>, vector<8x1024xf32> -> vector<8x1024xf32>
    %c0_8 = arith.constant 0 : index
    %c0_9 = arith.constant 0 : index
    %9 = vector.load %arg5[%c0_8, %c0_9] : memref<1x1024xf32, #tpu.memory_space<vmem>>, vector<1x1024xf32>
    %10 = vector.broadcast %9 : vector<1x1024xf32> to vector<8x1024xf32>
    %11 = arith.addf %8, %10 : vector<8x1024xf32>
    %cst_10 = arith.constant 0.000000e+00 : f32
    %12 = vector.broadcast %cst_10 : f32 to vector<8x1024xf32>
    %13 = arith.maximumf %11, %12 : vector<8x1024xf32>
    %14 = arith.truncf %13 : vector<8x1024xf32> to vector<8x1024xbf16>
    %c0_11 = arith.constant 0 : index
    %c0_12 = arith.constant 0 : index
    %15 = vector.load %arg6[%c0_11, %c0_12] : memref<1024x128xbf16, #tpu.memory_space<vmem>>, vector<1024x128xbf16>
    %cst_13 = arith.constant dense<0.000000e+00> : vector<8x128xf32>
    %16 = tpu.matmul %14, %15, %cst_13 {dimension_numbers = #tpu.dot_dimension_numbers<[1], [0], [0], [1], [0, 0, 1, 1], [], []>} : vector<8x1024xbf16>, vector<1024x128xbf16>, vector<8x128xf32> -> vector<8x128xf32>
    %c0_14 = arith.constant 0 : index
    %c0_15 = arith.constant 0 : index
    %17 = vector.load %arg7[%c0_14, %c0_15] : memref<1x128xf32, #tpu.memory_space<vmem>>, vector<1x128xf32>
    %18 = vector.broadcast %17 : vector<1x128xf32> to vector<8x128xf32>
    %19 = arith.addf %16, %18 : vector<8x128xf32>
    %cst_16 = arith.constant 0.000000e+00 : f32
    %20 = vector.broadcast %cst_16 : f32 to vector<8x128xf32>
    %21 = arith.maximumf %19, %20 : vector<8x128xf32>
    %c0_17 = arith.constant 0 : index
    %c0_18 = arith.constant 0 : index
    %22 = vector.load %arg8[%c0_17, %c0_18] : memref<8x128xf32, #tpu.memory_space<vmem>>, vector<8x128xf32>
    tpu.vector_store %arg8[%c0_17, %c0_18], %21 {strides = array<i32>} : memref<8x128xf32, #tpu.memory_space<vmem>>, vector<8x128xf32>,
    return
  }
  func.func @transform_0(%arg0: i32) -> (i32, i32) {
    %c0_i32 = arith.constant 0 : i32
    %c0_i32_0 = arith.constant 0 : i32
    return %arg0, %c0_i32 : i32, i32
  }
  func.func @transform_1(%arg0: i32) -> (i32, i32) {
    %c0_i32 = arith.constant 0 : i32
    %c0_i32_0 = arith.constant 0 : i32
    %c0_i32_1 = arith.constant 0 : i32
    return %c0_i32, %c0_i32_0 : i32, i32
  }
  func.func @transform_2(%arg0: i32) -> (i32, i32) {
    %c0_i32 = arith.constant 0 : i32
    %c0_i32_0 = arith.constant 0 : i32
    %c0_i32_1 = arith.constant 0 : i32
    return %c0_i32, %c0_i32_0 : i32, i32
  }
  func.func @transform_3(%arg0: i32) -> (i32, i32) {
    %c0_i32 = arith.constant 0 : i32
    %c0_i32_0 = arith.constant 0 : i32
    %c0_i32_1 = arith.constant 0 : i32
    return %c0_i32, %c0_i32_0 : i32, i32
  }
  func.func @transform_4(%arg0: i32) -> (i32, i32) {
    %c0_i32 = arith.constant 0 : i32
    %c0_i32_0 = arith.constant 0 : i32
    %c0_i32_1 = arith.constant 0 : i32
    return %c0_i32, %c0_i32_0 : i32, i32
  }
  func.func @transform_5(%arg0: i32) -> (i32, i32) {
    %c0_i32 = arith.constant 0 : i32
    %c0_i32_0 = arith.constant 0 : i32
    %c0_i32_1 = arith.constant 0 : i32
    return %c0_i32, %c0_i32_0 : i32, i32
  }
  func.func @transform_6(%arg0: i32) -> (i32, i32) {
    %c0_i32 = arith.constant 0 : i32
    %c0_i32_0 = arith.constant 0 : i32
    %c0_i32_1 = arith.constant 0 : i32
    return %c0_i32, %c0_i32_0 : i32, i32
  }
  func.func @transform_7(%arg0: i32) -> (i32, i32) {
    %c0_i32 = arith.constant 0 : i32
    %c0_i32_0 = arith.constant 0 : i32
    return %arg0, %c0_i32 : i32, i32
  }
}

module attributes {stable_mosaic.version = 11 : i64} {
  func.func @scene_classifier_kernel(%arg0: i32, %arg1: memref<8x1024xbf16, #tpu.memory_space<vmem>>, %arg2: memref<1024x768xbf16, #tpu.memory_space<vmem>>, %arg3: memref<1x768xf32, #tpu.memory_space<vmem>>, %arg4: memref<768x1024xbf16, #tpu.memory_space<vmem>>, %arg5: memref<1x1024xf32, #tpu.memory_space<vmem>>, %arg6: memref<1024x128xbf16, #tpu.memory_space<vmem>>, %arg7: memref<1x128xf32, #tpu.memory_space<vmem>>, %arg8: memref<8x128xf32, #tpu.memory_space<vmem>>) attributes {dimension_semantics = [#tpu.dimension_semantics<parallel>], iteration_bounds = array<i64: 1>, scalar_prefetch = 0 : i64, scratch_operands = 0 : i64, tpu.core_type = #tpu.core_type<tc>, window_params = [{transform_indices = @transform_0, window_bounds = array<i64: 8, 1024>}, {pipeline_mode = #tpu.pipeline_mode<synchronous>, transform_indices = @transform_1, window_bounds = array<i64: 1024, 768>}, {pipeline_mode = #tpu.pipeline_mode<synchronous>, transform_indices = @transform_2, window_bounds = array<i64: 1, 768>}, {pipeline_mode = #tpu.pipeline_mode<synchronous>, transform_indices = @transform_3, window_bounds = array<i64: 768, 1024>}, {pipeline_mode = #tpu.pipeline_mode<synchronous>, transform_indices = @transform_4, window_bounds = array<i64: 1, 1024>}, {pipeline_mode = #tpu.pipeline_mode<synchronous>, transform_indices = @transform_5, window_bounds = array<i64: 1024, 128>}, {pipeline_mode = #tpu.pipeline_mode<synchronous>, transform_indices = @transform_6, window_bounds = array<i64: 1, 128>}, {transform_indices = @transform_7, window_bounds = array<i64: 8, 128>}]} {
    %c0 = arith.constant 0 : index
    %c0_0 = arith.constant 0 : index
    %0 = vector.load %arg1[%c0, %c0_0] : memref<8x1024xbf16, #tpu.memory_space<vmem>>, vector<8x1024xbf16>
    %c0_1 = arith.constant 0 : index
    %c0_2 = arith.constant 0 : index
    %1 = vector.load %arg2[%c0_1, %c0_2] : memref<1024x768xbf16, #tpu.memory_space<vmem>>, vector<1024x768xbf16>
    %cst = arith.constant dense<0.000000e+00> : vector<8x768xf32>
    %2 = tpu.matmul %0, %1, %cst {dimension_numbers = #tpu.dot_dimension_numbers<[1], [0], [0], [1], [0, 0, 1, 1], [], []>} : vector<8x1024xbf16>, vector<1024x768xbf16>, vector<8x768xf32> -> vector<8x768xf32>
    %c0_3 = arith.constant 0 : index
    %c0_4 = arith.constant 0 : index
    %3 = vector.load %arg3[%c0_3, %c0_4] : memref<1x768xf32, #tpu.memory_space<vmem>>, vector<1x768xf32>
    %4 = vector.broadcast %3 : vector<1x768xf32> to vector<8x768xf32>
    %5 = arith.addf %2, %4 : vector<8x768xf32>
    %6 = arith.truncf %5 : vector<8x768xf32> to vector<8x768xbf16>
    %c0_5 = arith.constant 0 : index
    %c0_6 = arith.constant 0 : index
    %7 = vector.load %arg4[%c0_5, %c0_6] : memref<768x1024xbf16, #tpu.memory_space<vmem>>, vector<768x1024xbf16>
    %cst_7 = arith.constant dense<0.000000e+00> : vector<8x1024xf32>
    %8 = tpu.matmul %6, %7, %cst_7 {dimension_numbers = #tpu.dot_dimension_numbers<[1], [0], [0], [1], [0, 0, 1, 1], [], []>} : vector<8x768xbf16>, vector<768x1024xbf16>, vector<8x1024xf32> -> vector<8x1024xf32>
    %c0_8 = arith.constant 0 : index
    %c0_9 = arith.constant 0 : index
    %9 = vector.load %arg5[%c0_8, %c0_9] : memref<1x1024xf32, #tpu.memory_space<vmem>>, vector<1x1024xf32>
    %10 = vector.broadcast %9 : vector<1x1024xf32> to vector<8x1024xf32>
    %11 = arith.addf %8, %10 : vector<8x1024xf32>
    %cst_10 = arith.constant 0.000000e+00 : f32
    %12 = vector.broadcast %cst_10 : f32 to vector<8x1024xf32>
    %13 = arith.maximumf %11, %12 : vector<8x1024xf32>
    %14 = arith.truncf %13 : vector<8x1024xf32> to vector<8x1024xbf16>
    %c0_11 = arith.constant 0 : index
    %c0_12 = arith.constant 0 : index
    %15 = vector.load %arg6[%c0_11, %c0_12] : memref<1024x128xbf16, #tpu.memory_space<vmem>>, vector<1024x128xbf16>
    %cst_13 = arith.constant dense<0.000000e+00> : vector<8x128xf32>
    %16 = tpu.matmul %14, %15, %cst_13 {dimension_numbers = #tpu.dot_dimension_numbers<[1], [0], [0], [1], [0, 0, 1, 1], [], []>} : vector<8x1024xbf16>, vector<1024x128xbf16>, vector<8x128xf32> -> vector<8x128xf32>
    %c0_14 = arith.constant 0 : index
    %c0_15 = arith.constant 0 : index
    %17 = vector.load %arg7[%c0_14, %c0_15] : memref<1x128xf32, #tpu.memory_space<vmem>>, vector<1x128xf32>
    %18 = vector.broadcast %17 : vector<1x128xf32> to vector<8x128xf32>
    %19 = arith.addf %16, %18 : vector<8x128xf32>
    %cst_16 = arith.constant 0.000000e+00 : f32
    %20 = vector.broadcast %cst_16 : f32 to vector<8x128xf32>
    %21 = arith.maximumf %19, %20 : vector<8x128xf32>
    %c0_17 = arith.constant 0 : index
    %c0_18 = arith.constant 0 : index
    %22 = vector.load %arg8[%c0_17, %c0_18] : memref<8x128xf32, #tpu.memory_space<vmem>>, vector<8x128xf32>
    tpu.vector_store %arg8[%c0_17, %c0_18], %21 {strides = array<i32>} : memref<8x128xf32, #tpu.memory_space<vmem>>, vector<8x128xf32>,
    return
  }
  func.func @transform_0(%arg0: i32) -> (i32, i32) {
    %c0_i32 = arith.constant 0 : i32
    %c0_i32_0 = arith.constant 0 : i32
    return %arg0, %c0_i32 : i32, i32
  }
  func.func @transform_1(%arg0: i32) -> (i32, i32) {
    %c0_i32 = arith.constant 0 : i32
    %c0_i32_0 = arith.constant 0 : i32
    %c0_i32_1 = arith.constant 0 : i32
    return %c0_i32, %c0_i32_0 : i32, i32
  }
  func.func @transform_2(%arg0: i32) -> (i32, i32) {
    %c0_i32 = arith.constant 0 : i32
    %c0_i32_0 = arith.constant 0 : i32
    %c0_i32_1 = arith.constant 0 : i32
    return %c0_i32, %c0_i32_0 : i32, i32
  }
  func.func @transform_3(%arg0: i32) -> (i32, i32) {
    %c0_i32 = arith.constant 0 : i32
    %c0_i32_0 = arith.constant 0 : i32
    %c0_i32_1 = arith.constant 0 : i32
    return %c0_i32, %c0_i32_0 : i32, i32
  }
  func.func @transform_4(%arg0: i32) -> (i32, i32) {
    %c0_i32 = arith.constant 0 : i32
    %c0_i32_0 = arith.constant 0 : i32
    %c0_i32_1 = arith.constant 0 : i32
    return %c0_i32, %c0_i32_0 : i32, i32
  }
  func.func @transform_5(%arg0: i32) -> (i32, i32) {
    %c0_i32 = arith.constant 0 : i32
    %c0_i32_0 = arith.constant 0 : i32
    %c0_i32_1 = arith.constant 0 : i32
    return %c0_i32, %c0_i32_0 : i32, i32
  }
  func.func @transform_6(%arg0: i32) -> (i32, i32) {
    %c0_i32 = arith.constant 0 : i32
    %c0_i32_0 = arith.constant 0 : i32
    %c0_i32_1 = arith.constant 0 : i32
    return %c0_i32, %c0_i32_0 : i32, i32
  }
  func.func @transform_7(%arg0: i32) -> (i32, i32) {
    %c0_i32 = arith.constant 0 : i32
    %c0_i32_0 = arith.constant 0 : i32
    return %arg0, %c0_i32 : i32, i32
  }
}

</mosaic_0001>

<llo_original>
// kernel: tpu_custom_call.1
$region0: #{tpu_custom_call.1}
  #allocation0 [shape = 'u32[]', space=smem, size = 0x4, offset = 0x4, fixed_abs, tag = 'smem constant byte address 0x4 - core index']
  #allocation1 [shape = 'u32[144,128]{1,0:T(1,128)}', space=vmem, size = 0x12000, scoped, tag = 'internal scratch']
  %s0 = inlined_call_operand.hbm [shape: bf16[8,1024], index: 0, kind: input, shape index: {}]
  %s1 = inlined_call_operand.hbm [shape: bf16[1024,768], index: 1, kind: input, shape index: {}]
  %s2 = inlined_call_operand.hbm [shape: f32[1,768], index: 2, kind: input, shape index: {}]
  %s3 = inlined_call_operand.hbm [shape: bf16[768,1024], index: 3, kind: input, shape index: {}]
  %s4 = inlined_call_operand.hbm [shape: f32[1,1024], index: 4, kind: input, shape index: {}]
  %s5 = inlined_call_operand.hbm [shape: bf16[1024,128], index: 5, kind: input, shape index: {}]
  %s6 = inlined_call_operand.hbm [shape: f32[1,128], index: 6, kind: input, shape index: {}]
  %s7 = inlined_call_operand.hbm [shape: f32[8,128], index: 7, kind: output, shape index: {}]
  %s8 = sld [smem:[#allocation0]]
  $region66: #{tpu_custom_call.1} parent=0
    _
  %s10 = ssub.s32 1, %s8
  %s11 = scalar_select 0, %s10, %s8
  $region1: #{tpu_custom_call.1} parent=0
    #allocation2 [shape = 'u8[16384]{0}', space=vmem, size = 0x4000, scoped, tag = 'input window, operand 0, single buffered']
    #allocation3 [shape = 's32[1]{0}', space=sflag, size = 0x4, scoped, tag = 'scoped memory for tpu_custom_call.1']
    #allocation4 [shape = 's32[1]{0}', space=sflag, size = 0x4, scoped, tag = 'scoped memory for tpu_custom_call.1']
    #allocation5 [shape = 'u8[1572864]{0}', space=vmem, size = 0x180000, scoped, tag = 'input window, operand 1, single buffered']
    #allocation6 [shape = 's32[1]{0}', space=sflag, size = 0x4, scoped, tag = 'scoped memory for tpu_custom_call.1']
    #allocation7 [shape = 'u8[3072]{0}', space=vmem, size = 0xc00, scoped, tag = 'input window, operand 2, single buffered']
    #allocation8 [shape = 'u8[1572864]{0}', space=vmem, size = 0x180000, scoped, tag = 'input window, operand 3, single buffered']
    #allocation9 [shape = 's32[1]{0}', space=sflag, size = 0x4, scoped, tag = 'scoped memory for tpu_custom_call.1']
    #allocation10 [shape = 'u8[4096]{0}', space=vmem, size = 0x1000, scoped, tag = 'input window, operand 4, single buffered']
    #allocation11 [shape = 'u8[262144]{0}', space=vmem, size = 0x40000, scoped, tag = 'input window, operand 5, single buffered']
    #allocation12 [shape = 's32[1]{0}', space=sflag, size = 0x4, scoped, tag = 'scoped memory for tpu_custom_call.1']
    #allocation13 [shape = 'u8[512]{0}', space=vmem, size = 0x400, scoped, tag = 'input window, operand 6, single buffered']
    #allocation14 [shape = 'u8[4096]{0}', space=vmem, size = 0x1000, scoped, tag = 'output window, operand 0, single buffered']
    %12 = vsyncpa [#allocation3], 0
    %13 = vsyncpa [#allocation6], 0
    %14 = vsyncpa [#allocation9], 0
    %15 = vsyncpa [#allocation12], 0
    %16 = vsyncpa [#allocation4], 0
    // Predicated region
    $region2: #{tpu_custom_call.1} parent=1 // pred_check
      _
    $region3: #{tpu_custom_call.1} parent=1 // pred_check_branch
      %18 = sbr.rel (0) target = $region5
    $region4: #{tpu_custom_call.1} parent=1 // pred_region
      %s20 = ssub.s32 512, 512
      %21 = vsyncadd [#allocation3], %s20
      %s23 = sshll.u32 [#allocation2], 4
      %s24 = int_to_ptr.vmem [resolvable:$true] %s23
      %26 = dma.hbm_to_vmem [thread:$0]  %s0, 512, %s24, [#allocation3]
    $region5: #{tpu_custom_call.1} parent=1 // pred_fallthru
      _
    // Predicated region
    $region6: #{tpu_custom_call.1} parent=1 // pred_check
      _
    $region7: #{tpu_custom_call.1} parent=1 // pred_check_branch
      %28 = sbr.rel (0) target = $region9
    $region8: #{tpu_custom_call.1} parent=1 // pred_region
      %s30 = ssub.s32 49152, 49152
      %31 = vsyncadd [#allocation6], %s30
      %s32 = sshll.u32 [#allocation5], 4
      %s33 = int_to_ptr.vmem [resolvable:$true] %s32
      %38 = dma.hbm_to_vmem [thread:$0]  %s1, 49152, %s33, [#allocation6], 384, 384, 24
    $region9: #{tpu_custom_call.1} parent=1 // pred_fallthru
      _
    // Predicated region
    $region10: #{tpu_custom_call.1} parent=1 // pred_check
      _
    $region11: #{tpu_custom_call.1} parent=1 // pred_check_branch
      %40 = sbr.rel (0) target = $region13
    $region12: #{tpu_custom_call.1} parent=1 // pred_region
      %s42 = ssub.s32 96, 96
      %43 = vsyncadd [#allocation6], %s42
      %s45 = sshll.u32 [#allocation7], 4
      %s46 = int_to_ptr.vmem [resolvable:$true] %s45
      %48 = dma.hbm_to_vmem [thread:$0]  %s2, 96, %s46, [#allocation6]
    $region13: #{tpu_custom_call.1} parent=1 // pred_fallthru
      _
    // Predicated region
    $region14: #{tpu_custom_call.1} parent=1 // pred_check
      _
    $region15: #{tpu_custom_call.1} parent=1 // pred_check_branch
      %50 = sbr.rel (0) target = $region17
    $region16: #{tpu_custom_call.1} parent=1 // pred_region
      %s52 = ssub.s32 49152, 49152
      %53 = vsyncadd [#allocation9], %s52
      %s54 = sshll.u32 [#allocation8], 4
      %s55 = int_to_ptr.vmem [resolvable:$true] %s54
      %60 = dma.hbm_to_vmem [thread:$0]  %s3, 49152, %s55, [#allocation9], 512, 512, 32
    $region17: #{tpu_custom_call.1} parent=1 // pred_fallthru
      _
    // Predicated region
    $region18: #{tpu_custom_call.1} parent=1 // pred_check
      _
    $region19: #{tpu_custom_call.1} parent=1 // pred_check_branch
      %62 = sbr.rel (0) target = $region21
    $region20: #{tpu_custom_call.1} parent=1 // pred_region
      %s64 = ssub.s32 128, 128
      %65 = vsyncadd [#allocation9], %s64
      %s67 = sshll.u32 [#allocation10], 4
      %s68 = int_to_ptr.vmem [resolvable:$true] %s67
      %70 = dma.hbm_to_vmem [thread:$0]  %s4, 128, %s68, [#allocation9]
    $region21: #{tpu_custom_call.1} parent=1 // pred_fallthru
      _
    // Predicated region
    $region22: #{tpu_custom_call.1} parent=1 // pred_check
      _
    $region23: #{tpu_custom_call.1} parent=1 // pred_check_branch
      %72 = sbr.rel (0) target = $region25
    $region24: #{tpu_custom_call.1} parent=1 // pred_region
      %s74 = ssub.s32 8192, 8192
      %75 = vsyncadd [#allocation12], %s74
      %s76 = sshll.u32 [#allocation11], 4
      %s77 = int_to_ptr.vmem [resolvable:$true] %s76
      %82 = dma.hbm_to_vmem [thread:$0]  %s5, 8192, %s77, [#allocation12], 64, 64, 4
    $region25: #{tpu_custom_call.1} parent=1 // pred_fallthru
      _
    // Predicated region
    $region26: #{tpu_custom_call.1} parent=1 // pred_check
      _
    $region27: #{tpu_custom_call.1} parent=1 // pred_check_branch
      %84 = sbr.rel (0) target = $region29
    $region28: #{tpu_custom_call.1} parent=1 // pred_region
      %s86 = ssub.s32 16, 16
      %87 = vsyncadd [#allocation12], %s86
      %s89 = sshll.u32 [#allocation13], 4
      %s90 = int_to_ptr.vmem [resolvable:$true] %s89
      %92 = dma.hbm_to_vmem [thread:$0]  %s6, 16, %s90, [#allocation12]
    $region29: #{tpu_custom_call.1} parent=1 // pred_fallthru
      _
    // Predicated region
    $region30: #{tpu_custom_call.1} parent=1 // pred_check
      _
    $region31: #{tpu_custom_call.1} parent=1 // pred_check_branch
      %94 = sbr.rel (0) target = $region33
    $region32: #{tpu_custom_call.1} parent=1 // pred_region
      %95 = dma.done [#allocation3], 512
    $region33: #{tpu_custom_call.1} parent=1 // pred_fallthru
      _
    // Predicated region
    $region34: #{tpu_custom_call.1} parent=1 // pred_check
      _
    $region35: #{tpu_custom_call.1} parent=1 // pred_check_branch
      %97 = sbr.rel (0) target = $region37
    $region36: #{tpu_custom_call.1} parent=1 // pred_region
      %98 = dma.done [#allocation6], 49152
    $region37: #{tpu_custom_call.1} parent=1 // pred_fallthru
      _
    // Predicated region
    $region38: #{tpu_custom_call.1} parent=1 // pred_check
      _
    $region39: #{tpu_custom_call.1} parent=1 // pred_check_branch
      %100 = sbr.rel (0) target = $region41
    $region40: #{tpu_custom_call.1} parent=1 // pred_region
      %101 = dma.done [#allocation6], 96
    $region41: #{tpu_custom_call.1} parent=1 // pred_fallthru
      _
    // Predicated region
    $region42: #{tpu_custom_call.1} parent=1 // pred_check
      _
    $region43: #{tpu_custom_call.1} parent=1 // pred_check_branch
      %103 = sbr.rel (0) target = $region45
    $region44: #{tpu_custom_call.1} parent=1 // pred_region
      %104 = dma.done [#allocation9], 49152
    $region45: #{tpu_custom_call.1} parent=1 // pred_fallthru
      _
    // Predicated region
    $region46: #{tpu_custom_call.1} parent=1 // pred_check
      _
    $region47: #{tpu_custom_call.1} parent=1 // pred_check_branch
      %106 = sbr.rel (0) target = $region49
    $region48: #{tpu_custom_call.1} parent=1 // pred_region
      %107 = dma.done [#allocation9], 128
    $region49: #{tpu_custom_call.1} parent=1 // pred_fallthru
      _
    // Predicated region
    $region50: #{tpu_custom_call.1} parent=1 // pred_check
      _
    $region51: #{tpu_custom_call.1} parent=1 // pred_check_branch
      %109 = sbr.rel (0) target = $region53
    $region52: #{tpu_custom_call.1} parent=1 // pred_region
      %110 = dma.done [#allocation12], 8192
    $region53: #{tpu_custom_call.1} parent=1 // pred_fallthru
      _
    // Predicated region
    $region54: #{tpu_custom_call.1} parent=1 // pred_check
      _
    $region55: #{tpu_custom_call.1} parent=1 // pred_check_branch
      %112 = sbr.rel (0) target = $region57
    $region56: #{tpu_custom_call.1} parent=1 // pred_region
      %113 = dma.done [#allocation12], 16
    $region57: #{tpu_custom_call.1} parent=1 // pred_fallthru
      _
    %v115 = vld [vmem:[#allocation2] sm:$0xff]
    %v116 = vld [vmem:[#allocation2 + $0x8] sm:$0xff]
    %v117 = vld [vmem:[#allocation2 + $0x10] sm:$0xff]
    %v118 = vld [vmem:[#allocation2 + $0x18] sm:$0xff]
    %v119 = vld [vmem:[#allocation5] sm:$0xff]
    %v120 = vld [vmem:[#allocation5 + $0x8] sm:$0xff]
    %v121 = vld [vmem:[#allocation5 + $0x10] sm:$0xff]
    %v122 = vld [vmem:[#allocation5 + $0x18] sm:$0xff]
    %v123 = vld [vmem:[#allocation5 + $0x20] sm:$0xff]
    %v124 = vld [vmem:[#allocation5 + $0x28] sm:$0xff]
    %v125 = vld [vmem:[#allocation5 + $0x30] sm:$0xff]
    %v126 = vld [vmem:[#allocation5 + $0x38] sm:$0xff]
    %v127 = vld [vmem:[#allocation5 + $0x40] sm:$0xff]
    %v128 = vld [vmem:[#allocation5 + $0x48] sm:$0xff]
    %v129 = vld [vmem:[#allocation5 + $0x50] sm:$0xff]
    %v130 = vld [vmem:[#allocation5 + $0x58] sm:$0xff]
    %v131 = vld [vmem:[#allocation5 + $0x60] sm:$0xff]
    %v132 = vld [vmem:[#allocation5 + $0x68] sm:$0xff]
    %v133 = vld [vmem:[#allocation5 + $0x70] sm:$0xff]
    %v134 = vld [vmem:[#allocation5 + $0x78] sm:$0xff]
    %v135 = vld [vmem:[#allocation5 + $0x80] sm:$0xff]
    %v136 = vld [vmem:[#allocation5 + $0x88] sm:$0xff]
    %v137 = vld [vmem:[#allocation5 + $0x90] sm:$0xff]
    %v138 = vld [vmem:[#allocation5 + $0x98] sm:$0xff]
    %v139 = vld [vmem:[#allocation5 + $0xa0] sm:$0xff]
    %v140 = vld [vmem:[#allocation5 + $0xa8] sm:$0xff]
    %v141 = vld [vmem:[#allocation5 + $0xb0] sm:$0xff]
    %v142 = vld [vmem:[#allocation5 + $0xb8] sm:$0xff]
    %v143 = vld [vmem:[#allocation5 + $0xc0] sm:$0xff]
    %v144 = vld [vmem:[#allocation5 + $0xc8] sm:$0xff]
    %v145 = vld [vmem:[#allocation5 + $0xd0] sm:$0xff]
    %v146 = vld [vmem:[#allocation5 + $0xd8] sm:$0xff]
    %v147 = vld [vmem:[#allocation5 + $0xe0] sm:$0xff]
    %v148 = vld [vmem:[#allocation5 + $0xe8] sm:$0xff]
    %v149 = vld [vmem:[#allocation5 + $0xf0] sm:$0xff]
    %v150 = vld [vmem:[#allocation5 + $0xf8] sm:$0xff]
    %v151 = vld [vmem:[#allocation5 + $0x100] sm:$0xff]
    %v152 = vld [vmem:[#allocation5 + $0x108] sm:$0xff]
    %v153 = vld [vmem:[#allocation5 + $0x110] sm:$0xff]
    %v154 = vld [vmem:[#allocation5 + $0x118] sm:$0xff]
    %v155 = vld [vmem:[#allocation5 + $0x120] sm:$0xff]
    %v156 = vld [vmem:[#allocation5 + $0x128] sm:$0xff]
    %v157 = vld [vmem:[#allocation5 + $0x130] sm:$0xff]
    %v158 = vld [vmem:[#allocation5 + $0x138] sm:$0xff]
    %v159 = vld [vmem:[#allocation5 + $0x140] sm:$0xff]
    %v160 = vld [vmem:[#allocation5 + $0x148] sm:$0xff]
    %v161 = vld [vmem:[#allocation5 + $0x150] sm:$0xff]
    %v162 = vld [vmem:[#allocation5 + $0x158] sm:$0xff]
    %v163 = vld [vmem:[#allocation5 + $0x160] sm:$0xff]
    %v164 = vld [vmem:[#allocation5 + $0x168] sm:$0xff]
    %v165 = vld [vmem:[#allocation5 + $0x170] sm:$0xff]
    %v166 = vld [vmem:[#allocation5 + $0x178] sm:$0xff]
    %v167 = vld [vmem:[#allocation5 + $0x180] sm:$0xff]
    %v168 = vld [vmem:[#allocation5 + $0x188] sm:$0xff]
    %v169 = vld [vmem:[#allocation5 + $0x190] sm:$0xff]
    %v170 = vld [vmem:[#allocation5 + $0x198] sm:$0xff]
    %v171 = vld [vmem:[#allocation5 + $0x1a0] sm:$0xff]
    %v172 = vld [vmem:[#allocation5 + $0x1a8] sm:$0xff]
    %v173 = vld [vmem:[#allocation5 + $0x1b0] sm:$0xff]
    %v174 = vld [vmem:[#allocation5 + $0x1b8] sm:$0xff]
    %v175 = vld [vmem:[#allocation5 + $0x1c0] sm:$0xff]
    %v176 = vld [vmem:[#allocation5 + $0x1c8] sm:$0xff]
    %v177 = vld [vmem:[#allocation5 + $0x1d0] sm:$0xff]
    %v178 = vld [vmem:[#allocation5 + $0x1d8] sm:$0xff]
    %v179 = vld [vmem:[#allocation5 + $0x1e0] sm:$0xff]
    %v180 = vld [vmem:[#allocation5 + $0x1e8] sm:$0xff]
    %v181 = vld [vmem:[#allocation5 + $0x1f0] sm:$0xff]
    %v182 = vld [vmem:[#allocation5 + $0x1f8] sm:$0xff]
    %v183 = vld [vmem:[#allocation5 + $0x200] sm:$0xff]
    %v184 = vld [vmem:[#allocation5 + $0x208] sm:$0xff]
    %v185 = vld [vmem:[#allocation5 + $0x210] sm:$0xff]
    %v186 = vld [vmem:[#allocation5 + $0x218] sm:$0xff]
    %v187 = vld [vmem:[#allocation5 + $0x220] sm:$0xff]
    %v188 = vld [vmem:[#allocation5 + $0x228] sm:$0xff]
    %v189 = vld [vmem:[#allocation5 + $0x230] sm:$0xff]
    %v190 = vld [vmem:[#allocation5 + $0x238] sm:$0xff]
    %v191 = vld [vmem:[#allocation5 + $0x240] sm:$0xff]
    %v192 = vld [vmem:[#allocation5 + $0x248] sm:$0xff]
    %v193 = vld [vmem:[#allocation5 + $0x250] sm:$0xff]
    %v194 = vld [vmem:[#allocation5 + $0x258] sm:$0xff]
    %v195 = vld [vmem:[#allocation5 + $0x260] sm:$0xff]
    %v196 = vld [vmem:[#allocation5 + $0x268] sm:$0xff]
    %v197 = vld [vmem:[#allocation5 + $0x270] sm:$0xff]
    %v198 = vld [vmem:[#allocation5 + $0x278] sm:$0xff]
    %v199 = vld [vmem:[#allocation5 + $0x280] sm:$0xff]
    %v200 = vld [vmem:[#allocation5 + $0x288] sm:$0xff]
    %v201 = vld [vmem:[#allocation5 + $0x290] sm:$0xff]
    %v202 = vld [vmem:[#allocation5 + $0x298] sm:$0xff]
    %v203 = vld [vmem:[#allocation5 + $0x2a0] sm:$0xff]
    %v204 = vld [vmem:[#allocation5 + $0x2a8] sm:$0xff]
    %v205 = vld [vmem:[#allocation5 + $0x2b0] sm:$0xff]
    %v206 = vld [vmem:[#allocation5 + $0x2b8] sm:$0xff]
    %v207 = vld [vmem:[#allocation5 + $0x2c0] sm:$0xff]
    %v208 = vld [vmem:[#allocation5 + $0x2c8] sm:$0xff]
    %v209 = vld [vmem:[#allocation5 + $0x2d0] sm:$0xff]
    %v210 = vld [vmem:[#allocation5 + $0x2d8] sm:$0xff]
    %v211 = vld [vmem:[#allocation5 + $0x2e0] sm:$0xff]
    %v212 = vld [vmem:[#allocation5 + $0x2e8] sm:$0xff]
    %v213 = vld [vmem:[#allocation5 + $0x2f0] sm:$0xff]
    %v214 = vld [vmem:[#allocation5 + $0x2f8] sm:$0xff]
    %v215 = vld [vmem:[#allocation5 + $0x300] sm:$0xff]
    %v216 = vld [vmem:[#allocation5 + $0x308] sm:$0xff]
    %v217 = vld [vmem:[#allocation5 + $0x310] sm:$0xff]
    %v218 = vld [vmem:[#allocation5 + $0x318] sm:$0xff]
    %v219 = vld [vmem:[#allocation5 + $0x320] sm:$0xff]
    %v220 = vld [vmem:[#allocation5 + $0x328] sm:$0xff]
    %v221 = vld [vmem:[#allocation5 + $0x330] sm:$0xff]
    %v222 = vld [vmem:[#allocation5 + $0x338] sm:$0xff]
    %v223 = vld [vmem:[#allocation5 + $0x340] sm:$0xff]
    %v224 = vld [vmem:[#allocation5 + $0x348] sm:$0xff]
    %v225 = vld [vmem:[#allocation5 + $0x350] sm:$0xff]
    %v226 = vld [vmem:[#allocation5 + $0x358] sm:$0xff]
    %v227 = vld [vmem:[#allocation5 + $0x360] sm:$0xff]
    %v228 = vld [vmem:[#allocation5 + $0x368] sm:$0xff]
    %v229 = vld [vmem:[#allocation5 + $0x370] sm:$0xff]
    %v230 = vld [vmem:[#allocation5 + $0x378] sm:$0xff]
    %v231 = vld [vmem:[#allocation5 + $0x380] sm:$0xff]
    %v232 = vld [vmem:[#allocation5 + $0x388] sm:$0xff]
    %v233 = vld [vmem:[#allocation5 + $0x390] sm:$0xff]
    %v234 = vld [vmem:[#allocation5 + $0x398] sm:$0xff]
    %v235 = vld [vmem:[#allocation5 + $0x3a0] sm:$0xff]
    %v236 = vld [vmem:[#allocation5 + $0x3a8] sm:$0xff]
    %v237 = vld [vmem:[#allocation5 + $0x3b0] sm:$0xff]
    %v238 = vld [vmem:[#allocation5 + $0x3b8] sm:$0xff]
    %v239 = vld [vmem:[#allocation5 + $0x3c0] sm:$0xff]
    %v240 = vld [vmem:[#allocation5 + $0x3c8] sm:$0xff]
    %v241 = vld [vmem:[#allocation5 + $0x3d0] sm:$0xff]
    %v242 = vld [vmem:[#allocation5 + $0x3d8] sm:$0xff]
    %v243 = vld [vmem:[#allocation5 + $0x3e0] sm:$0xff]
    %v244 = vld [vmem:[#allocation5 + $0x3e8] sm:$0xff]
    %v245 = vld [vmem:[#allocation5 + $0x3f0] sm:$0xff]
    %v246 = vld [vmem:[#allocation5 + $0x3f8] sm:$0xff]
    %v247 = vld [vmem:[#allocation5 + $0x400] sm:$0xff]
    %v248 = vld [vmem:[#allocation5 + $0x408] sm:$0xff]
    %v249 = vld [vmem:[#allocation5 + $0x410] sm:$0xff]
    %v250 = vld [vmem:[#allocation5 + $0x418] sm:$0xff]
    %v251 = vld [vmem:[#allocation5 + $0x420] sm:$0xff]
    %v252 = vld [vmem:[#allocation5 + $0x428] sm:$0xff]
    %v253 = vld [vmem:[#allocation5 + $0x430] sm:$0xff]
    %v254 = vld [vmem:[#allocation5 + $0x438] sm:$0xff]
    %v255 = vld [vmem:[#allocation5 + $0x440] sm:$0xff]
    %v256 = vld [vmem:[#allocation5 + $0x448] sm:$0xff]
    %v257 = vld [vmem:[#allocation5 + $0x450] sm:$0xff]
    %v258 = vld [vmem:[#allocation5 + $0x458] sm:$0xff]
    %v259 = vld [vmem:[#allocation5 + $0x460] sm:$0xff]
    %v260 = vld [vmem:[#allocation5 + $0x468] sm:$0xff]
    %v261 = vld [vmem:[#allocation5 + $0x470] sm:$0xff]
    %v262 = vld [vmem:[#allocation5 + $0x478] sm:$0xff]
    %v263 = vld [vmem:[#allocation5 + $0x480] sm:$0xff]
    %v264 = vld [vmem:[#allocation5 + $0x488] sm:$0xff]
    %v265 = vld [vmem:[#allocation5 + $0x490] sm:$0xff]
    %v266 = vld [vmem:[#allocation5 + $0x498] sm:$0xff]
    %v267 = vld [vmem:[#allocation5 + $0x4a0] sm:$0xff]
    %v268 = vld [vmem:[#allocation5 + $0x4a8] sm:$0xff]
    %v269 = vld [vmem:[#allocation5 + $0x4b0] sm:$0xff]
    %v270 = vld [vmem:[#allocation5 + $0x4b8] sm:$0xff]
    %v271 = vld [vmem:[#allocation5 + $0x4c0] sm:$0xff]
    %v272 = vld [vmem:[#allocation5 + $0x4c8] sm:$0xff]
    %v273 = vld [vmem:[#allocation5 + $0x4d0] sm:$0xff]
    %v274 = vld [vmem:[#allocation5 + $0x4d8] sm:$0xff]
    %v275 = vld [vmem:[#allocation5 + $0x4e0] sm:$0xff]
    %v276 = vld [vmem:[#allocation5 + $0x4e8] sm:$0xff]
    %v277 = vld [vmem:[#allocation5 + $0x4f0] sm:$0xff]
    %v278 = vld [vmem:[#allocation5 + $0x4f8] sm:$0xff]
    %v279 = vld [vmem:[#allocation5 + $0x500] sm:$0xff]
    %v280 = vld [vmem:[#allocation5 + $0x508] sm:$0xff]
    %v281 = vld [vmem:[#allocation5 + $0x510] sm:$0xff]
    %v282 = vld [vmem:[#allocation5 + $0x518] sm:$0xff]
    %v283 = vld [vmem:[#allocation5 + $0x520] sm:$0xff]
    %v284 = vld [vmem:[#allocation5 + $0x528] sm:$0xff]
    %v285 = vld [vmem:[#allocation5 + $0x530] sm:$0xff]
    %v286 = vld [vmem:[#allocation5 + $0x538] sm:$0xff]
    %v287 = vld [vmem:[#allocation5 + $0x540] sm:$0xff]
    %v288 = vld [vmem:[#allocation5 + $0x548] sm:$0xff]
    %v289 = vld [vmem:[#allocation5 + $0x550] sm:$0xff]
    %v290 = vld [vmem:[#allocation5 + $0x558] sm:$0xff]
    %v291 = vld [vmem:[#allocation5 + $0x560] sm:$0xff]
    %v292 = vld [vmem:[#allocation5 + $0x568] sm:$0xff]
    %v293 = vld [vmem:[#allocation5 + $0x570] sm:$0xff]
    %v294 = vld [vmem:[#allocation5 + $0x578] sm:$0xff]
    %v295 = vld [vmem:[#allocation5 + $0x580] sm:$0xff]
    %v296 = vld [vmem:[#allocation5 + $0x588] sm:$0xff]
    %v297 = vld [vmem:[#allocation5 + $0x590] sm:$0xff]
    %v298 = vld [vmem:[#allocation5 + $0x598] sm:$0xff]
    %v299 = vld [vmem:[#allocation5 + $0x5a0] sm:$0xff]
    %v300 = vld [vmem:[#allocation5 + $0x5a8] sm:$0xff]
    %v301 = vld [vmem:[#allocation5 + $0x5b0] sm:$0xff]
    %v302 = vld [vmem:[#allocation5 + $0x5b8] sm:$0xff]
    %v303 = vld [vmem:[#allocation5 + $0x5c0] sm:$0xff]
    %v304 = vld [vmem:[#allocation5 + $0x5c8] sm:$0xff]
    %v305 = vld [vmem:[#allocation5 + $0x5d0] sm:$0xff]
    %v306 = vld [vmem:[#allocation5 + $0x5d8] sm:$0xff]
    %v307 = vld [vmem:[#allocation5 + $0x5e0] sm:$0xff]
    %v308 = vld [vmem:[#allocation5 + $0x5e8] sm:$0xff]
    %v309 = vld [vmem:[#allocation5 + $0x5f0] sm:$0xff]
    %v310 = vld [vmem:[#allocation5 + $0x5f8] sm:$0xff]
    %v311 = vld [vmem:[#allocation5 + $0x600] sm:$0xff]
    %v312 = vld [vmem:[#allocation5 + $0x608] sm:$0xff]
    %v313 = vld [vmem:[#allocation5 + $0x610] sm:$0xff]
    %v314 = vld [vmem:[#allocation5 + $0x618] sm:$0xff]
    %v315 = vld [vmem:[#allocation5 + $0x620] sm:$0xff]
    %v316 = vld [vmem:[#allocation5 + $0x628] sm:$0xff]
    %v317 = vld [vmem:[#allocation5 + $0x630] sm:$0xff]
    %v318 = vld [vmem:[#allocation5 + $0x638] sm:$0xff]
    %v319 = vld [vmem:[#allocation5 + $0x640] sm:$0xff]
    %v320 = vld [vmem:[#allocation5 + $0x648] sm:$0xff]
    %v321 = vld [vmem:[#allocation5 + $0x650] sm:$0xff]
    %v322 = vld [vmem:[#allocation5 + $0x658] sm:$0xff]
    %v323 = vld [vmem:[#allocation5 + $0x660] sm:$0xff]
    %v324 = vld [vmem:[#allocation5 + $0x668] sm:$0xff]
    %v325 = vld [vmem:[#allocation5 + $0x670] sm:$0xff]
    %v326 = vld [vmem:[#allocation5 + $0x678] sm:$0xff]
    %v327 = vld [vmem:[#allocation5 + $0x680] sm:$0xff]
    %v328 = vld [vmem:[#allocation5 + $0x688] sm:$0xff]
    %v329 = vld [vmem:[#allocation5 + $0x690] sm:$0xff]
    %v330 = vld [vmem:[#allocation5 + $0x698] sm:$0xff]
    %v331 = vld [vmem:[#allocation5 + $0x6a0] sm:$0xff]
    %v332 = vld [vmem:[#allocation5 + $0x6a8] sm:$0xff]
    %v333 = vld [vmem:[#allocation5 + $0x6b0] sm:$0xff]
    %v334 = vld [vmem:[#allocation5 + $0x6b8] sm:$0xff]
    %v335 = vld [vmem:[#allocation5 + $0x6c0] sm:$0xff]
    %v336 = vld [vmem:[#allocation5 + $0x6c8] sm:$0xff]
    %v337 = vld [vmem:[#allocation5 + $0x6d0] sm:$0xff]
    %v338 = vld [vmem:[#allocation5 + $0x6d8] sm:$0xff]
    %v339 = vld [vmem:[#allocation5 + $0x6e0] sm:$0xff]
    %v340 = vld [vmem:[#allocation5 + $0x6e8] sm:$0xff]
    %v341 = vld [vmem:[#allocation5 + $0x6f0] sm:$0xff]
    %v342 = vld [vmem:[#allocation5 + $0x6f8] sm:$0xff]
    %v343 = vld [vmem:[#allocation5 + $0x700] sm:$0xff]
    %v344 = vld [vmem:[#allocation5 + $0x708] sm:$0xff]
    %v345 = vld [vmem:[#allocation5 + $0x710] sm:$0xff]
    %v346 = vld [vmem:[#allocation5 + $0x718] sm:$0xff]
    %v347 = vld [vmem:[#allocation5 + $0x720] sm:$0xff]
    %v348 = vld [vmem:[#allocation5 + $0x728] sm:$0xff]
    %v349 = vld [vmem:[#allocation5 + $0x730] sm:$0xff]
    %v350 = vld [vmem:[#allocation5 + $0x738] sm:$0xff]
    %v351 = vld [vmem:[#allocation5 + $0x740] sm:$0xff]
    %v352 = vld [vmem:[#allocation5 + $0x748] sm:$0xff]
    %v353 = vld [vmem:[#allocation5 + $0x750] sm:$0xff]
    %v354 = vld [vmem:[#allocation5 + $0x758] sm:$0xff]
    %v355 = vld [vmem:[#allocation5 + $0x760] sm:$0xff]
    %v356 = vld [vmem:[#allocation5 + $0x768] sm:$0xff]
    %v357 = vld [vmem:[#allocation5 + $0x770] sm:$0xff]
    %v358 = vld [vmem:[#allocation5 + $0x778] sm:$0xff]
    %v359 = vld [vmem:[#allocation5 + $0x780] sm:$0xff]
    %v360 = vld [vmem:[#allocation5 + $0x788] sm:$0xff]
    %v361 = vld [vmem:[#allocation5 + $0x790] sm:$0xff]
    %v362 = vld [vmem:[#allocation5 + $0x798] sm:$0xff]
    %v363 = vld [vmem:[#allocation5 + $0x7a0] sm:$0xff]
    %v364 = vld [vmem:[#allocation5 + $0x7a8] sm:$0xff]
    %v365 = vld [vmem:[#allocation5 + $0x7b0] sm:$0xff]
    %v366 = vld [vmem:[#allocation5 + $0x7b8] sm:$0xff]
    %v367 = vld [vmem:[#allocation5 + $0x7c0] sm:$0xff]
    %v368 = vld [vmem:[#allocation5 + $0x7c8] sm:$0xff]
    %v369 = vld [vmem:[#allocation5 + $0x7d0] sm:$0xff]
    %v370 = vld [vmem:[#allocation5 + $0x7d8] sm:$0xff]
    %v371 = vld [vmem:[#allocation5 + $0x7e0] sm:$0xff]
    %v372 = vld [vmem:[#allocation5 + $0x7e8] sm:$0xff]
    %v373 = vld [vmem:[#allocation5 + $0x7f0] sm:$0xff]
    %v374 = vld [vmem:[#allocation5 + $0x7f8] sm:$0xff]
    %v375 = vld [vmem:[#allocation5 + $0x800] sm:$0xff]
    %v376 = vld [vmem:[#allocation5 + $0x808] sm:$0xff]
    %v377 = vld [vmem:[#allocation5 + $0x810] sm:$0xff]
    %v378 = vld [vmem:[#allocation5 + $0x818] sm:$0xff]
    %v379 = vld [vmem:[#allocation5 + $0x820] sm:$0xff]
    %v380 = vld [vmem:[#allocation5 + $0x828] sm:$0xff]
    %v381 = vld [vmem:[#allocation5 + $0x830] sm:$0xff]
    %v382 = vld [vmem:[#allocation5 + $0x838] sm:$0xff]
    %v383 = vld [vmem:[#allocation5 + $0x840] sm:$0xff]
    %v384 = vld [vmem:[#allocation5 + $0x848] sm:$0xff]
    %v385 = vld [vmem:[#allocation5 + $0x850] sm:$0xff]
    %v386 = vld [vmem:[#allocation5 + $0x858] sm:$0xff]
    %v387 = vld [vmem:[#allocation5 + $0x860] sm:$0xff]
    %v388 = vld [vmem:[#allocation5 + $0x868] sm:$0xff]
    %v389 = vld [vmem:[#allocation5 + $0x870] sm:$0xff]
    %v390 = vld [vmem:[#allocation5 + $0x878] sm:$0xff]
    %v391 = vld [vmem:[#allocation5 + $0x880] sm:$0xff]
    %v392 = vld [vmem:[#allocation5 + $0x888] sm:$0xff]
    %v393 = vld [vmem:[#allocation5 + $0x890] sm:$0xff]
    %v394 = vld [vmem:[#allocation5 + $0x898] sm:$0xff]
    %v395 = vld [vmem:[#allocation5 + $0x8a0] sm:$0xff]
    %v396 = vld [vmem:[#allocation5 + $0x8a8] sm:$0xff]
    %v397 = vld [vmem:[#allocation5 + $0x8b0] sm:$0xff]
    %v398 = vld [vmem:[#allocation5 + $0x8b8] sm:$0xff]
    %v399 = vld [vmem:[#allocation5 + $0x8c0] sm:$0xff]
    %v400 = vld [vmem:[#allocation5 + $0x8c8] sm:$0xff]
    %v401 = vld [vmem:[#allocation5 + $0x8d0] sm:$0xff]
    %v402 = vld [vmem:[#allocation5 + $0x8d8] sm:$0xff]
    %v403 = vld [vmem:[#allocation5 + $0x8e0] sm:$0xff]
    %v404 = vld [vmem:[#allocation5 + $0x8e8] sm:$0xff]
    %v405 = vld [vmem:[#allocation5 + $0x8f0] sm:$0xff]
    %v406 = vld [vmem:[#allocation5 + $0x8f8] sm:$0xff]
    %v407 = vld [vmem:[#allocation5 + $0x900] sm:$0xff]
    %v408 = vld [vmem:[#allocation5 + $0x908] sm:$0xff]
    %v409 = vld [vmem:[#allocation5 + $0x910] sm:$0xff]
    %v410 = vld [vmem:[#allocation5 + $0x918] sm:$0xff]
    %v411 = vld [vmem:[#allocation5 + $0x920] sm:$0xff]
    %v412 = vld [vmem:[#allocation5 + $0x928] sm:$0xff]
    %v413 = vld [vmem:[#allocation5 + $0x930] sm:$0xff]
    %v414 = vld [vmem:[#allocation5 + $0x938] sm:$0xff]
    %v415 = vld [vmem:[#allocation5 + $0x940] sm:$0xff]
    %v416 = vld [vmem:[#allocation5 + $0x948] sm:$0xff]
    %v417 = vld [vmem:[#allocation5 + $0x950] sm:$0xff]
    %v418 = vld [vmem:[#allocation5 + $0x958] sm:$0xff]
    %v419 = vld [vmem:[#allocation5 + $0x960] sm:$0xff]
    %v420 = vld [vmem:[#allocation5 + $0x968] sm:$0xff]
    %v421 = vld [vmem:[#allocation5 + $0x970] sm:$0xff]
    %v422 = vld [vmem:[#allocation5 + $0x978] sm:$0xff]
    %v423 = vld [vmem:[#allocation5 + $0x980] sm:$0xff]
    %v424 = vld [vmem:[#allocation5 + $0x988] sm:$0xff]
    %v425 = vld [vmem:[#allocation5 + $0x990] sm:$0xff]
    %v426 = vld [vmem:[#allocation5 + $0x998] sm:$0xff]
    %v427 = vld [vmem:[#allocation5 + $0x9a0] sm:$0xff]
    %v428 = vld [vmem:[#allocation5 + $0x9a8] sm:$0xff]
    %v429 = vld [vmem:[#allocation5 + $0x9b0] sm:$0xff]
    %v430 = vld [vmem:[#allocation5 + $0x9b8] sm:$0xff]
    %v431 = vld [vmem:[#allocation5 + $0x9c0] sm:$0xff]
    %v432 = vld [vmem:[#allocation5 + $0x9c8] sm:$0xff]
    %v433 = vld [vmem:[#allocation5 + $0x9d0] sm:$0xff]
    %v434 = vld [vmem:[#allocation5 + $0x9d8] sm:$0xff]
    %v435 = vld [vmem:[#allocation5 + $0x9e0] sm:$0xff]
    %v436 = vld [vmem:[#allocation5 + $0x9e8] sm:$0xff]
    %v437 = vld [vmem:[#allocation5 + $0x9f0] sm:$0xff]
    %v438 = vld [vmem:[#allocation5 + $0x9f8] sm:$0xff]
    %v439 = vld [vmem:[#allocation5 + $0xa00] sm:$0xff]
    %v440 = vld [vmem:[#allocation5 + $0xa08] sm:$0xff]
    %v441 = vld [vmem:[#allocation5 + $0xa10] sm:$0xff]
    %v442 = vld [vmem:[#allocation5 + $0xa18] sm:$0xff]
    %v443 = vld [vmem:[#allocation5 + $0xa20] sm:$0xff]
    %v444 = vld [vmem:[#allocation5 + $0xa28] sm:$0xff]
    %v445 = vld [vmem:[#allocation5 + $0xa30] sm:$0xff]
    %v446 = vld [vmem:[#allocation5 + $0xa38] sm:$0xff]
    %v447 = vld [vmem:[#allocation5 + $0xa40] sm:$0xff]
    %v448 = vld [vmem:[#allocation5 + $0xa48] sm:$0xff]
    %v449 = vld [vmem:[#allocation5 + $0xa50] sm:$0xff]
    %v450 = vld [vmem:[#allocation5 + $0xa58] sm:$0xff]
    %v451 = vld [vmem:[#allocation5 + $0xa60] sm:$0xff]
    %v452 = vld [vmem:[#allocation5 + $0xa68] sm:$0xff]
    %v453 = vld [vmem:[#allocation5 + $0xa70] sm:$0xff]
    %v454 = vld [vmem:[#allocation5 + $0xa78] sm:$0xff]
    %v455 = vld [vmem:[#allocation5 + $0xa80] sm:$0xff]
    %v456 = vld [vmem:[#allocation5 + $0xa88] sm:$0xff]
    %v457 = vld [vmem:[#allocation5 + $0xa90] sm:$0xff]
    %v458 = vld [vmem:[#allocation5 + $0xa98] sm:$0xff]
    %v459 = vld [vmem:[#allocation5 + $0xaa0] sm:$0xff]
    %v460 = vld [vmem:[#allocation5 + $0xaa8] sm:$0xff]
    %v461 = vld [vmem:[#allocation5 + $0xab0] sm:$0xff]
    %v462 = vld [vmem:[#allocation5 + $0xab8] sm:$0xff]
    %v463 = vld [vmem:[#allocation5 + $0xac0] sm:$0xff]
    %v464 = vld [vmem:[#allocation5 + $0xac8] sm:$0xff]
    %v465 = vld [vmem:[#allocation5 + $0xad0] sm:$0xff]
    %v466 = vld [vmem:[#allocation5 + $0xad8] sm:$0xff]
    %v467 = vld [vmem:[#allocation5 + $0xae0] sm:$0xff]
    %v468 = vld [vmem:[#allocation5 + $0xae8] sm:$0xff]
    %v469 = vld [vmem:[#allocation5 + $0xaf0] sm:$0xff]
    %v470 = vld [vmem:[#allocation5 + $0xaf8] sm:$0xff]
    %v471 = vld [vmem:[#allocation5 + $0xb00] sm:$0xff]
    %v472 = vld [vmem:[#allocation5 + $0xb08] sm:$0xff]
    %v473 = vld [vmem:[#allocation5 + $0xb10] sm:$0xff]
    %v474 = vld [vmem:[#allocation5 + $0xb18] sm:$0xff]
    %v475 = vld [vmem:[#allocation5 + $0xb20] sm:$0xff]
    %v476 = vld [vmem:[#allocation5 + $0xb28] sm:$0xff]
    %v477 = vld [vmem:[#allocation5 + $0xb30] sm:$0xff]
    %v478 = vld [vmem:[#allocation5 + $0xb38] sm:$0xff]
    %v479 = vld [vmem:[#allocation5 + $0xb40] sm:$0xff]
    %v480 = vld [vmem:[#allocation5 + $0xb48] sm:$0xff]
    %v481 = vld [vmem:[#allocation5 + $0xb50] sm:$0xff]
    %v482 = vld [vmem:[#allocation5 + $0xb58] sm:$0xff]
    %v483 = vld [vmem:[#allocation5 + $0xb60] sm:$0xff]
    %v484 = vld [vmem:[#allocation5 + $0xb68] sm:$0xff]
    %v485 = vld [vmem:[#allocation5 + $0xb70] sm:$0xff]
    %v486 = vld [vmem:[#allocation5 + $0xb78] sm:$0xff]
    %v487 = vld [vmem:[#allocation5 + $0xb80] sm:$0xff]
    %v488 = vld [vmem:[#allocation5 + $0xb88] sm:$0xff]
    %v489 = vld [vmem:[#allocation5 + $0xb90] sm:$0xff]
    %v490 = vld [vmem:[#allocation5 + $0xb98] sm:$0xff]
    %v491 = vld [vmem:[#allocation5 + $0xba0] sm:$0xff]
    %v492 = vld [vmem:[#allocation5 + $0xba8] sm:$0xff]
    %v493 = vld [vmem:[#allocation5 + $0xbb0] sm:$0xff]
    %v494 = vld [vmem:[#allocation5 + $0xbb8] sm:$0xff]
    %v495 = vld [vmem:[#allocation5 + $0xbc0] sm:$0xff]
    %v496 = vld [vmem:[#allocation5 + $0xbc8] sm:$0xff]
    %v497 = vld [vmem:[#allocation5 + $0xbd0] sm:$0xff]
    %v498 = vld [vmem:[#allocation5 + $0xbd8] sm:$0xff]
    %v499 = vld [vmem:[#allocation5 + $0xbe0] sm:$0xff]
    %v500 = vld [vmem:[#allocation5 + $0xbe8] sm:$0xff]
    %v501 = vld [vmem:[#allocation5 + $0xbf0] sm:$0xff]
    %v502 = vld [vmem:[#allocation5 + $0xbf8] sm:$0xff]
    %v503 = vld [vmem:[#allocation7] sm:$0x3f]
    %v505 = vlaneseq
    %v506 = vshrl.u32 %v505, 7
    %v507 = vsub.s32 0, %v506
    %v508 = vrot.slane %v503, %v507
    %v509 = vlaneseq
    %v510 = vshrl.u32 %v509, 7
    %v511 = vsub.s32 1, %v510
    %v512 = vrot.slane %v503, %v511
    %v513 = vlaneseq
    %v514 = vshrl.u32 %v513, 7
    %v515 = vsub.s32 2, %v514
    %v516 = vrot.slane %v503, %v515
    %v517 = vlaneseq
    %v518 = vshrl.u32 %v517, 7
    %v519 = vsub.s32 3, %v518
    %v520 = vrot.slane %v503, %v519
    %v521 = vlaneseq
    %v522 = vshrl.u32 %v521, 7
    %v523 = vsub.s32 4, %v522
    %v524 = vrot.slane %v503, %v523
    %v525 = vlaneseq
    %v526 = vshrl.u32 %v525, 7
    %v527 = vsub.s32 5, %v526
    %v528 = vrot.slane %v503, %v527
    %v539 = vunpack.c.l.b16 %v115
    %v540 = vunpack.c.h.b16 %v115
    %v541 = vunpack.c.l.b16 %v116
    %v542 = vunpack.c.h.b16 %v116
    %v543 = vunpack.c.l.b16 %v117
    %v544 = vunpack.c.h.b16 %v117
    %v545 = vunpack.c.l.b16 %v118
    %v546 = vunpack.c.h.b16 %v118
    %v547 = vpack.c.b16 %v539, %v539
    %v548 = vpack.c.b16 %v540, %v540
    %v549 = vpack.c.b16 %v541, %v541
    %v550 = vpack.c.b16 %v542, %v542
    %v551 = vpack.c.b16 %v543, %v543
    %v552 = vpack.c.b16 %v544, %v544
    %v553 = vpack.c.b16 %v545, %v545
    %v554 = vpack.c.b16 %v546, %v546
    %v947 = vunpack.c.l.b16 %v119
    %v948 = vunpack.c.h.b16 %v119
    %v949 = vunpack.c.l.b16 %v120
    %v950 = vunpack.c.h.b16 %v120
    %v951 = vunpack.c.l.b16 %v121
    %v952 = vunpack.c.h.b16 %v121
    %v953 = vunpack.c.l.b16 %v122
    %v954 = vunpack.c.h.b16 %v122
    %v955 = vunpack.c.l.b16 %v123
    %v956 = vunpack.c.h.b16 %v123
    %v957 = vunpack.c.l.b16 %v124
    %v958 = vunpack.c.h.b16 %v124
    %v959 = vunpack.c.l.b16 %v125
    %v960 = vunpack.c.h.b16 %v125
    %v961 = vunpack.c.l.b16 %v126
    %v962 = vunpack.c.h.b16 %v126
    %v963 = vunpack.c.l.b16 %v127
    %v964 = vunpack.c.h.b16 %v127
    %v965 = vunpack.c.l.b16 %v128
    %v966 = vunpack.c.h.b16 %v128
    %v967 = vunpack.c.l.b16 %v129
    %v968 = vunpack.c.h.b16 %v129
    %v969 = vunpack.c.l.b16 %v130
    %v970 = vunpack.c.h.b16 %v130
    %v971 = vunpack.c.l.b16 %v131
    %v972 = vunpack.c.h.b16 %v131
    %v973 = vunpack.c.l.b16 %v132
    %v974 = vunpack.c.h.b16 %v132
    %v975 = vunpack.c.l.b16 %v133
    %v976 = vunpack.c.h.b16 %v133
    %v977 = vunpack.c.l.b16 %v134
    %v978 = vunpack.c.h.b16 %v134
    %v979 = vunpack.c.l.b16 %v135
    %v980 = vunpack.c.h.b16 %v135
    %v981 = vunpack.c.l.b16 %v136
    %v982 = vunpack.c.h.b16 %v136
    %v983 = vunpack.c.l.b16 %v137
    %v984 = vunpack.c.h.b16 %v137
    %v985 = vunpack.c.l.b16 %v138
    %v986 = vunpack.c.h.b16 %v138
    %v987 = vunpack.c.l.b16 %v139
    %v988 = vunpack.c.h.b16 %v139
    %v989 = vunpack.c.l.b16 %v140
    %v990 = vunpack.c.h.b16 %v140
    %v991 = vunpack.c.l.b16 %v141
    %v992 = vunpack.c.h.b16 %v141
    %v993 = vunpack.c.l.b16 %v142
    %v994 = vunpack.c.h.b16 %v142
    %v995 = vunpack.c.l.b16 %v143
    %v996 = vunpack.c.h.b16 %v143
    %v997 = vunpack.c.l.b16 %v144
    %v998 = vunpack.c.h.b16 %v144
    %v999 = vunpack.c.l.b16 %v145
    %v1000 = vunpack.c.h.b16 %v145
    %v1001 = vunpack.c.l.b16 %v146
    %v1002 = vunpack.c.h.b16 %v146
    %v1003 = vunpack.c.l.b16 %v147
    %v1004 = vunpack.c.h.b16 %v147
    %v1005 = vunpack.c.l.b16 %v148
    %v1006 = vunpack.c.h.b16 %v148
    %v1007 = vunpack.c.l.b16 %v149
    %v1008 = vunpack.c.h.b16 %v149
    %v1009 = vunpack.c.l.b16 %v150
    %v1010 = vunpack.c.h.b16 %v150
    %v1011 = vunpack.c.l.b16 %v151
    %v1012 = vunpack.c.h.b16 %v151
    %v1013 = vunpack.c.l.b16 %v152
    %v1014 = vunpack.c.h.b16 %v152
    %v1015 = vunpack.c.l.b16 %v153
    %v1016 = vunpack.c.h.b16 %v153
    %v1017 = vunpack.c.l.b16 %v154
    %v1018 = vunpack.c.h.b16 %v154
    %v1019 = vunpack.c.l.b16 %v155
    %v1020 = vunpack.c.h.b16 %v155
    %v1021 = vunpack.c.l.b16 %v156
    %v1022 = vunpack.c.h.b16 %v156
    %v1023 = vunpack.c.l.b16 %v157
    %v1024 = vunpack.c.h.b16 %v157
    %v1025 = vunpack.c.l.b16 %v158
    %v1026 = vunpack.c.h.b16 %v158
    %v1027 = vunpack.c.l.b16 %v159
    %v1028 = vunpack.c.h.b16 %v159
    %v1029 = vunpack.c.l.b16 %v160
    %v1030 = vunpack.c.h.b16 %v160
    %v1031 = vunpack.c.l.b16 %v161
    %v1032 = vunpack.c.h.b16 %v161
    %v1033 = vunpack.c.l.b16 %v162
    %v1034 = vunpack.c.h.b16 %v162
    %v1035 = vunpack.c.l.b16 %v163
    %v1036 = vunpack.c.h.b16 %v163
    %v1037 = vunpack.c.l.b16 %v164
    %v1038 = vunpack.c.h.b16 %v164
    %v1039 = vunpack.c.l.b16 %v165
    %v1040 = vunpack.c.h.b16 %v165
    %v1041 = vunpack.c.l.b16 %v166
    %v1042 = vunpack.c.h.b16 %v166
    %v1043 = vunpack.c.l.b16 %v167
    %v1044 = vunpack.c.h.b16 %v167
    %v1045 = vunpack.c.l.b16 %v168
    %v1046 = vunpack.c.h.b16 %v168
    %v1047 = vunpack.c.l.b16 %v169
    %v1048 = vunpack.c.h.b16 %v169
    %v1049 = vunpack.c.l.b16 %v170
    %v1050 = vunpack.c.h.b16 %v170
    %v1051 = vunpack.c.l.b16 %v171
    %v1052 = vunpack.c.h.b16 %v171
    %v1053 = vunpack.c.l.b16 %v172
    %v1054 = vunpack.c.h.b16 %v172
    %v1055 = vunpack.c.l.b16 %v173
    %v1056 = vunpack.c.h.b16 %v173
    %v1057 = vunpack.c.l.b16 %v174
    %v1058 = vunpack.c.h.b16 %v174
    %v1059 = vunpack.c.l.b16 %v175
    %v1060 = vunpack.c.h.b16 %v175
    %v1061 = vunpack.c.l.b16 %v176
    %v1062 = vunpack.c.h.b16 %v176
    %v1063 = vunpack.c.l.b16 %v177
    %v1064 = vunpack.c.h.b16 %v177
    %v1065 = vunpack.c.l.b16 %v178
    %v1066 = vunpack.c.h.b16 %v178
    %v1067 = vunpack.c.l.b16 %v179
    %v1068 = vunpack.c.h.b16 %v179
    %v1069 = vunpack.c.l.b16 %v180
    %v1070 = vunpack.c.h.b16 %v180
    %v1071 = vunpack.c.l.b16 %v181
    %v1072 = vunpack.c.h.b16 %v181
    %v1073 = vunpack.c.l.b16 %v182
    %v1074 = vunpack.c.h.b16 %v182
    %v1075 = vunpack.c.l.b16 %v183
    %v1076 = vunpack.c.h.b16 %v183
    %v1077 = vunpack.c.l.b16 %v184
    %v1078 = vunpack.c.h.b16 %v184
    %v1079 = vunpack.c.l.b16 %v185
    %v1080 = vunpack.c.h.b16 %v185
    %v1081 = vunpack.c.l.b16 %v186
    %v1082 = vunpack.c.h.b16 %v186
    %v1083 = vunpack.c.l.b16 %v187
    %v1084 = vunpack.c.h.b16 %v187
    %v1085 = vunpack.c.l.b16 %v188
    %v1086 = vunpack.c.h.b16 %v188
    %v1087 = vunpack.c.l.b16 %v189
    %v1088 = vunpack.c.h.b16 %v189
    %v1089 = vunpack.c.l.b16 %v190
    %v1090 = vunpack.c.h.b16 %v190
    %v1091 = vunpack.c.l.b16 %v191
    %v1092 = vunpack.c.h.b16 %v191
    %v1093 = vunpack.c.l.b16 %v192
    %v1094 = vunpack.c.h.b16 %v192
    %v1095 = vunpack.c.l.b16 %v193
    %v1096 = vunpack.c.h.b16 %v193
    %v1097 = vunpack.c.l.b16 %v194
    %v1098 = vunpack.c.h.b16 %v194
    %v1099 = vunpack.c.l.b16 %v195
    %v1100 = vunpack.c.h.b16 %v195
    %v1101 = vunpack.c.l.b16 %v196
    %v1102 = vunpack.c.h.b16 %v196
    %v1103 = vunpack.c.l.b16 %v197
    %v1104 = vunpack.c.h.b16 %v197
    %v1105 = vunpack.c.l.b16 %v198
    %v1106 = vunpack.c.h.b16 %v198
    %v1107 = vunpack.c.l.b16 %v199
    %v1108 = vunpack.c.h.b16 %v199
    %v1109 = vunpack.c.l.b16 %v200
    %v1110 = vunpack.c.h.b16 %v200
    %v1111 = vunpack.c.l.b16 %v201
    %v1112 = vunpack.c.h.b16 %v201
    %v1113 = vunpack.c.l.b16 %v202
    %v1114 = vunpack.c.h.b16 %v202
    %v1115 = vunpack.c.l.b16 %v203
    %v1116 = vunpack.c.h.b16 %v203
    %v1117 = vunpack.c.l.b16 %v204
    %v1118 = vunpack.c.h.b16 %v204
    %v1119 = vunpack.c.l.b16 %v205
    %v1120 = vunpack.c.h.b16 %v205
    %v1121 = vunpack.c.l.b16 %v206
    %v1122 = vunpack.c.h.b16 %v206
    %v1123 = vunpack.c.l.b16 %v207
    %v1124 = vunpack.c.h.b16 %v207
    %v1125 = vunpack.c.l.b16 %v208
    %v1126 = vunpack.c.h.b16 %v208
    %v1127 = vunpack.c.l.b16 %v209
    %v1128 = vunpack.c.h.b16 %v209
    %v1129 = vunpack.c.l.b16 %v210
    %v1130 = vunpack.c.h.b16 %v210
    %v1131 = vunpack.c.l.b16 %v211
    %v1132 = vunpack.c.h.b16 %v211
    %v1133 = vunpack.c.l.b16 %v212
    %v1134 = vunpack.c.h.b16 %v212
    %v1135 = vunpack.c.l.b16 %v213
    %v1136 = vunpack.c.h.b16 %v213
    %v1137 = vunpack.c.l.b16 %v214
    %v1138 = vunpack.c.h.b16 %v214
    %v1139 = vunpack.c.l.b16 %v215
    %v1140 = vunpack.c.h.b16 %v215
    %v1141 = vunpack.c.l.b16 %v216
    %v1142 = vunpack.c.h.b16 %v216
    %v1143 = vunpack.c.l.b16 %v217
    %v1144 = vunpack.c.h.b16 %v217
    %v1145 = vunpack.c.l.b16 %v218
    %v1146 = vunpack.c.h.b16 %v218
    %v1147 = vunpack.c.l.b16 %v219
    %v1148 = vunpack.c.h.b16 %v219
    %v1149 = vunpack.c.l.b16 %v220
    %v1150 = vunpack.c.h.b16 %v220
    %v1151 = vunpack.c.l.b16 %v221
    %v1152 = vunpack.c.h.b16 %v221
    %v1153 = vunpack.c.l.b16 %v222
    %v1154 = vunpack.c.h.b16 %v222
    %v1155 = vunpack.c.l.b16 %v223
    %v1156 = vunpack.c.h.b16 %v223
    %v1157 = vunpack.c.l.b16 %v224
    %v1158 = vunpack.c.h.b16 %v224
    %v1159 = vunpack.c.l.b16 %v225
    %v1160 = vunpack.c.h.b16 %v225
    %v1161 = vunpack.c.l.b16 %v226
    %v1162 = vunpack.c.h.b16 %v226
    %v1163 = vunpack.c.l.b16 %v227
    %v1164 = vunpack.c.h.b16 %v227
    %v1165 = vunpack.c.l.b16 %v228
    %v1166 = vunpack.c.h.b16 %v228
    %v1167 = vunpack.c.l.b16 %v229
    %v1168 = vunpack.c.h.b16 %v229
    %v1169 = vunpack.c.l.b16 %v230
    %v1170 = vunpack.c.h.b16 %v230
    %v1171 = vunpack.c.l.b16 %v231
    %v1172 = vunpack.c.h.b16 %v231
    %v1173 = vunpack.c.l.b16 %v232
    %v1174 = vunpack.c.h.b16 %v232
    %v1175 = vunpack.c.l.b16 %v233
    %v1176 = vunpack.c.h.b16 %v233
    %v1177 = vunpack.c.l.b16 %v234
    %v1178 = vunpack.c.h.b16 %v234
    %v1179 = vunpack.c.l.b16 %v235
    %v1180 = vunpack.c.h.b16 %v235
    %v1181 = vunpack.c.l.b16 %v236
    %v1182 = vunpack.c.h.b16 %v236
    %v1183 = vunpack.c.l.b16 %v237
    %v1184 = vunpack.c.h.b16 %v237
    %v1185 = vunpack.c.l.b16 %v238
    %v1186 = vunpack.c.h.b16 %v238
    %v1187 = vunpack.c.l.b16 %v239
    %v1188 = vunpack.c.h.b16 %v239
    %v1189 = vunpack.c.l.b16 %v240
    %v1190 = vunpack.c.h.b16 %v240
    %v1191 = vunpack.c.l.b16 %v241
    %v1192 = vunpack.c.h.b16 %v241
    %v1193 = vunpack.c.l.b16 %v242
    %v1194 = vunpack.c.h.b16 %v242
    %v1195 = vunpack.c.l.b16 %v243
    %v1196 = vunpack.c.h.b16 %v243
    %v1197 = vunpack.c.l.b16 %v244
    %v1198 = vunpack.c.h.b16 %v244
    %v1199 = vunpack.c.l.b16 %v245
    %v1200 = vunpack.c.h.b16 %v245
    %v1201 = vunpack.c.l.b16 %v246
    %v1202 = vunpack.c.h.b16 %v246
    %v1203 = vunpack.c.l.b16 %v247
    %v1204 = vunpack.c.h.b16 %v247
    %v1205 = vunpack.c.l.b16 %v248
    %v1206 = vunpack.c.h.b16 %v248
    %v1207 = vunpack.c.l.b16 %v249
    %v1208 = vunpack.c.h.b16 %v249
    %v1209 = vunpack.c.l.b16 %v250
    %v1210 = vunpack.c.h.b16 %v250
    %v1211 = vunpack.c.l.b16 %v251
    %v1212 = vunpack.c.h.b16 %v251
    %v1213 = vunpack.c.l.b16 %v252
    %v1214 = vunpack.c.h.b16 %v252
    %v1215 = vunpack.c.l.b16 %v253
    %v1216 = vunpack.c.h.b16 %v253
    %v1217 = vunpack.c.l.b16 %v254
    %v1218 = vunpack.c.h.b16 %v254
    %v1219 = vunpack.c.l.b16 %v255
    %v1220 = vunpack.c.h.b16 %v255
    %v1221 = vunpack.c.l.b16 %v256
    %v1222 = vunpack.c.h.b16 %v256
    %v1223 = vunpack.c.l.b16 %v257
    %v1224 = vunpack.c.h.b16 %v257
    %v1225 = vunpack.c.l.b16 %v258
    %v1226 = vunpack.c.h.b16 %v258
    %v1227 = vunpack.c.l.b16 %v259
    %v1228 = vunpack.c.h.b16 %v259
    %v1229 = vunpack.c.l.b16 %v260
    %v1230 = vunpack.c.h.b16 %v260
    %v1231 = vunpack.c.l.b16 %v261
    %v1232 = vunpack.c.h.b16 %v261
    %v1233 = vunpack.c.l.b16 %v262
    %v1234 = vunpack.c.h.b16 %v262
    %v1235 = vunpack.c.l.b16 %v263
    %v1236 = vunpack.c.h.b16 %v263
    %v1237 = vunpack.c.l.b16 %v264
    %v1238 = vunpack.c.h.b16 %v264
    %v1239 = vunpack.c.l.b16 %v265
    %v1240 = vunpack.c.h.b16 %v265
    %v1241 = vunpack.c.l.b16 %v266
    %v1242 = vunpack.c.h.b16 %v266
    %v1243 = vunpack.c.l.b16 %v267
    %v1244 = vunpack.c.h.b16 %v267
    %v1245 = vunpack.c.l.b16 %v268
    %v1246 = vunpack.c.h.b16 %v268
    %v1247 = vunpack.c.l.b16 %v269
    %v1248 = vunpack.c.h.b16 %v269
    %v1249 = vunpack.c.l.b16 %v270
    %v1250 = vunpack.c.h.b16 %v270
    %v1251 = vunpack.c.l.b16 %v271
    %v1252 = vunpack.c.h.b16 %v271
    %v1253 = vunpack.c.l.b16 %v272
    %v1254 = vunpack.c.h.b16 %v272
    %v1255 = vunpack.c.l.b16 %v273
    %v1256 = vunpack.c.h.b16 %v273
    %v1257 = vunpack.c.l.b16 %v274
    %v1258 = vunpack.c.h.b16 %v274
    %v1259 = vunpack.c.l.b16 %v275
    %v1260 = vunpack.c.h.b16 %v275
    %v1261 = vunpack.c.l.b16 %v276
    %v1262 = vunpack.c.h.b16 %v276
    %v1263 = vunpack.c.l.b16 %v277
    %v1264 = vunpack.c.h.b16 %v277
    %v1265 = vunpack.c.l.b16 %v278
    %v1266 = vunpack.c.h.b16 %v278
    %v1267 = vunpack.c.l.b16 %v279
    %v1268 = vunpack.c.h.b16 %v279
    %v1269 = vunpack.c.l.b16 %v280
    %v1270 = vunpack.c.h.b16 %v280
    %v1271 = vunpack.c.l.b16 %v281
    %v1272 = vunpack.c.h.b16 %v281
    %v1273 = vunpack.c.l.b16 %v282
    %v1274 = vunpack.c.h.b16 %v282
    %v1275 = vunpack.c.l.b16 %v283
    %v1276 = vunpack.c.h.b16 %v283
    %v1277 = vunpack.c.l.b16 %v284
    %v1278 = vunpack.c.h.b16 %v284
    %v1279 = vunpack.c.l.b16 %v285
    %v1280 = vunpack.c.h.b16 %v285
    %v1281 = vunpack.c.l.b16 %v286
    %v1282 = vunpack.c.h.b16 %v286
    %v1283 = vunpack.c.l.b16 %v287
    %v1284 = vunpack.c.h.b16 %v287
    %v1285 = vunpack.c.l.b16 %v288
    %v1286 = vunpack.c.h.b16 %v288
    %v1287 = vunpack.c.l.b16 %v289
    %v1288 = vunpack.c.h.b16 %v289
    %v1289 = vunpack.c.l.b16 %v290
    %v1290 = vunpack.c.h.b16 %v290
    %v1291 = vunpack.c.l.b16 %v291
    %v1292 = vunpack.c.h.b16 %v291
    %v1293 = vunpack.c.l.b16 %v292
    %v1294 = vunpack.c.h.b16 %v292
    %v1295 = vunpack.c.l.b16 %v293
    %v1296 = vunpack.c.h.b16 %v293
    %v1297 = vunpack.c.l.b16 %v294
    %v1298 = vunpack.c.h.b16 %v294
    %v1299 = vunpack.c.l.b16 %v295
    %v1300 = vunpack.c.h.b16 %v295
    %v1301 = vunpack.c.l.b16 %v296
    %v1302 = vunpack.c.h.b16 %v296
    %v1303 = vunpack.c.l.b16 %v297
    %v1304 = vunpack.c.h.b16 %v297
    %v1305 = vunpack.c.l.b16 %v298
    %v1306 = vunpack.c.h.b16 %v298
    %v1307 = vunpack.c.l.b16 %v299
    %v1308 = vunpack.c.h.b16 %v299
    %v1309 = vunpack.c.l.b16 %v300
    %v1310 = vunpack.c.h.b16 %v300
    %v1311 = vunpack.c.l.b16 %v301
    %v1312 = vunpack.c.h.b16 %v301
    %v1313 = vunpack.c.l.b16 %v302
    %v1314 = vunpack.c.h.b16 %v302
    %v1315 = vunpack.c.l.b16 %v303
    %v1316 = vunpack.c.h.b16 %v303
    %v1317 = vunpack.c.l.b16 %v304
    %v1318 = vunpack.c.h.b16 %v304
    %v1319 = vunpack.c.l.b16 %v305
    %v1320 = vunpack.c.h.b16 %v305
    %v1321 = vunpack.c.l.b16 %v306
    %v1322 = vunpack.c.h.b16 %v306
    %v1323 = vunpack.c.l.b16 %v307
    %v1324 = vunpack.c.h.b16 %v307
    %v1325 = vunpack.c.l.b16 %v308
    %v1326 = vunpack.c.h.b16 %v308
    %v1327 = vunpack.c.l.b16 %v309
    %v1328 = vunpack.c.h.b16 %v309
    %v1329 = vunpack.c.l.b16 %v310
    %v1330 = vunpack.c.h.b16 %v310
    %v1331 = vunpack.c.l.b16 %v311
    %v1332 = vunpack.c.h.b16 %v311
    %v1333 = vunpack.c.l.b16 %v312
    %v1334 = vunpack.c.h.b16 %v312
    %v1335 = vunpack.c.l.b16 %v313
    %v1336 = vunpack.c.h.b16 %v313
    %v1337 = vunpack.c.l.b16 %v314
    %v1338 = vunpack.c.h.b16 %v314
    %v1339 = vunpack.c.l.b16 %v315
    %v1340 = vunpack.c.h.b16 %v315
    %v1341 = vunpack.c.l.b16 %v316
    %v1342 = vunpack.c.h.b16 %v316
    %v1343 = vunpack.c.l.b16 %v317
    %v1344 = vunpack.c.h.b16 %v317
    %v1345 = vunpack.c.l.b16 %v318
    %v1346 = vunpack.c.h.b16 %v318
    %v1347 = vunpack.c.l.b16 %v319
    %v1348 = vunpack.c.h.b16 %v319
    %v1349 = vunpack.c.l.b16 %v320
    %v1350 = vunpack.c.h.b16 %v320
    %v1351 = vunpack.c.l.b16 %v321
    %v1352 = vunpack.c.h.b16 %v321
    %v1353 = vunpack.c.l.b16 %v322
    %v1354 = vunpack.c.h.b16 %v322
    %v1355 = vunpack.c.l.b16 %v323
    %v1356 = vunpack.c.h.b16 %v323
    %v1357 = vunpack.c.l.b16 %v324
    %v1358 = vunpack.c.h.b16 %v324
    %v1359 = vunpack.c.l.b16 %v325
    %v1360 = vunpack.c.h.b16 %v325
    %v1361 = vunpack.c.l.b16 %v326
    %v1362 = vunpack.c.h.b16 %v326
    %v1363 = vunpack.c.l.b16 %v327
    %v1364 = vunpack.c.h.b16 %v327
    %v1365 = vunpack.c.l.b16 %v328
    %v1366 = vunpack.c.h.b16 %v328
    %v1367 = vunpack.c.l.b16 %v329
    %v1368 = vunpack.c.h.b16 %v329
    %v1369 = vunpack.c.l.b16 %v330
    %v1370 = vunpack.c.h.b16 %v330
    %v1371 = vunpack.c.l.b16 %v331
    %v1372 = vunpack.c.h.b16 %v331
    %v1373 = vunpack.c.l.b16 %v332
    %v1374 = vunpack.c.h.b16 %v332
    %v1375 = vunpack.c.l.b16 %v333
    %v1376 = vunpack.c.h.b16 %v333
    %v1377 = vunpack.c.l.b16 %v334
    %v1378 = vunpack.c.h.b16 %v334
    %v1379 = vunpack.c.l.b16 %v335
    %v1380 = vunpack.c.h.b16 %v335
    %v1381 = vunpack.c.l.b16 %v336
    %v1382 = vunpack.c.h.b16 %v336
    %v1383 = vunpack.c.l.b16 %v337
    %v1384 = vunpack.c.h.b16 %v337
    %v1385 = vunpack.c.l.b16 %v338
    %v1386 = vunpack.c.h.b16 %v338
    %v1387 = vunpack.c.l.b16 %v339
    %v1388 = vunpack.c.h.b16 %v339
    %v1389 = vunpack.c.l.b16 %v340
    %v1390 = vunpack.c.h.b16 %v340
    %v1391 = vunpack.c.l.b16 %v341
    %v1392 = vunpack.c.h.b16 %v341
    %v1393 = vunpack.c.l.b16 %v342
    %v1394 = vunpack.c.h.b16 %v342
    %v1395 = vunpack.c.l.b16 %v343
    %v1396 = vunpack.c.h.b16 %v343
    %v1397 = vunpack.c.l.b16 %v344
    %v1398 = vunpack.c.h.b16 %v344
    %v1399 = vunpack.c.l.b16 %v345
    %v1400 = vunpack.c.h.b16 %v345
    %v1401 = vunpack.c.l.b16 %v346
    %v1402 = vunpack.c.h.b16 %v346
    %v1403 = vunpack.c.l.b16 %v347
    %v1404 = vunpack.c.h.b16 %v347
    %v1405 = vunpack.c.l.b16 %v348
    %v1406 = vunpack.c.h.b16 %v348
    %v1407 = vunpack.c.l.b16 %v349
    %v1408 = vunpack.c.h.b16 %v349
    %v1409 = vunpack.c.l.b16 %v350
    %v1410 = vunpack.c.h.b16 %v350
    %v1411 = vunpack.c.l.b16 %v351
    %v1412 = vunpack.c.h.b16 %v351
    %v1413 = vunpack.c.l.b16 %v352
    %v1414 = vunpack.c.h.b16 %v352
    %v1415 = vunpack.c.l.b16 %v353
    %v1416 = vunpack.c.h.b16 %v353
    %v1417 = vunpack.c.l.b16 %v354
    %v1418 = vunpack.c.h.b16 %v354
    %v1419 = vunpack.c.l.b16 %v355
    %v1420 = vunpack.c.h.b16 %v355
    %v1421 = vunpack.c.l.b16 %v356
    %v1422 = vunpack.c.h.b16 %v356
    %v1423 = vunpack.c.l.b16 %v357
    %v1424 = vunpack.c.h.b16 %v357
    %v1425 = vunpack.c.l.b16 %v358
    %v1426 = vunpack.c.h.b16 %v358
    %v1427 = vunpack.c.l.b16 %v359
    %v1428 = vunpack.c.h.b16 %v359
    %v1429 = vunpack.c.l.b16 %v360
    %v1430 = vunpack.c.h.b16 %v360
    %v1431 = vunpack.c.l.b16 %v361
    %v1432 = vunpack.c.h.b16 %v361
    %v1433 = vunpack.c.l.b16 %v362
    %v1434 = vunpack.c.h.b16 %v362
    %v1435 = vunpack.c.l.b16 %v363
    %v1436 = vunpack.c.h.b16 %v363
    %v1437 = vunpack.c.l.b16 %v364
    %v1438 = vunpack.c.h.b16 %v364
    %v1439 = vunpack.c.l.b16 %v365
    %v1440 = vunpack.c.h.b16 %v365
    %v1441 = vunpack.c.l.b16 %v366
    %v1442 = vunpack.c.h.b16 %v366
    %v1443 = vunpack.c.l.b16 %v367
    %v1444 = vunpack.c.h.b16 %v367
    %v1445 = vunpack.c.l.b16 %v368
    %v1446 = vunpack.c.h.b16 %v368
    %v1447 = vunpack.c.l.b16 %v369
    %v1448 = vunpack.c.h.b16 %v369
    %v1449 = vunpack.c.l.b16 %v370
    %v1450 = vunpack.c.h.b16 %v370
    %v1451 = vunpack.c.l.b16 %v371
    %v1452 = vunpack.c.h.b16 %v371
    %v1453 = vunpack.c.l.b16 %v372
    %v1454 = vunpack.c.h.b16 %v372
    %v1455 = vunpack.c.l.b16 %v373
    %v1456 = vunpack.c.h.b16 %v373
    %v1457 = vunpack.c.l.b16 %v374
    %v1458 = vunpack.c.h.b16 %v374
    %v1459 = vunpack.c.l.b16 %v375
    %v1460 = vunpack.c.h.b16 %v375
    %v1461 = vunpack.c.l.b16 %v376
    %v1462 = vunpack.c.h.b16 %v376
    %v1463 = vunpack.c.l.b16 %v377
    %v1464 = vunpack.c.h.b16 %v377
    %v1465 = vunpack.c.l.b16 %v378
    %v1466 = vunpack.c.h.b16 %v378
    %v1467 = vunpack.c.l.b16 %v379
    %v1468 = vunpack.c.h.b16 %v379
    %v1469 = vunpack.c.l.b16 %v380
    %v1470 = vunpack.c.h.b16 %v380
    %v1471 = vunpack.c.l.b16 %v381
    %v1472 = vunpack.c.h.b16 %v381
    %v1473 = vunpack.c.l.b16 %v382
    %v1474 = vunpack.c.h.b16 %v382
    %v1475 = vunpack.c.l.b16 %v383
    %v1476 = vunpack.c.h.b16 %v383
    %v1477 = vunpack.c.l.b16 %v384
    %v1478 = vunpack.c.h.b16 %v384
    %v1479 = vunpack.c.l.b16 %v385
    %v1480 = vunpack.c.h.b16 %v385
    %v1481 = vunpack.c.l.b16 %v386
    %v1482 = vunpack.c.h.b16 %v386
    %v1483 = vunpack.c.l.b16 %v387
    %v1484 = vunpack.c.h.b16 %v387
    %v1485 = vunpack.c.l.b16 %v388
    %v1486 = vunpack.c.h.b16 %v388
    %v1487 = vunpack.c.l.b16 %v389
    %v1488 = vunpack.c.h.b16 %v389
    %v1489 = vunpack.c.l.b16 %v390
    %v1490 = vunpack.c.h.b16 %v390
    %v1491 = vunpack.c.l.b16 %v391
    %v1492 = vunpack.c.h.b16 %v391
    %v1493 = vunpack.c.l.b16 %v392
    %v1494 = vunpack.c.h.b16 %v392
    %v1495 = vunpack.c.l.b16 %v393
    %v1496 = vunpack.c.h.b16 %v393
    %v1497 = vunpack.c.l.b16 %v394
    %v1498 = vunpack.c.h.b16 %v394
    %v1499 = vunpack.c.l.b16 %v395
    %v1500 = vunpack.c.h.b16 %v395
    %v1501 = vunpack.c.l.b16 %v396
    %v1502 = vunpack.c.h.b16 %v396
    %v1503 = vunpack.c.l.b16 %v397
    %v1504 = vunpack.c.h.b16 %v397
    %v1505 = vunpack.c.l.b16 %v398
    %v1506 = vunpack.c.h.b16 %v398
    %v1507 = vunpack.c.l.b16 %v399
    %v1508 = vunpack.c.h.b16 %v399
    %v1509 = vunpack.c.l.b16 %v400
    %v1510 = vunpack.c.h.b16 %v400
    %v1511 = vunpack.c.l.b16 %v401
    %v1512 = vunpack.c.h.b16 %v401
    %v1513 = vunpack.c.l.b16 %v402
    %v1514 = vunpack.c.h.b16 %v402
    %v1515 = vunpack.c.l.b16 %v403
    %v1516 = vunpack.c.h.b16 %v403
    %v1517 = vunpack.c.l.b16 %v404
    %v1518 = vunpack.c.h.b16 %v404
    %v1519 = vunpack.c.l.b16 %v405
    %v1520 = vunpack.c.h.b16 %v405
    %v1521 = vunpack.c.l.b16 %v406
    %v1522 = vunpack.c.h.b16 %v406
    %v1523 = vunpack.c.l.b16 %v407
    %v1524 = vunpack.c.h.b16 %v407
    %v1525 = vunpack.c.l.b16 %v408
    %v1526 = vunpack.c.h.b16 %v408
    %v1527 = vunpack.c.l.b16 %v409
    %v1528 = vunpack.c.h.b16 %v409
    %v1529 = vunpack.c.l.b16 %v410
    %v1530 = vunpack.c.h.b16 %v410
    %v1531 = vunpack.c.l.b16 %v411
    %v1532 = vunpack.c.h.b16 %v411
    %v1533 = vunpack.c.l.b16 %v412
    %v1534 = vunpack.c.h.b16 %v412
    %v1535 = vunpack.c.l.b16 %v413
    %v1536 = vunpack.c.h.b16 %v413
    %v1537 = vunpack.c.l.b16 %v414
    %v1538 = vunpack.c.h.b16 %v414
    %v1539 = vunpack.c.l.b16 %v415
    %v1540 = vunpack.c.h.b16 %v415
    %v1541 = vunpack.c.l.b16 %v416
    %v1542 = vunpack.c.h.b16 %v416
    %v1543 = vunpack.c.l.b16 %v417
    %v1544 = vunpack.c.h.b16 %v417
    %v1545 = vunpack.c.l.b16 %v418
    %v1546 = vunpack.c.h.b16 %v418
    %v1547 = vunpack.c.l.b16 %v419
    %v1548 = vunpack.c.h.b16 %v419
    %v1549 = vunpack.c.l.b16 %v420
    %v1550 = vunpack.c.h.b16 %v420
    %v1551 = vunpack.c.l.b16 %v421
    %v1552 = vunpack.c.h.b16 %v421
    %v1553 = vunpack.c.l.b16 %v422
    %v1554 = vunpack.c.h.b16 %v422
    %v1555 = vunpack.c.l.b16 %v423
    %v1556 = vunpack.c.h.b16 %v423
    %v1557 = vunpack.c.l.b16 %v424
    %v1558 = vunpack.c.h.b16 %v424
    %v1559 = vunpack.c.l.b16 %v425
    %v1560 = vunpack.c.h.b16 %v425
    %v1561 = vunpack.c.l.b16 %v426
    %v1562 = vunpack.c.h.b16 %v426
    %v1563 = vunpack.c.l.b16 %v427
    %v1564 = vunpack.c.h.b16 %v427
    %v1565 = vunpack.c.l.b16 %v428
    %v1566 = vunpack.c.h.b16 %v428
    %v1567 = vunpack.c.l.b16 %v429
    %v1568 = vunpack.c.h.b16 %v429
    %v1569 = vunpack.c.l.b16 %v430
    %v1570 = vunpack.c.h.b16 %v430
    %v1571 = vunpack.c.l.b16 %v431
    %v1572 = vunpack.c.h.b16 %v431
    %v1573 = vunpack.c.l.b16 %v432
    %v1574 = vunpack.c.h.b16 %v432
    %v1575 = vunpack.c.l.b16 %v433
    %v1576 = vunpack.c.h.b16 %v433
    %v1577 = vunpack.c.l.b16 %v434
    %v1578 = vunpack.c.h.b16 %v434
    %v1579 = vunpack.c.l.b16 %v435
    %v1580 = vunpack.c.h.b16 %v435
    %v1581 = vunpack.c.l.b16 %v436
    %v1582 = vunpack.c.h.b16 %v436
    %v1583 = vunpack.c.l.b16 %v437
    %v1584 = vunpack.c.h.b16 %v437
    %v1585 = vunpack.c.l.b16 %v438
    %v1586 = vunpack.c.h.b16 %v438
    %v1587 = vunpack.c.l.b16 %v439
    %v1588 = vunpack.c.h.b16 %v439
    %v1589 = vunpack.c.l.b16 %v440
    %v1590 = vunpack.c.h.b16 %v440
    %v1591 = vunpack.c.l.b16 %v441
    %v1592 = vunpack.c.h.b16 %v441
    %v1593 = vunpack.c.l.b16 %v442
    %v1594 = vunpack.c.h.b16 %v442
    %v1595 = vunpack.c.l.b16 %v443
    %v1596 = vunpack.c.h.b16 %v443
    %v1597 = vunpack.c.l.b16 %v444
    %v1598 = vunpack.c.h.b16 %v444
    %v1599 = vunpack.c.l.b16 %v445
    %v1600 = vunpack.c.h.b16 %v445
    %v1601 = vunpack.c.l.b16 %v446
    %v1602 = vunpack.c.h.b16 %v446
    %v1603 = vunpack.c.l.b16 %v447
    %v1604 = vunpack.c.h.b16 %v447
    %v1605 = vunpack.c.l.b16 %v448
    %v1606 = vunpack.c.h.b16 %v448
    %v1607 = vunpack.c.l.b16 %v449
    %v1608 = vunpack.c.h.b16 %v449
    %v1609 = vunpack.c.l.b16 %v450
    %v1610 = vunpack.c.h.b16 %v450
    %v1611 = vunpack.c.l.b16 %v451
    %v1612 = vunpack.c.h.b16 %v451
    %v1613 = vunpack.c.l.b16 %v452
    %v1614 = vunpack.c.h.b16 %v452
    %v1615 = vunpack.c.l.b16 %v453
    %v1616 = vunpack.c.h.b16 %v453
    %v1617 = vunpack.c.l.b16 %v454
    %v1618 = vunpack.c.h.b16 %v454
    %v1619 = vunpack.c.l.b16 %v455
    %v1620 = vunpack.c.h.b16 %v455
    %v1621 = vunpack.c.l.b16 %v456
    %v1622 = vunpack.c.h.b16 %v456
    %v1623 = vunpack.c.l.b16 %v457
    %v1624 = vunpack.c.h.b16 %v457
    %v1625 = vunpack.c.l.b16 %v458
    %v1626 = vunpack.c.h.b16 %v458
    %v1627 = vunpack.c.l.b16 %v459
    %v1628 = vunpack.c.h.b16 %v459
    %v1629 = vunpack.c.l.b16 %v460
    %v1630 = vunpack.c.h.b16 %v460
    %v1631 = vunpack.c.l.b16 %v461
    %v1632 = vunpack.c.h.b16 %v461
    %v1633 = vunpack.c.l.b16 %v462
    %v1634 = vunpack.c.h.b16 %v462
    %v1635 = vunpack.c.l.b16 %v463
    %v1636 = vunpack.c.h.b16 %v463
    %v1637 = vunpack.c.l.b16 %v464
    %v1638 = vunpack.c.h.b16 %v464
    %v1639 = vunpack.c.l.b16 %v465
    %v1640 = vunpack.c.h.b16 %v465
    %v1641 = vunpack.c.l.b16 %v466
    %v1642 = vunpack.c.h.b16 %v466
    %v1643 = vunpack.c.l.b16 %v467
    %v1644 = vunpack.c.h.b16 %v467
    %v1645 = vunpack.c.l.b16 %v468
    %v1646 = vunpack.c.h.b16 %v468
    %v1647 = vunpack.c.l.b16 %v469
    %v1648 = vunpack.c.h.b16 %v469
    %v1649 = vunpack.c.l.b16 %v470
    %v1650 = vunpack.c.h.b16 %v470
    %v1651 = vunpack.c.l.b16 %v471
    %v1652 = vunpack.c.h.b16 %v471
    %v1653 = vunpack.c.l.b16 %v472
    %v1654 = vunpack.c.h.b16 %v472
    %v1655 = vunpack.c.l.b16 %v473
    %v1656 = vunpack.c.h.b16 %v473
    %v1657 = vunpack.c.l.b16 %v474
    %v1658 = vunpack.c.h.b16 %v474
    %v1659 = vunpack.c.l.b16 %v475
    %v1660 = vunpack.c.h.b16 %v475
    %v1661 = vunpack.c.l.b16 %v476
    %v1662 = vunpack.c.h.b16 %v476
    %v1663 = vunpack.c.l.b16 %v477
    %v1664 = vunpack.c.h.b16 %v477
    %v1665 = vunpack.c.l.b16 %v478
    %v1666 = vunpack.c.h.b16 %v478
    %v1667 = vunpack.c.l.b16 %v479
    %v1668 = vunpack.c.h.b16 %v479
    %v1669 = vunpack.c.l.b16 %v480
    %v1670 = vunpack.c.h.b16 %v480
    %v1671 = vunpack.c.l.b16 %v481
    %v1672 = vunpack.c.h.b16 %v481
    %v1673 = vunpack.c.l.b16 %v482
    %v1674 = vunpack.c.h.b16 %v482
    %v1675 = vunpack.c.l.b16 %v483
    %v1676 = vunpack.c.h.b16 %v483
    %v1677 = vunpack.c.l.b16 %v484
    %v1678 = vunpack.c.h.b16 %v484
    %v1679 = vunpack.c.l.b16 %v485
    %v1680 = vunpack.c.h.b16 %v485
    %v1681 = vunpack.c.l.b16 %v486
    %v1682 = vunpack.c.h.b16 %v486
    %v1683 = vunpack.c.l.b16 %v487
    %v1684 = vunpack.c.h.b16 %v487
    %v1685 = vunpack.c.l.b16 %v488
    %v1686 = vunpack.c.h.b16 %v488
    %v1687 = vunpack.c.l.b16 %v489
    %v1688 = vunpack.c.h.b16 %v489
    %v1689 = vunpack.c.l.b16 %v490
    %v1690 = vunpack.c.h.b16 %v490
    %v1691 = vunpack.c.l.b16 %v491
    %v1692 = vunpack.c.h.b16 %v491
    %v1693 = vunpack.c.l.b16 %v492
    %v1694 = vunpack.c.h.b16 %v492
    %v1695 = vunpack.c.l.b16 %v493
    %v1696 = vunpack.c.h.b16 %v493
    %v1697 = vunpack.c.l.b16 %v494
    %v1698 = vunpack.c.h.b16 %v494
    %v1699 = vunpack.c.l.b16 %v495
    %v1700 = vunpack.c.h.b16 %v495
    %v1701 = vunpack.c.l.b16 %v496
    %v1702 = vunpack.c.h.b16 %v496
    %v1703 = vunpack.c.l.b16 %v497
    %v1704 = vunpack.c.h.b16 %v497
    %v1705 = vunpack.c.l.b16 %v498
    %v1706 = vunpack.c.h.b16 %v498
    %v1707 = vunpack.c.l.b16 %v499
    %v1708 = vunpack.c.h.b16 %v499
    %v1709 = vunpack.c.l.b16 %v500
    %v1710 = vunpack.c.h.b16 %v500
    %v1711 = vunpack.c.l.b16 %v501
    %v1712 = vunpack.c.h.b16 %v501
    %v1713 = vunpack.c.l.b16 %v502
    %v1714 = vunpack.c.h.b16 %v502
    %v1715 = vpack.c.b16 %v953, %v947
    %v1716 = vpack.c.b16 %v954, %v948
    %v1717 = vpack.c.b16 %v955, %v949
    %v1718 = vpack.c.b16 %v956, %v950
    %v1719 = vpack.c.b16 %v957, %v951
    %v1720 = vpack.c.b16 %v958, %v952
    %v1721 = vpack.c.b16 %v965, %v959
    %v1722 = vpack.c.b16 %v966, %v960
    %v1723 = vpack.c.b16 %v967, %v961
    %v1724 = vpack.c.b16 %v968, %v962
    %v1725 = vpack.c.b16 %v969, %v963
    %v1726 = vpack.c.b16 %v970, %v964
    %v1727 = vpack.c.b16 %v977, %v971
    %v1728 = vpack.c.b16 %v978, %v972
    %v1729 = vpack.c.b16 %v979, %v973
    %v1730 = vpack.c.b16 %v980, %v974
    %v1731 = vpack.c.b16 %v981, %v975
    %v1732 = vpack.c.b16 %v982, %v976
    %v1733 = vpack.c.b16 %v989, %v983
    %v1734 = vpack.c.b16 %v990, %v984
    %v1735 = vpack.c.b16 %v991, %v985
    %v1736 = vpack.c.b16 %v992, %v986
    %v1737 = vpack.c.b16 %v993, %v987
    %v1738 = vpack.c.b16 %v994, %v988
    %v1739 = vpack.c.b16 %v1001, %v995
    %v1740 = vpack.c.b16 %v1002, %v996
    %v1741 = vpack.c.b16 %v1003, %v997
    %v1742 = vpack.c.b16 %v1004, %v998
    %v1743 = vpack.c.b16 %v1005, %v999
    %v1744 = vpack.c.b16 %v1006, %v1000
    %v1745 = vpack.c.b16 %v1013, %v1007
    %v1746 = vpack.c.b16 %v1014, %v1008
    %v1747 = vpack.c.b16 %v1015, %v1009
    %v1748 = vpack.c.b16 %v1016, %v1010
    %v1749 = vpack.c.b16 %v1017, %v1011
    %v1750 = vpack.c.b16 %v1018, %v1012
    %v1751 = vpack.c.b16 %v1025, %v1019
    %v1752 = vpack.c.b16 %v1026, %v1020
    %v1753 = vpack.c.b16 %v1027, %v1021
    %v1754 = vpack.c.b16 %v1028, %v1022
    %v1755 = vpack.c.b16 %v1029, %v1023
    %v1756 = vpack.c.b16 %v1030, %v1024
    %v1757 = vpack.c.b16 %v1037, %v1031
    %v1758 = vpack.c.b16 %v1038, %v1032
    %v1759 = vpack.c.b16 %v1039, %v1033
    %v1760 = vpack.c.b16 %v1040, %v1034
    %v1761 = vpack.c.b16 %v1041, %v1035
    %v1762 = vpack.c.b16 %v1042, %v1036
    %v1763 = vpack.c.b16 %v1049, %v1043
    %v1764 = vpack.c.b16 %v1050, %v1044
    %v1765 = vpack.c.b16 %v1051, %v1045
    %v1766 = vpack.c.b16 %v1052, %v1046
    %v1767 = vpack.c.b16 %v1053, %v1047
    %v1768 = vpack.c.b16 %v1054, %v1048
    %v1769 = vpack.c.b16 %v1061, %v1055
    %v1770 = vpack.c.b16 %v1062, %v1056
    %v1771 = vpack.c.b16 %v1063, %v1057
    %v1772 = vpack.c.b16 %v1064, %v1058
    %v1773 = vpack.c.b16 %v1065, %v1059
    %v1774 = vpack.c.b16 %v1066, %v1060
    %v1775 = vpack.c.b16 %v1073, %v1067
    %v1776 = vpack.c.b16 %v1074, %v1068
    %v1777 = vpack.c.b16 %v1075, %v1069
    %v1778 = vpack.c.b16 %v1076, %v1070
    %v1779 = vpack.c.b16 %v1077, %v1071
    %v1780 = vpack.c.b16 %v1078, %v1072
    %v1781 = vpack.c.b16 %v1085, %v1079
    %v1782 = vpack.c.b16 %v1086, %v1080
    %v1783 = vpack.c.b16 %v1087, %v1081
    %v1784 = vpack.c.b16 %v1088, %v1082
    %v1785 = vpack.c.b16 %v1089, %v1083
    %v1786 = vpack.c.b16 %v1090, %v1084
    %v1787 = vpack.c.b16 %v1097, %v1091
    %v1788 = vpack.c.b16 %v1098, %v1092
    %v1789 = vpack.c.b16 %v1099, %v1093
    %v1790 = vpack.c.b16 %v1100, %v1094
    %v1791 = vpack.c.b16 %v1101, %v1095
    %v1792 = vpack.c.b16 %v1102, %v1096
    %v1793 = vpack.c.b16 %v1109, %v1103
    %v1794 = vpack.c.b16 %v1110, %v1104
    %v1795 = vpack.c.b16 %v1111, %v1105
    %v1796 = vpack.c.b16 %v1112, %v1106
    %v1797 = vpack.c.b16 %v1113, %v1107
    %v1798 = vpack.c.b16 %v1114, %v1108
    %v1799 = vpack.c.b16 %v1121, %v1115
    %v1800 = vpack.c.b16 %v1122, %v1116
    %v1801 = vpack.c.b16 %v1123, %v1117
    %v1802 = vpack.c.b16 %v1124, %v1118
    %v1803 = vpack.c.b16 %v1125, %v1119
    %v1804 = vpack.c.b16 %v1126, %v1120
    %v1805 = vpack.c.b16 %v1133, %v1127
    %v1806 = vpack.c.b16 %v1134, %v1128
    %v1807 = vpack.c.b16 %v1135, %v1129
    %v1808 = vpack.c.b16 %v1136, %v1130
    %v1809 = vpack.c.b16 %v1137, %v1131
    %v1810 = vpack.c.b16 %v1138, %v1132
    %v1811 = vpack.c.b16 %v1145, %v1139
    %v1812 = vpack.c.b16 %v1146, %v1140
    %v1813 = vpack.c.b16 %v1147, %v1141
    %v1814 = vpack.c.b16 %v1148, %v1142
    %v1815 = vpack.c.b16 %v1149, %v1143
    %v1816 = vpack.c.b16 %v1150, %v1144
    %v1817 = vpack.c.b16 %v1157, %v1151
    %v1818 = vpack.c.b16 %v1158, %v1152
    %v1819 = vpack.c.b16 %v1159, %v1153
    %v1820 = vpack.c.b16 %v1160, %v1154
    %v1821 = vpack.c.b16 %v1161, %v1155
    %v1822 = vpack.c.b16 %v1162, %v1156
    %v1823 = vpack.c.b16 %v1169, %v1163
    %v1824 = vpack.c.b16 %v1170, %v1164
    %v1825 = vpack.c.b16 %v1171, %v1165
    %v1826 = vpack.c.b16 %v1172, %v1166
    %v1827 = vpack.c.b16 %v1173, %v1167
    %v1828 = vpack.c.b16 %v1174, %v1168
    %v1829 = vpack.c.b16 %v1181, %v1175
    %v1830 = vpack.c.b16 %v1182, %v1176
    %v1831 = vpack.c.b16 %v1183, %v1177
    %v1832 = vpack.c.b16 %v1184, %v1178
    %v1833 = vpack.c.b16 %v1185, %v1179
    %v1834 = vpack.c.b16 %v1186, %v1180
    %v1835 = vpack.c.b16 %v1193, %v1187
    %v1836 = vpack.c.b16 %v1194, %v1188
    %v1837 = vpack.c.b16 %v1195, %v1189
    %v1838 = vpack.c.b16 %v1196, %v1190
    %v1839 = vpack.c.b16 %v1197, %v1191
    %v1840 = vpack.c.b16 %v1198, %v1192
    %v1841 = vpack.c.b16 %v1205, %v1199
    %v1842 = vpack.c.b16 %v1206, %v1200
    %v1843 = vpack.c.b16 %v1207, %v1201
    %v1844 = vpack.c.b16 %v1208, %v1202
    %v1845 = vpack.c.b16 %v1209, %v1203
    %v1846 = vpack.c.b16 %v1210, %v1204
    %v1847 = vpack.c.b16 %v1217, %v1211
    %v1848 = vpack.c.b16 %v1218, %v1212
    %v1849 = vpack.c.b16 %v1219, %v1213
    %v1850 = vpack.c.b16 %v1220, %v1214
    %v1851 = vpack.c.b16 %v1221, %v1215
    %v1852 = vpack.c.b16 %v1222, %v1216
    %v1853 = vpack.c.b16 %v1229, %v1223
    %v1854 = vpack.c.b16 %v1230, %v1224
    %v1855 = vpack.c.b16 %v1231, %v1225
    %v1856 = vpack.c.b16 %v1232, %v1226
    %v1857 = vpack.c.b16 %v1233, %v1227
    %v1858 = vpack.c.b16 %v1234, %v1228
    %v1859 = vpack.c.b16 %v1241, %v1235
    %v1860 = vpack.c.b16 %v1242, %v1236
    %v1861 = vpack.c.b16 %v1243, %v1237
    %v1862 = vpack.c.b16 %v1244, %v1238
    %v1863 = vpack.c.b16 %v1245, %v1239
    %v1864 = vpack.c.b16 %v1246, %v1240
    %v1865 = vpack.c.b16 %v1253, %v1247
    %v1866 = vpack.c.b16 %v1254, %v1248
    %v1867 = vpack.c.b16 %v1255, %v1249
    %v1868 = vpack.c.b16 %v1256, %v1250
    %v1869 = vpack.c.b16 %v1257, %v1251
    %v1870 = vpack.c.b16 %v1258, %v1252
    %v1871 = vpack.c.b16 %v1265, %v1259
    %v1872 = vpack.c.b16 %v1266, %v1260
    %v1873 = vpack.c.b16 %v1267, %v1261
    %v1874 = vpack.c.b16 %v1268, %v1262
    %v1875 = vpack.c.b16 %v1269, %v1263
    %v1876 = vpack.c.b16 %v1270, %v1264
    %v1877 = vpack.c.b16 %v1277, %v1271
    %v1878 = vpack.c.b16 %v1278, %v1272
    %v1879 = vpack.c.b16 %v1279, %v1273
    %v1880 = vpack.c.b16 %v1280, %v1274
    %v1881 = vpack.c.b16 %v1281, %v1275
    %v1882 = vpack.c.b16 %v1282, %v1276
    %v1883 = vpack.c.b16 %v1289, %v1283
    %v1884 = vpack.c.b16 %v1290, %v1284
    %v1885 = vpack.c.b16 %v1291, %v1285
    %v1886 = vpack.c.b16 %v1292, %v1286
    %v1887 = vpack.c.b16 %v1293, %v1287
    %v1888 = vpack.c.b16 %v1294, %v1288
    %v1889 = vpack.c.b16 %v1301, %v1295
    %v1890 = vpack.c.b16 %v1302, %v1296
    %v1891 = vpack.c.b16 %v1303, %v1297
    %v1892 = vpack.c.b16 %v1304, %v1298
    %v1893 = vpack.c.b16 %v1305, %v1299
    %v1894 = vpack.c.b16 %v1306, %v1300
    %v1895 = vpack.c.b16 %v1313, %v1307
    %v1896 = vpack.c.b16 %v1314, %v1308
    %v1897 = vpack.c.b16 %v1315, %v1309
    %v1898 = vpack.c.b16 %v1316, %v1310
    %v1899 = vpack.c.b16 %v1317, %v1311
    %v1900 = vpack.c.b16 %v1318, %v1312
    %v1901 = vpack.c.b16 %v1325, %v1319
    %v1902 = vpack.c.b16 %v1326, %v1320
    %v1903 = vpack.c.b16 %v1327, %v1321
    %v1904 = vpack.c.b16 %v1328, %v1322
    %v1905 = vpack.c.b16 %v1329, %v1323
    %v1906 = vpack.c.b16 %v1330, %v1324
    %v1907 = vpack.c.b16 %v1337, %v1331
    %v1908 = vpack.c.b16 %v1338, %v1332
    %v1909 = vpack.c.b16 %v1339, %v1333
    %v1910 = vpack.c.b16 %v1340, %v1334
    %v1911 = vpack.c.b16 %v1341, %v1335
    %v1912 = vpack.c.b16 %v1342, %v1336
    %v1913 = vpack.c.b16 %v1349, %v1343
    %v1914 = vpack.c.b16 %v1350, %v1344
    %v1915 = vpack.c.b16 %v1351, %v1345
    %v1916 = vpack.c.b16 %v1352, %v1346
    %v1917 = vpack.c.b16 %v1353, %v1347
    %v1918 = vpack.c.b16 %v1354, %v1348
    %v1919 = vpack.c.b16 %v1361, %v1355
    %v1920 = vpack.c.b16 %v1362, %v1356
    %v1921 = vpack.c.b16 %v1363, %v1357
    %v1922 = vpack.c.b16 %v1364, %v1358
    %v1923 = vpack.c.b16 %v1365, %v1359
    %v1924 = vpack.c.b16 %v1366, %v1360
    %v1925 = vpack.c.b16 %v1373, %v1367
    %v1926 = vpack.c.b16 %v1374, %v1368
    %v1927 = vpack.c.b16 %v1375, %v1369
    %v1928 = vpack.c.b16 %v1376, %v1370
    %v1929 = vpack.c.b16 %v1377, %v1371
    %v1930 = vpack.c.b16 %v1378, %v1372
    %v1931 = vpack.c.b16 %v1385, %v1379
    %v1932 = vpack.c.b16 %v1386, %v1380
    %v1933 = vpack.c.b16 %v1387, %v1381
    %v1934 = vpack.c.b16 %v1388, %v1382
    %v1935 = vpack.c.b16 %v1389, %v1383
    %v1936 = vpack.c.b16 %v1390, %v1384
    %v1937 = vpack.c.b16 %v1397, %v1391
    %v1938 = vpack.c.b16 %v1398, %v1392
    %v1939 = vpack.c.b16 %v1399, %v1393
    %v1940 = vpack.c.b16 %v1400, %v1394
    %v1941 = vpack.c.b16 %v1401, %v1395
    %v1942 = vpack.c.b16 %v1402, %v1396
    %v1943 = vpack.c.b16 %v1409, %v1403
    %v1944 = vpack.c.b16 %v1410, %v1404
    %v1945 = vpack.c.b16 %v1411, %v1405
    %v1946 = vpack.c.b16 %v1412, %v1406
    %v1947 = vpack.c.b16 %v1413, %v1407
    %v1948 = vpack.c.b16 %v1414, %v1408
    %v1949 = vpack.c.b16 %v1421, %v1415
    %v1950 = vpack.c.b16 %v1422, %v1416
    %v1951 = vpack.c.b16 %v1423, %v1417
    %v1952 = vpack.c.b16 %v1424, %v1418
    %v1953 = vpack.c.b16 %v1425, %v1419
    %v1954 = vpack.c.b16 %v1426, %v1420
    %v1955 = vpack.c.b16 %v1433, %v1427
    %v1956 = vpack.c.b16 %v1434, %v1428
    %v1957 = vpack.c.b16 %v1435, %v1429
    %v1958 = vpack.c.b16 %v1436, %v1430
    %v1959 = vpack.c.b16 %v1437, %v1431
    %v1960 = vpack.c.b16 %v1438, %v1432
    %v1961 = vpack.c.b16 %v1445, %v1439
    %v1962 = vpack.c.b16 %v1446, %v1440
    %v1963 = vpack.c.b16 %v1447, %v1441
    %v1964 = vpack.c.b16 %v1448, %v1442
    %v1965 = vpack.c.b16 %v1449, %v1443
    %v1966 = vpack.c.b16 %v1450, %v1444
    %v1967 = vpack.c.b16 %v1457, %v1451
    %v1968 = vpack.c.b16 %v1458, %v1452
    %v1969 = vpack.c.b16 %v1459, %v1453
    %v1970 = vpack.c.b16 %v1460, %v1454
    %v1971 = vpack.c.b16 %v1461, %v1455
    %v1972 = vpack.c.b16 %v1462, %v1456
    %v1973 = vpack.c.b16 %v1469, %v1463
    %v1974 = vpack.c.b16 %v1470, %v1464
    %v1975 = vpack.c.b16 %v1471, %v1465
    %v1976 = vpack.c.b16 %v1472, %v1466
    %v1977 = vpack.c.b16 %v1473, %v1467
    %v1978 = vpack.c.b16 %v1474, %v1468
    %v1979 = vpack.c.b16 %v1481, %v1475
    %v1980 = vpack.c.b16 %v1482, %v1476
    %v1981 = vpack.c.b16 %v1483, %v1477
    %v1982 = vpack.c.b16 %v1484, %v1478
    %v1983 = vpack.c.b16 %v1485, %v1479
    %v1984 = vpack.c.b16 %v1486, %v1480
    %v1985 = vpack.c.b16 %v1493, %v1487
    %v1986 = vpack.c.b16 %v1494, %v1488
    %v1987 = vpack.c.b16 %v1495, %v1489
    %v1988 = vpack.c.b16 %v1496, %v1490
    %v1989 = vpack.c.b16 %v1497, %v1491
    %v1990 = vpack.c.b16 %v1498, %v1492
    %v1991 = vpack.c.b16 %v1505, %v1499
    %v1992 = vpack.c.b16 %v1506, %v1500
    %v1993 = vpack.c.b16 %v1507, %v1501
    %v1994 = vpack.c.b16 %v1508, %v1502
    %v1995 = vpack.c.b16 %v1509, %v1503
    %v1996 = vpack.c.b16 %v1510, %v1504
    %v1997 = vpack.c.b16 %v1517, %v1511
    %v1998 = vpack.c.b16 %v1518, %v1512
    %v1999 = vpack.c.b16 %v1519, %v1513
    %v2000 = vpack.c.b16 %v1520, %v1514
    %v2001 = vpack.c.b16 %v1521, %v1515
    %v2002 = vpack.c.b16 %v1522, %v1516
    %v2003 = vpack.c.b16 %v1529, %v1523
    %v2004 = vpack.c.b16 %v1530, %v1524
    %v2005 = vpack.c.b16 %v1531, %v1525
    %v2006 = vpack.c.b16 %v1532, %v1526
    %v2007 = vpack.c.b16 %v1533, %v1527
    %v2008 = vpack.c.b16 %v1534, %v1528
    %v2009 = vpack.c.b16 %v1541, %v1535
    %v2010 = vpack.c.b16 %v1542, %v1536
    %v2011 = vpack.c.b16 %v1543, %v1537
    %v2012 = vpack.c.b16 %v1544, %v1538
    %v2013 = vpack.c.b16 %v1545, %v1539
    %v2014 = vpack.c.b16 %v1546, %v1540
    %v2015 = vpack.c.b16 %v1553, %v1547
    %v2016 = vpack.c.b16 %v1554, %v1548
    %v2017 = vpack.c.b16 %v1555, %v1549
    %v2018 = vpack.c.b16 %v1556, %v1550
    %v2019 = vpack.c.b16 %v1557, %v1551
    %v2020 = vpack.c.b16 %v1558, %v1552
    %v2021 = vpack.c.b16 %v1565, %v1559
    %v2022 = vpack.c.b16 %v1566, %v1560
    %v2023 = vpack.c.b16 %v1567, %v1561
    %v2024 = vpack.c.b16 %v1568, %v1562
    %v2025 = vpack.c.b16 %v1569, %v1563
    %v2026 = vpack.c.b16 %v1570, %v1564
    %v2027 = vpack.c.b16 %v1577, %v1571
    %v2028 = vpack.c.b16 %v1578, %v1572
    %v2029 = vpack.c.b16 %v1579, %v1573
    %v2030 = vpack.c.b16 %v1580, %v1574
    %v2031 = vpack.c.b16 %v1581, %v1575
    %v2032 = vpack.c.b16 %v1582, %v1576
    %v2033 = vpack.c.b16 %v1589, %v1583
    %v2034 = vpack.c.b16 %v1590, %v1584
    %v2035 = vpack.c.b16 %v1591, %v1585
    %v2036 = vpack.c.b16 %v1592, %v1586
    %v2037 = vpack.c.b16 %v1593, %v1587
    %v2038 = vpack.c.b16 %v1594, %v1588
    %v2039 = vpack.c.b16 %v1601, %v1595
    %v2040 = vpack.c.b16 %v1602, %v1596
    %v2041 = vpack.c.b16 %v1603, %v1597
    %v2042 = vpack.c.b16 %v1604, %v1598
    %v2043 = vpack.c.b16 %v1605, %v1599
    %v2044 = vpack.c.b16 %v1606, %v1600
    %v2045 = vpack.c.b16 %v1613, %v1607
    %v2046 = vpack.c.b16 %v1614, %v1608
    %v2047 = vpack.c.b16 %v1615, %v1609
    %v2048 = vpack.c.b16 %v1616, %v1610
    %v2049 = vpack.c.b16 %v1617, %v1611
    %v2050 = vpack.c.b16 %v1618, %v1612
    %v2051 = vpack.c.b16 %v1625, %v1619
    %v2052 = vpack.c.b16 %v1626, %v1620
    %v2053 = vpack.c.b16 %v1627, %v1621
    %v2054 = vpack.c.b16 %v1628, %v1622
    %v2055 = vpack.c.b16 %v1629, %v1623
    %v2056 = vpack.c.b16 %v1630, %v1624
    %v2057 = vpack.c.b16 %v1637, %v1631
    %v2058 = vpack.c.b16 %v1638, %v1632
    %v2059 = vpack.c.b16 %v1639, %v1633
    %v2060 = vpack.c.b16 %v1640, %v1634
    %v2061 = vpack.c.b16 %v1641, %v1635
    %v2062 = vpack.c.b16 %v1642, %v1636
    %v2063 = vpack.c.b16 %v1649, %v1643
    %v2064 = vpack.c.b16 %v1650, %v1644
    %v2065 = vpack.c.b16 %v1651, %v1645
    %v2066 = vpack.c.b16 %v1652, %v1646
    %v2067 = vpack.c.b16 %v1653, %v1647
    %v2068 = vpack.c.b16 %v1654, %v1648
    %v2069 = vpack.c.b16 %v1661, %v1655
    %v2070 = vpack.c.b16 %v1662, %v1656
    %v2071 = vpack.c.b16 %v1663, %v1657
    %v2072 = vpack.c.b16 %v1664, %v1658
    %v2073 = vpack.c.b16 %v1665, %v1659
    %v2074 = vpack.c.b16 %v1666, %v1660
    %v2075 = vpack.c.b16 %v1673, %v1667
    %v2076 = vpack.c.b16 %v1674, %v1668
    %v2077 = vpack.c.b16 %v1675, %v1669
    %v2078 = vpack.c.b16 %v1676, %v1670
    %v2079 = vpack.c.b16 %v1677, %v1671
    %v2080 = vpack.c.b16 %v1678, %v1672
    %v2081 = vpack.c.b16 %v1685, %v1679
    %v2082 = vpack.c.b16 %v1686, %v1680
    %v2083 = vpack.c.b16 %v1687, %v1681
    %v2084 = vpack.c.b16 %v1688, %v1682
    %v2085 = vpack.c.b16 %v1689, %v1683
    %v2086 = vpack.c.b16 %v1690, %v1684
    %v2087 = vpack.c.b16 %v1697, %v1691
    %v2088 = vpack.c.b16 %v1698, %v1692
    %v2089 = vpack.c.b16 %v1699, %v1693
    %v2090 = vpack.c.b16 %v1700, %v1694
    %v2091 = vpack.c.b16 %v1701, %v1695
    %v2092 = vpack.c.b16 %v1702, %v1696
    %v2093 = vpack.c.b16 %v1709, %v1703
    %v2094 = vpack.c.b16 %v1710, %v1704
    %v2095 = vpack.c.b16 %v1711, %v1705
    %v2096 = vpack.c.b16 %v1712, %v1706
    %v2097 = vpack.c.b16 %v1713, %v1707
    %v2098 = vpack.c.b16 %v1714, %v1708
    %2483 = vmatprep.subr.bf16.mxu0 %v1758
    %2484 = vmatpush1.bf16.msra.mxu0 %v1757
    %2485 = vmatprep.subr.bf16.mxu0 %v1752
    %2486 = vmatpush1.bf16.msra.mxu0 %v1751
    %2487 = vmatprep.subr.bf16.mxu0 %v1746
    %2488 = vmatpush1.bf16.msra.mxu0 %v1745
    %2489 = vmatprep.subr.bf16.mxu0 %v1740
    %2490 = vmatpush1.bf16.msra.mxu0 %v1739
    %2491 = vmatprep.subr.bf16.mxu0 %v1734
    %2492 = vmatpush1.bf16.msra.mxu0 %v1733
    %2493 = vmatprep.subr.bf16.mxu0 %v1728
    %2494 = vmatpush1.bf16.msra.mxu0 %v1727
    %2495 = vmatprep.subr.bf16.mxu0 %v1722
    %2496 = vmatpush1.bf16.msra.mxu0 %v1721
    %2497 = vmatprep.subr.bf16.mxu0 %v1716
    %2498 = vmatpush1.bf16.msra.mxu0 %v1715
    %2499 = vmatprep.subr.bf16.mxu0 %v1806
    %2500 = vmatpush2.bf16.msra.mxu0 %v1805
    %2501 = vmatprep.subr.bf16.mxu0 %v1800
    %2502 = vmatpush2.bf16.msra.mxu0 %v1799
    %2503 = vmatprep.subr.bf16.mxu0 %v1794
    %2504 = vmatpush2.bf16.msra.mxu0 %v1793
    %2505 = vmatprep.subr.bf16.mxu0 %v1788
    %2506 = vmatpush2.bf16.msra.mxu0 %v1787
    %2507 = vmatprep.subr.bf16.mxu0 %v1782
    %2508 = vmatpush2.bf16.msra.mxu0 %v1781
    %2509 = vmatprep.subr.bf16.mxu0 %v1776
    %2510 = vmatpush2.bf16.msra.mxu0 %v1775
    %2511 = vmatprep.subr.bf16.mxu0 %v1770
    %2512 = vmatpush2.bf16.msra.mxu0 %v1769
    %2513 = vmatprep.subr.bf16.mxu0 %v1764
    %2514 = vmatpush2.bf16.msra.mxu0 %v1763
    %2515 = vmatprep.mubr.bf16.mxu0 %v548
    %2516 = vmatmul.mubr.bf16.gmra.mxu0 %v547
    %v2517 = vpop.f32.mrf.mxu0
    %v2518 = vadd.f32 %v508, %v2517
    %v2519 = vpop.f32.mrf.mxu0
    %v2520 = vadd.f32 %v512, %v2519
    %v2521 = vpop.f32.mrf.mxu0
    %v2522 = vpop.f32.mrf.mxu0
    %2523 = vdwg.mxu0
    %2524 = vmatprep.subr.bf16.mxu0 %v1854
    %2525 = vmatpush1.bf16.msra.mxu0 %v1853
    %2526 = vmatprep.subr.bf16.mxu0 %v1848
    %2527 = vmatpush1.bf16.msra.mxu0 %v1847
    %2528 = vmatprep.subr.bf16.mxu0 %v1842
    %2529 = vmatpush1.bf16.msra.mxu0 %v1841
    %2530 = vmatprep.subr.bf16.mxu0 %v1836
    %2531 = vmatpush1.bf16.msra.mxu0 %v1835
    %2532 = vmatprep.subr.bf16.mxu0 %v1830
    %2533 = vmatpush1.bf16.msra.mxu0 %v1829
    %2534 = vmatprep.subr.bf16.mxu0 %v1824
    %2535 = vmatpush1.bf16.msra.mxu0 %v1823
    %2536 = vmatprep.subr.bf16.mxu0 %v1818
    %2537 = vmatpush1.bf16.msra.mxu0 %v1817
    %2538 = vmatprep.subr.bf16.mxu0 %v1812
    %2539 = vmatpush1.bf16.msra.mxu0 %v1811
    %2540 = vmatprep.subr.bf16.mxu0 %v1902
    %2541 = vmatpush2.bf16.msra.mxu0 %v1901
    %2542 = vmatprep.subr.bf16.mxu0 %v1896
    %2543 = vmatpush2.bf16.msra.mxu0 %v1895
    %2544 = vmatprep.subr.bf16.mxu0 %v1890
    %2545 = vmatpush2.bf16.msra.mxu0 %v1889
    %2546 = vmatprep.subr.bf16.mxu0 %v1884
    %2547 = vmatpush2.bf16.msra.mxu0 %v1883
    %2548 = vmatprep.subr.bf16.mxu0 %v1878
    %2549 = vmatpush2.bf16.msra.mxu0 %v1877
    %2550 = vmatprep.subr.bf16.mxu0 %v1872
    %2551 = vmatpush2.bf16.msra.mxu0 %v1871
    %2552 = vmatprep.subr.bf16.mxu0 %v1866
    %2553 = vmatpush2.bf16.msra.mxu0 %v1865
    %2554 = vmatprep.subr.bf16.mxu0 %v1860
    %2555 = vmatpush2.bf16.msra.mxu0 %v1859
    %2556 = vmatprep.mubr.bf16.mxu0 %v550
    %2557 = vmatmul.mubr.bf16.gmra.mxu0 %v549
    %v2558 = vpop.f32.mrf.mxu0
    %v2559 = vadd.f32 %v2518, %v2558
    %v2560 = vpop.f32.mrf.mxu0
    %v2561 = vadd.f32 %v2520, %v2560
    %v2562 = vpop.f32.mrf.mxu0
    %v2563 = vpop.f32.mrf.mxu0
    %2564 = vdwg.mxu0
    %2565 = vmatprep.subr.bf16.mxu0 %v1950
    %2566 = vmatpush1.bf16.msra.mxu0 %v1949
    %2567 = vmatprep.subr.bf16.mxu0 %v1944
    %2568 = vmatpush1.bf16.msra.mxu0 %v1943
    %2569 = vmatprep.subr.bf16.mxu0 %v1938
    %2570 = vmatpush1.bf16.msra.mxu0 %v1937
    %2571 = vmatprep.subr.bf16.mxu0 %v1932
    %2572 = vmatpush1.bf16.msra.mxu0 %v1931
    %2573 = vmatprep.subr.bf16.mxu0 %v1926
    %2574 = vmatpush1.bf16.msra.mxu0 %v1925
    %2575 = vmatprep.subr.bf16.mxu0 %v1920
    %2576 = vmatpush1.bf16.msra.mxu0 %v1919
    %2577 = vmatprep.subr.bf16.mxu0 %v1914
    %2578 = vmatpush1.bf16.msra.mxu0 %v1913
    %2579 = vmatprep.subr.bf16.mxu0 %v1908
    %2580 = vmatpush1.bf16.msra.mxu0 %v1907
    %2581 = vmatprep.subr.bf16.mxu0 %v1998
    %2582 = vmatpush2.bf16.msra.mxu0 %v1997
    %2583 = vmatprep.subr.bf16.mxu0 %v1992
    %2584 = vmatpush2.bf16.msra.mxu0 %v1991
    %2585 = vmatprep.subr.bf16.mxu0 %v1986
    %2586 = vmatpush2.bf16.msra.mxu0 %v1985
    %2587 = vmatprep.subr.bf16.mxu0 %v1980
    %2588 = vmatpush2.bf16.msra.mxu0 %v1979
    %2589 = vmatprep.subr.bf16.mxu0 %v1974
    %2590 = vmatpush2.bf16.msra.mxu0 %v1973
    %2591 = vmatprep.subr.bf16.mxu0 %v1968
    %2592 = vmatpush2.bf16.msra.mxu0 %v1967
    %2593 = vmatprep.subr.bf16.mxu0 %v1962
    %2594 = vmatpush2.bf16.msra.mxu0 %v1961
    %2595 = vmatprep.subr.bf16.mxu0 %v1956
    %2596 = vmatpush2.bf16.msra.mxu0 %v1955
    %2597 = vmatprep.mubr.bf16.mxu0 %v552
    %2598 = vmatmul.mubr.bf16.gmra.mxu0 %v551
    %v2599 = vpop.f32.mrf.mxu0
    %v2600 = vadd.f32 %v2559, %v2599
    %v2601 = vpop.f32.mrf.mxu0
    %v2602 = vadd.f32 %v2561, %v2601
    %v2603 = vpop.f32.mrf.mxu0
    %v2604 = vpop.f32.mrf.mxu0
    %2605 = vdwg.mxu0
    %2606 = vmatprep.subr.bf16.mxu0 %v2046
    %2607 = vmatpush1.bf16.msra.mxu0 %v2045
    %2608 = vmatprep.subr.bf16.mxu0 %v2040
    %2609 = vmatpush1.bf16.msra.mxu0 %v2039
    %2610 = vmatprep.subr.bf16.mxu0 %v2034
    %2611 = vmatpush1.bf16.msra.mxu0 %v2033
    %2612 = vmatprep.subr.bf16.mxu0 %v2028
    %2613 = vmatpush1.bf16.msra.mxu0 %v2027
    %2614 = vmatprep.subr.bf16.mxu0 %v2022
    %2615 = vmatpush1.bf16.msra.mxu0 %v2021
    %2616 = vmatprep.subr.bf16.mxu0 %v2016
    %2617 = vmatpush1.bf16.msra.mxu0 %v2015
    %2618 = vmatprep.subr.bf16.mxu0 %v2010
    %2619 = vmatpush1.bf16.msra.mxu0 %v2009
    %2620 = vmatprep.subr.bf16.mxu0 %v2004
    %2621 = vmatpush1.bf16.msra.mxu0 %v2003
    %2622 = vmatprep.subr.bf16.mxu0 %v2094
    %2623 = vmatpush2.bf16.msra.mxu0 %v2093
    %2624 = vmatprep.subr.bf16.mxu0 %v2088
    %2625 = vmatpush2.bf16.msra.mxu0 %v2087
    %2626 = vmatprep.subr.bf16.mxu0 %v2082
    %2627 = vmatpush2.bf16.msra.mxu0 %v2081
    %2628 = vmatprep.subr.bf16.mxu0 %v2076
    %2629 = vmatpush2.bf16.msra.mxu0 %v2075
    %2630 = vmatprep.subr.bf16.mxu0 %v2070
    %2631 = vmatpush2.bf16.msra.mxu0 %v2069
    %2632 = vmatprep.subr.bf16.mxu0 %v2064
    %2633 = vmatpush2.bf16.msra.mxu0 %v2063
    %2634 = vmatprep.subr.bf16.mxu0 %v2058
    %2635 = vmatpush2.bf16.msra.mxu0 %v2057
    %2636 = vmatprep.subr.bf16.mxu0 %v2052
    %2637 = vmatpush2.bf16.msra.mxu0 %v2051
    %2638 = vmatprep.mubr.bf16.mxu0 %v554
    %2639 = vmatmul.mubr.bf16.gmra.mxu0 %v553
    %v2640 = vpop.f32.mrf.mxu0
    %v2641 = vadd.f32 %v2600, %v2640
    %v2642 = vpop.f32.mrf.mxu0
    %v2643 = vadd.f32 %v2602, %v2642
    %v2644 = vpop.f32.mrf.mxu0
    %v2645 = vpop.f32.mrf.mxu0
    %2646 = vdwg.mxu0
    %2647 = vmatprep.subr.bf16.mxu0 %v1760
    %2648 = vmatpush1.bf16.msra.mxu0 %v1759
    %2649 = vmatprep.subr.bf16.mxu0 %v1754
    %2650 = vmatpush1.bf16.msra.mxu0 %v1753
    %2651 = vmatprep.subr.bf16.mxu0 %v1748
    %2652 = vmatpush1.bf16.msra.mxu0 %v1747
    %2653 = vmatprep.subr.bf16.mxu0 %v1742
    %2654 = vmatpush1.bf16.msra.mxu0 %v1741
    %2655 = vmatprep.subr.bf16.mxu0 %v1736
    %2656 = vmatpush1.bf16.msra.mxu0 %v1735
    %2657 = vmatprep.subr.bf16.mxu0 %v1730
    %2658 = vmatpush1.bf16.msra.mxu0 %v1729
    %2659 = vmatprep.subr.bf16.mxu0 %v1724
    %2660 = vmatpush1.bf16.msra.mxu0 %v1723
    %2661 = vmatprep.subr.bf16.mxu0 %v1718
    %2662 = vmatpush1.bf16.msra.mxu0 %v1717
    %2663 = vmatprep.subr.bf16.mxu0 %v1808
    %2664 = vmatpush2.bf16.msra.mxu0 %v1807
    %2665 = vmatprep.subr.bf16.mxu0 %v1802
    %2666 = vmatpush2.bf16.msra.mxu0 %v1801
    %2667 = vmatprep.subr.bf16.mxu0 %v1796
    %2668 = vmatpush2.bf16.msra.mxu0 %v1795
    %2669 = vmatprep.subr.bf16.mxu0 %v1790
    %2670 = vmatpush2.bf16.msra.mxu0 %v1789
    %2671 = vmatprep.subr.bf16.mxu0 %v1784
    %2672 = vmatpush2.bf16.msra.mxu0 %v1783
    %2673 = vmatprep.subr.bf16.mxu0 %v1778
    %2674 = vmatpush2.bf16.msra.mxu0 %v1777
    %2675 = vmatprep.subr.bf16.mxu0 %v1772
    %2676 = vmatpush2.bf16.msra.mxu0 %v1771
    %2677 = vmatprep.subr.bf16.mxu0 %v1766
    %2678 = vmatpush2.bf16.msra.mxu0 %v1765
    %2679 = vmatprep.mubr.bf16.mxu0 %v548
    %2680 = vmatmul.mubr.bf16.gmra.mxu0 %v547
    %v2681 = vpop.f32.mrf.mxu0
    %v2682 = vadd.f32 %v516, %v2681
    %v2683 = vpop.f32.mrf.mxu0
    %v2684 = vadd.f32 %v520, %v2683
    %v2685 = vpop.f32.mrf.mxu0
    %v2686 = vpop.f32.mrf.mxu0
    %2687 = vdwg.mxu0
    %2688 = vmatprep.subr.bf16.mxu0 %v1856
    %2689 = vmatpush1.bf16.msra.mxu0 %v1855
    %2690 = vmatprep.subr.bf16.mxu0 %v1850
    %2691 = vmatpush1.bf16.msra.mxu0 %v1849
    %2692 = vmatprep.subr.bf16.mxu0 %v1844
    %2693 = vmatpush1.bf16.msra.mxu0 %v1843
    %2694 = vmatprep.subr.bf16.mxu0 %v1838
    %2695 = vmatpush1.bf16.msra.mxu0 %v1837
    %2696 = vmatprep.subr.bf16.mxu0 %v1832
    %2697 = vmatpush1.bf16.msra.mxu0 %v1831
    %2698 = vmatprep.subr.bf16.mxu0 %v1826
    %2699 = vmatpush1.bf16.msra.mxu0 %v1825
    %2700 = vmatprep.subr.bf16.mxu0 %v1820
    %2701 = vmatpush1.bf16.msra.mxu0 %v1819
    %2702 = vmatprep.subr.bf16.mxu0 %v1814
    %2703 = vmatpush1.bf16.msra.mxu0 %v1813
    %2704 = vmatprep.subr.bf16.mxu0 %v1904
    %2705 = vmatpush2.bf16.msra.mxu0 %v1903
    %2706 = vmatprep.subr.bf16.mxu0 %v1898
    %2707 = vmatpush2.bf16.msra.mxu0 %v1897
    %2708 = vmatprep.subr.bf16.mxu0 %v1892
    %2709 = vmatpush2.bf16.msra.mxu0 %v1891
    %2710 = vmatprep.subr.bf16.mxu0 %v1886
    %2711 = vmatpush2.bf16.msra.mxu0 %v1885
    %2712 = vmatprep.subr.bf16.mxu0 %v1880
    %2713 = vmatpush2.bf16.msra.mxu0 %v1879
    %2714 = vmatprep.subr.bf16.mxu0 %v1874
    %2715 = vmatpush2.bf16.msra.mxu0 %v1873
    %2716 = vmatprep.subr.bf16.mxu0 %v1868
    %2717 = vmatpush2.bf16.msra.mxu0 %v1867
    %2718 = vmatprep.subr.bf16.mxu0 %v1862
    %2719 = vmatpush2.bf16.msra.mxu0 %v1861
    %2720 = vmatprep.mubr.bf16.mxu0 %v550
    %2721 = vmatmul.mubr.bf16.gmra.mxu0 %v549
    %v2722 = vpop.f32.mrf.mxu0
    %v2723 = vadd.f32 %v2682, %v2722
    %v2724 = vpop.f32.mrf.mxu0
    %v2725 = vadd.f32 %v2684, %v2724
    %v2726 = vpop.f32.mrf.mxu0
    %v2727 = vpop.f32.mrf.mxu0
    %2728 = vdwg.mxu0
    %2729 = vmatprep.subr.bf16.mxu0 %v1952
    %2730 = vmatpush1.bf16.msra.mxu0 %v1951
    %2731 = vmatprep.subr.bf16.mxu0 %v1946
    %2732 = vmatpush1.bf16.msra.mxu0 %v1945
    %2733 = vmatprep.subr.bf16.mxu0 %v1940
    %2734 = vmatpush1.bf16.msra.mxu0 %v1939
    %2735 = vmatprep.subr.bf16.mxu0 %v1934
    %2736 = vmatpush1.bf16.msra.mxu0 %v1933
    %2737 = vmatprep.subr.bf16.mxu0 %v1928
    %2738 = vmatpush1.bf16.msra.mxu0 %v1927
    %2739 = vmatprep.subr.bf16.mxu0 %v1922
    %2740 = vmatpush1.bf16.msra.mxu0 %v1921
    %2741 = vmatprep.subr.bf16.mxu0 %v1916
    %2742 = vmatpush1.bf16.msra.mxu0 %v1915
    %2743 = vmatprep.subr.bf16.mxu0 %v1910
    %2744 = vmatpush1.bf16.msra.mxu0 %v1909
    %2745 = vmatprep.subr.bf16.mxu0 %v2000
    %2746 = vmatpush2.bf16.msra.mxu0 %v1999
    %2747 = vmatprep.subr.bf16.mxu0 %v1994
    %2748 = vmatpush2.bf16.msra.mxu0 %v1993
    %2749 = vmatprep.subr.bf16.mxu0 %v1988
    %2750 = vmatpush2.bf16.msra.mxu0 %v1987
    %2751 = vmatprep.subr.bf16.mxu0 %v1982
    %2752 = vmatpush2.bf16.msra.mxu0 %v1981
    %2753 = vmatprep.subr.bf16.mxu0 %v1976
    %2754 = vmatpush2.bf16.msra.mxu0 %v1975
    %2755 = vmatprep.subr.bf16.mxu0 %v1970
    %2756 = vmatpush2.bf16.msra.mxu0 %v1969
    %2757 = vmatprep.subr.bf16.mxu0 %v1964
    %2758 = vmatpush2.bf16.msra.mxu0 %v1963
    %2759 = vmatprep.subr.bf16.mxu0 %v1958
    %2760 = vmatpush2.bf16.msra.mxu0 %v1957
    %2761 = vmatprep.mubr.bf16.mxu0 %v552
    %2762 = vmatmul.mubr.bf16.gmra.mxu0 %v551
    %v2763 = vpop.f32.mrf.mxu0
    %v2764 = vadd.f32 %v2723, %v2763
    %v2765 = vpop.f32.mrf.mxu0
    %v2766 = vadd.f32 %v2725, %v2765
    %v2767 = vpop.f32.mrf.mxu0
    %v2768 = vpop.f32.mrf.mxu0
    %2769 = vdwg.mxu0
    %2770 = vmatprep.subr.bf16.mxu0 %v2048
    %2771 = vmatpush1.bf16.msra.mxu0 %v2047
    %2772 = vmatprep.subr.bf16.mxu0 %v2042
    %2773 = vmatpush1.bf16.msra.mxu0 %v2041
    %2774 = vmatprep.subr.bf16.mxu0 %v2036
    %2775 = vmatpush1.bf16.msra.mxu0 %v2035
    %2776 = vmatprep.subr.bf16.mxu0 %v2030
    %2777 = vmatpush1.bf16.msra.mxu0 %v2029
    %2778 = vmatprep.subr.bf16.mxu0 %v2024
    %2779 = vmatpush1.bf16.msra.mxu0 %v2023
    %2780 = vmatprep.subr.bf16.mxu0 %v2018
    %2781 = vmatpush1.bf16.msra.mxu0 %v2017
    %2782 = vmatprep.subr.bf16.mxu0 %v2012
    %2783 = vmatpush1.bf16.msra.mxu0 %v2011
    %2784 = vmatprep.subr.bf16.mxu0 %v2006
    %2785 = vmatpush1.bf16.msra.mxu0 %v2005
    %2786 = vmatprep.subr.bf16.mxu0 %v2096
    %2787 = vmatpush2.bf16.msra.mxu0 %v2095
    %2788 = vmatprep.subr.bf16.mxu0 %v2090
    %2789 = vmatpush2.bf16.msra.mxu0 %v2089
    %2790 = vmatprep.subr.bf16.mxu0 %v2084
    %2791 = vmatpush2.bf16.msra.mxu0 %v2083
    %2792 = vmatprep.subr.bf16.mxu0 %v2078
    %2793 = vmatpush2.bf16.msra.mxu0 %v2077
    %2794 = vmatprep.subr.bf16.mxu0 %v2072
    %2795 = vmatpush2.bf16.msra.mxu0 %v2071
    %2796 = vmatprep.subr.bf16.mxu0 %v2066
    %2797 = vmatpush2.bf16.msra.mxu0 %v2065
    %2798 = vmatprep.subr.bf16.mxu0 %v2060
    %2799 = vmatpush2.bf16.msra.mxu0 %v2059
    %2800 = vmatprep.subr.bf16.mxu0 %v2054
    %2801 = vmatpush2.bf16.msra.mxu0 %v2053
    %2802 = vmatprep.mubr.bf16.mxu0 %v554
    %2803 = vmatmul.mubr.bf16.gmra.mxu0 %v553
    %v2804 = vpop.f32.mrf.mxu0
    %v2805 = vadd.f32 %v2764, %v2804
    %v2806 = vpop.f32.mrf.mxu0
    %v2807 = vadd.f32 %v2766, %v2806
    %v2808 = vpop.f32.mrf.mxu0
    %v2809 = vpop.f32.mrf.mxu0
    %2810 = vdwg.mxu0
    %2811 = vmatprep.subr.bf16.mxu0 %v1762
    %2812 = vmatpush1.bf16.msra.mxu0 %v1761
    %2813 = vmatprep.subr.bf16.mxu0 %v1756
    %2814 = vmatpush1.bf16.msra.mxu0 %v1755
    %2815 = vmatprep.subr.bf16.mxu0 %v1750
    %2816 = vmatpush1.bf16.msra.mxu0 %v1749
    %2817 = vmatprep.subr.bf16.mxu0 %v1744
    %2818 = vmatpush1.bf16.msra.mxu0 %v1743
    %2819 = vmatprep.subr.bf16.mxu0 %v1738
    %2820 = vmatpush1.bf16.msra.mxu0 %v1737
    %2821 = vmatprep.subr.bf16.mxu0 %v1732
    %2822 = vmatpush1.bf16.msra.mxu0 %v1731
    %2823 = vmatprep.subr.bf16.mxu0 %v1726
    %2824 = vmatpush1.bf16.msra.mxu0 %v1725
    %2825 = vmatprep.subr.bf16.mxu0 %v1720
    %2826 = vmatpush1.bf16.msra.mxu0 %v1719
    %2827 = vmatprep.subr.bf16.mxu0 %v1810
    %2828 = vmatpush2.bf16.msra.mxu0 %v1809
    %2829 = vmatprep.subr.bf16.mxu0 %v1804
    %2830 = vmatpush2.bf16.msra.mxu0 %v1803
    %2831 = vmatprep.subr.bf16.mxu0 %v1798
    %2832 = vmatpush2.bf16.msra.mxu0 %v1797
    %2833 = vmatprep.subr.bf16.mxu0 %v1792
    %2834 = vmatpush2.bf16.msra.mxu0 %v1791
    %2835 = vmatprep.subr.bf16.mxu0 %v1786
    %2836 = vmatpush2.bf16.msra.mxu0 %v1785
    %2837 = vmatprep.subr.bf16.mxu0 %v1780
    %2838 = vmatpush2.bf16.msra.mxu0 %v1779
    %2839 = vmatprep.subr.bf16.mxu0 %v1774
    %2840 = vmatpush2.bf16.msra.mxu0 %v1773
    %2841 = vmatprep.subr.bf16.mxu0 %v1768
    %2842 = vmatpush2.bf16.msra.mxu0 %v1767
    %2843 = vmatprep.mubr.bf16.mxu0 %v548
    %2844 = vmatmul.mubr.bf16.gmra.mxu0 %v547
    %v2845 = vpop.f32.mrf.mxu0
    %v2846 = vadd.f32 %v524, %v2845
    %v2847 = vpop.f32.mrf.mxu0
    %v2848 = vadd.f32 %v528, %v2847
    %v2849 = vpop.f32.mrf.mxu0
    %v2850 = vpop.f32.mrf.mxu0
    %2851 = vdwg.mxu0
    %2852 = vmatprep.subr.bf16.mxu0 %v1858
    %2853 = vmatpush1.bf16.msra.mxu0 %v1857
    %2854 = vmatprep.subr.bf16.mxu0 %v1852
    %2855 = vmatpush1.bf16.msra.mxu0 %v1851
    %2856 = vmatprep.subr.bf16.mxu0 %v1846
    %2857 = vmatpush1.bf16.msra.mxu0 %v1845
    %2858 = vmatprep.subr.bf16.mxu0 %v1840
    %2859 = vmatpush1.bf16.msra.mxu0 %v1839
    %2860 = vmatprep.subr.bf16.mxu0 %v1834
    %2861 = vmatpush1.bf16.msra.mxu0 %v1833
    %2862 = vmatprep.subr.bf16.mxu0 %v1828
    %2863 = vmatpush1.bf16.msra.mxu0 %v1827
    %2864 = vmatprep.subr.bf16.mxu0 %v1822
    %2865 = vmatpush1.bf16.msra.mxu0 %v1821
    %2866 = vmatprep.subr.bf16.mxu0 %v1816
    %2867 = vmatpush1.bf16.msra.mxu0 %v1815
    %2868 = vmatprep.subr.bf16.mxu0 %v1906
    %2869 = vmatpush2.bf16.msra.mxu0 %v1905
    %2870 = vmatprep.subr.bf16.mxu0 %v1900
    %2871 = vmatpush2.bf16.msra.mxu0 %v1899
    %2872 = vmatprep.subr.bf16.mxu0 %v1894
    %2873 = vmatpush2.bf16.msra.mxu0 %v1893
    %2874 = vmatprep.subr.bf16.mxu0 %v1888
    %2875 = vmatpush2.bf16.msra.mxu0 %v1887
    %2876 = vmatprep.subr.bf16.mxu0 %v1882
    %2877 = vmatpush2.bf16.msra.mxu0 %v1881
    %2878 = vmatprep.subr.bf16.mxu0 %v1876
    %2879 = vmatpush2.bf16.msra.mxu0 %v1875
    %2880 = vmatprep.subr.bf16.mxu0 %v1870
    %2881 = vmatpush2.bf16.msra.mxu0 %v1869
    %2882 = vmatprep.subr.bf16.mxu0 %v1864
    %2883 = vmatpush2.bf16.msra.mxu0 %v1863
    %2884 = vmatprep.mubr.bf16.mxu0 %v550
    %2885 = vmatmul.mubr.bf16.gmra.mxu0 %v549
    %v2886 = vpop.f32.mrf.mxu0
    %v2887 = vadd.f32 %v2846, %v2886
    %v2888 = vpop.f32.mrf.mxu0
    %v2889 = vadd.f32 %v2848, %v2888
    %v2890 = vpop.f32.mrf.mxu0
    %v2891 = vpop.f32.mrf.mxu0
    %2892 = vdwg.mxu0
    %2893 = vmatprep.subr.bf16.mxu0 %v1954
    %2894 = vmatpush1.bf16.msra.mxu0 %v1953
    %2895 = vmatprep.subr.bf16.mxu0 %v1948
    %2896 = vmatpush1.bf16.msra.mxu0 %v1947
    %2897 = vmatprep.subr.bf16.mxu0 %v1942
    %2898 = vmatpush1.bf16.msra.mxu0 %v1941
    %2899 = vmatprep.subr.bf16.mxu0 %v1936
    %2900 = vmatpush1.bf16.msra.mxu0 %v1935
    %2901 = vmatprep.subr.bf16.mxu0 %v1930
    %2902 = vmatpush1.bf16.msra.mxu0 %v1929
    %2903 = vmatprep.subr.bf16.mxu0 %v1924
    %2904 = vmatpush1.bf16.msra.mxu0 %v1923
    %2905 = vmatprep.subr.bf16.mxu0 %v1918
    %2906 = vmatpush1.bf16.msra.mxu0 %v1917
    %2907 = vmatprep.subr.bf16.mxu0 %v1912
    %2908 = vmatpush1.bf16.msra.mxu0 %v1911
    %2909 = vmatprep.subr.bf16.mxu0 %v2002
    %2910 = vmatpush2.bf16.msra.mxu0 %v2001
    %2911 = vmatprep.subr.bf16.mxu0 %v1996
    %2912 = vmatpush2.bf16.msra.mxu0 %v1995
    %2913 = vmatprep.subr.bf16.mxu0 %v1990
    %2914 = vmatpush2.bf16.msra.mxu0 %v1989
    %2915 = vmatprep.subr.bf16.mxu0 %v1984
    %2916 = vmatpush2.bf16.msra.mxu0 %v1983
    %2917 = vmatprep.subr.bf16.mxu0 %v1978
    %2918 = vmatpush2.bf16.msra.mxu0 %v1977
    %2919 = vmatprep.subr.bf16.mxu0 %v1972
    %2920 = vmatpush2.bf16.msra.mxu0 %v1971
    %2921 = vmatprep.subr.bf16.mxu0 %v1966
    %2922 = vmatpush2.bf16.msra.mxu0 %v1965
    %2923 = vmatprep.subr.bf16.mxu0 %v1960
    %2924 = vmatpush2.bf16.msra.mxu0 %v1959
    %2925 = vmatprep.mubr.bf16.mxu0 %v552
    %2926 = vmatmul.mubr.bf16.gmra.mxu0 %v551
    %v2927 = vpop.f32.mrf.mxu0
    %v2928 = vadd.f32 %v2887, %v2927
    %v2929 = vpop.f32.mrf.mxu0
    %v2930 = vadd.f32 %v2889, %v2929
    %v2931 = vpop.f32.mrf.mxu0
    %v2932 = vpop.f32.mrf.mxu0
    %2933 = vdwg.mxu0
    %2934 = vmatprep.subr.bf16.mxu0 %v2050
    %2935 = vmatpush1.bf16.msra.mxu0 %v2049
    %2936 = vmatprep.subr.bf16.mxu0 %v2044
    %2937 = vmatpush1.bf16.msra.mxu0 %v2043
    %2938 = vmatprep.subr.bf16.mxu0 %v2038
    %2939 = vmatpush1.bf16.msra.mxu0 %v2037
    %2940 = vmatprep.subr.bf16.mxu0 %v2032
    %2941 = vmatpush1.bf16.msra.mxu0 %v2031
    %2942 = vmatprep.subr.bf16.mxu0 %v2026
    %2943 = vmatpush1.bf16.msra.mxu0 %v2025
    %2944 = vmatprep.subr.bf16.mxu0 %v2020
    %2945 = vmatpush1.bf16.msra.mxu0 %v2019
    %2946 = vmatprep.subr.bf16.mxu0 %v2014
    %2947 = vmatpush1.bf16.msra.mxu0 %v2013
    %2948 = vmatprep.subr.bf16.mxu0 %v2008
    %2949 = vmatpush1.bf16.msra.mxu0 %v2007
    %2950 = vmatprep.subr.bf16.mxu0 %v2098
    %2951 = vmatpush2.bf16.msra.mxu0 %v2097
    %2952 = vmatprep.subr.bf16.mxu0 %v2092
    %2953 = vmatpush2.bf16.msra.mxu0 %v2091
    %2954 = vmatprep.subr.bf16.mxu0 %v2086
    %2955 = vmatpush2.bf16.msra.mxu0 %v2085
    %2956 = vmatprep.subr.bf16.mxu0 %v2080
    %2957 = vmatpush2.bf16.msra.mxu0 %v2079
    %2958 = vmatprep.subr.bf16.mxu0 %v2074
    %2959 = vmatpush2.bf16.msra.mxu0 %v2073
    %2960 = vmatprep.subr.bf16.mxu0 %v2068
    %2961 = vmatpush2.bf16.msra.mxu0 %v2067
    %2962 = vmatprep.subr.bf16.mxu0 %v2062
    %2963 = vmatpush2.bf16.msra.mxu0 %v2061
    %2964 = vmatprep.subr.bf16.mxu0 %v2056
    %2965 = vmatpush2.bf16.msra.mxu0 %v2055
    %2966 = vmatprep.mubr.bf16.mxu0 %v554
    %2967 = vmatmul.mubr.bf16.gmra.mxu0 %v553
    %v2968 = vpop.f32.mrf.mxu0
    %v2969 = vadd.f32 %v2928, %v2968
    %v2970 = vpop.f32.mrf.mxu0
    %v2971 = vadd.f32 %v2930, %v2970
    %v2972 = vpop.f32.mrf.mxu0
    %v2973 = vpop.f32.mrf.mxu0
    %2974 = vdwg.mxu0
    %v2975 = vpack.c.bf16 %v2641, %v2641
    %v2976 = vpack.c.bf16 %v2643, %v2643
    %v2977 = vpack.c.bf16 %v2805, %v2805
    %v2978 = vpack.c.bf16 %v2807, %v2807
    %v2979 = vpack.c.bf16 %v2969, %v2969
    %v2980 = vpack.c.bf16 %v2971, %v2971
    %v2981 = vld [vmem:[#allocation8] sm:$0xff]
    %v2982 = vld [vmem:[#allocation8 + $0x8] sm:$0xff]
    %v2983 = vld [vmem:[#allocation8 + $0x10] sm:$0xff]
    %v2984 = vld [vmem:[#allocation8 + $0x18] sm:$0xff]
    %v2985 = vld [vmem:[#allocation8 + $0x20] sm:$0xff]
    %v2986 = vld [vmem:[#allocation8 + $0x28] sm:$0xff]
    %v2987 = vld [vmem:[#allocation8 + $0x30] sm:$0xff]
    %v2988 = vld [vmem:[#allocation8 + $0x38] sm:$0xff]
    %v2989 = vld [vmem:[#allocation8 + $0x40] sm:$0xff]
    %v2990 = vld [vmem:[#allocation8 + $0x48] sm:$0xff]
    %v2991 = vld [vmem:[#allocation8 + $0x50] sm:$0xff]
    %v2992 = vld [vmem:[#allocation8 + $0x58] sm:$0xff]
    %v2993 = vld [vmem:[#allocation8 + $0x60] sm:$0xff]
    %v2994 = vld [vmem:[#allocation8 + $0x68] sm:$0xff]
    %v2995 = vld [vmem:[#allocation8 + $0x70] sm:$0xff]
    %v2996 = vld [vmem:[#allocation8 + $0x78] sm:$0xff]
    %v2997 = vld [vmem:[#allocation8 + $0x80] sm:$0xff]
    %v2998 = vld [vmem:[#allocation8 + $0x88] sm:$0xff]
    %v2999 = vld [vmem:[#allocation8 + $0x90] sm:$0xff]
    %v3000 = vld [vmem:[#allocation8 + $0x98] sm:$0xff]
    %v3001 = vld [vmem:[#allocation8 + $0xa0] sm:$0xff]
    %v3002 = vld [vmem:[#allocation8 + $0xa8] sm:$0xff]
    %v3003 = vld [vmem:[#allocation8 + $0xb0] sm:$0xff]
    %v3004 = vld [vmem:[#allocation8 + $0xb8] sm:$0xff]
    %v3005 = vld [vmem:[#allocation8 + $0xc0] sm:$0xff]
    %v3006 = vld [vmem:[#allocation8 + $0xc8] sm:$0xff]
    %v3007 = vld [vmem:[#allocation8 + $0xd0] sm:$0xff]
    %v3008 = vld [vmem:[#allocation8 + $0xd8] sm:$0xff]
    %v3009 = vld [vmem:[#allocation8 + $0xe0] sm:$0xff]
    %v3010 = vld [vmem:[#allocation8 + $0xe8] sm:$0xff]
    %v3011 = vld [vmem:[#allocation8 + $0xf0] sm:$0xff]
    %v3012 = vld [vmem:[#allocation8 + $0xf8] sm:$0xff]
    %v3013 = vld [vmem:[#allocation8 + $0x100] sm:$0xff]
    %v3014 = vld [vmem:[#allocation8 + $0x108] sm:$0xff]
    %v3015 = vld [vmem:[#allocation8 + $0x110] sm:$0xff]
    %v3016 = vld [vmem:[#allocation8 + $0x118] sm:$0xff]
    %v3017 = vld [vmem:[#allocation8 + $0x120] sm:$0xff]
    %v3018 = vld [vmem:[#allocation8 + $0x128] sm:$0xff]
    %v3019 = vld [vmem:[#allocation8 + $0x130] sm:$0xff]
    %v3020 = vld [vmem:[#allocation8 + $0x138] sm:$0xff]
    %v3021 = vld [vmem:[#allocation8 + $0x140] sm:$0xff]
    %v3022 = vld [vmem:[#allocation8 + $0x148] sm:$0xff]
    %v3023 = vld [vmem:[#allocation8 + $0x150] sm:$0xff]
    %v3024 = vld [vmem:[#allocation8 + $0x158] sm:$0xff]
    %v3025 = vld [vmem:[#allocation8 + $0x160] sm:$0xff]
    %v3026 = vld [vmem:[#allocation8 + $0x168] sm:$0xff]
    %v3027 = vld [vmem:[#allocation8 + $0x170] sm:$0xff]
    %v3028 = vld [vmem:[#allocation8 + $0x178] sm:$0xff]
    %v3029 = vld [vmem:[#allocation8 + $0x180] sm:$0xff]
    %v3030 = vld [vmem:[#allocation8 + $0x188] sm:$0xff]
    %v3031 = vld [vmem:[#allocation8 + $0x190] sm:$0xff]
    %v3032 = vld [vmem:[#allocation8 + $0x198] sm:$0xff]
    %v3033 = vld [vmem:[#allocation8 + $0x1a0] sm:$0xff]
    %v3034 = vld [vmem:[#allocation8 + $0x1a8] sm:$0xff]
    %v3035 = vld [vmem:[#allocation8 + $0x1b0] sm:$0xff]
    %v3036 = vld [vmem:[#allocation8 + $0x1b8] sm:$0xff]
    %v3037 = vld [vmem:[#allocation8 + $0x1c0] sm:$0xff]
    %v3038 = vld [vmem:[#allocation8 + $0x1c8] sm:$0xff]
    %v3039 = vld [vmem:[#allocation8 + $0x1d0] sm:$0xff]
    %v3040 = vld [vmem:[#allocation8 + $0x1d8] sm:$0xff]
    %v3041 = vld [vmem:[#allocation8 + $0x1e0] sm:$0xff]
    %v3042 = vld [vmem:[#allocation8 + $0x1e8] sm:$0xff]
    %v3043 = vld [vmem:[#allocation8 + $0x1f0] sm:$0xff]
    %v3044 = vld [vmem:[#allocation8 + $0x1f8] sm:$0xff]
    %v3045 = vld [vmem:[#allocation8 + $0x200] sm:$0xff]
    %v3046 = vld [vmem:[#allocation8 + $0x208] sm:$0xff]
    %v3047 = vld [vmem:[#allocation8 + $0x210] sm:$0xff]
    %v3048 = vld [vmem:[#allocation8 + $0x218] sm:$0xff]
    %v3049 = vld [vmem:[#allocation8 + $0x220] sm:$0xff]
    %v3050 = vld [vmem:[#allocation8 + $0x228] sm:$0xff]
    %v3051 = vld [vmem:[#allocation8 + $0x230] sm:$0xff]
    %v3052 = vld [vmem:[#allocation8 + $0x238] sm:$0xff]
    %v3053 = vld [vmem:[#allocation8 + $0x240] sm:$0xff]
    %v3054 = vld [vmem:[#allocation8 + $0x248] sm:$0xff]
    %v3055 = vld [vmem:[#allocation8 + $0x250] sm:$0xff]
    %v3056 = vld [vmem:[#allocation8 + $0x258] sm:$0xff]
    %v3057 = vld [vmem:[#allocation8 + $0x260] sm:$0xff]
    %v3058 = vld [vmem:[#allocation8 + $0x268] sm:$0xff]
    %v3059 = vld [vmem:[#allocation8 + $0x270] sm:$0xff]
    %v3060 = vld [vmem:[#allocation8 + $0x278] sm:$0xff]
    %v3061 = vld [vmem:[#allocation8 + $0x280] sm:$0xff]
    %v3062 = vld [vmem:[#allocation8 + $0x288] sm:$0xff]
    %v3063 = vld [vmem:[#allocation8 + $0x290] sm:$0xff]
    %v3064 = vld [vmem:[#allocation8 + $0x298] sm:$0xff]
    %v3065 = vld [vmem:[#allocation8 + $0x2a0] sm:$0xff]
    %v3066 = vld [vmem:[#allocation8 + $0x2a8] sm:$0xff]
    %v3067 = vld [vmem:[#allocation8 + $0x2b0] sm:$0xff]
    %v3068 = vld [vmem:[#allocation8 + $0x2b8] sm:$0xff]
    %v3069 = vld [vmem:[#allocation8 + $0x2c0] sm:$0xff]
    %v3070 = vld [vmem:[#allocation8 + $0x2c8] sm:$0xff]
    %v3071 = vld [vmem:[#allocation8 + $0x2d0] sm:$0xff]
    %v3072 = vld [vmem:[#allocation8 + $0x2d8] sm:$0xff]
    %v3073 = vld [vmem:[#allocation8 + $0x2e0] sm:$0xff]
    %v3074 = vld [vmem:[#allocation8 + $0x2e8] sm:$0xff]
    %v3075 = vld [vmem:[#allocation8 + $0x2f0] sm:$0xff]
    %v3076 = vld [vmem:[#allocation8 + $0x2f8] sm:$0xff]
    %v3077 = vld [vmem:[#allocation8 + $0x300] sm:$0xff]
    %v3078 = vld [vmem:[#allocation8 + $0x308] sm:$0xff]
    %v3079 = vld [vmem:[#allocation8 + $0x310] sm:$0xff]
    %v3080 = vld [vmem:[#allocation8 + $0x318] sm:$0xff]
    %v3081 = vld [vmem:[#allocation8 + $0x320] sm:$0xff]
    %v3082 = vld [vmem:[#allocation8 + $0x328] sm:$0xff]
    %v3083 = vld [vmem:[#allocation8 + $0x330] sm:$0xff]
    %v3084 = vld [vmem:[#allocation8 + $0x338] sm:$0xff]
    %v3085 = vld [vmem:[#allocation8 + $0x340] sm:$0xff]
    %v3086 = vld [vmem:[#allocation8 + $0x348] sm:$0xff]
    %v3087 = vld [vmem:[#allocation8 + $0x350] sm:$0xff]
    %v3088 = vld [vmem:[#allocation8 + $0x358] sm:$0xff]
    %v3089 = vld [vmem:[#allocation8 + $0x360] sm:$0xff]
    %v3090 = vld [vmem:[#allocation8 + $0x368] sm:$0xff]
    %v3091 = vld [vmem:[#allocation8 + $0x370] sm:$0xff]
    %v3092 = vld [vmem:[#allocation8 + $0x378] sm:$0xff]
    %v3093 = vld [vmem:[#allocation8 + $0x380] sm:$0xff]
    %v3094 = vld [vmem:[#allocation8 + $0x388] sm:$0xff]
    %v3095 = vld [vmem:[#allocation8 + $0x390] sm:$0xff]
    %v3096 = vld [vmem:[#allocation8 + $0x398] sm:$0xff]
    %v3097 = vld [vmem:[#allocation8 + $0x3a0] sm:$0xff]
    %v3098 = vld [vmem:[#allocation8 + $0x3a8] sm:$0xff]
    %v3099 = vld [vmem:[#allocation8 + $0x3b0] sm:$0xff]
    %v3100 = vld [vmem:[#allocation8 + $0x3b8] sm:$0xff]
    %v3101 = vld [vmem:[#allocation8 + $0x3c0] sm:$0xff]
    %v3102 = vld [vmem:[#allocation8 + $0x3c8] sm:$0xff]
    %v3103 = vld [vmem:[#allocation8 + $0x3d0] sm:$0xff]
    %v3104 = vld [vmem:[#allocation8 + $0x3d8] sm:$0xff]
    %v3105 = vld [vmem:[#allocation8 + $0x3e0] sm:$0xff]
    %v3106 = vld [vmem:[#allocation8 + $0x3e8] sm:$0xff]
    %v3107 = vld [vmem:[#allocation8 + $0x3f0] sm:$0xff]
    %v3108 = vld [vmem:[#allocation8 + $0x3f8] sm:$0xff]
    %v3109 = vld [vmem:[#allocation8 + $0x400] sm:$0xff]
    %v3110 = vld [vmem:[#allocation8 + $0x408] sm:$0xff]
    %v3111 = vld [vmem:[#allocation8 + $0x410] sm:$0xff]
    %v3112 = vld [vmem:[#allocation8 + $0x418] sm:$0xff]
    %v3113 = vld [vmem:[#allocation8 + $0x420] sm:$0xff]
    %v3114 = vld [vmem:[#allocation8 + $0x428] sm:$0xff]
    %v3115 = vld [vmem:[#allocation8 + $0x430] sm:$0xff]
    %v3116 = vld [vmem:[#allocation8 + $0x438] sm:$0xff]
    %v3117 = vld [vmem:[#allocation8 + $0x440] sm:$0xff]
    %v3118 = vld [vmem:[#allocation8 + $0x448] sm:$0xff]
    %v3119 = vld [vmem:[#allocation8 + $0x450] sm:$0xff]
    %v3120 = vld [vmem:[#allocation8 + $0x458] sm:$0xff]
    %v3121 = vld [vmem:[#allocation8 + $0x460] sm:$0xff]
    %v3122 = vld [vmem:[#allocation8 + $0x468] sm:$0xff]
    %v3123 = vld [vmem:[#allocation8 + $0x470] sm:$0xff]
    %v3124 = vld [vmem:[#allocation8 + $0x478] sm:$0xff]
    %v3125 = vld [vmem:[#allocation8 + $0x480] sm:$0xff]
    %v3126 = vld [vmem:[#allocation8 + $0x488] sm:$0xff]
    %v3127 = vld [vmem:[#allocation8 + $0x490] sm:$0xff]
    %v3128 = vld [vmem:[#allocation8 + $0x498] sm:$0xff]
    %v3129 = vld [vmem:[#allocation8 + $0x4a0] sm:$0xff]
    %v3130 = vld [vmem:[#allocation8 + $0x4a8] sm:$0xff]
    %v3131 = vld [vmem:[#allocation8 + $0x4b0] sm:$0xff]
    %v3132 = vld [vmem:[#allocation8 + $0x4b8] sm:$0xff]
    %v3133 = vld [vmem:[#allocation8 + $0x4c0] sm:$0xff]
    %v3134 = vld [vmem:[#allocation8 + $0x4c8] sm:$0xff]
    %v3135 = vld [vmem:[#allocation8 + $0x4d0] sm:$0xff]
    %v3136 = vld [vmem:[#allocation8 + $0x4d8] sm:$0xff]
    %v3137 = vld [vmem:[#allocation8 + $0x4e0] sm:$0xff]
    %v3138 = vld [vmem:[#allocation8 + $0x4e8] sm:$0xff]
    %v3139 = vld [vmem:[#allocation8 + $0x4f0] sm:$0xff]
    %v3140 = vld [vmem:[#allocation8 + $0x4f8] sm:$0xff]
    %v3141 = vld [vmem:[#allocation8 + $0x500] sm:$0xff]
    %v3142 = vld [vmem:[#allocation8 + $0x508] sm:$0xff]
    %v3143 = vld [vmem:[#allocation8 + $0x510] sm:$0xff]
    %v3144 = vld [vmem:[#allocation8 + $0x518] sm:$0xff]
    %v3145 = vld [vmem:[#allocation8 + $0x520] sm:$0xff]
    %v3146 = vld [vmem:[#allocation8 + $0x528] sm:$0xff]
    %v3147 = vld [vmem:[#allocation8 + $0x530] sm:$0xff]
    %v3148 = vld [vmem:[#allocation8 + $0x538] sm:$0xff]
    %v3149 = vld [vmem:[#allocation8 + $0x540] sm:$0xff]
    %v3150 = vld [vmem:[#allocation8 + $0x548] sm:$0xff]
    %v3151 = vld [vmem:[#allocation8 + $0x550] sm:$0xff]
    %v3152 = vld [vmem:[#allocation8 + $0x558] sm:$0xff]
    %v3153 = vld [vmem:[#allocation8 + $0x560] sm:$0xff]
    %v3154 = vld [vmem:[#allocation8 + $0x568] sm:$0xff]
    %v3155 = vld [vmem:[#allocation8 + $0x570] sm:$0xff]
    %v3156 = vld [vmem:[#allocation8 + $0x578] sm:$0xff]
    %v3157 = vld [vmem:[#allocation8 + $0x580] sm:$0xff]
    %v3158 = vld [vmem:[#allocation8 + $0x588] sm:$0xff]
    %v3159 = vld [vmem:[#allocation8 + $0x590] sm:$0xff]
    %v3160 = vld [vmem:[#allocation8 + $0x598] sm:$0xff]
    %v3161 = vld [vmem:[#allocation8 + $0x5a0] sm:$0xff]
    %v3162 = vld [vmem:[#allocation8 + $0x5a8] sm:$0xff]
    %v3163 = vld [vmem:[#allocation8 + $0x5b0] sm:$0xff]
    %v3164 = vld [vmem:[#allocation8 + $0x5b8] sm:$0xff]
    %v3165 = vld [vmem:[#allocation8 + $0x5c0] sm:$0xff]
    %v3166 = vld [vmem:[#allocation8 + $0x5c8] sm:$0xff]
    %v3167 = vld [vmem:[#allocation8 + $0x5d0] sm:$0xff]
    %v3168 = vld [vmem:[#allocation8 + $0x5d8] sm:$0xff]
    %v3169 = vld [vmem:[#allocation8 + $0x5e0] sm:$0xff]
    %v3170 = vld [vmem:[#allocation8 + $0x5e8] sm:$0xff]
    %v3171 = vld [vmem:[#allocation8 + $0x5f0] sm:$0xff]
    %v3172 = vld [vmem:[#allocation8 + $0x5f8] sm:$0xff]
    %v3173 = vld [vmem:[#allocation8 + $0x600] sm:$0xff]
    %v3174 = vld [vmem:[#allocation8 + $0x608] sm:$0xff]
    %v3175 = vld [vmem:[#allocation8 + $0x610] sm:$0xff]
    %v3176 = vld [vmem:[#allocation8 + $0x618] sm:$0xff]
    %v3177 = vld [vmem:[#allocation8 + $0x620] sm:$0xff]
    %v3178 = vld [vmem:[#allocation8 + $0x628] sm:$0xff]
    %v3179 = vld [vmem:[#allocation8 + $0x630] sm:$0xff]
    %v3180 = vld [vmem:[#allocation8 + $0x638] sm:$0xff]
    %v3181 = vld [vmem:[#allocation8 + $0x640] sm:$0xff]
    %v3182 = vld [vmem:[#allocation8 + $0x648] sm:$0xff]
    %v3183 = vld [vmem:[#allocation8 + $0x650] sm:$0xff]
    %v3184 = vld [vmem:[#allocation8 + $0x658] sm:$0xff]
    %v3185 = vld [vmem:[#allocation8 + $0x660] sm:$0xff]
    %v3186 = vld [vmem:[#allocation8 + $0x668] sm:$0xff]
    %v3187 = vld [vmem:[#allocation8 + $0x670] sm:$0xff]
    %v3188 = vld [vmem:[#allocation8 + $0x678] sm:$0xff]
    %v3189 = vld [vmem:[#allocation8 + $0x680] sm:$0xff]
    %v3190 = vld [vmem:[#allocation8 + $0x688] sm:$0xff]
    %v3191 = vld [vmem:[#allocation8 + $0x690] sm:$0xff]
    %v3192 = vld [vmem:[#allocation8 + $0x698] sm:$0xff]
    %v3193 = vld [vmem:[#allocation8 + $0x6a0] sm:$0xff]
    %v3194 = vld [vmem:[#allocation8 + $0x6a8] sm:$0xff]
    %v3195 = vld [vmem:[#allocation8 + $0x6b0] sm:$0xff]
    %v3196 = vld [vmem:[#allocation8 + $0x6b8] sm:$0xff]
    %v3197 = vld [vmem:[#allocation8 + $0x6c0] sm:$0xff]
    %v3198 = vld [vmem:[#allocation8 + $0x6c8] sm:$0xff]
    %v3199 = vld [vmem:[#allocation8 + $0x6d0] sm:$0xff]
    %v3200 = vld [vmem:[#allocation8 + $0x6d8] sm:$0xff]
    %v3201 = vld [vmem:[#allocation8 + $0x6e0] sm:$0xff]
    %v3202 = vld [vmem:[#allocation8 + $0x6e8] sm:$0xff]
    %v3203 = vld [vmem:[#allocation8 + $0x6f0] sm:$0xff]
    %v3204 = vld [vmem:[#allocation8 + $0x6f8] sm:$0xff]
    %v3205 = vld [vmem:[#allocation8 + $0x700] sm:$0xff]
    %v3206 = vld [vmem:[#allocation8 + $0x708] sm:$0xff]
    %v3207 = vld [vmem:[#allocation8 + $0x710] sm:$0xff]
    %v3208 = vld [vmem:[#allocation8 + $0x718] sm:$0xff]
    %v3209 = vld [vmem:[#allocation8 + $0x720] sm:$0xff]
    %v3210 = vld [vmem:[#allocation8 + $0x728] sm:$0xff]
    %v3211 = vld [vmem:[#allocation8 + $0x730] sm:$0xff]
    %v3212 = vld [vmem:[#allocation8 + $0x738] sm:$0xff]
    %v3213 = vld [vmem:[#allocation8 + $0x740] sm:$0xff]
    %v3214 = vld [vmem:[#allocation8 + $0x748] sm:$0xff]
    %v3215 = vld [vmem:[#allocation8 + $0x750] sm:$0xff]
    %v3216 = vld [vmem:[#allocation8 + $0x758] sm:$0xff]
    %v3217 = vld [vmem:[#allocation8 + $0x760] sm:$0xff]
    %v3218 = vld [vmem:[#allocation8 + $0x768] sm:$0xff]
    %v3219 = vld [vmem:[#allocation8 + $0x770] sm:$0xff]
    %v3220 = vld [vmem:[#allocation8 + $0x778] sm:$0xff]
    %v3221 = vld [vmem:[#allocation8 + $0x780] sm:$0xff]
    %v3222 = vld [vmem:[#allocation8 + $0x788] sm:$0xff]
    %v3223 = vld [vmem:[#allocation8 + $0x790] sm:$0xff]
    %v3224 = vld [vmem:[#allocation8 + $0x798] sm:$0xff]
    %v3225 = vld [vmem:[#allocation8 + $0x7a0] sm:$0xff]
    %v3226 = vld [vmem:[#allocation8 + $0x7a8] sm:$0xff]
    %v3227 = vld [vmem:[#allocation8 + $0x7b0] sm:$0xff]
    %v3228 = vld [vmem:[#allocation8 + $0x7b8] sm:$0xff]
    %v3229 = vld [vmem:[#allocation8 + $0x7c0] sm:$0xff]
    %v3230 = vld [vmem:[#allocation8 + $0x7c8] sm:$0xff]
    %v3231 = vld [vmem:[#allocation8 + $0x7d0] sm:$0xff]
    %v3232 = vld [vmem:[#allocation8 + $0x7d8] sm:$0xff]
    %v3233 = vld [vmem:[#allocation8 + $0x7e0] sm:$0xff]
    %v3234 = vld [vmem:[#allocation8 + $0x7e8] sm:$0xff]
    %v3235 = vld [vmem:[#allocation8 + $0x7f0] sm:$0xff]
    %v3236 = vld [vmem:[#allocation8 + $0x7f8] sm:$0xff]
    %v3237 = vld [vmem:[#allocation8 + $0x800] sm:$0xff]
    %v3238 = vld [vmem:[#allocation8 + $0x808] sm:$0xff]
    %v3239 = vld [vmem:[#allocation8 + $0x810] sm:$0xff]
    %v3240 = vld [vmem:[#allocation8 + $0x818] sm:$0xff]
    %v3241 = vld [vmem:[#allocation8 + $0x820] sm:$0xff]
    %v3242 = vld [vmem:[#allocation8 + $0x828] sm:$0xff]
    %v3243 = vld [vmem:[#allocation8 + $0x830] sm:$0xff]
    %v3244 = vld [vmem:[#allocation8 + $0x838] sm:$0xff]
    %v3245 = vld [vmem:[#allocation8 + $0x840] sm:$0xff]
    %v3246 = vld [vmem:[#allocation8 + $0x848] sm:$0xff]
    %v3247 = vld [vmem:[#allocation8 + $0x850] sm:$0xff]
    %v3248 = vld [vmem:[#allocation8 + $0x858] sm:$0xff]
    %v3249 = vld [vmem:[#allocation8 + $0x860] sm:$0xff]
    %v3250 = vld [vmem:[#allocation8 + $0x868] sm:$0xff]
    %v3251 = vld [vmem:[#allocation8 + $0x870] sm:$0xff]
    %v3252 = vld [vmem:[#allocation8 + $0x878] sm:$0xff]
    %v3253 = vld [vmem:[#allocation8 + $0x880] sm:$0xff]
    %v3254 = vld [vmem:[#allocation8 + $0x888] sm:$0xff]
    %v3255 = vld [vmem:[#allocation8 + $0x890] sm:$0xff]
    %v3256 = vld [vmem:[#allocation8 + $0x898] sm:$0xff]
    %v3257 = vld [vmem:[#allocation8 + $0x8a0] sm:$0xff]
    %v3258 = vld [vmem:[#allocation8 + $0x8a8] sm:$0xff]
    %v3259 = vld [vmem:[#allocation8 + $0x8b0] sm:$0xff]
    %v3260 = vld [vmem:[#allocation8 + $0x8b8] sm:$0xff]
    %v3261 = vld [vmem:[#allocation8 + $0x8c0] sm:$0xff]
    %v3262 = vld [vmem:[#allocation8 + $0x8c8] sm:$0xff]
    %v3263 = vld [vmem:[#allocation8 + $0x8d0] sm:$0xff]
    %v3264 = vld [vmem:[#allocation8 + $0x8d8] sm:$0xff]
    %v3265 = vld [vmem:[#allocation8 + $0x8e0] sm:$0xff]
    %v3266 = vld [vmem:[#allocation8 + $0x8e8] sm:$0xff]
    %v3267 = vld [vmem:[#allocation8 + $0x8f0] sm:$0xff]
    %v3268 = vld [vmem:[#allocation8 + $0x8f8] sm:$0xff]
    %v3269 = vld [vmem:[#allocation8 + $0x900] sm:$0xff]
    %v3270 = vld [vmem:[#allocation8 + $0x908] sm:$0xff]
    %v3271 = vld [vmem:[#allocation8 + $0x910] sm:$0xff]
    %v3272 = vld [vmem:[#allocation8 + $0x918] sm:$0xff]
    %v3273 = vld [vmem:[#allocation8 + $0x920] sm:$0xff]
    %v3274 = vld [vmem:[#allocation8 + $0x928] sm:$0xff]
    %v3275 = vld [vmem:[#allocation8 + $0x930] sm:$0xff]
    %v3276 = vld [vmem:[#allocation8 + $0x938] sm:$0xff]
    %v3277 = vld [vmem:[#allocation8 + $0x940] sm:$0xff]
    %v3278 = vld [vmem:[#allocation8 + $0x948] sm:$0xff]
    %v3279 = vld [vmem:[#allocation8 + $0x950] sm:$0xff]
    %v3280 = vld [vmem:[#allocation8 + $0x958] sm:$0xff]
    %v3281 = vld [vmem:[#allocation8 + $0x960] sm:$0xff]
    %v3282 = vld [vmem:[#allocation8 + $0x968] sm:$0xff]
    %v3283 = vld [vmem:[#allocation8 + $0x970] sm:$0xff]
    %v3284 = vld [vmem:[#allocation8 + $0x978] sm:$0xff]
    %v3285 = vld [vmem:[#allocation8 + $0x980] sm:$0xff]
    %v3286 = vld [vmem:[#allocation8 + $0x988] sm:$0xff]
    %v3287 = vld [vmem:[#allocation8 + $0x990] sm:$0xff]
    %v3288 = vld [vmem:[#allocation8 + $0x998] sm:$0xff]
    %v3289 = vld [vmem:[#allocation8 + $0x9a0] sm:$0xff]
    %v3290 = vld [vmem:[#allocation8 + $0x9a8] sm:$0xff]
    %v3291 = vld [vmem:[#allocation8 + $0x9b0] sm:$0xff]
    %v3292 = vld [vmem:[#allocation8 + $0x9b8] sm:$0xff]
    %v3293 = vld [vmem:[#allocation8 + $0x9c0] sm:$0xff]
    %v3294 = vld [vmem:[#allocation8 + $0x9c8] sm:$0xff]
    %v3295 = vld [vmem:[#allocation8 + $0x9d0] sm:$0xff]
    %v3296 = vld [vmem:[#allocation8 + $0x9d8] sm:$0xff]
    %v3297 = vld [vmem:[#allocation8 + $0x9e0] sm:$0xff]
    %v3298 = vld [vmem:[#allocation8 + $0x9e8] sm:$0xff]
    %v3299 = vld [vmem:[#allocation8 + $0x9f0] sm:$0xff]
    %v3300 = vld [vmem:[#allocation8 + $0x9f8] sm:$0xff]
    %v3301 = vld [vmem:[#allocation8 + $0xa00] sm:$0xff]
    %v3302 = vld [vmem:[#allocation8 + $0xa08] sm:$0xff]
    %v3303 = vld [vmem:[#allocation8 + $0xa10] sm:$0xff]
    %v3304 = vld [vmem:[#allocation8 + $0xa18] sm:$0xff]
    %v3305 = vld [vmem:[#allocation8 + $0xa20] sm:$0xff]
    %v3306 = vld [vmem:[#allocation8 + $0xa28] sm:$0xff]
    %v3307 = vld [vmem:[#allocation8 + $0xa30] sm:$0xff]
    %v3308 = vld [vmem:[#allocation8 + $0xa38] sm:$0xff]
    %v3309 = vld [vmem:[#allocation8 + $0xa40] sm:$0xff]
    %v3310 = vld [vmem:[#allocation8 + $0xa48] sm:$0xff]
    %v3311 = vld [vmem:[#allocation8 + $0xa50] sm:$0xff]
    %v3312 = vld [vmem:[#allocation8 + $0xa58] sm:$0xff]
    %v3313 = vld [vmem:[#allocation8 + $0xa60] sm:$0xff]
    %v3314 = vld [vmem:[#allocation8 + $0xa68] sm:$0xff]
    %v3315 = vld [vmem:[#allocation8 + $0xa70] sm:$0xff]
    %v3316 = vld [vmem:[#allocation8 + $0xa78] sm:$0xff]
    %v3317 = vld [vmem:[#allocation8 + $0xa80] sm:$0xff]
    %v3318 = vld [vmem:[#allocation8 + $0xa88] sm:$0xff]
    %v3319 = vld [vmem:[#allocation8 + $0xa90] sm:$0xff]
    %v3320 = vld [vmem:[#allocation8 + $0xa98] sm:$0xff]
    %v3321 = vld [vmem:[#allocation8 + $0xaa0] sm:$0xff]
    %v3322 = vld [vmem:[#allocation8 + $0xaa8] sm:$0xff]
    %v3323 = vld [vmem:[#allocation8 + $0xab0] sm:$0xff]
    %v3324 = vld [vmem:[#allocation8 + $0xab8] sm:$0xff]
    %v3325 = vld [vmem:[#allocation8 + $0xac0] sm:$0xff]
    %v3326 = vld [vmem:[#allocation8 + $0xac8] sm:$0xff]
    %v3327 = vld [vmem:[#allocation8 + $0xad0] sm:$0xff]
    %v3328 = vld [vmem:[#allocation8 + $0xad8] sm:$0xff]
    %v3329 = vld [vmem:[#allocation8 + $0xae0] sm:$0xff]
    %v3330 = vld [vmem:[#allocation8 + $0xae8] sm:$0xff]
    %v3331 = vld [vmem:[#allocation8 + $0xaf0] sm:$0xff]
    %v3332 = vld [vmem:[#allocation8 + $0xaf8] sm:$0xff]
    %v3333 = vld [vmem:[#allocation8 + $0xb00] sm:$0xff]
    %v3334 = vld [vmem:[#allocation8 + $0xb08] sm:$0xff]
    %v3335 = vld [vmem:[#allocation8 + $0xb10] sm:$0xff]
    %v3336 = vld [vmem:[#allocation8 + $0xb18] sm:$0xff]
    %v3337 = vld [vmem:[#allocation8 + $0xb20] sm:$0xff]
    %v3338 = vld [vmem:[#allocation8 + $0xb28] sm:$0xff]
    %v3339 = vld [vmem:[#allocation8 + $0xb30] sm:$0xff]
    %v3340 = vld [vmem:[#allocation8 + $0xb38] sm:$0xff]
    %v3341 = vld [vmem:[#allocation8 + $0xb40] sm:$0xff]
    %v3342 = vld [vmem:[#allocation8 + $0xb48] sm:$0xff]
    %v3343 = vld [vmem:[#allocation8 + $0xb50] sm:$0xff]
    %v3344 = vld [vmem:[#allocation8 + $0xb58] sm:$0xff]
    %v3345 = vld [vmem:[#allocation8 + $0xb60] sm:$0xff]
    %v3346 = vld [vmem:[#allocation8 + $0xb68] sm:$0xff]
    %v3347 = vld [vmem:[#allocation8 + $0xb70] sm:$0xff]
    %v3348 = vld [vmem:[#allocation8 + $0xb78] sm:$0xff]
    %v3349 = vld [vmem:[#allocation8 + $0xb80] sm:$0xff]
    %v3350 = vld [vmem:[#allocation8 + $0xb88] sm:$0xff]
    %v3351 = vld [vmem:[#allocation8 + $0xb90] sm:$0xff]
    %v3352 = vld [vmem:[#allocation8 + $0xb98] sm:$0xff]
    %v3353 = vld [vmem:[#allocation8 + $0xba0] sm:$0xff]
    %v3354 = vld [vmem:[#allocation8 + $0xba8] sm:$0xff]
    %v3355 = vld [vmem:[#allocation8 + $0xbb0] sm:$0xff]
    %v3356 = vld [vmem:[#allocation8 + $0xbb8] sm:$0xff]
    %v3357 = vld [vmem:[#allocation8 + $0xbc0] sm:$0xff]
    %v3358 = vld [vmem:[#allocation8 + $0xbc8] sm:$0xff]
    %v3359 = vld [vmem:[#allocation8 + $0xbd0] sm:$0xff]
    %v3360 = vld [vmem:[#allocation8 + $0xbd8] sm:$0xff]
    %v3361 = vld [vmem:[#allocation8 + $0xbe0] sm:$0xff]
    %v3362 = vld [vmem:[#allocation8 + $0xbe8] sm:$0xff]
    %v3363 = vld [vmem:[#allocation8 + $0xbf0] sm:$0xff]
    %v3364 = vld [vmem:[#allocation8 + $0xbf8] sm:$0xff]
    %v3365 = vld [vmem:[#allocation10] sm:$0xff]
    %v3367 = vlaneseq
    %v3368 = vshrl.u32 %v3367, 7
    %v3369 = vsub.s32 0, %v3368
    %v3370 = vrot.slane %v3365, %v3369
    %v3371 = vlaneseq
    %v3372 = vshrl.u32 %v3371, 7
    %v3373 = vsub.s32 1, %v3372
    %v3374 = vrot.slane %v3365, %v3373
    %v3375 = vlaneseq
    %v3376 = vshrl.u32 %v3375, 7
    %v3377 = vsub.s32 2, %v3376
    %v3378 = vrot.slane %v3365, %v3377
    %v3379 = vlaneseq
    %v3380 = vshrl.u32 %v3379, 7
    %v3381 = vsub.s32 3, %v3380
    %v3382 = vrot.slane %v3365, %v3381
    %v3383 = vlaneseq
    %v3384 = vshrl.u32 %v3383, 7
    %v3385 = vsub.s32 4, %v3384
    %v3386 = vrot.slane %v3365, %v3385
    %v3387 = vlaneseq
    %v3388 = vshrl.u32 %v3387, 7
    %v3389 = vsub.s32 5, %v3388
    %v3390 = vrot.slane %v3365, %v3389
    %v3391 = vlaneseq
    %v3392 = vshrl.u32 %v3391, 7
    %v3393 = vsub.s32 6, %v3392
    %v3394 = vrot.slane %v3365, %v3393
    %v3395 = vlaneseq
    %v3396 = vshrl.u32 %v3395, 7
    %v3397 = vsub.s32 7, %v3396
    %v3398 = vrot.slane %v3365, %v3397
    %v3791 = vunpack.c.l.b16 %v2981
    %v3792 = vunpack.c.h.b16 %v2981
    %v3793 = vunpack.c.l.b16 %v2982
    %v3794 = vunpack.c.h.b16 %v2982
    %v3795 = vunpack.c.l.b16 %v2983
    %v3796 = vunpack.c.h.b16 %v2983
    %v3797 = vunpack.c.l.b16 %v2984
    %v3798 = vunpack.c.h.b16 %v2984
    %v3799 = vunpack.c.l.b16 %v2985
    %v3800 = vunpack.c.h.b16 %v2985
    %v3801 = vunpack.c.l.b16 %v2986
    %v3802 = vunpack.c.h.b16 %v2986
    %v3803 = vunpack.c.l.b16 %v2987
    %v3804 = vunpack.c.h.b16 %v2987
    %v3805 = vunpack.c.l.b16 %v2988
    %v3806 = vunpack.c.h.b16 %v2988
    %v3807 = vunpack.c.l.b16 %v2989
    %v3808 = vunpack.c.h.b16 %v2989
    %v3809 = vunpack.c.l.b16 %v2990
    %v3810 = vunpack.c.h.b16 %v2990
    %v3811 = vunpack.c.l.b16 %v2991
    %v3812 = vunpack.c.h.b16 %v2991
    %v3813 = vunpack.c.l.b16 %v2992
    %v3814 = vunpack.c.h.b16 %v2992
    %v3815 = vunpack.c.l.b16 %v2993
    %v3816 = vunpack.c.h.b16 %v2993
    %v3817 = vunpack.c.l.b16 %v2994
    %v3818 = vunpack.c.h.b16 %v2994
    %v3819 = vunpack.c.l.b16 %v2995
    %v3820 = vunpack.c.h.b16 %v2995
    %v3821 = vunpack.c.l.b16 %v2996
    %v3822 = vunpack.c.h.b16 %v2996
    %v3823 = vunpack.c.l.b16 %v2997
    %v3824 = vunpack.c.h.b16 %v2997
    %v3825 = vunpack.c.l.b16 %v2998
    %v3826 = vunpack.c.h.b16 %v2998
    %v3827 = vunpack.c.l.b16 %v2999
    %v3828 = vunpack.c.h.b16 %v2999
    %v3829 = vunpack.c.l.b16 %v3000
    %v3830 = vunpack.c.h.b16 %v3000
    %v3831 = vunpack.c.l.b16 %v3001
    %v3832 = vunpack.c.h.b16 %v3001
    %v3833 = vunpack.c.l.b16 %v3002
    %v3834 = vunpack.c.h.b16 %v3002
    %v3835 = vunpack.c.l.b16 %v3003
    %v3836 = vunpack.c.h.b16 %v3003
    %v3837 = vunpack.c.l.b16 %v3004
    %v3838 = vunpack.c.h.b16 %v3004
    %v3839 = vunpack.c.l.b16 %v3005
    %v3840 = vunpack.c.h.b16 %v3005
    %v3841 = vunpack.c.l.b16 %v3006
    %v3842 = vunpack.c.h.b16 %v3006
    %v3843 = vunpack.c.l.b16 %v3007
    %v3844 = vunpack.c.h.b16 %v3007
    %v3845 = vunpack.c.l.b16 %v3008
    %v3846 = vunpack.c.h.b16 %v3008
    %v3847 = vunpack.c.l.b16 %v3009
    %v3848 = vunpack.c.h.b16 %v3009
    %v3849 = vunpack.c.l.b16 %v3010
    %v3850 = vunpack.c.h.b16 %v3010
    %v3851 = vunpack.c.l.b16 %v3011
    %v3852 = vunpack.c.h.b16 %v3011
    %v3853 = vunpack.c.l.b16 %v3012
    %v3854 = vunpack.c.h.b16 %v3012
    %v3855 = vunpack.c.l.b16 %v3013
    %v3856 = vunpack.c.h.b16 %v3013
    %v3857 = vunpack.c.l.b16 %v3014
    %v3858 = vunpack.c.h.b16 %v3014
    %v3859 = vunpack.c.l.b16 %v3015
    %v3860 = vunpack.c.h.b16 %v3015
    %v3861 = vunpack.c.l.b16 %v3016
    %v3862 = vunpack.c.h.b16 %v3016
    %v3863 = vunpack.c.l.b16 %v3017
    %v3864 = vunpack.c.h.b16 %v3017
    %v3865 = vunpack.c.l.b16 %v3018
    %v3866 = vunpack.c.h.b16 %v3018
    %v3867 = vunpack.c.l.b16 %v3019
    %v3868 = vunpack.c.h.b16 %v3019
    %v3869 = vunpack.c.l.b16 %v3020
    %v3870 = vunpack.c.h.b16 %v3020
    %v3871 = vunpack.c.l.b16 %v3021
    %v3872 = vunpack.c.h.b16 %v3021
    %v3873 = vunpack.c.l.b16 %v3022
    %v3874 = vunpack.c.h.b16 %v3022
    %v3875 = vunpack.c.l.b16 %v3023
    %v3876 = vunpack.c.h.b16 %v3023
    %v3877 = vunpack.c.l.b16 %v3024
    %v3878 = vunpack.c.h.b16 %v3024
    %v3879 = vunpack.c.l.b16 %v3025
    %v3880 = vunpack.c.h.b16 %v3025
    %v3881 = vunpack.c.l.b16 %v3026
    %v3882 = vunpack.c.h.b16 %v3026
    %v3883 = vunpack.c.l.b16 %v3027
    %v3884 = vunpack.c.h.b16 %v3027
    %v3885 = vunpack.c.l.b16 %v3028
    %v3886 = vunpack.c.h.b16 %v3028
    %v3887 = vunpack.c.l.b16 %v3029
    %v3888 = vunpack.c.h.b16 %v3029
    %v3889 = vunpack.c.l.b16 %v3030
    %v3890 = vunpack.c.h.b16 %v3030
    %v3891 = vunpack.c.l.b16 %v3031
    %v3892 = vunpack.c.h.b16 %v3031
    %v3893 = vunpack.c.l.b16 %v3032
    %v3894 = vunpack.c.h.b16 %v3032
    %v3895 = vunpack.c.l.b16 %v3033
    %v3896 = vunpack.c.h.b16 %v3033
    %v3897 = vunpack.c.l.b16 %v3034
    %v3898 = vunpack.c.h.b16 %v3034
    %v3899 = vunpack.c.l.b16 %v3035
    %v3900 = vunpack.c.h.b16 %v3035
    %v3901 = vunpack.c.l.b16 %v3036
    %v3902 = vunpack.c.h.b16 %v3036
    %v3903 = vunpack.c.l.b16 %v3037
    %v3904 = vunpack.c.h.b16 %v3037
    %v3905 = vunpack.c.l.b16 %v3038
    %v3906 = vunpack.c.h.b16 %v3038
    %v3907 = vunpack.c.l.b16 %v3039
    %v3908 = vunpack.c.h.b16 %v3039
    %v3909 = vunpack.c.l.b16 %v3040
    %v3910 = vunpack.c.h.b16 %v3040
    %v3911 = vunpack.c.l.b16 %v3041
    %v3912 = vunpack.c.h.b16 %v3041
    %v3913 = vunpack.c.l.b16 %v3042
    %v3914 = vunpack.c.h.b16 %v3042
    %v3915 = vunpack.c.l.b16 %v3043
    %v3916 = vunpack.c.h.b16 %v3043
    %v3917 = vunpack.c.l.b16 %v3044
    %v3918 = vunpack.c.h.b16 %v3044
    %v3919 = vunpack.c.l.b16 %v3045
    %v3920 = vunpack.c.h.b16 %v3045
    %v3921 = vunpack.c.l.b16 %v3046
    %v3922 = vunpack.c.h.b16 %v3046
    %v3923 = vunpack.c.l.b16 %v3047
    %v3924 = vunpack.c.h.b16 %v3047
    %v3925 = vunpack.c.l.b16 %v3048
    %v3926 = vunpack.c.h.b16 %v3048
    %v3927 = vunpack.c.l.b16 %v3049
    %v3928 = vunpack.c.h.b16 %v3049
    %v3929 = vunpack.c.l.b16 %v3050
    %v3930 = vunpack.c.h.b16 %v3050
    %v3931 = vunpack.c.l.b16 %v3051
    %v3932 = vunpack.c.h.b16 %v3051
    %v3933 = vunpack.c.l.b16 %v3052
    %v3934 = vunpack.c.h.b16 %v3052
    %v3935 = vunpack.c.l.b16 %v3053
    %v3936 = vunpack.c.h.b16 %v3053
    %v3937 = vunpack.c.l.b16 %v3054
    %v3938 = vunpack.c.h.b16 %v3054
    %v3939 = vunpack.c.l.b16 %v3055
    %v3940 = vunpack.c.h.b16 %v3055
    %v3941 = vunpack.c.l.b16 %v3056
    %v3942 = vunpack.c.h.b16 %v3056
    %v3943 = vunpack.c.l.b16 %v3057
    %v3944 = vunpack.c.h.b16 %v3057
    %v3945 = vunpack.c.l.b16 %v3058
    %v3946 = vunpack.c.h.b16 %v3058
    %v3947 = vunpack.c.l.b16 %v3059
    %v3948 = vunpack.c.h.b16 %v3059
    %v3949 = vunpack.c.l.b16 %v3060
    %v3950 = vunpack.c.h.b16 %v3060
    %v3951 = vunpack.c.l.b16 %v3061
    %v3952 = vunpack.c.h.b16 %v3061
    %v3953 = vunpack.c.l.b16 %v3062
    %v3954 = vunpack.c.h.b16 %v3062
    %v3955 = vunpack.c.l.b16 %v3063
    %v3956 = vunpack.c.h.b16 %v3063
    %v3957 = vunpack.c.l.b16 %v3064
    %v3958 = vunpack.c.h.b16 %v3064
    %v3959 = vunpack.c.l.b16 %v3065
    %v3960 = vunpack.c.h.b16 %v3065
    %v3961 = vunpack.c.l.b16 %v3066
    %v3962 = vunpack.c.h.b16 %v3066
    %v3963 = vunpack.c.l.b16 %v3067
    %v3964 = vunpack.c.h.b16 %v3067
    %v3965 = vunpack.c.l.b16 %v3068
    %v3966 = vunpack.c.h.b16 %v3068
    %v3967 = vunpack.c.l.b16 %v3069
    %v3968 = vunpack.c.h.b16 %v3069
    %v3969 = vunpack.c.l.b16 %v3070
    %v3970 = vunpack.c.h.b16 %v3070
    %v3971 = vunpack.c.l.b16 %v3071
    %v3972 = vunpack.c.h.b16 %v3071
    %v3973 = vunpack.c.l.b16 %v3072
    %v3974 = vunpack.c.h.b16 %v3072
    %v3975 = vunpack.c.l.b16 %v3073
    %v3976 = vunpack.c.h.b16 %v3073
    %v3977 = vunpack.c.l.b16 %v3074
    %v3978 = vunpack.c.h.b16 %v3074
    %v3979 = vunpack.c.l.b16 %v3075
    %v3980 = vunpack.c.h.b16 %v3075
    %v3981 = vunpack.c.l.b16 %v3076
    %v3982 = vunpack.c.h.b16 %v3076
    %v3983 = vunpack.c.l.b16 %v3077
    %v3984 = vunpack.c.h.b16 %v3077
    %v3985 = vunpack.c.l.b16 %v3078
    %v3986 = vunpack.c.h.b16 %v3078
    %v3987 = vunpack.c.l.b16 %v3079
    %v3988 = vunpack.c.h.b16 %v3079
    %v3989 = vunpack.c.l.b16 %v3080
    %v3990 = vunpack.c.h.b16 %v3080
    %v3991 = vunpack.c.l.b16 %v3081
    %v3992 = vunpack.c.h.b16 %v3081
    %v3993 = vunpack.c.l.b16 %v3082
    %v3994 = vunpack.c.h.b16 %v3082
    %v3995 = vunpack.c.l.b16 %v3083
    %v3996 = vunpack.c.h.b16 %v3083
    %v3997 = vunpack.c.l.b16 %v3084
    %v3998 = vunpack.c.h.b16 %v3084
    %v3999 = vunpack.c.l.b16 %v3085
    %v4000 = vunpack.c.h.b16 %v3085
    %v4001 = vunpack.c.l.b16 %v3086
    %v4002 = vunpack.c.h.b16 %v3086
    %v4003 = vunpack.c.l.b16 %v3087
    %v4004 = vunpack.c.h.b16 %v3087
    %v4005 = vunpack.c.l.b16 %v3088
    %v4006 = vunpack.c.h.b16 %v3088
    %v4007 = vunpack.c.l.b16 %v3089
    %v4008 = vunpack.c.h.b16 %v3089
    %v4009 = vunpack.c.l.b16 %v3090
    %v4010 = vunpack.c.h.b16 %v3090
    %v4011 = vunpack.c.l.b16 %v3091
    %v4012 = vunpack.c.h.b16 %v3091
    %v4013 = vunpack.c.l.b16 %v3092
    %v4014 = vunpack.c.h.b16 %v3092
    %v4015 = vunpack.c.l.b16 %v3093
    %v4016 = vunpack.c.h.b16 %v3093
    %v4017 = vunpack.c.l.b16 %v3094
    %v4018 = vunpack.c.h.b16 %v3094
    %v4019 = vunpack.c.l.b16 %v3095
    %v4020 = vunpack.c.h.b16 %v3095
    %v4021 = vunpack.c.l.b16 %v3096
    %v4022 = vunpack.c.h.b16 %v3096
    %v4023 = vunpack.c.l.b16 %v3097
    %v4024 = vunpack.c.h.b16 %v3097
    %v4025 = vunpack.c.l.b16 %v3098
    %v4026 = vunpack.c.h.b16 %v3098
    %v4027 = vunpack.c.l.b16 %v3099
    %v4028 = vunpack.c.h.b16 %v3099
    %v4029 = vunpack.c.l.b16 %v3100
    %v4030 = vunpack.c.h.b16 %v3100
    %v4031 = vunpack.c.l.b16 %v3101
    %v4032 = vunpack.c.h.b16 %v3101
    %v4033 = vunpack.c.l.b16 %v3102
    %v4034 = vunpack.c.h.b16 %v3102
    %v4035 = vunpack.c.l.b16 %v3103
    %v4036 = vunpack.c.h.b16 %v3103
    %v4037 = vunpack.c.l.b16 %v3104
    %v4038 = vunpack.c.h.b16 %v3104
    %v4039 = vunpack.c.l.b16 %v3105
    %v4040 = vunpack.c.h.b16 %v3105
    %v4041 = vunpack.c.l.b16 %v3106
    %v4042 = vunpack.c.h.b16 %v3106
    %v4043 = vunpack.c.l.b16 %v3107
    %v4044 = vunpack.c.h.b16 %v3107
    %v4045 = vunpack.c.l.b16 %v3108
    %v4046 = vunpack.c.h.b16 %v3108
    %v4047 = vunpack.c.l.b16 %v3109
    %v4048 = vunpack.c.h.b16 %v3109
    %v4049 = vunpack.c.l.b16 %v3110
    %v4050 = vunpack.c.h.b16 %v3110
    %v4051 = vunpack.c.l.b16 %v3111
    %v4052 = vunpack.c.h.b16 %v3111
    %v4053 = vunpack.c.l.b16 %v3112
    %v4054 = vunpack.c.h.b16 %v3112
    %v4055 = vunpack.c.l.b16 %v3113
    %v4056 = vunpack.c.h.b16 %v3113
    %v4057 = vunpack.c.l.b16 %v3114
    %v4058 = vunpack.c.h.b16 %v3114
    %v4059 = vunpack.c.l.b16 %v3115
    %v4060 = vunpack.c.h.b16 %v3115
    %v4061 = vunpack.c.l.b16 %v3116
    %v4062 = vunpack.c.h.b16 %v3116
    %v4063 = vunpack.c.l.b16 %v3117
    %v4064 = vunpack.c.h.b16 %v3117
    %v4065 = vunpack.c.l.b16 %v3118
    %v4066 = vunpack.c.h.b16 %v3118
    %v4067 = vunpack.c.l.b16 %v3119
    %v4068 = vunpack.c.h.b16 %v3119
    %v4069 = vunpack.c.l.b16 %v3120
    %v4070 = vunpack.c.h.b16 %v3120
    %v4071 = vunpack.c.l.b16 %v3121
    %v4072 = vunpack.c.h.b16 %v3121
    %v4073 = vunpack.c.l.b16 %v3122
    %v4074 = vunpack.c.h.b16 %v3122
    %v4075 = vunpack.c.l.b16 %v3123
    %v4076 = vunpack.c.h.b16 %v3123
    %v4077 = vunpack.c.l.b16 %v3124
    %v4078 = vunpack.c.h.b16 %v3124
    %v4079 = vunpack.c.l.b16 %v3125
    %v4080 = vunpack.c.h.b16 %v3125
    %v4081 = vunpack.c.l.b16 %v3126
    %v4082 = vunpack.c.h.b16 %v3126
    %v4083 = vunpack.c.l.b16 %v3127
    %v4084 = vunpack.c.h.b16 %v3127
    %v4085 = vunpack.c.l.b16 %v3128
    %v4086 = vunpack.c.h.b16 %v3128
    %v4087 = vunpack.c.l.b16 %v3129
    %v4088 = vunpack.c.h.b16 %v3129
    %v4089 = vunpack.c.l.b16 %v3130
    %v4090 = vunpack.c.h.b16 %v3130
    %v4091 = vunpack.c.l.b16 %v3131
    %v4092 = vunpack.c.h.b16 %v3131
    %v4093 = vunpack.c.l.b16 %v3132
    %v4094 = vunpack.c.h.b16 %v3132
    %v4095 = vunpack.c.l.b16 %v3133
    %v4096 = vunpack.c.h.b16 %v3133
    %v4097 = vunpack.c.l.b16 %v3134
    %v4098 = vunpack.c.h.b16 %v3134
    %v4099 = vunpack.c.l.b16 %v3135
    %v4100 = vunpack.c.h.b16 %v3135
    %v4101 = vunpack.c.l.b16 %v3136
    %v4102 = vunpack.c.h.b16 %v3136
    %v4103 = vunpack.c.l.b16 %v3137
    %v4104 = vunpack.c.h.b16 %v3137
    %v4105 = vunpack.c.l.b16 %v3138
    %v4106 = vunpack.c.h.b16 %v3138
    %v4107 = vunpack.c.l.b16 %v3139
    %v4108 = vunpack.c.h.b16 %v3139
    %v4109 = vunpack.c.l.b16 %v3140
    %v4110 = vunpack.c.h.b16 %v3140
    %v4111 = vunpack.c.l.b16 %v3141
    %v4112 = vunpack.c.h.b16 %v3141
    %v4113 = vunpack.c.l.b16 %v3142
    %v4114 = vunpack.c.h.b16 %v3142
    %v4115 = vunpack.c.l.b16 %v3143
    %v4116 = vunpack.c.h.b16 %v3143
    %v4117 = vunpack.c.l.b16 %v3144
    %v4118 = vunpack.c.h.b16 %v3144
    %v4119 = vunpack.c.l.b16 %v3145
    %v4120 = vunpack.c.h.b16 %v3145
    %v4121 = vunpack.c.l.b16 %v3146
    %v4122 = vunpack.c.h.b16 %v3146
    %v4123 = vunpack.c.l.b16 %v3147
    %v4124 = vunpack.c.h.b16 %v3147
    %v4125 = vunpack.c.l.b16 %v3148
    %v4126 = vunpack.c.h.b16 %v3148
    %v4127 = vunpack.c.l.b16 %v3149
    %v4128 = vunpack.c.h.b16 %v3149
    %v4129 = vunpack.c.l.b16 %v3150
    %v4130 = vunpack.c.h.b16 %v3150
    %v4131 = vunpack.c.l.b16 %v3151
    %v4132 = vunpack.c.h.b16 %v3151
    %v4133 = vunpack.c.l.b16 %v3152
    %v4134 = vunpack.c.h.b16 %v3152
    %v4135 = vunpack.c.l.b16 %v3153
    %v4136 = vunpack.c.h.b16 %v3153
    %v4137 = vunpack.c.l.b16 %v3154
    %v4138 = vunpack.c.h.b16 %v3154
    %v4139 = vunpack.c.l.b16 %v3155
    %v4140 = vunpack.c.h.b16 %v3155
    %v4141 = vunpack.c.l.b16 %v3156
    %v4142 = vunpack.c.h.b16 %v3156
    %v4143 = vunpack.c.l.b16 %v3157
    %v4144 = vunpack.c.h.b16 %v3157
    %v4145 = vunpack.c.l.b16 %v3158
    %v4146 = vunpack.c.h.b16 %v3158
    %v4147 = vunpack.c.l.b16 %v3159
    %v4148 = vunpack.c.h.b16 %v3159
    %v4149 = vunpack.c.l.b16 %v3160
    %v4150 = vunpack.c.h.b16 %v3160
    %v4151 = vunpack.c.l.b16 %v3161
    %v4152 = vunpack.c.h.b16 %v3161
    %v4153 = vunpack.c.l.b16 %v3162
    %v4154 = vunpack.c.h.b16 %v3162
    %v4155 = vunpack.c.l.b16 %v3163
    %v4156 = vunpack.c.h.b16 %v3163
    %v4157 = vunpack.c.l.b16 %v3164
    %v4158 = vunpack.c.h.b16 %v3164
    %v4159 = vunpack.c.l.b16 %v3165
    %v4160 = vunpack.c.h.b16 %v3165
    %v4161 = vunpack.c.l.b16 %v3166
    %v4162 = vunpack.c.h.b16 %v3166
    %v4163 = vunpack.c.l.b16 %v3167
    %v4164 = vunpack.c.h.b16 %v3167
    %v4165 = vunpack.c.l.b16 %v3168
    %v4166 = vunpack.c.h.b16 %v3168
    %v4167 = vunpack.c.l.b16 %v3169
    %v4168 = vunpack.c.h.b16 %v3169
    %v4169 = vunpack.c.l.b16 %v3170
    %v4170 = vunpack.c.h.b16 %v3170
    %v4171 = vunpack.c.l.b16 %v3171
    %v4172 = vunpack.c.h.b16 %v3171
    %v4173 = vunpack.c.l.b16 %v3172
    %v4174 = vunpack.c.h.b16 %v3172
    %v4175 = vunpack.c.l.b16 %v3173
    %v4176 = vunpack.c.h.b16 %v3173
    %v4177 = vunpack.c.l.b16 %v3174
    %v4178 = vunpack.c.h.b16 %v3174
    %v4179 = vunpack.c.l.b16 %v3175
    %v4180 = vunpack.c.h.b16 %v3175
    %v4181 = vunpack.c.l.b16 %v3176
    %v4182 = vunpack.c.h.b16 %v3176
    %v4183 = vunpack.c.l.b16 %v3177
    %v4184 = vunpack.c.h.b16 %v3177
    %v4185 = vunpack.c.l.b16 %v3178
    %v4186 = vunpack.c.h.b16 %v3178
    %v4187 = vunpack.c.l.b16 %v3179
    %v4188 = vunpack.c.h.b16 %v3179
    %v4189 = vunpack.c.l.b16 %v3180
    %v4190 = vunpack.c.h.b16 %v3180
    %v4191 = vunpack.c.l.b16 %v3181
    %v4192 = vunpack.c.h.b16 %v3181
    %v4193 = vunpack.c.l.b16 %v3182
    %v4194 = vunpack.c.h.b16 %v3182
    %v4195 = vunpack.c.l.b16 %v3183
    %v4196 = vunpack.c.h.b16 %v3183
    %v4197 = vunpack.c.l.b16 %v3184
    %v4198 = vunpack.c.h.b16 %v3184
    %v4199 = vunpack.c.l.b16 %v3185
    %v4200 = vunpack.c.h.b16 %v3185
    %v4201 = vunpack.c.l.b16 %v3186
    %v4202 = vunpack.c.h.b16 %v3186
    %v4203 = vunpack.c.l.b16 %v3187
    %v4204 = vunpack.c.h.b16 %v3187
    %v4205 = vunpack.c.l.b16 %v3188
    %v4206 = vunpack.c.h.b16 %v3188
    %v4207 = vunpack.c.l.b16 %v3189
    %v4208 = vunpack.c.h.b16 %v3189
    %v4209 = vunpack.c.l.b16 %v3190
    %v4210 = vunpack.c.h.b16 %v3190
    %v4211 = vunpack.c.l.b16 %v3191
    %v4212 = vunpack.c.h.b16 %v3191
    %v4213 = vunpack.c.l.b16 %v3192
    %v4214 = vunpack.c.h.b16 %v3192
    %v4215 = vunpack.c.l.b16 %v3193
    %v4216 = vunpack.c.h.b16 %v3193
    %v4217 = vunpack.c.l.b16 %v3194
    %v4218 = vunpack.c.h.b16 %v3194
    %v4219 = vunpack.c.l.b16 %v3195
    %v4220 = vunpack.c.h.b16 %v3195
    %v4221 = vunpack.c.l.b16 %v3196
    %v4222 = vunpack.c.h.b16 %v3196
    %v4223 = vunpack.c.l.b16 %v3197
    %v4224 = vunpack.c.h.b16 %v3197
    %v4225 = vunpack.c.l.b16 %v3198
    %v4226 = vunpack.c.h.b16 %v3198
    %v4227 = vunpack.c.l.b16 %v3199
    %v4228 = vunpack.c.h.b16 %v3199
    %v4229 = vunpack.c.l.b16 %v3200
    %v4230 = vunpack.c.h.b16 %v3200
    %v4231 = vunpack.c.l.b16 %v3201
    %v4232 = vunpack.c.h.b16 %v3201
    %v4233 = vunpack.c.l.b16 %v3202
    %v4234 = vunpack.c.h.b16 %v3202
    %v4235 = vunpack.c.l.b16 %v3203
    %v4236 = vunpack.c.h.b16 %v3203
    %v4237 = vunpack.c.l.b16 %v3204
    %v4238 = vunpack.c.h.b16 %v3204
    %v4239 = vunpack.c.l.b16 %v3205
    %v4240 = vunpack.c.h.b16 %v3205
    %v4241 = vunpack.c.l.b16 %v3206
    %v4242 = vunpack.c.h.b16 %v3206
    %v4243 = vunpack.c.l.b16 %v3207
    %v4244 = vunpack.c.h.b16 %v3207
    %v4245 = vunpack.c.l.b16 %v3208
    %v4246 = vunpack.c.h.b16 %v3208
    %v4247 = vunpack.c.l.b16 %v3209
    %v4248 = vunpack.c.h.b16 %v3209
    %v4249 = vunpack.c.l.b16 %v3210
    %v4250 = vunpack.c.h.b16 %v3210
    %v4251 = vunpack.c.l.b16 %v3211
    %v4252 = vunpack.c.h.b16 %v3211
    %v4253 = vunpack.c.l.b16 %v3212
    %v4254 = vunpack.c.h.b16 %v3212
    %v4255 = vunpack.c.l.b16 %v3213
    %v4256 = vunpack.c.h.b16 %v3213
    %v4257 = vunpack.c.l.b16 %v3214
    %v4258 = vunpack.c.h.b16 %v3214
    %v4259 = vunpack.c.l.b16 %v3215
    %v4260 = vunpack.c.h.b16 %v3215
    %v4261 = vunpack.c.l.b16 %v3216
    %v4262 = vunpack.c.h.b16 %v3216
    %v4263 = vunpack.c.l.b16 %v3217
    %v4264 = vunpack.c.h.b16 %v3217
    %v4265 = vunpack.c.l.b16 %v3218
    %v4266 = vunpack.c.h.b16 %v3218
    %v4267 = vunpack.c.l.b16 %v3219
    %v4268 = vunpack.c.h.b16 %v3219
    %v4269 = vunpack.c.l.b16 %v3220
    %v4270 = vunpack.c.h.b16 %v3220
    %v4271 = vunpack.c.l.b16 %v3221
    %v4272 = vunpack.c.h.b16 %v3221
    %v4273 = vunpack.c.l.b16 %v3222
    %v4274 = vunpack.c.h.b16 %v3222
    %v4275 = vunpack.c.l.b16 %v3223
    %v4276 = vunpack.c.h.b16 %v3223
    %v4277 = vunpack.c.l.b16 %v3224
    %v4278 = vunpack.c.h.b16 %v3224
    %v4279 = vunpack.c.l.b16 %v3225
    %v4280 = vunpack.c.h.b16 %v3225
    %v4281 = vunpack.c.l.b16 %v3226
    %v4282 = vunpack.c.h.b16 %v3226
    %v4283 = vunpack.c.l.b16 %v3227
    %v4284 = vunpack.c.h.b16 %v3227
    %v4285 = vunpack.c.l.b16 %v3228
    %v4286 = vunpack.c.h.b16 %v3228
    %v4287 = vunpack.c.l.b16 %v3229
    %v4288 = vunpack.c.h.b16 %v3229
    %v4289 = vunpack.c.l.b16 %v3230
    %v4290 = vunpack.c.h.b16 %v3230
    %v4291 = vunpack.c.l.b16 %v3231
    %v4292 = vunpack.c.h.b16 %v3231
    %v4293 = vunpack.c.l.b16 %v3232
    %v4294 = vunpack.c.h.b16 %v3232
    %v4295 = vunpack.c.l.b16 %v3233
    %v4296 = vunpack.c.h.b16 %v3233
    %v4297 = vunpack.c.l.b16 %v3234
    %v4298 = vunpack.c.h.b16 %v3234
    %v4299 = vunpack.c.l.b16 %v3235
    %v4300 = vunpack.c.h.b16 %v3235
    %v4301 = vunpack.c.l.b16 %v3236
    %v4302 = vunpack.c.h.b16 %v3236
    %v4303 = vunpack.c.l.b16 %v3237
    %v4304 = vunpack.c.h.b16 %v3237
    %v4305 = vunpack.c.l.b16 %v3238
    %v4306 = vunpack.c.h.b16 %v3238
    %v4307 = vunpack.c.l.b16 %v3239
    %v4308 = vunpack.c.h.b16 %v3239
    %v4309 = vunpack.c.l.b16 %v3240
    %v4310 = vunpack.c.h.b16 %v3240
    %v4311 = vunpack.c.l.b16 %v3241
    %v4312 = vunpack.c.h.b16 %v3241
    %v4313 = vunpack.c.l.b16 %v3242
    %v4314 = vunpack.c.h.b16 %v3242
    %v4315 = vunpack.c.l.b16 %v3243
    %v4316 = vunpack.c.h.b16 %v3243
    %v4317 = vunpack.c.l.b16 %v3244
    %v4318 = vunpack.c.h.b16 %v3244
    %v4319 = vunpack.c.l.b16 %v3245
    %v4320 = vunpack.c.h.b16 %v3245
    %v4321 = vunpack.c.l.b16 %v3246
    %v4322 = vunpack.c.h.b16 %v3246
    %v4323 = vunpack.c.l.b16 %v3247
    %v4324 = vunpack.c.h.b16 %v3247
    %v4325 = vunpack.c.l.b16 %v3248
    %v4326 = vunpack.c.h.b16 %v3248
    %v4327 = vunpack.c.l.b16 %v3249
    %v4328 = vunpack.c.h.b16 %v3249
    %v4329 = vunpack.c.l.b16 %v3250
    %v4330 = vunpack.c.h.b16 %v3250
    %v4331 = vunpack.c.l.b16 %v3251
    %v4332 = vunpack.c.h.b16 %v3251
    %v4333 = vunpack.c.l.b16 %v3252
    %v4334 = vunpack.c.h.b16 %v3252
    %v4335 = vunpack.c.l.b16 %v3253
    %v4336 = vunpack.c.h.b16 %v3253
    %v4337 = vunpack.c.l.b16 %v3254
    %v4338 = vunpack.c.h.b16 %v3254
    %v4339 = vunpack.c.l.b16 %v3255
    %v4340 = vunpack.c.h.b16 %v3255
    %v4341 = vunpack.c.l.b16 %v3256
    %v4342 = vunpack.c.h.b16 %v3256
    %v4343 = vunpack.c.l.b16 %v3257
    %v4344 = vunpack.c.h.b16 %v3257
    %v4345 = vunpack.c.l.b16 %v3258
    %v4346 = vunpack.c.h.b16 %v3258
    %v4347 = vunpack.c.l.b16 %v3259
    %v4348 = vunpack.c.h.b16 %v3259
    %v4349 = vunpack.c.l.b16 %v3260
    %v4350 = vunpack.c.h.b16 %v3260
    %v4351 = vunpack.c.l.b16 %v3261
    %v4352 = vunpack.c.h.b16 %v3261
    %v4353 = vunpack.c.l.b16 %v3262
    %v4354 = vunpack.c.h.b16 %v3262
    %v4355 = vunpack.c.l.b16 %v3263
    %v4356 = vunpack.c.h.b16 %v3263
    %v4357 = vunpack.c.l.b16 %v3264
    %v4358 = vunpack.c.h.b16 %v3264
    %v4359 = vunpack.c.l.b16 %v3265
    %v4360 = vunpack.c.h.b16 %v3265
    %v4361 = vunpack.c.l.b16 %v3266
    %v4362 = vunpack.c.h.b16 %v3266
    %v4363 = vunpack.c.l.b16 %v3267
    %v4364 = vunpack.c.h.b16 %v3267
    %v4365 = vunpack.c.l.b16 %v3268
    %v4366 = vunpack.c.h.b16 %v3268
    %v4367 = vunpack.c.l.b16 %v3269
    %v4368 = vunpack.c.h.b16 %v3269
    %v4369 = vunpack.c.l.b16 %v3270
    %v4370 = vunpack.c.h.b16 %v3270
    %v4371 = vunpack.c.l.b16 %v3271
    %v4372 = vunpack.c.h.b16 %v3271
    %v4373 = vunpack.c.l.b16 %v3272
    %v4374 = vunpack.c.h.b16 %v3272
    %v4375 = vunpack.c.l.b16 %v3273
    %v4376 = vunpack.c.h.b16 %v3273
    %v4377 = vunpack.c.l.b16 %v3274
    %v4378 = vunpack.c.h.b16 %v3274
    %v4379 = vunpack.c.l.b16 %v3275
    %v4380 = vunpack.c.h.b16 %v3275
    %v4381 = vunpack.c.l.b16 %v3276
    %v4382 = vunpack.c.h.b16 %v3276
    %v4383 = vunpack.c.l.b16 %v3277
    %v4384 = vunpack.c.h.b16 %v3277
    %v4385 = vunpack.c.l.b16 %v3278
    %v4386 = vunpack.c.h.b16 %v3278
    %v4387 = vunpack.c.l.b16 %v3279
    %v4388 = vunpack.c.h.b16 %v3279
    %v4389 = vunpack.c.l.b16 %v3280
    %v4390 = vunpack.c.h.b16 %v3280
    %v4391 = vunpack.c.l.b16 %v3281
    %v4392 = vunpack.c.h.b16 %v3281
    %v4393 = vunpack.c.l.b16 %v3282
    %v4394 = vunpack.c.h.b16 %v3282
    %v4395 = vunpack.c.l.b16 %v3283
    %v4396 = vunpack.c.h.b16 %v3283
    %v4397 = vunpack.c.l.b16 %v3284
    %v4398 = vunpack.c.h.b16 %v3284
    %v4399 = vunpack.c.l.b16 %v3285
    %v4400 = vunpack.c.h.b16 %v3285
    %v4401 = vunpack.c.l.b16 %v3286
    %v4402 = vunpack.c.h.b16 %v3286
    %v4403 = vunpack.c.l.b16 %v3287
    %v4404 = vunpack.c.h.b16 %v3287
    %v4405 = vunpack.c.l.b16 %v3288
    %v4406 = vunpack.c.h.b16 %v3288
    %v4407 = vunpack.c.l.b16 %v3289
    %v4408 = vunpack.c.h.b16 %v3289
    %v4409 = vunpack.c.l.b16 %v3290
    %v4410 = vunpack.c.h.b16 %v3290
    %v4411 = vunpack.c.l.b16 %v3291
    %v4412 = vunpack.c.h.b16 %v3291
    %v4413 = vunpack.c.l.b16 %v3292
    %v4414 = vunpack.c.h.b16 %v3292
    %v4415 = vunpack.c.l.b16 %v3293
    %v4416 = vunpack.c.h.b16 %v3293
    %v4417 = vunpack.c.l.b16 %v3294
    %v4418 = vunpack.c.h.b16 %v3294
    %v4419 = vunpack.c.l.b16 %v3295
    %v4420 = vunpack.c.h.b16 %v3295
    %v4421 = vunpack.c.l.b16 %v3296
    %v4422 = vunpack.c.h.b16 %v3296
    %v4423 = vunpack.c.l.b16 %v3297
    %v4424 = vunpack.c.h.b16 %v3297
    %v4425 = vunpack.c.l.b16 %v3298
    %v4426 = vunpack.c.h.b16 %v3298
    %v4427 = vunpack.c.l.b16 %v3299
    %v4428 = vunpack.c.h.b16 %v3299
    %v4429 = vunpack.c.l.b16 %v3300
    %v4430 = vunpack.c.h.b16 %v3300
    %v4431 = vunpack.c.l.b16 %v3301
    %v4432 = vunpack.c.h.b16 %v3301
    %v4433 = vunpack.c.l.b16 %v3302
    %v4434 = vunpack.c.h.b16 %v3302
    %v4435 = vunpack.c.l.b16 %v3303
    %v4436 = vunpack.c.h.b16 %v3303
    %v4437 = vunpack.c.l.b16 %v3304
    %v4438 = vunpack.c.h.b16 %v3304
    %v4439 = vunpack.c.l.b16 %v3305
    %v4440 = vunpack.c.h.b16 %v3305
    %v4441 = vunpack.c.l.b16 %v3306
    %v4442 = vunpack.c.h.b16 %v3306
    %v4443 = vunpack.c.l.b16 %v3307
    %v4444 = vunpack.c.h.b16 %v3307
    %v4445 = vunpack.c.l.b16 %v3308
    %v4446 = vunpack.c.h.b16 %v3308
    %v4447 = vunpack.c.l.b16 %v3309
    %v4448 = vunpack.c.h.b16 %v3309
    %v4449 = vunpack.c.l.b16 %v3310
    %v4450 = vunpack.c.h.b16 %v3310
    %v4451 = vunpack.c.l.b16 %v3311
    %v4452 = vunpack.c.h.b16 %v3311
    %v4453 = vunpack.c.l.b16 %v3312
    %v4454 = vunpack.c.h.b16 %v3312
    %v4455 = vunpack.c.l.b16 %v3313
    %v4456 = vunpack.c.h.b16 %v3313
    %v4457 = vunpack.c.l.b16 %v3314
    %v4458 = vunpack.c.h.b16 %v3314
    %v4459 = vunpack.c.l.b16 %v3315
    %v4460 = vunpack.c.h.b16 %v3315
    %v4461 = vunpack.c.l.b16 %v3316
    %v4462 = vunpack.c.h.b16 %v3316
    %v4463 = vunpack.c.l.b16 %v3317
    %v4464 = vunpack.c.h.b16 %v3317
    %v4465 = vunpack.c.l.b16 %v3318
    %v4466 = vunpack.c.h.b16 %v3318
    %v4467 = vunpack.c.l.b16 %v3319
    %v4468 = vunpack.c.h.b16 %v3319
    %v4469 = vunpack.c.l.b16 %v3320
    %v4470 = vunpack.c.h.b16 %v3320
    %v4471 = vunpack.c.l.b16 %v3321
    %v4472 = vunpack.c.h.b16 %v3321
    %v4473 = vunpack.c.l.b16 %v3322
    %v4474 = vunpack.c.h.b16 %v3322
    %v4475 = vunpack.c.l.b16 %v3323
    %v4476 = vunpack.c.h.b16 %v3323
    %v4477 = vunpack.c.l.b16 %v3324
    %v4478 = vunpack.c.h.b16 %v3324
    %v4479 = vunpack.c.l.b16 %v3325
    %v4480 = vunpack.c.h.b16 %v3325
    %v4481 = vunpack.c.l.b16 %v3326
    %v4482 = vunpack.c.h.b16 %v3326
    %v4483 = vunpack.c.l.b16 %v3327
    %v4484 = vunpack.c.h.b16 %v3327
    %v4485 = vunpack.c.l.b16 %v3328
    %v4486 = vunpack.c.h.b16 %v3328
    %v4487 = vunpack.c.l.b16 %v3329
    %v4488 = vunpack.c.h.b16 %v3329
    %v4489 = vunpack.c.l.b16 %v3330
    %v4490 = vunpack.c.h.b16 %v3330
    %v4491 = vunpack.c.l.b16 %v3331
    %v4492 = vunpack.c.h.b16 %v3331
    %v4493 = vunpack.c.l.b16 %v3332
    %v4494 = vunpack.c.h.b16 %v3332
    %v4495 = vunpack.c.l.b16 %v3333
    %v4496 = vunpack.c.h.b16 %v3333
    %v4497 = vunpack.c.l.b16 %v3334
    %v4498 = vunpack.c.h.b16 %v3334
    %v4499 = vunpack.c.l.b16 %v3335
    %v4500 = vunpack.c.h.b16 %v3335
    %v4501 = vunpack.c.l.b16 %v3336
    %v4502 = vunpack.c.h.b16 %v3336
    %v4503 = vunpack.c.l.b16 %v3337
    %v4504 = vunpack.c.h.b16 %v3337
    %v4505 = vunpack.c.l.b16 %v3338
    %v4506 = vunpack.c.h.b16 %v3338
    %v4507 = vunpack.c.l.b16 %v3339
    %v4508 = vunpack.c.h.b16 %v3339
    %v4509 = vunpack.c.l.b16 %v3340
    %v4510 = vunpack.c.h.b16 %v3340
    %v4511 = vunpack.c.l.b16 %v3341
    %v4512 = vunpack.c.h.b16 %v3341
    %v4513 = vunpack.c.l.b16 %v3342
    %v4514 = vunpack.c.h.b16 %v3342
    %v4515 = vunpack.c.l.b16 %v3343
    %v4516 = vunpack.c.h.b16 %v3343
    %v4517 = vunpack.c.l.b16 %v3344
    %v4518 = vunpack.c.h.b16 %v3344
    %v4519 = vunpack.c.l.b16 %v3345
    %v4520 = vunpack.c.h.b16 %v3345
    %v4521 = vunpack.c.l.b16 %v3346
    %v4522 = vunpack.c.h.b16 %v3346
    %v4523 = vunpack.c.l.b16 %v3347
    %v4524 = vunpack.c.h.b16 %v3347
    %v4525 = vunpack.c.l.b16 %v3348
    %v4526 = vunpack.c.h.b16 %v3348
    %v4527 = vunpack.c.l.b16 %v3349
    %v4528 = vunpack.c.h.b16 %v3349
    %v4529 = vunpack.c.l.b16 %v3350
    %v4530 = vunpack.c.h.b16 %v3350
    %v4531 = vunpack.c.l.b16 %v3351
    %v4532 = vunpack.c.h.b16 %v3351
    %v4533 = vunpack.c.l.b16 %v3352
    %v4534 = vunpack.c.h.b16 %v3352
    %v4535 = vunpack.c.l.b16 %v3353
    %v4536 = vunpack.c.h.b16 %v3353
    %v4537 = vunpack.c.l.b16 %v3354
    %v4538 = vunpack.c.h.b16 %v3354
    %v4539 = vunpack.c.l.b16 %v3355
    %v4540 = vunpack.c.h.b16 %v3355
    %v4541 = vunpack.c.l.b16 %v3356
    %v4542 = vunpack.c.h.b16 %v3356
    %v4543 = vunpack.c.l.b16 %v3357
    %v4544 = vunpack.c.h.b16 %v3357
    %v4545 = vunpack.c.l.b16 %v3358
    %v4546 = vunpack.c.h.b16 %v3358
    %v4547 = vunpack.c.l.b16 %v3359
    %v4548 = vunpack.c.h.b16 %v3359
    %v4549 = vunpack.c.l.b16 %v3360
    %v4550 = vunpack.c.h.b16 %v3360
    %v4551 = vunpack.c.l.b16 %v3361
    %v4552 = vunpack.c.h.b16 %v3361
    %v4553 = vunpack.c.l.b16 %v3362
    %v4554 = vunpack.c.h.b16 %v3362
    %v4555 = vunpack.c.l.b16 %v3363
    %v4556 = vunpack.c.h.b16 %v3363
    %v4557 = vunpack.c.l.b16 %v3364
    %v4558 = vunpack.c.h.b16 %v3364
    %v4559 = vpack.c.b16 %v3799, %v3791
    %v4560 = vpack.c.b16 %v3800, %v3792
    %v4561 = vpack.c.b16 %v3801, %v3793
    %v4562 = vpack.c.b16 %v3802, %v3794
    %v4563 = vpack.c.b16 %v3803, %v3795
    %v4564 = vpack.c.b16 %v3804, %v3796
    %v4565 = vpack.c.b16 %v3805, %v3797
    %v4566 = vpack.c.b16 %v3806, %v3798
    %v4567 = vpack.c.b16 %v3815, %v3807
    %v4568 = vpack.c.b16 %v3816, %v3808
    %v4569 = vpack.c.b16 %v3817, %v3809
    %v4570 = vpack.c.b16 %v3818, %v3810
    %v4571 = vpack.c.b16 %v3819, %v3811
    %v4572 = vpack.c.b16 %v3820, %v3812
    %v4573 = vpack.c.b16 %v3821, %v3813
    %v4574 = vpack.c.b16 %v3822, %v3814
    %v4575 = vpack.c.b16 %v3831, %v3823
    %v4576 = vpack.c.b16 %v3832, %v3824
    %v4577 = vpack.c.b16 %v3833, %v3825
    %v4578 = vpack.c.b16 %v3834, %v3826
    %v4579 = vpack.c.b16 %v3835, %v3827
    %v4580 = vpack.c.b16 %v3836, %v3828
    %v4581 = vpack.c.b16 %v3837, %v3829
    %v4582 = vpack.c.b16 %v3838, %v3830
    %v4583 = vpack.c.b16 %v3847, %v3839
    %v4584 = vpack.c.b16 %v3848, %v3840
    %v4585 = vpack.c.b16 %v3849, %v3841
    %v4586 = vpack.c.b16 %v3850, %v3842
    %v4587 = vpack.c.b16 %v3851, %v3843
    %v4588 = vpack.c.b16 %v3852, %v3844
    %v4589 = vpack.c.b16 %v3853, %v3845
    %v4590 = vpack.c.b16 %v3854, %v3846
    %v4591 = vpack.c.b16 %v3863, %v3855
    %v4592 = vpack.c.b16 %v3864, %v3856
    %v4593 = vpack.c.b16 %v3865, %v3857
    %v4594 = vpack.c.b16 %v3866, %v3858
    %v4595 = vpack.c.b16 %v3867, %v3859
    %v4596 = vpack.c.b16 %v3868, %v3860
    %v4597 = vpack.c.b16 %v3869, %v3861
    %v4598 = vpack.c.b16 %v3870, %v3862
    %v4599 = vpack.c.b16 %v3879, %v3871
    %v4600 = vpack.c.b16 %v3880, %v3872
    %v4601 = vpack.c.b16 %v3881, %v3873
    %v4602 = vpack.c.b16 %v3882, %v3874
    %v4603 = vpack.c.b16 %v3883, %v3875
    %v4604 = vpack.c.b16 %v3884, %v3876
    %v4605 = vpack.c.b16 %v3885, %v3877
    %v4606 = vpack.c.b16 %v3886, %v3878
    %v4607 = vpack.c.b16 %v3895, %v3887
    %v4608 = vpack.c.b16 %v3896, %v3888
    %v4609 = vpack.c.b16 %v3897, %v3889
    %v4610 = vpack.c.b16 %v3898, %v3890
    %v4611 = vpack.c.b16 %v3899, %v3891
    %v4612 = vpack.c.b16 %v3900, %v3892
    %v4613 = vpack.c.b16 %v3901, %v3893
    %v4614 = vpack.c.b16 %v3902, %v3894
    %v4615 = vpack.c.b16 %v3911, %v3903
    %v4616 = vpack.c.b16 %v3912, %v3904
    %v4617 = vpack.c.b16 %v3913, %v3905
    %v4618 = vpack.c.b16 %v3914, %v3906
    %v4619 = vpack.c.b16 %v3915, %v3907
    %v4620 = vpack.c.b16 %v3916, %v3908
    %v4621 = vpack.c.b16 %v3917, %v3909
    %v4622 = vpack.c.b16 %v3918, %v3910
    %v4623 = vpack.c.b16 %v3927, %v3919
    %v4624 = vpack.c.b16 %v3928, %v3920
    %v4625 = vpack.c.b16 %v3929, %v3921
    %v4626 = vpack.c.b16 %v3930, %v3922
    %v4627 = vpack.c.b16 %v3931, %v3923
    %v4628 = vpack.c.b16 %v3932, %v3924
    %v4629 = vpack.c.b16 %v3933, %v3925
    %v4630 = vpack.c.b16 %v3934, %v3926
    %v4631 = vpack.c.b16 %v3943, %v3935
    %v4632 = vpack.c.b16 %v3944, %v3936
    %v4633 = vpack.c.b16 %v3945, %v3937
    %v4634 = vpack.c.b16 %v3946, %v3938
    %v4635 = vpack.c.b16 %v3947, %v3939
    %v4636 = vpack.c.b16 %v3948, %v3940
    %v4637 = vpack.c.b16 %v3949, %v3941
    %v4638 = vpack.c.b16 %v3950, %v3942
    %v4639 = vpack.c.b16 %v3959, %v3951
    %v4640 = vpack.c.b16 %v3960, %v3952
    %v4641 = vpack.c.b16 %v3961, %v3953
    %v4642 = vpack.c.b16 %v3962, %v3954
    %v4643 = vpack.c.b16 %v3963, %v3955
    %v4644 = vpack.c.b16 %v3964, %v3956
    %v4645 = vpack.c.b16 %v3965, %v3957
    %v4646 = vpack.c.b16 %v3966, %v3958
    %v4647 = vpack.c.b16 %v3975, %v3967
    %v4648 = vpack.c.b16 %v3976, %v3968
    %v4649 = vpack.c.b16 %v3977, %v3969
    %v4650 = vpack.c.b16 %v3978, %v3970
    %v4651 = vpack.c.b16 %v3979, %v3971
    %v4652 = vpack.c.b16 %v3980, %v3972
    %v4653 = vpack.c.b16 %v3981, %v3973
    %v4654 = vpack.c.b16 %v3982, %v3974
    %v4655 = vpack.c.b16 %v3991, %v3983
    %v4656 = vpack.c.b16 %v3992, %v3984
    %v4657 = vpack.c.b16 %v3993, %v3985
    %v4658 = vpack.c.b16 %v3994, %v3986
    %v4659 = vpack.c.b16 %v3995, %v3987
    %v4660 = vpack.c.b16 %v3996, %v3988
    %v4661 = vpack.c.b16 %v3997, %v3989
    %v4662 = vpack.c.b16 %v3998, %v3990
    %v4663 = vpack.c.b16 %v4007, %v3999
    %v4664 = vpack.c.b16 %v4008, %v4000
    %v4665 = vpack.c.b16 %v4009, %v4001
    %v4666 = vpack.c.b16 %v4010, %v4002
    %v4667 = vpack.c.b16 %v4011, %v4003
    %v4668 = vpack.c.b16 %v4012, %v4004
    %v4669 = vpack.c.b16 %v4013, %v4005
    %v4670 = vpack.c.b16 %v4014, %v4006
    %v4671 = vpack.c.b16 %v4023, %v4015
    %v4672 = vpack.c.b16 %v4024, %v4016
    %v4673 = vpack.c.b16 %v4025, %v4017
    %v4674 = vpack.c.b16 %v4026, %v4018
    %v4675 = vpack.c.b16 %v4027, %v4019
    %v4676 = vpack.c.b16 %v4028, %v4020
    %v4677 = vpack.c.b16 %v4029, %v4021
    %v4678 = vpack.c.b16 %v4030, %v4022
    %v4679 = vpack.c.b16 %v4039, %v4031
    %v4680 = vpack.c.b16 %v4040, %v4032
    %v4681 = vpack.c.b16 %v4041, %v4033
    %v4682 = vpack.c.b16 %v4042, %v4034
    %v4683 = vpack.c.b16 %v4043, %v4035
    %v4684 = vpack.c.b16 %v4044, %v4036
    %v4685 = vpack.c.b16 %v4045, %v4037
    %v4686 = vpack.c.b16 %v4046, %v4038
    %v4687 = vpack.c.b16 %v4055, %v4047
    %v4688 = vpack.c.b16 %v4056, %v4048
    %v4689 = vpack.c.b16 %v4057, %v4049
    %v4690 = vpack.c.b16 %v4058, %v4050
    %v4691 = vpack.c.b16 %v4059, %v4051
    %v4692 = vpack.c.b16 %v4060, %v4052
    %v4693 = vpack.c.b16 %v4061, %v4053
    %v4694 = vpack.c.b16 %v4062, %v4054
    %v4695 = vpack.c.b16 %v4071, %v4063
    %v4696 = vpack.c.b16 %v4072, %v4064
    %v4697 = vpack.c.b16 %v4073, %v4065
    %v4698 = vpack.c.b16 %v4074, %v4066
    %v4699 = vpack.c.b16 %v4075, %v4067
    %v4700 = vpack.c.b16 %v4076, %v4068
    %v4701 = vpack.c.b16 %v4077, %v4069
    %v4702 = vpack.c.b16 %v4078, %v4070
    %v4703 = vpack.c.b16 %v4087, %v4079
    %v4704 = vpack.c.b16 %v4088, %v4080
    %v4705 = vpack.c.b16 %v4089, %v4081
    %v4706 = vpack.c.b16 %v4090, %v4082
    %v4707 = vpack.c.b16 %v4091, %v4083
    %v4708 = vpack.c.b16 %v4092, %v4084
    %v4709 = vpack.c.b16 %v4093, %v4085
    %v4710 = vpack.c.b16 %v4094, %v4086
    %v4711 = vpack.c.b16 %v4103, %v4095
    %v4712 = vpack.c.b16 %v4104, %v4096
    %v4713 = vpack.c.b16 %v4105, %v4097
    %v4714 = vpack.c.b16 %v4106, %v4098
    %v4715 = vpack.c.b16 %v4107, %v4099
    %v4716 = vpack.c.b16 %v4108, %v4100
    %v4717 = vpack.c.b16 %v4109, %v4101
    %v4718 = vpack.c.b16 %v4110, %v4102
    %v4719 = vpack.c.b16 %v4119, %v4111
    %v4720 = vpack.c.b16 %v4120, %v4112
    %v4721 = vpack.c.b16 %v4121, %v4113
    %v4722 = vpack.c.b16 %v4122, %v4114
    %v4723 = vpack.c.b16 %v4123, %v4115
    %v4724 = vpack.c.b16 %v4124, %v4116
    %v4725 = vpack.c.b16 %v4125, %v4117
    %v4726 = vpack.c.b16 %v4126, %v4118
    %v4727 = vpack.c.b16 %v4135, %v4127
    %v4728 = vpack.c.b16 %v4136, %v4128
    %v4729 = vpack.c.b16 %v4137, %v4129
    %v4730 = vpack.c.b16 %v4138, %v4130
    %v4731 = vpack.c.b16 %v4139, %v4131
    %v4732 = vpack.c.b16 %v4140, %v4132
    %v4733 = vpack.c.b16 %v4141, %v4133
    %v4734 = vpack.c.b16 %v4142, %v4134
    %v4735 = vpack.c.b16 %v4151, %v4143
    %v4736 = vpack.c.b16 %v4152, %v4144
    %v4737 = vpack.c.b16 %v4153, %v4145
    %v4738 = vpack.c.b16 %v4154, %v4146
    %v4739 = vpack.c.b16 %v4155, %v4147
    %v4740 = vpack.c.b16 %v4156, %v4148
    %v4741 = vpack.c.b16 %v4157, %v4149
    %v4742 = vpack.c.b16 %v4158, %v4150
    %v4743 = vpack.c.b16 %v4167, %v4159
    %v4744 = vpack.c.b16 %v4168, %v4160
    %v4745 = vpack.c.b16 %v4169, %v4161
    %v4746 = vpack.c.b16 %v4170, %v4162
    %v4747 = vpack.c.b16 %v4171, %v4163
    %v4748 = vpack.c.b16 %v4172, %v4164
    %v4749 = vpack.c.b16 %v4173, %v4165
    %v4750 = vpack.c.b16 %v4174, %v4166
    %v4751 = vpack.c.b16 %v4183, %v4175
    %v4752 = vpack.c.b16 %v4184, %v4176
    %v4753 = vpack.c.b16 %v4185, %v4177
    %v4754 = vpack.c.b16 %v4186, %v4178
    %v4755 = vpack.c.b16 %v4187, %v4179
    %v4756 = vpack.c.b16 %v4188, %v4180
    %v4757 = vpack.c.b16 %v4189, %v4181
    %v4758 = vpack.c.b16 %v4190, %v4182
    %v4759 = vpack.c.b16 %v4199, %v4191
    %v4760 = vpack.c.b16 %v4200, %v4192
    %v4761 = vpack.c.b16 %v4201, %v4193
    %v4762 = vpack.c.b16 %v4202, %v4194
    %v4763 = vpack.c.b16 %v4203, %v4195
    %v4764 = vpack.c.b16 %v4204, %v4196
    %v4765 = vpack.c.b16 %v4205, %v4197
    %v4766 = vpack.c.b16 %v4206, %v4198
    %v4767 = vpack.c.b16 %v4215, %v4207
    %v4768 = vpack.c.b16 %v4216, %v4208
    %v4769 = vpack.c.b16 %v4217, %v4209
    %v4770 = vpack.c.b16 %v4218, %v4210
    %v4771 = vpack.c.b16 %v4219, %v4211
    %v4772 = vpack.c.b16 %v4220, %v4212
    %v4773 = vpack.c.b16 %v4221, %v4213
    %v4774 = vpack.c.b16 %v4222, %v4214
    %v4775 = vpack.c.b16 %v4231, %v4223
    %v4776 = vpack.c.b16 %v4232, %v4224
    %v4777 = vpack.c.b16 %v4233, %v4225
    %v4778 = vpack.c.b16 %v4234, %v4226
    %v4779 = vpack.c.b16 %v4235, %v4227
    %v4780 = vpack.c.b16 %v4236, %v4228
    %v4781 = vpack.c.b16 %v4237, %v4229
    %v4782 = vpack.c.b16 %v4238, %v4230
    %v4783 = vpack.c.b16 %v4247, %v4239
    %v4784 = vpack.c.b16 %v4248, %v4240
    %v4785 = vpack.c.b16 %v4249, %v4241
    %v4786 = vpack.c.b16 %v4250, %v4242
    %v4787 = vpack.c.b16 %v4251, %v4243
    %v4788 = vpack.c.b16 %v4252, %v4244
    %v4789 = vpack.c.b16 %v4253, %v4245
    %v4790 = vpack.c.b16 %v4254, %v4246
    %v4791 = vpack.c.b16 %v4263, %v4255
    %v4792 = vpack.c.b16 %v4264, %v4256
    %v4793 = vpack.c.b16 %v4265, %v4257
    %v4794 = vpack.c.b16 %v4266, %v4258
    %v4795 = vpack.c.b16 %v4267, %v4259
    %v4796 = vpack.c.b16 %v4268, %v4260
    %v4797 = vpack.c.b16 %v4269, %v4261
    %v4798 = vpack.c.b16 %v4270, %v4262
    %v4799 = vpack.c.b16 %v4279, %v4271
    %v4800 = vpack.c.b16 %v4280, %v4272
    %v4801 = vpack.c.b16 %v4281, %v4273
    %v4802 = vpack.c.b16 %v4282, %v4274
    %v4803 = vpack.c.b16 %v4283, %v4275
    %v4804 = vpack.c.b16 %v4284, %v4276
    %v4805 = vpack.c.b16 %v4285, %v4277
    %v4806 = vpack.c.b16 %v4286, %v4278
    %v4807 = vpack.c.b16 %v4295, %v4287
    %v4808 = vpack.c.b16 %v4296, %v4288
    %v4809 = vpack.c.b16 %v4297, %v4289
    %v4810 = vpack.c.b16 %v4298, %v4290
    %v4811 = vpack.c.b16 %v4299, %v4291
    %v4812 = vpack.c.b16 %v4300, %v4292
    %v4813 = vpack.c.b16 %v4301, %v4293
    %v4814 = vpack.c.b16 %v4302, %v4294
    %v4815 = vpack.c.b16 %v4311, %v4303
    %v4816 = vpack.c.b16 %v4312, %v4304
    %v4817 = vpack.c.b16 %v4313, %v4305
    %v4818 = vpack.c.b16 %v4314, %v4306
    %v4819 = vpack.c.b16 %v4315, %v4307
    %v4820 = vpack.c.b16 %v4316, %v4308
    %v4821 = vpack.c.b16 %v4317, %v4309
    %v4822 = vpack.c.b16 %v4318, %v4310
    %v4823 = vpack.c.b16 %v4327, %v4319
    %v4824 = vpack.c.b16 %v4328, %v4320
    %v4825 = vpack.c.b16 %v4329, %v4321
    %v4826 = vpack.c.b16 %v4330, %v4322
    %v4827 = vpack.c.b16 %v4331, %v4323
    %v4828 = vpack.c.b16 %v4332, %v4324
    %v4829 = vpack.c.b16 %v4333, %v4325
    %v4830 = vpack.c.b16 %v4334, %v4326
    %v4831 = vpack.c.b16 %v4343, %v4335
    %v4832 = vpack.c.b16 %v4344, %v4336
    %v4833 = vpack.c.b16 %v4345, %v4337
    %v4834 = vpack.c.b16 %v4346, %v4338
    %v4835 = vpack.c.b16 %v4347, %v4339
    %v4836 = vpack.c.b16 %v4348, %v4340
    %v4837 = vpack.c.b16 %v4349, %v4341
    %v4838 = vpack.c.b16 %v4350, %v4342
    %v4839 = vpack.c.b16 %v4359, %v4351
    %v4840 = vpack.c.b16 %v4360, %v4352
    %v4841 = vpack.c.b16 %v4361, %v4353
    %v4842 = vpack.c.b16 %v4362, %v4354
    %v4843 = vpack.c.b16 %v4363, %v4355
    %v4844 = vpack.c.b16 %v4364, %v4356
    %v4845 = vpack.c.b16 %v4365, %v4357
    %v4846 = vpack.c.b16 %v4366, %v4358
    %v4847 = vpack.c.b16 %v4375, %v4367
    %v4848 = vpack.c.b16 %v4376, %v4368
    %v4849 = vpack.c.b16 %v4377, %v4369
    %v4850 = vpack.c.b16 %v4378, %v4370
    %v4851 = vpack.c.b16 %v4379, %v4371
    %v4852 = vpack.c.b16 %v4380, %v4372
    %v4853 = vpack.c.b16 %v4381, %v4373
    %v4854 = vpack.c.b16 %v4382, %v4374
    %v4855 = vpack.c.b16 %v4391, %v4383
    %v4856 = vpack.c.b16 %v4392, %v4384
    %v4857 = vpack.c.b16 %v4393, %v4385
    %v4858 = vpack.c.b16 %v4394, %v4386
    %v4859 = vpack.c.b16 %v4395, %v4387
    %v4860 = vpack.c.b16 %v4396, %v4388
    %v4861 = vpack.c.b16 %v4397, %v4389
    %v4862 = vpack.c.b16 %v4398, %v4390
    %v4863 = vpack.c.b16 %v4407, %v4399
    %v4864 = vpack.c.b16 %v4408, %v4400
    %v4865 = vpack.c.b16 %v4409, %v4401
    %v4866 = vpack.c.b16 %v4410, %v4402
    %v4867 = vpack.c.b16 %v4411, %v4403
    %v4868 = vpack.c.b16 %v4412, %v4404
    %v4869 = vpack.c.b16 %v4413, %v4405
    %v4870 = vpack.c.b16 %v4414, %v4406
    %v4871 = vpack.c.b16 %v4423, %v4415
    %v4872 = vpack.c.b16 %v4424, %v4416
    %v4873 = vpack.c.b16 %v4425, %v4417
    %v4874 = vpack.c.b16 %v4426, %v4418
    %v4875 = vpack.c.b16 %v4427, %v4419
    %v4876 = vpack.c.b16 %v4428, %v4420
    %v4877 = vpack.c.b16 %v4429, %v4421
    %v4878 = vpack.c.b16 %v4430, %v4422
    %v4879 = vpack.c.b16 %v4439, %v4431
    %v4880 = vpack.c.b16 %v4440, %v4432
    %v4881 = vpack.c.b16 %v4441, %v4433
    %v4882 = vpack.c.b16 %v4442, %v4434
    %v4883 = vpack.c.b16 %v4443, %v4435
    %v4884 = vpack.c.b16 %v4444, %v4436
    %v4885 = vpack.c.b16 %v4445, %v4437
    %v4886 = vpack.c.b16 %v4446, %v4438
    %v4887 = vpack.c.b16 %v4455, %v4447
    %v4888 = vpack.c.b16 %v4456, %v4448
    %v4889 = vpack.c.b16 %v4457, %v4449
    %v4890 = vpack.c.b16 %v4458, %v4450
    %v4891 = vpack.c.b16 %v4459, %v4451
    %v4892 = vpack.c.b16 %v4460, %v4452
    %v4893 = vpack.c.b16 %v4461, %v4453
    %v4894 = vpack.c.b16 %v4462, %v4454
    %v4895 = vpack.c.b16 %v4471, %v4463
    %v4896 = vpack.c.b16 %v4472, %v4464
    %v4897 = vpack.c.b16 %v4473, %v4465
    %v4898 = vpack.c.b16 %v4474, %v4466
    %v4899 = vpack.c.b16 %v4475, %v4467
    %v4900 = vpack.c.b16 %v4476, %v4468
    %v4901 = vpack.c.b16 %v4477, %v4469
    %v4902 = vpack.c.b16 %v4478, %v4470
    %v4903 = vpack.c.b16 %v4487, %v4479
    %v4904 = vpack.c.b16 %v4488, %v4480
    %v4905 = vpack.c.b16 %v4489, %v4481
    %v4906 = vpack.c.b16 %v4490, %v4482
    %v4907 = vpack.c.b16 %v4491, %v4483
    %v4908 = vpack.c.b16 %v4492, %v4484
    %v4909 = vpack.c.b16 %v4493, %v4485
    %v4910 = vpack.c.b16 %v4494, %v4486
    %v4911 = vpack.c.b16 %v4503, %v4495
    %v4912 = vpack.c.b16 %v4504, %v4496
    %v4913 = vpack.c.b16 %v4505, %v4497
    %v4914 = vpack.c.b16 %v4506, %v4498
    %v4915 = vpack.c.b16 %v4507, %v4499
    %v4916 = vpack.c.b16 %v4508, %v4500
    %v4917 = vpack.c.b16 %v4509, %v4501
    %v4918 = vpack.c.b16 %v4510, %v4502
    %v4919 = vpack.c.b16 %v4519, %v4511
    %v4920 = vpack.c.b16 %v4520, %v4512
    %v4921 = vpack.c.b16 %v4521, %v4513
    %v4922 = vpack.c.b16 %v4522, %v4514
    %v4923 = vpack.c.b16 %v4523, %v4515
    %v4924 = vpack.c.b16 %v4524, %v4516
    %v4925 = vpack.c.b16 %v4525, %v4517
    %v4926 = vpack.c.b16 %v4526, %v4518
    %v4927 = vpack.c.b16 %v4535, %v4527
    %v4928 = vpack.c.b16 %v4536, %v4528
    %v4929 = vpack.c.b16 %v4537, %v4529
    %v4930 = vpack.c.b16 %v4538, %v4530
    %v4931 = vpack.c.b16 %v4539, %v4531
    %v4932 = vpack.c.b16 %v4540, %v4532
    %v4933 = vpack.c.b16 %v4541, %v4533
    %v4934 = vpack.c.b16 %v4542, %v4534
    %v4935 = vpack.c.b16 %v4551, %v4543
    %v4936 = vpack.c.b16 %v4552, %v4544
    %v4937 = vpack.c.b16 %v4553, %v4545
    %v4938 = vpack.c.b16 %v4554, %v4546
    %v4939 = vpack.c.b16 %v4555, %v4547
    %v4940 = vpack.c.b16 %v4556, %v4548
    %v4941 = vpack.c.b16 %v4557, %v4549
    %v4942 = vpack.c.b16 %v4558, %v4550
    %5327 = vmatprep.subr.bf16.mxu0 %v4616
    %5328 = vmatpush1.bf16.msra.mxu0 %v4615
    %5329 = vmatprep.subr.bf16.mxu0 %v4608
    %5330 = vmatpush1.bf16.msra.mxu0 %v4607
    %5331 = vmatprep.subr.bf16.mxu0 %v4600
    %5332 = vmatpush1.bf16.msra.mxu0 %v4599
    %5333 = vmatprep.subr.bf16.mxu0 %v4592
    %5334 = vmatpush1.bf16.msra.mxu0 %v4591
    %5335 = vmatprep.subr.bf16.mxu0 %v4584
    %5336 = vmatpush1.bf16.msra.mxu0 %v4583
    %5337 = vmatprep.subr.bf16.mxu0 %v4576
    %5338 = vmatpush1.bf16.msra.mxu0 %v4575
    %5339 = vmatprep.subr.bf16.mxu0 %v4568
    %5340 = vmatpush1.bf16.msra.mxu0 %v4567
    %5341 = vmatprep.subr.bf16.mxu0 %v4560
    %5342 = vmatpush1.bf16.msra.mxu0 %v4559
    %5343 = vmatprep.subr.bf16.mxu0 %v4680
    %5344 = vmatpush2.bf16.msra.mxu0 %v4679
    %5345 = vmatprep.subr.bf16.mxu0 %v4672
    %5346 = vmatpush2.bf16.msra.mxu0 %v4671
    %5347 = vmatprep.subr.bf16.mxu0 %v4664
    %5348 = vmatpush2.bf16.msra.mxu0 %v4663
    %5349 = vmatprep.subr.bf16.mxu0 %v4656
    %5350 = vmatpush2.bf16.msra.mxu0 %v4655
    %5351 = vmatprep.subr.bf16.mxu0 %v4648
    %5352 = vmatpush2.bf16.msra.mxu0 %v4647
    %5353 = vmatprep.subr.bf16.mxu0 %v4640
    %5354 = vmatpush2.bf16.msra.mxu0 %v4639
    %5355 = vmatprep.subr.bf16.mxu0 %v4632
    %5356 = vmatpush2.bf16.msra.mxu0 %v4631
    %5357 = vmatprep.subr.bf16.mxu0 %v4624
    %5358 = vmatpush2.bf16.msra.mxu0 %v4623
    %5359 = vmatprep.mubr.bf16.mxu0 %v2976
    %5360 = vmatmul.mubr.bf16.gmra.mxu0 %v2975
    %v5361 = vpop.f32.mrf.mxu0
    %v5362 = vadd.f32 %v3370, %v5361
    %v5363 = vpop.f32.mrf.mxu0
    %v5364 = vadd.f32 %v3374, %v5363
    %v5365 = vpop.f32.mrf.mxu0
    %v5366 = vpop.f32.mrf.mxu0
    %5367 = vdwg.mxu0
    %5368 = vmatprep.subr.bf16.mxu0 %v4744
    %5369 = vmatpush1.bf16.msra.mxu0 %v4743
    %5370 = vmatprep.subr.bf16.mxu0 %v4736
    %5371 = vmatpush1.bf16.msra.mxu0 %v4735
    %5372 = vmatprep.subr.bf16.mxu0 %v4728
    %5373 = vmatpush1.bf16.msra.mxu0 %v4727
    %5374 = vmatprep.subr.bf16.mxu0 %v4720
    %5375 = vmatpush1.bf16.msra.mxu0 %v4719
    %5376 = vmatprep.subr.bf16.mxu0 %v4712
    %5377 = vmatpush1.bf16.msra.mxu0 %v4711
    %5378 = vmatprep.subr.bf16.mxu0 %v4704
    %5379 = vmatpush1.bf16.msra.mxu0 %v4703
    %5380 = vmatprep.subr.bf16.mxu0 %v4696
    %5381 = vmatpush1.bf16.msra.mxu0 %v4695
    %5382 = vmatprep.subr.bf16.mxu0 %v4688
    %5383 = vmatpush1.bf16.msra.mxu0 %v4687
    %5384 = vmatprep.subr.bf16.mxu0 %v4808
    %5385 = vmatpush2.bf16.msra.mxu0 %v4807
    %5386 = vmatprep.subr.bf16.mxu0 %v4800
    %5387 = vmatpush2.bf16.msra.mxu0 %v4799
    %5388 = vmatprep.subr.bf16.mxu0 %v4792
    %5389 = vmatpush2.bf16.msra.mxu0 %v4791
    %5390 = vmatprep.subr.bf16.mxu0 %v4784
    %5391 = vmatpush2.bf16.msra.mxu0 %v4783
    %5392 = vmatprep.subr.bf16.mxu0 %v4776
    %5393 = vmatpush2.bf16.msra.mxu0 %v4775
    %5394 = vmatprep.subr.bf16.mxu0 %v4768
    %5395 = vmatpush2.bf16.msra.mxu0 %v4767
    %5396 = vmatprep.subr.bf16.mxu0 %v4760
    %5397 = vmatpush2.bf16.msra.mxu0 %v4759
    %5398 = vmatprep.subr.bf16.mxu0 %v4752
    %5399 = vmatpush2.bf16.msra.mxu0 %v4751
    %5400 = vmatprep.mubr.bf16.mxu0 %v2978
    %5401 = vmatmul.mubr.bf16.gmra.mxu0 %v2977
    %v5402 = vpop.f32.mrf.mxu0
    %v5403 = vadd.f32 %v5362, %v5402
    %v5404 = vpop.f32.mrf.mxu0
    %v5405 = vadd.f32 %v5364, %v5404
    %v5406 = vpop.f32.mrf.mxu0
    %v5407 = vpop.f32.mrf.mxu0
    %5408 = vdwg.mxu0
    %5409 = vmatprep.subr.bf16.mxu0 %v4872
    %5410 = vmatpush1.bf16.msra.mxu0 %v4871
    %5411 = vmatprep.subr.bf16.mxu0 %v4864
    %5412 = vmatpush1.bf16.msra.mxu0 %v4863
    %5413 = vmatprep.subr.bf16.mxu0 %v4856
    %5414 = vmatpush1.bf16.msra.mxu0 %v4855
    %5415 = vmatprep.subr.bf16.mxu0 %v4848
    %5416 = vmatpush1.bf16.msra.mxu0 %v4847
    %5417 = vmatprep.subr.bf16.mxu0 %v4840
    %5418 = vmatpush1.bf16.msra.mxu0 %v4839
    %5419 = vmatprep.subr.bf16.mxu0 %v4832
    %5420 = vmatpush1.bf16.msra.mxu0 %v4831
    %5421 = vmatprep.subr.bf16.mxu0 %v4824
    %5422 = vmatpush1.bf16.msra.mxu0 %v4823
    %5423 = vmatprep.subr.bf16.mxu0 %v4816
    %5424 = vmatpush1.bf16.msra.mxu0 %v4815
    %5425 = vmatprep.subr.bf16.mxu0 %v4936
    %5426 = vmatpush2.bf16.msra.mxu0 %v4935
    %5427 = vmatprep.subr.bf16.mxu0 %v4928
    %5428 = vmatpush2.bf16.msra.mxu0 %v4927
    %5429 = vmatprep.subr.bf16.mxu0 %v4920
    %5430 = vmatpush2.bf16.msra.mxu0 %v4919
    %5431 = vmatprep.subr.bf16.mxu0 %v4912
    %5432 = vmatpush2.bf16.msra.mxu0 %v4911
    %5433 = vmatprep.subr.bf16.mxu0 %v4904
    %5434 = vmatpush2.bf16.msra.mxu0 %v4903
    %5435 = vmatprep.subr.bf16.mxu0 %v4896
    %5436 = vmatpush2.bf16.msra.mxu0 %v4895
    %5437 = vmatprep.subr.bf16.mxu0 %v4888
    %5438 = vmatpush2.bf16.msra.mxu0 %v4887
    %5439 = vmatprep.subr.bf16.mxu0 %v4880
    %5440 = vmatpush2.bf16.msra.mxu0 %v4879
    %5441 = vmatprep.mubr.bf16.mxu0 %v2980
    %5442 = vmatmul.mubr.bf16.gmra.mxu0 %v2979
    %v5443 = vpop.f32.mrf.mxu0
    %v5444 = vadd.f32 %v5403, %v5443
    %v5445 = vpop.f32.mrf.mxu0
    %v5446 = vadd.f32 %v5405, %v5445
    %v5447 = vpop.f32.mrf.mxu0
    %v5448 = vpop.f32.mrf.mxu0
    %5449 = vdwg.mxu0
    %5450 = vmatprep.subr.bf16.mxu0 %v4618
    %5451 = vmatpush1.bf16.msra.mxu0 %v4617
    %5452 = vmatprep.subr.bf16.mxu0 %v4610
    %5453 = vmatpush1.bf16.msra.mxu0 %v4609
    %5454 = vmatprep.subr.bf16.mxu0 %v4602
    %5455 = vmatpush1.bf16.msra.mxu0 %v4601
    %5456 = vmatprep.subr.bf16.mxu0 %v4594
    %5457 = vmatpush1.bf16.msra.mxu0 %v4593
    %5458 = vmatprep.subr.bf16.mxu0 %v4586
    %5459 = vmatpush1.bf16.msra.mxu0 %v4585
    %5460 = vmatprep.subr.bf16.mxu0 %v4578
    %5461 = vmatpush1.bf16.msra.mxu0 %v4577
    %5462 = vmatprep.subr.bf16.mxu0 %v4570
    %5463 = vmatpush1.bf16.msra.mxu0 %v4569
    %5464 = vmatprep.subr.bf16.mxu0 %v4562
    %5465 = vmatpush1.bf16.msra.mxu0 %v4561
    %5466 = vmatprep.subr.bf16.mxu0 %v4682
    %5467 = vmatpush2.bf16.msra.mxu0 %v4681
    %5468 = vmatprep.subr.bf16.mxu0 %v4674
    %5469 = vmatpush2.bf16.msra.mxu0 %v4673
    %5470 = vmatprep.subr.bf16.mxu0 %v4666
    %5471 = vmatpush2.bf16.msra.mxu0 %v4665
    %5472 = vmatprep.subr.bf16.mxu0 %v4658
    %5473 = vmatpush2.bf16.msra.mxu0 %v4657
    %5474 = vmatprep.subr.bf16.mxu0 %v4650
    %5475 = vmatpush2.bf16.msra.mxu0 %v4649
    %5476 = vmatprep.subr.bf16.mxu0 %v4642
    %5477 = vmatpush2.bf16.msra.mxu0 %v4641
    %5478 = vmatprep.subr.bf16.mxu0 %v4634
    %5479 = vmatpush2.bf16.msra.mxu0 %v4633
    %5480 = vmatprep.subr.bf16.mxu0 %v4626
    %5481 = vmatpush2.bf16.msra.mxu0 %v4625
    %5482 = vmatprep.mubr.bf16.mxu0 %v2976
    %5483 = vmatmul.mubr.bf16.gmra.mxu0 %v2975
    %v5484 = vpop.f32.mrf.mxu0
    %v5485 = vadd.f32 %v3378, %v5484
    %v5486 = vpop.f32.mrf.mxu0
    %v5487 = vadd.f32 %v3382, %v5486
    %v5488 = vpop.f32.mrf.mxu0
    %v5489 = vpop.f32.mrf.mxu0
    %5490 = vdwg.mxu0
    %5491 = vmatprep.subr.bf16.mxu0 %v4746
    %5492 = vmatpush1.bf16.msra.mxu0 %v4745
    %5493 = vmatprep.subr.bf16.mxu0 %v4738
    %5494 = vmatpush1.bf16.msra.mxu0 %v4737
    %5495 = vmatprep.subr.bf16.mxu0 %v4730
    %5496 = vmatpush1.bf16.msra.mxu0 %v4729
    %5497 = vmatprep.subr.bf16.mxu0 %v4722
    %5498 = vmatpush1.bf16.msra.mxu0 %v4721
    %5499 = vmatprep.subr.bf16.mxu0 %v4714
    %5500 = vmatpush1.bf16.msra.mxu0 %v4713
    %5501 = vmatprep.subr.bf16.mxu0 %v4706
    %5502 = vmatpush1.bf16.msra.mxu0 %v4705
    %5503 = vmatprep.subr.bf16.mxu0 %v4698
    %5504 = vmatpush1.bf16.msra.mxu0 %v4697
    %5505 = vmatprep.subr.bf16.mxu0 %v4690
    %5506 = vmatpush1.bf16.msra.mxu0 %v4689
    %5507 = vmatprep.subr.bf16.mxu0 %v4810
    %5508 = vmatpush2.bf16.msra.mxu0 %v4809
    %5509 = vmatprep.subr.bf16.mxu0 %v4802
    %5510 = vmatpush2.bf16.msra.mxu0 %v4801
    %5511 = vmatprep.subr.bf16.mxu0 %v4794
    %5512 = vmatpush2.bf16.msra.mxu0 %v4793
    %5513 = vmatprep.subr.bf16.mxu0 %v4786
    %5514 = vmatpush2.bf16.msra.mxu0 %v4785
    %5515 = vmatprep.subr.bf16.mxu0 %v4778
    %5516 = vmatpush2.bf16.msra.mxu0 %v4777
    %5517 = vmatprep.subr.bf16.mxu0 %v4770
    %5518 = vmatpush2.bf16.msra.mxu0 %v4769
    %5519 = vmatprep.subr.bf16.mxu0 %v4762
    %5520 = vmatpush2.bf16.msra.mxu0 %v4761
    %5521 = vmatprep.subr.bf16.mxu0 %v4754
    %5522 = vmatpush2.bf16.msra.mxu0 %v4753
    %5523 = vmatprep.mubr.bf16.mxu0 %v2978
    %5524 = vmatmul.mubr.bf16.gmra.mxu0 %v2977
    %v5525 = vpop.f32.mrf.mxu0
    %v5526 = vadd.f32 %v5485, %v5525
    %v5527 = vpop.f32.mrf.mxu0
    %v5528 = vadd.f32 %v5487, %v5527
    %v5529 = vpop.f32.mrf.mxu0
    %v5530 = vpop.f32.mrf.mxu0
    %5531 = vdwg.mxu0
    %5532 = vmatprep.subr.bf16.mxu0 %v4874
    %5533 = vmatpush1.bf16.msra.mxu0 %v4873
    %5534 = vmatprep.subr.bf16.mxu0 %v4866
    %5535 = vmatpush1.bf16.msra.mxu0 %v4865
    %5536 = vmatprep.subr.bf16.mxu0 %v4858
    %5537 = vmatpush1.bf16.msra.mxu0 %v4857
    %5538 = vmatprep.subr.bf16.mxu0 %v4850
    %5539 = vmatpush1.bf16.msra.mxu0 %v4849
    %5540 = vmatprep.subr.bf16.mxu0 %v4842
    %5541 = vmatpush1.bf16.msra.mxu0 %v4841
    %5542 = vmatprep.subr.bf16.mxu0 %v4834
    %5543 = vmatpush1.bf16.msra.mxu0 %v4833
    %5544 = vmatprep.subr.bf16.mxu0 %v4826
    %5545 = vmatpush1.bf16.msra.mxu0 %v4825
    %5546 = vmatprep.subr.bf16.mxu0 %v4818
    %5547 = vmatpush1.bf16.msra.mxu0 %v4817
    %5548 = vmatprep.subr.bf16.mxu0 %v4938
    %5549 = vmatpush2.bf16.msra.mxu0 %v4937
    %5550 = vmatprep.subr.bf16.mxu0 %v4930
    %5551 = vmatpush2.bf16.msra.mxu0 %v4929
    %5552 = vmatprep.subr.bf16.mxu0 %v4922
    %5553 = vmatpush2.bf16.msra.mxu0 %v4921
    %5554 = vmatprep.subr.bf16.mxu0 %v4914
    %5555 = vmatpush2.bf16.msra.mxu0 %v4913
    %5556 = vmatprep.subr.bf16.mxu0 %v4906
    %5557 = vmatpush2.bf16.msra.mxu0 %v4905
    %5558 = vmatprep.subr.bf16.mxu0 %v4898
    %5559 = vmatpush2.bf16.msra.mxu0 %v4897
    %5560 = vmatprep.subr.bf16.mxu0 %v4890
    %5561 = vmatpush2.bf16.msra.mxu0 %v4889
    %5562 = vmatprep.subr.bf16.mxu0 %v4882
    %5563 = vmatpush2.bf16.msra.mxu0 %v4881
    %5564 = vmatprep.mubr.bf16.mxu0 %v2980
    %5565 = vmatmul.mubr.bf16.gmra.mxu0 %v2979
    %v5566 = vpop.f32.mrf.mxu0
    %v5567 = vadd.f32 %v5526, %v5566
    %v5568 = vpop.f32.mrf.mxu0
    %v5569 = vadd.f32 %v5528, %v5568
    %v5570 = vpop.f32.mrf.mxu0
    %v5571 = vpop.f32.mrf.mxu0
    %5572 = vdwg.mxu0
    %5573 = vmatprep.subr.bf16.mxu0 %v4620
    %5574 = vmatpush1.bf16.msra.mxu0 %v4619
    %5575 = vmatprep.subr.bf16.mxu0 %v4612
    %5576 = vmatpush1.bf16.msra.mxu0 %v4611
    %5577 = vmatprep.subr.bf16.mxu0 %v4604
    %5578 = vmatpush1.bf16.msra.mxu0 %v4603
    %5579 = vmatprep.subr.bf16.mxu0 %v4596
    %5580 = vmatpush1.bf16.msra.mxu0 %v4595
    %5581 = vmatprep.subr.bf16.mxu0 %v4588
    %5582 = vmatpush1.bf16.msra.mxu0 %v4587
    %5583 = vmatprep.subr.bf16.mxu0 %v4580
    %5584 = vmatpush1.bf16.msra.mxu0 %v4579
    %5585 = vmatprep.subr.bf16.mxu0 %v4572
    %5586 = vmatpush1.bf16.msra.mxu0 %v4571
    %5587 = vmatprep.subr.bf16.mxu0 %v4564
    %5588 = vmatpush1.bf16.msra.mxu0 %v4563
    %5589 = vmatprep.subr.bf16.mxu0 %v4684
    %5590 = vmatpush2.bf16.msra.mxu0 %v4683
    %5591 = vmatprep.subr.bf16.mxu0 %v4676
    %5592 = vmatpush2.bf16.msra.mxu0 %v4675
    %5593 = vmatprep.subr.bf16.mxu0 %v4668
    %5594 = vmatpush2.bf16.msra.mxu0 %v4667
    %5595 = vmatprep.subr.bf16.mxu0 %v4660
    %5596 = vmatpush2.bf16.msra.mxu0 %v4659
    %5597 = vmatprep.subr.bf16.mxu0 %v4652
    %5598 = vmatpush2.bf16.msra.mxu0 %v4651
    %5599 = vmatprep.subr.bf16.mxu0 %v4644
    %5600 = vmatpush2.bf16.msra.mxu0 %v4643
    %5601 = vmatprep.subr.bf16.mxu0 %v4636
    %5602 = vmatpush2.bf16.msra.mxu0 %v4635
    %5603 = vmatprep.subr.bf16.mxu0 %v4628
    %5604 = vmatpush2.bf16.msra.mxu0 %v4627
    %5605 = vmatprep.mubr.bf16.mxu0 %v2976
    %5606 = vmatmul.mubr.bf16.gmra.mxu0 %v2975
    %v5607 = vpop.f32.mrf.mxu0
    %v5608 = vadd.f32 %v3386, %v5607
    %v5609 = vpop.f32.mrf.mxu0
    %v5610 = vadd.f32 %v3390, %v5609
    %v5611 = vpop.f32.mrf.mxu0
    %v5612 = vpop.f32.mrf.mxu0
    %5613 = vdwg.mxu0
    %5614 = vmatprep.subr.bf16.mxu0 %v4748
    %5615 = vmatpush1.bf16.msra.mxu0 %v4747
    %5616 = vmatprep.subr.bf16.mxu0 %v4740
    %5617 = vmatpush1.bf16.msra.mxu0 %v4739
    %5618 = vmatprep.subr.bf16.mxu0 %v4732
    %5619 = vmatpush1.bf16.msra.mxu0 %v4731
    %5620 = vmatprep.subr.bf16.mxu0 %v4724
    %5621 = vmatpush1.bf16.msra.mxu0 %v4723
    %5622 = vmatprep.subr.bf16.mxu0 %v4716
    %5623 = vmatpush1.bf16.msra.mxu0 %v4715
    %5624 = vmatprep.subr.bf16.mxu0 %v4708
    %5625 = vmatpush1.bf16.msra.mxu0 %v4707
    %5626 = vmatprep.subr.bf16.mxu0 %v4700
    %5627 = vmatpush1.bf16.msra.mxu0 %v4699
    %5628 = vmatprep.subr.bf16.mxu0 %v4692
    %5629 = vmatpush1.bf16.msra.mxu0 %v4691
    %5630 = vmatprep.subr.bf16.mxu0 %v4812
    %5631 = vmatpush2.bf16.msra.mxu0 %v4811
    %5632 = vmatprep.subr.bf16.mxu0 %v4804
    %5633 = vmatpush2.bf16.msra.mxu0 %v4803
    %5634 = vmatprep.subr.bf16.mxu0 %v4796
    %5635 = vmatpush2.bf16.msra.mxu0 %v4795
    %5636 = vmatprep.subr.bf16.mxu0 %v4788
    %5637 = vmatpush2.bf16.msra.mxu0 %v4787
    %5638 = vmatprep.subr.bf16.mxu0 %v4780
    %5639 = vmatpush2.bf16.msra.mxu0 %v4779
    %5640 = vmatprep.subr.bf16.mxu0 %v4772
    %5641 = vmatpush2.bf16.msra.mxu0 %v4771
    %5642 = vmatprep.subr.bf16.mxu0 %v4764
    %5643 = vmatpush2.bf16.msra.mxu0 %v4763
    %5644 = vmatprep.subr.bf16.mxu0 %v4756
    %5645 = vmatpush2.bf16.msra.mxu0 %v4755
    %5646 = vmatprep.mubr.bf16.mxu0 %v2978
    %5647 = vmatmul.mubr.bf16.gmra.mxu0 %v2977
    %v5648 = vpop.f32.mrf.mxu0
    %v5649 = vadd.f32 %v5608, %v5648
    %v5650 = vpop.f32.mrf.mxu0
    %v5651 = vadd.f32 %v5610, %v5650
    %v5652 = vpop.f32.mrf.mxu0
    %v5653 = vpop.f32.mrf.mxu0
    %5654 = vdwg.mxu0
    %5655 = vmatprep.subr.bf16.mxu0 %v4876
    %5656 = vmatpush1.bf16.msra.mxu0 %v4875
    %5657 = vmatprep.subr.bf16.mxu0 %v4868
    %5658 = vmatpush1.bf16.msra.mxu0 %v4867
    %5659 = vmatprep.subr.bf16.mxu0 %v4860
    %5660 = vmatpush1.bf16.msra.mxu0 %v4859
    %5661 = vmatprep.subr.bf16.mxu0 %v4852
    %5662 = vmatpush1.bf16.msra.mxu0 %v4851
    %5663 = vmatprep.subr.bf16.mxu0 %v4844
    %5664 = vmatpush1.bf16.msra.mxu0 %v4843
    %5665 = vmatprep.subr.bf16.mxu0 %v4836
    %5666 = vmatpush1.bf16.msra.mxu0 %v4835
    %5667 = vmatprep.subr.bf16.mxu0 %v4828
    %5668 = vmatpush1.bf16.msra.mxu0 %v4827
    %5669 = vmatprep.subr.bf16.mxu0 %v4820
    %5670 = vmatpush1.bf16.msra.mxu0 %v4819
    %5671 = vmatprep.subr.bf16.mxu0 %v4940
    %5672 = vmatpush2.bf16.msra.mxu0 %v4939
    %5673 = vmatprep.subr.bf16.mxu0 %v4932
    %5674 = vmatpush2.bf16.msra.mxu0 %v4931
    %5675 = vmatprep.subr.bf16.mxu0 %v4924
    %5676 = vmatpush2.bf16.msra.mxu0 %v4923
    %5677 = vmatprep.subr.bf16.mxu0 %v4916
    %5678 = vmatpush2.bf16.msra.mxu0 %v4915
    %5679 = vmatprep.subr.bf16.mxu0 %v4908
    %5680 = vmatpush2.bf16.msra.mxu0 %v4907
    %5681 = vmatprep.subr.bf16.mxu0 %v4900
    %5682 = vmatpush2.bf16.msra.mxu0 %v4899
    %5683 = vmatprep.subr.bf16.mxu0 %v4892
    %5684 = vmatpush2.bf16.msra.mxu0 %v4891
    %5685 = vmatprep.subr.bf16.mxu0 %v4884
    %5686 = vmatpush2.bf16.msra.mxu0 %v4883
    %5687 = vmatprep.mubr.bf16.mxu0 %v2980
    %5688 = vmatmul.mubr.bf16.gmra.mxu0 %v2979
    %v5689 = vpop.f32.mrf.mxu0
    %v5690 = vadd.f32 %v5649, %v5689
    %v5691 = vpop.f32.mrf.mxu0
    %v5692 = vadd.f32 %v5651, %v5691
    %v5693 = vpop.f32.mrf.mxu0
    %v5694 = vpop.f32.mrf.mxu0
    %5695 = vdwg.mxu0
    %5696 = vmatprep.subr.bf16.mxu0 %v4622
    %5697 = vmatpush1.bf16.msra.mxu0 %v4621
    %5698 = vmatprep.subr.bf16.mxu0 %v4614
    %5699 = vmatpush1.bf16.msra.mxu0 %v4613
    %5700 = vmatprep.subr.bf16.mxu0 %v4606
    %5701 = vmatpush1.bf16.msra.mxu0 %v4605
    %5702 = vmatprep.subr.bf16.mxu0 %v4598
    %5703 = vmatpush1.bf16.msra.mxu0 %v4597
    %5704 = vmatprep.subr.bf16.mxu0 %v4590
    %5705 = vmatpush1.bf16.msra.mxu0 %v4589
    %5706 = vmatprep.subr.bf16.mxu0 %v4582
    %5707 = vmatpush1.bf16.msra.mxu0 %v4581
    %5708 = vmatprep.subr.bf16.mxu0 %v4574
    %5709 = vmatpush1.bf16.msra.mxu0 %v4573
    %5710 = vmatprep.subr.bf16.mxu0 %v4566
    %5711 = vmatpush1.bf16.msra.mxu0 %v4565
    %5712 = vmatprep.subr.bf16.mxu0 %v4686
    %5713 = vmatpush2.bf16.msra.mxu0 %v4685
    %5714 = vmatprep.subr.bf16.mxu0 %v4678
    %5715 = vmatpush2.bf16.msra.mxu0 %v4677
    %5716 = vmatprep.subr.bf16.mxu0 %v4670
    %5717 = vmatpush2.bf16.msra.mxu0 %v4669
    %5718 = vmatprep.subr.bf16.mxu0 %v4662
    %5719 = vmatpush2.bf16.msra.mxu0 %v4661
    %5720 = vmatprep.subr.bf16.mxu0 %v4654
    %5721 = vmatpush2.bf16.msra.mxu0 %v4653
    %5722 = vmatprep.subr.bf16.mxu0 %v4646
    %5723 = vmatpush2.bf16.msra.mxu0 %v4645
    %5724 = vmatprep.subr.bf16.mxu0 %v4638
    %5725 = vmatpush2.bf16.msra.mxu0 %v4637
    %5726 = vmatprep.subr.bf16.mxu0 %v4630
    %5727 = vmatpush2.bf16.msra.mxu0 %v4629
    %5728 = vmatprep.mubr.bf16.mxu0 %v2976
    %5729 = vmatmul.mubr.bf16.gmra.mxu0 %v2975
    %v5730 = vpop.f32.mrf.mxu0
    %v5731 = vadd.f32 %v3394, %v5730
    %v5732 = vpop.f32.mrf.mxu0
    %v5733 = vadd.f32 %v3398, %v5732
    %v5734 = vpop.f32.mrf.mxu0
    %v5735 = vpop.f32.mrf.mxu0
    %5736 = vdwg.mxu0
    %5737 = vmatprep.subr.bf16.mxu0 %v4750
    %5738 = vmatpush1.bf16.msra.mxu0 %v4749
    %5739 = vmatprep.subr.bf16.mxu0 %v4742
    %5740 = vmatpush1.bf16.msra.mxu0 %v4741
    %5741 = vmatprep.subr.bf16.mxu0 %v4734
    %5742 = vmatpush1.bf16.msra.mxu0 %v4733
    %5743 = vmatprep.subr.bf16.mxu0 %v4726
    %5744 = vmatpush1.bf16.msra.mxu0 %v4725
    %5745 = vmatprep.subr.bf16.mxu0 %v4718
    %5746 = vmatpush1.bf16.msra.mxu0 %v4717
    %5747 = vmatprep.subr.bf16.mxu0 %v4710
    %5748 = vmatpush1.bf16.msra.mxu0 %v4709
    %5749 = vmatprep.subr.bf16.mxu0 %v4702
    %5750 = vmatpush1.bf16.msra.mxu0 %v4701
    %5751 = vmatprep.subr.bf16.mxu0 %v4694
    %5752 = vmatpush1.bf16.msra.mxu0 %v4693
    %5753 = vmatprep.subr.bf16.mxu0 %v4814
    %5754 = vmatpush2.bf16.msra.mxu0 %v4813
    %5755 = vmatprep.subr.bf16.mxu0 %v4806
    %5756 = vmatpush2.bf16.msra.mxu0 %v4805
    %5757 = vmatprep.subr.bf16.mxu0 %v4798
    %5758 = vmatpush2.bf16.msra.mxu0 %v4797
    %5759 = vmatprep.subr.bf16.mxu0 %v4790
    %5760 = vmatpush2.bf16.msra.mxu0 %v4789
    %5761 = vmatprep.subr.bf16.mxu0 %v4782
    %5762 = vmatpush2.bf16.msra.mxu0 %v4781
    %5763 = vmatprep.subr.bf16.mxu0 %v4774
    %5764 = vmatpush2.bf16.msra.mxu0 %v4773
    %5765 = vmatprep.subr.bf16.mxu0 %v4766
    %5766 = vmatpush2.bf16.msra.mxu0 %v4765
    %5767 = vmatprep.subr.bf16.mxu0 %v4758
    %5768 = vmatpush2.bf16.msra.mxu0 %v4757
    %5769 = vmatprep.mubr.bf16.mxu0 %v2978
    %5770 = vmatmul.mubr.bf16.gmra.mxu0 %v2977
    %v5771 = vpop.f32.mrf.mxu0
    %v5772 = vadd.f32 %v5731, %v5771
    %v5773 = vpop.f32.mrf.mxu0
    %v5774 = vadd.f32 %v5733, %v5773
    %v5775 = vpop.f32.mrf.mxu0
    %v5776 = vpop.f32.mrf.mxu0
    %5777 = vdwg.mxu0
    %5778 = vmatprep.subr.bf16.mxu0 %v4878
    %5779 = vmatpush1.bf16.msra.mxu0 %v4877
    %5780 = vmatprep.subr.bf16.mxu0 %v4870
    %5781 = vmatpush1.bf16.msra.mxu0 %v4869
    %5782 = vmatprep.subr.bf16.mxu0 %v4862
    %5783 = vmatpush1.bf16.msra.mxu0 %v4861
    %5784 = vmatprep.subr.bf16.mxu0 %v4854
    %5785 = vmatpush1.bf16.msra.mxu0 %v4853
    %5786 = vmatprep.subr.bf16.mxu0 %v4846
    %5787 = vmatpush1.bf16.msra.mxu0 %v4845
    %5788 = vmatprep.subr.bf16.mxu0 %v4838
    %5789 = vmatpush1.bf16.msra.mxu0 %v4837
    %5790 = vmatprep.subr.bf16.mxu0 %v4830
    %5791 = vmatpush1.bf16.msra.mxu0 %v4829
    %5792 = vmatprep.subr.bf16.mxu0 %v4822
    %5793 = vmatpush1.bf16.msra.mxu0 %v4821
    %5794 = vmatprep.subr.bf16.mxu0 %v4942
    %5795 = vmatpush2.bf16.msra.mxu0 %v4941
    %5796 = vmatprep.subr.bf16.mxu0 %v4934
    %5797 = vmatpush2.bf16.msra.mxu0 %v4933
    %5798 = vmatprep.subr.bf16.mxu0 %v4926
    %5799 = vmatpush2.bf16.msra.mxu0 %v4925
    %5800 = vmatprep.subr.bf16.mxu0 %v4918
    %5801 = vmatpush2.bf16.msra.mxu0 %v4917
    %5802 = vmatprep.subr.bf16.mxu0 %v4910
    %5803 = vmatpush2.bf16.msra.mxu0 %v4909
    %5804 = vmatprep.subr.bf16.mxu0 %v4902
    %5805 = vmatpush2.bf16.msra.mxu0 %v4901
    %5806 = vmatprep.subr.bf16.mxu0 %v4894
    %5807 = vmatpush2.bf16.msra.mxu0 %v4893
    %5808 = vmatprep.subr.bf16.mxu0 %v4886
    %5809 = vmatpush2.bf16.msra.mxu0 %v4885
    %5810 = vmatprep.mubr.bf16.mxu0 %v2980
    %5811 = vmatmul.mubr.bf16.gmra.mxu0 %v2979
    %v5812 = vpop.f32.mrf.mxu0
    %v5813 = vadd.f32 %v5772, %v5812
    %v5814 = vpop.f32.mrf.mxu0
    %v5815 = vadd.f32 %v5774, %v5814
    %v5816 = vpop.f32.mrf.mxu0
    %v5817 = vpop.f32.mrf.mxu0
    %5818 = vdwg.mxu0
    %v5819 = vmax.f32 %v5444, 0.0
    %v5820 = vmax.f32 %v5446, 0.0
    %v5821 = vmax.f32 %v5567, 0.0
    %v5822 = vmax.f32 %v5569, 0.0
    %v5823 = vmax.f32 %v5690, 0.0
    %v5824 = vmax.f32 %v5692, 0.0
    %v5825 = vmax.f32 %v5813, 0.0
    %v5826 = vmax.f32 %v5815, 0.0
    %v5827 = vpack.c.bf16 %v5819, %v5819
    %v5828 = vpack.c.bf16 %v5820, %v5820
    %v5829 = vpack.c.bf16 %v5821, %v5821
    %v5830 = vpack.c.bf16 %v5822, %v5822
    %v5831 = vpack.c.bf16 %v5823, %v5823
    %v5832 = vpack.c.bf16 %v5824, %v5824
    %v5833 = vpack.c.bf16 %v5825, %v5825
    %v5834 = vpack.c.bf16 %v5826, %v5826
    %v5835 = vld [vmem:[#allocation11] sm:$0xf]
    %v5836 = vld [vmem:[#allocation11 + $0x4] sm:$0xf]
    %v5837 = vld [vmem:[#allocation11 + $0x8] sm:$0xf]
    %v5838 = vld [vmem:[#allocation11 + $0xc] sm:$0xf]
    %v5839 = vld [vmem:[#allocation11 + $0x10] sm:$0xf]
    %v5840 = vld [vmem:[#allocation11 + $0x14] sm:$0xf]
    %v5841 = vld [vmem:[#allocation11 + $0x18] sm:$0xf]
    %v5842 = vld [vmem:[#allocation11 + $0x1c] sm:$0xf]
    %v5843 = vld [vmem:[#allocation11 + $0x20] sm:$0xf]
    %v5844 = vld [vmem:[#allocation11 + $0x24] sm:$0xf]
    %v5845 = vld [vmem:[#allocation11 + $0x28] sm:$0xf]
    %v5846 = vld [vmem:[#allocation11 + $0x2c] sm:$0xf]
    %v5847 = vld [vmem:[#allocation11 + $0x30] sm:$0xf]
    %v5848 = vld [vmem:[#allocation11 + $0x34] sm:$0xf]
    %v5849 = vld [vmem:[#allocation11 + $0x38] sm:$0xf]
    %v5850 = vld [vmem:[#allocation11 + $0x3c] sm:$0xf]
    %v5851 = vld [vmem:[#allocation11 + $0x40] sm:$0xf]
    %v5852 = vld [vmem:[#allocation11 + $0x44] sm:$0xf]
    %v5853 = vld [vmem:[#allocation11 + $0x48] sm:$0xf]
    %v5854 = vld [vmem:[#allocation11 + $0x4c] sm:$0xf]
    %v5855 = vld [vmem:[#allocation11 + $0x50] sm:$0xf]
    %v5856 = vld [vmem:[#allocation11 + $0x54] sm:$0xf]
    %v5857 = vld [vmem:[#allocation11 + $0x58] sm:$0xf]
    %v5858 = vld [vmem:[#allocation11 + $0x5c] sm:$0xf]
    %v5859 = vld [vmem:[#allocation11 + $0x60] sm:$0xf]
    %v5860 = vld [vmem:[#allocation11 + $0x64] sm:$0xf]
    %v5861 = vld [vmem:[#allocation11 + $0x68] sm:$0xf]
    %v5862 = vld [vmem:[#allocation11 + $0x6c] sm:$0xf]
    %v5863 = vld [vmem:[#allocation11 + $0x70] sm:$0xf]
    %v5864 = vld [vmem:[#allocation11 + $0x74] sm:$0xf]
    %v5865 = vld [vmem:[#allocation11 + $0x78] sm:$0xf]
    %v5866 = vld [vmem:[#allocation11 + $0x7c] sm:$0xf]
    %v5867 = vld [vmem:[#allocation11 + $0x80] sm:$0xf]
    %v5868 = vld [vmem:[#allocation11 + $0x84] sm:$0xf]
    %v5869 = vld [vmem:[#allocation11 + $0x88] sm:$0xf]
    %v5870 = vld [vmem:[#allocation11 + $0x8c] sm:$0xf]
    %v5871 = vld [vmem:[#allocation11 + $0x90] sm:$0xf]
    %v5872 = vld [vmem:[#allocation11 + $0x94] sm:$0xf]
    %v5873 = vld [vmem:[#allocation11 + $0x98] sm:$0xf]
    %v5874 = vld [vmem:[#allocation11 + $0x9c] sm:$0xf]
    %v5875 = vld [vmem:[#allocation11 + $0xa0] sm:$0xf]
    %v5876 = vld [vmem:[#allocation11 + $0xa4] sm:$0xf]
    %v5877 = vld [vmem:[#allocation11 + $0xa8] sm:$0xf]
    %v5878 = vld [vmem:[#allocation11 + $0xac] sm:$0xf]
    %v5879 = vld [vmem:[#allocation11 + $0xb0] sm:$0xf]
    %v5880 = vld [vmem:[#allocation11 + $0xb4] sm:$0xf]
    %v5881 = vld [vmem:[#allocation11 + $0xb8] sm:$0xf]
    %v5882 = vld [vmem:[#allocation11 + $0xbc] sm:$0xf]
    %v5883 = vld [vmem:[#allocation11 + $0xc0] sm:$0xf]
    %v5884 = vld [vmem:[#allocation11 + $0xc4] sm:$0xf]
    %v5885 = vld [vmem:[#allocation11 + $0xc8] sm:$0xf]
    %v5886 = vld [vmem:[#allocation11 + $0xcc] sm:$0xf]
    %v5887 = vld [vmem:[#allocation11 + $0xd0] sm:$0xf]
    %v5888 = vld [vmem:[#allocation11 + $0xd4] sm:$0xf]
    %v5889 = vld [vmem:[#allocation11 + $0xd8] sm:$0xf]
    %v5890 = vld [vmem:[#allocation11 + $0xdc] sm:$0xf]
    %v5891 = vld [vmem:[#allocation11 + $0xe0] sm:$0xf]
    %v5892 = vld [vmem:[#allocation11 + $0xe4] sm:$0xf]
    %v5893 = vld [vmem:[#allocation11 + $0xe8] sm:$0xf]
    %v5894 = vld [vmem:[#allocation11 + $0xec] sm:$0xf]
    %v5895 = vld [vmem:[#allocation11 + $0xf0] sm:$0xf]
    %v5896 = vld [vmem:[#allocation11 + $0xf4] sm:$0xf]
    %v5897 = vld [vmem:[#allocation11 + $0xf8] sm:$0xf]
    %v5898 = vld [vmem:[#allocation11 + $0xfc] sm:$0xf]
    %v5899 = vld [vmem:[#allocation11 + $0x100] sm:$0xf]
    %v5900 = vld [vmem:[#allocation11 + $0x104] sm:$0xf]
    %v5901 = vld [vmem:[#allocation11 + $0x108] sm:$0xf]
    %v5902 = vld [vmem:[#allocation11 + $0x10c] sm:$0xf]
    %v5903 = vld [vmem:[#allocation11 + $0x110] sm:$0xf]
    %v5904 = vld [vmem:[#allocation11 + $0x114] sm:$0xf]
    %v5905 = vld [vmem:[#allocation11 + $0x118] sm:$0xf]
    %v5906 = vld [vmem:[#allocation11 + $0x11c] sm:$0xf]
    %v5907 = vld [vmem:[#allocation11 + $0x120] sm:$0xf]
    %v5908 = vld [vmem:[#allocation11 + $0x124] sm:$0xf]
    %v5909 = vld [vmem:[#allocation11 + $0x128] sm:$0xf]
    %v5910 = vld [vmem:[#allocation11 + $0x12c] sm:$0xf]
    %v5911 = vld [vmem:[#allocation11 + $0x130] sm:$0xf]
    %v5912 = vld [vmem:[#allocation11 + $0x134] sm:$0xf]
    %v5913 = vld [vmem:[#allocation11 + $0x138] sm:$0xf]
    %v5914 = vld [vmem:[#allocation11 + $0x13c] sm:$0xf]
    %v5915 = vld [vmem:[#allocation11 + $0x140] sm:$0xf]
    %v5916 = vld [vmem:[#allocation11 + $0x144] sm:$0xf]
    %v5917 = vld [vmem:[#allocation11 + $0x148] sm:$0xf]
    %v5918 = vld [vmem:[#allocation11 + $0x14c] sm:$0xf]
    %v5919 = vld [vmem:[#allocation11 + $0x150] sm:$0xf]
    %v5920 = vld [vmem:[#allocation11 + $0x154] sm:$0xf]
    %v5921 = vld [vmem:[#allocation11 + $0x158] sm:$0xf]
    %v5922 = vld [vmem:[#allocation11 + $0x15c] sm:$0xf]
    %v5923 = vld [vmem:[#allocation11 + $0x160] sm:$0xf]
    %v5924 = vld [vmem:[#allocation11 + $0x164] sm:$0xf]
    %v5925 = vld [vmem:[#allocation11 + $0x168] sm:$0xf]
    %v5926 = vld [vmem:[#allocation11 + $0x16c] sm:$0xf]
    %v5927 = vld [vmem:[#allocation11 + $0x170] sm:$0xf]
    %v5928 = vld [vmem:[#allocation11 + $0x174] sm:$0xf]
    %v5929 = vld [vmem:[#allocation11 + $0x178] sm:$0xf]
    %v5930 = vld [vmem:[#allocation11 + $0x17c] sm:$0xf]
    %v5931 = vld [vmem:[#allocation11 + $0x180] sm:$0xf]
    %v5932 = vld [vmem:[#allocation11 + $0x184] sm:$0xf]
    %v5933 = vld [vmem:[#allocation11 + $0x188] sm:$0xf]
    %v5934 = vld [vmem:[#allocation11 + $0x18c] sm:$0xf]
    %v5935 = vld [vmem:[#allocation11 + $0x190] sm:$0xf]
    %v5936 = vld [vmem:[#allocation11 + $0x194] sm:$0xf]
    %v5937 = vld [vmem:[#allocation11 + $0x198] sm:$0xf]
    %v5938 = vld [vmem:[#allocation11 + $0x19c] sm:$0xf]
    %v5939 = vld [vmem:[#allocation11 + $0x1a0] sm:$0xf]
    %v5940 = vld [vmem:[#allocation11 + $0x1a4] sm:$0xf]
    %v5941 = vld [vmem:[#allocation11 + $0x1a8] sm:$0xf]
    %v5942 = vld [vmem:[#allocation11 + $0x1ac] sm:$0xf]
    %v5943 = vld [vmem:[#allocation11 + $0x1b0] sm:$0xf]
    %v5944 = vld [vmem:[#allocation11 + $0x1b4] sm:$0xf]
    %v5945 = vld [vmem:[#allocation11 + $0x1b8] sm:$0xf]
    %v5946 = vld [vmem:[#allocation11 + $0x1bc] sm:$0xf]
    %v5947 = vld [vmem:[#allocation11 + $0x1c0] sm:$0xf]
    %v5948 = vld [vmem:[#allocation11 + $0x1c4] sm:$0xf]
    %v5949 = vld [vmem:[#allocation11 + $0x1c8] sm:$0xf]
    %v5950 = vld [vmem:[#allocation11 + $0x1cc] sm:$0xf]
    %v5951 = vld [vmem:[#allocation11 + $0x1d0] sm:$0xf]
    %v5952 = vld [vmem:[#allocation11 + $0x1d4] sm:$0xf]
    %v5953 = vld [vmem:[#allocation11 + $0x1d8] sm:$0xf]
    %v5954 = vld [vmem:[#allocation11 + $0x1dc] sm:$0xf]
    %v5955 = vld [vmem:[#allocation11 + $0x1e0] sm:$0xf]
    %v5956 = vld [vmem:[#allocation11 + $0x1e4] sm:$0xf]
    %v5957 = vld [vmem:[#allocation11 + $0x1e8] sm:$0xf]
    %v5958 = vld [vmem:[#allocation11 + $0x1ec] sm:$0xf]
    %v5959 = vld [vmem:[#allocation11 + $0x1f0] sm:$0xf]
    %v5960 = vld [vmem:[#allocation11 + $0x1f4] sm:$0xf]
    %v5961 = vld [vmem:[#allocation11 + $0x1f8] sm:$0xf]
    %v5962 = vld [vmem:[#allocation11 + $0x1fc] sm:$0xf]
    %v5963 = vld [vmem:[#allocation13] sm:$0x1]
    %v5965 = vlaneseq
    %v5966 = vshrl.u32 %v5965, 7
    %v5967 = vsub.s32 0, %v5966
    %v5968 = vrot.slane %v5963, %v5967
    %v6098 = vunpack.c.l.b16 %v5835
    %v6099 = vunpack.c.l.b16 %v5836
    %v6100 = vunpack.c.l.b16 %v5837
    %v6101 = vunpack.c.l.b16 %v5838
    %v6102 = vunpack.c.l.b16 %v5839
    %v6103 = vunpack.c.l.b16 %v5840
    %v6104 = vunpack.c.l.b16 %v5841
    %v6105 = vunpack.c.l.b16 %v5842
    %v6106 = vunpack.c.l.b16 %v5843
    %v6107 = vunpack.c.l.b16 %v5844
    %v6108 = vunpack.c.l.b16 %v5845
    %v6109 = vunpack.c.l.b16 %v5846
    %v6110 = vunpack.c.l.b16 %v5847
    %v6111 = vunpack.c.l.b16 %v5848
    %v6112 = vunpack.c.l.b16 %v5849
    %v6113 = vunpack.c.l.b16 %v5850
    %v6114 = vunpack.c.l.b16 %v5851
    %v6115 = vunpack.c.l.b16 %v5852
    %v6116 = vunpack.c.l.b16 %v5853
    %v6117 = vunpack.c.l.b16 %v5854
    %v6118 = vunpack.c.l.b16 %v5855
    %v6119 = vunpack.c.l.b16 %v5856
    %v6120 = vunpack.c.l.b16 %v5857
    %v6121 = vunpack.c.l.b16 %v5858
    %v6122 = vunpack.c.l.b16 %v5859
    %v6123 = vunpack.c.l.b16 %v5860
    %v6124 = vunpack.c.l.b16 %v5861
    %v6125 = vunpack.c.l.b16 %v5862
    %v6126 = vunpack.c.l.b16 %v5863
    %v6127 = vunpack.c.l.b16 %v5864
    %v6128 = vunpack.c.l.b16 %v5865
    %v6129 = vunpack.c.l.b16 %v5866
    %v6130 = vunpack.c.l.b16 %v5867
    %v6131 = vunpack.c.l.b16 %v5868
    %v6132 = vunpack.c.l.b16 %v5869
    %v6133 = vunpack.c.l.b16 %v5870
    %v6134 = vunpack.c.l.b16 %v5871
    %v6135 = vunpack.c.l.b16 %v5872
    %v6136 = vunpack.c.l.b16 %v5873
    %v6137 = vunpack.c.l.b16 %v5874
    %v6138 = vunpack.c.l.b16 %v5875
    %v6139 = vunpack.c.l.b16 %v5876
    %v6140 = vunpack.c.l.b16 %v5877
    %v6141 = vunpack.c.l.b16 %v5878
    %v6142 = vunpack.c.l.b16 %v5879
    %v6143 = vunpack.c.l.b16 %v5880
    %v6144 = vunpack.c.l.b16 %v5881
    %v6145 = vunpack.c.l.b16 %v5882
    %v6146 = vunpack.c.l.b16 %v5883
    %v6147 = vunpack.c.l.b16 %v5884
    %v6148 = vunpack.c.l.b16 %v5885
    %v6149 = vunpack.c.l.b16 %v5886
    %v6150 = vunpack.c.l.b16 %v5887
    %v6151 = vunpack.c.l.b16 %v5888
    %v6152 = vunpack.c.l.b16 %v5889
    %v6153 = vunpack.c.l.b16 %v5890
    %v6154 = vunpack.c.l.b16 %v5891
    %v6155 = vunpack.c.l.b16 %v5892
    %v6156 = vunpack.c.l.b16 %v5893
    %v6157 = vunpack.c.l.b16 %v5894
    %v6158 = vunpack.c.l.b16 %v5895
    %v6159 = vunpack.c.l.b16 %v5896
    %v6160 = vunpack.c.l.b16 %v5897
    %v6161 = vunpack.c.l.b16 %v5898
    %v6162 = vunpack.c.l.b16 %v5899
    %v6163 = vunpack.c.l.b16 %v5900
    %v6164 = vunpack.c.l.b16 %v5901
    %v6165 = vunpack.c.l.b16 %v5902
    %v6166 = vunpack.c.l.b16 %v5903
    %v6167 = vunpack.c.l.b16 %v5904
    %v6168 = vunpack.c.l.b16 %v5905
    %v6169 = vunpack.c.l.b16 %v5906
    %v6170 = vunpack.c.l.b16 %v5907
    %v6171 = vunpack.c.l.b16 %v5908
    %v6172 = vunpack.c.l.b16 %v5909
    %v6173 = vunpack.c.l.b16 %v5910
    %v6174 = vunpack.c.l.b16 %v5911
    %v6175 = vunpack.c.l.b16 %v5912
    %v6176 = vunpack.c.l.b16 %v5913
    %v6177 = vunpack.c.l.b16 %v5914
    %v6178 = vunpack.c.l.b16 %v5915
    %v6179 = vunpack.c.l.b16 %v5916
    %v6180 = vunpack.c.l.b16 %v5917
    %v6181 = vunpack.c.l.b16 %v5918
    %v6182 = vunpack.c.l.b16 %v5919
    %v6183 = vunpack.c.l.b16 %v5920
    %v6184 = vunpack.c.l.b16 %v5921
    %v6185 = vunpack.c.l.b16 %v5922
    %v6186 = vunpack.c.l.b16 %v5923
    %v6187 = vunpack.c.l.b16 %v5924
    %v6188 = vunpack.c.l.b16 %v5925
    %v6189 = vunpack.c.l.b16 %v5926
    %v6190 = vunpack.c.l.b16 %v5927
    %v6191 = vunpack.c.l.b16 %v5928
    %v6192 = vunpack.c.l.b16 %v5929
    %v6193 = vunpack.c.l.b16 %v5930
    %v6194 = vunpack.c.l.b16 %v5931
    %v6195 = vunpack.c.l.b16 %v5932
    %v6196 = vunpack.c.l.b16 %v5933
    %v6197 = vunpack.c.l.b16 %v5934
    %v6198 = vunpack.c.l.b16 %v5935
    %v6199 = vunpack.c.l.b16 %v5936
    %v6200 = vunpack.c.l.b16 %v5937
    %v6201 = vunpack.c.l.b16 %v5938
    %v6202 = vunpack.c.l.b16 %v5939
    %v6203 = vunpack.c.l.b16 %v5940
    %v6204 = vunpack.c.l.b16 %v5941
    %v6205 = vunpack.c.l.b16 %v5942
    %v6206 = vunpack.c.l.b16 %v5943
    %v6207 = vunpack.c.l.b16 %v5944
    %v6208 = vunpack.c.l.b16 %v5945
    %v6209 = vunpack.c.l.b16 %v5946
    %v6210 = vunpack.c.l.b16 %v5947
    %v6211 = vunpack.c.l.b16 %v5948
    %v6212 = vunpack.c.l.b16 %v5949
    %v6213 = vunpack.c.l.b16 %v5950
    %v6214 = vunpack.c.l.b16 %v5951
    %v6215 = vunpack.c.l.b16 %v5952
    %v6216 = vunpack.c.l.b16 %v5953
    %v6217 = vunpack.c.l.b16 %v5954
    %v6218 = vunpack.c.l.b16 %v5955
    %v6219 = vunpack.c.l.b16 %v5956
    %v6220 = vunpack.c.l.b16 %v5957
    %v6221 = vunpack.c.l.b16 %v5958
    %v6222 = vunpack.c.l.b16 %v5959
    %v6223 = vunpack.c.l.b16 %v5960
    %v6224 = vunpack.c.l.b16 %v5961
    %v6225 = vunpack.c.l.b16 %v5962
    %v6226 = vpack.c.b16 %v6099, %v6098
    %v6227 = vpack.c.b16 %v6101, %v6100
    %v6228 = vpack.c.b16 %v6103, %v6102
    %v6229 = vpack.c.b16 %v6105, %v6104
    %v6230 = vpack.c.b16 %v6107, %v6106
    %v6231 = vpack.c.b16 %v6109, %v6108
    %v6232 = vpack.c.b16 %v6111, %v6110
    %v6233 = vpack.c.b16 %v6113, %v6112
    %v6234 = vpack.c.b16 %v6115, %v6114
    %v6235 = vpack.c.b16 %v6117, %v6116
    %v6236 = vpack.c.b16 %v6119, %v6118
    %v6237 = vpack.c.b16 %v6121, %v6120
    %v6238 = vpack.c.b16 %v6123, %v6122
    %v6239 = vpack.c.b16 %v6125, %v6124
    %v6240 = vpack.c.b16 %v6127, %v6126
    %v6241 = vpack.c.b16 %v6129, %v6128
    %v6242 = vpack.c.b16 %v6131, %v6130
    %v6243 = vpack.c.b16 %v6133, %v6132
    %v6244 = vpack.c.b16 %v6135, %v6134
    %v6245 = vpack.c.b16 %v6137, %v6136
    %v6246 = vpack.c.b16 %v6139, %v6138
    %v6247 = vpack.c.b16 %v6141, %v6140
    %v6248 = vpack.c.b16 %v6143, %v6142
    %v6249 = vpack.c.b16 %v6145, %v6144
    %v6250 = vpack.c.b16 %v6147, %v6146
    %v6251 = vpack.c.b16 %v6149, %v6148
    %v6252 = vpack.c.b16 %v6151, %v6150
    %v6253 = vpack.c.b16 %v6153, %v6152
    %v6254 = vpack.c.b16 %v6155, %v6154
    %v6255 = vpack.c.b16 %v6157, %v6156
    %v6256 = vpack.c.b16 %v6159, %v6158
    %v6257 = vpack.c.b16 %v6161, %v6160
    %v6258 = vpack.c.b16 %v6163, %v6162
    %v6259 = vpack.c.b16 %v6165, %v6164
    %v6260 = vpack.c.b16 %v6167, %v6166
    %v6261 = vpack.c.b16 %v6169, %v6168
    %v6262 = vpack.c.b16 %v6171, %v6170
    %v6263 = vpack.c.b16 %v6173, %v6172
    %v6264 = vpack.c.b16 %v6175, %v6174
    %v6265 = vpack.c.b16 %v6177, %v6176
    %v6266 = vpack.c.b16 %v6179, %v6178
    %v6267 = vpack.c.b16 %v6181, %v6180
    %v6268 = vpack.c.b16 %v6183, %v6182
    %v6269 = vpack.c.b16 %v6185, %v6184
    %v6270 = vpack.c.b16 %v6187, %v6186
    %v6271 = vpack.c.b16 %v6189, %v6188
    %v6272 = vpack.c.b16 %v6191, %v6190
    %v6273 = vpack.c.b16 %v6193, %v6192
    %v6274 = vpack.c.b16 %v6195, %v6194
    %v6275 = vpack.c.b16 %v6197, %v6196
    %v6276 = vpack.c.b16 %v6199, %v6198
    %v6277 = vpack.c.b16 %v6201, %v6200
    %v6278 = vpack.c.b16 %v6203, %v6202
    %v6279 = vpack.c.b16 %v6205, %v6204
    %v6280 = vpack.c.b16 %v6207, %v6206
    %v6281 = vpack.c.b16 %v6209, %v6208
    %v6282 = vpack.c.b16 %v6211, %v6210
    %v6283 = vpack.c.b16 %v6213, %v6212
    %v6284 = vpack.c.b16 %v6215, %v6214
    %v6285 = vpack.c.b16 %v6217, %v6216
    %v6286 = vpack.c.b16 %v6219, %v6218
    %v6287 = vpack.c.b16 %v6221, %v6220
    %v6288 = vpack.c.b16 %v6223, %v6222
    %v6289 = vpack.c.b16 %v6225, %v6224
    %6354 = vmatprep.subr.bf16.mxu0 0
    %6355 = vmatpush1.bf16.msra.mxu0 %v6233
    %6356 = vmatprep.subr.bf16.mxu0 0
    %6357 = vmatpush1.bf16.msra.mxu0 %v6232
    %6358 = vmatprep.subr.bf16.mxu0 0
    %6359 = vmatpush1.bf16.msra.mxu0 %v6231
    %6360 = vmatprep.subr.bf16.mxu0 0
    %6361 = vmatpush1.bf16.msra.mxu0 %v6230
    %6362 = vmatprep.subr.bf16.mxu0 0
    %6363 = vmatpush1.bf16.msra.mxu0 %v6229
    %6364 = vmatprep.subr.bf16.mxu0 0
    %6365 = vmatpush1.bf16.msra.mxu0 %v6228
    %6366 = vmatprep.subr.bf16.mxu0 0
    %6367 = vmatpush1.bf16.msra.mxu0 %v6227
    %6368 = vmatprep.subr.bf16.mxu0 0
    %6369 = vmatpush1.bf16.msra.mxu0 %v6226
    %6370 = vmatprep.subr.bf16.mxu0 0
    %6371 = vmatpush2.bf16.msra.mxu0 %v6241
    %6372 = vmatprep.subr.bf16.mxu0 0
    %6373 = vmatpush2.bf16.msra.mxu0 %v6240
    %6374 = vmatprep.subr.bf16.mxu0 0
    %6375 = vmatpush2.bf16.msra.mxu0 %v6239
    %6376 = vmatprep.subr.bf16.mxu0 0
    %6377 = vmatpush2.bf16.msra.mxu0 %v6238
    %6378 = vmatprep.subr.bf16.mxu0 0
    %6379 = vmatpush2.bf16.msra.mxu0 %v6237
    %6380 = vmatprep.subr.bf16.mxu0 0
    %6381 = vmatpush2.bf16.msra.mxu0 %v6236
    %6382 = vmatprep.subr.bf16.mxu0 0
    %6383 = vmatpush2.bf16.msra.mxu0 %v6235
    %6384 = vmatprep.subr.bf16.mxu0 0
    %6385 = vmatpush2.bf16.msra.mxu0 %v6234
    %6386 = vmatprep.mubr.bf16.mxu0 %v5828
    %6387 = vmatmul.mubr.bf16.gmra.mxu0 %v5827
    %v6388 = vpop.f32.mrf.mxu0
    %v6389 = vadd.f32 %v5968, %v6388
    %v6390 = vpop.f32.mrf.mxu0
    %v6391 = vpop.f32.mrf.mxu0
    %v6392 = vpop.f32.mrf.mxu0
    %6393 = vdwg.mxu0
    %6394 = vmatprep.subr.bf16.mxu0 0
    %6395 = vmatpush1.bf16.msra.mxu0 %v6249
    %6396 = vmatprep.subr.bf16.mxu0 0
    %6397 = vmatpush1.bf16.msra.mxu0 %v6248
    %6398 = vmatprep.subr.bf16.mxu0 0
    %6399 = vmatpush1.bf16.msra.mxu0 %v6247
    %6400 = vmatprep.subr.bf16.mxu0 0
    %6401 = vmatpush1.bf16.msra.mxu0 %v6246
    %6402 = vmatprep.subr.bf16.mxu0 0
    %6403 = vmatpush1.bf16.msra.mxu0 %v6245
    %6404 = vmatprep.subr.bf16.mxu0 0
    %6405 = vmatpush1.bf16.msra.mxu0 %v6244
    %6406 = vmatprep.subr.bf16.mxu0 0
    %6407 = vmatpush1.bf16.msra.mxu0 %v6243
    %6408 = vmatprep.subr.bf16.mxu0 0
    %6409 = vmatpush1.bf16.msra.mxu0 %v6242
    %6410 = vmatprep.subr.bf16.mxu0 0
    %6411 = vmatpush2.bf16.msra.mxu0 %v6257
    %6412 = vmatprep.subr.bf16.mxu0 0
    %6413 = vmatpush2.bf16.msra.mxu0 %v6256
    %6414 = vmatprep.subr.bf16.mxu0 0
    %6415 = vmatpush2.bf16.msra.mxu0 %v6255
    %6416 = vmatprep.subr.bf16.mxu0 0
    %6417 = vmatpush2.bf16.msra.mxu0 %v6254
    %6418 = vmatprep.subr.bf16.mxu0 0
    %6419 = vmatpush2.bf16.msra.mxu0 %v6253
    %6420 = vmatprep.subr.bf16.mxu0 0
    %6421 = vmatpush2.bf16.msra.mxu0 %v6252
    %6422 = vmatprep.subr.bf16.mxu0 0
    %6423 = vmatpush2.bf16.msra.mxu0 %v6251
    %6424 = vmatprep.subr.bf16.mxu0 0
    %6425 = vmatpush2.bf16.msra.mxu0 %v6250
    %6426 = vmatprep.mubr.bf16.mxu0 %v5830
    %6427 = vmatmul.mubr.bf16.gmra.mxu0 %v5829
    %v6428 = vpop.f32.mrf.mxu0
    %v6429 = vadd.f32 %v6389, %v6428
    %v6430 = vpop.f32.mrf.mxu0
    %v6431 = vpop.f32.mrf.mxu0
    %v6432 = vpop.f32.mrf.mxu0
    %6433 = vdwg.mxu0
    %6434 = vmatprep.subr.bf16.mxu0 0
    %6435 = vmatpush1.bf16.msra.mxu0 %v6265
    %6436 = vmatprep.subr.bf16.mxu0 0
    %6437 = vmatpush1.bf16.msra.mxu0 %v6264
    %6438 = vmatprep.subr.bf16.mxu0 0
    %6439 = vmatpush1.bf16.msra.mxu0 %v6263
    %6440 = vmatprep.subr.bf16.mxu0 0
    %6441 = vmatpush1.bf16.msra.mxu0 %v6262
    %6442 = vmatprep.subr.bf16.mxu0 0
    %6443 = vmatpush1.bf16.msra.mxu0 %v6261
    %6444 = vmatprep.subr.bf16.mxu0 0
    %6445 = vmatpush1.bf16.msra.mxu0 %v6260
    %6446 = vmatprep.subr.bf16.mxu0 0
    %6447 = vmatpush1.bf16.msra.mxu0 %v6259
    %6448 = vmatprep.subr.bf16.mxu0 0
    %6449 = vmatpush1.bf16.msra.mxu0 %v6258
    %6450 = vmatprep.subr.bf16.mxu0 0
    %6451 = vmatpush2.bf16.msra.mxu0 %v6273
    %6452 = vmatprep.subr.bf16.mxu0 0
    %6453 = vmatpush2.bf16.msra.mxu0 %v6272
    %6454 = vmatprep.subr.bf16.mxu0 0
    %6455 = vmatpush2.bf16.msra.mxu0 %v6271
    %6456 = vmatprep.subr.bf16.mxu0 0
    %6457 = vmatpush2.bf16.msra.mxu0 %v6270
    %6458 = vmatprep.subr.bf16.mxu0 0
    %6459 = vmatpush2.bf16.msra.mxu0 %v6269
    %6460 = vmatprep.subr.bf16.mxu0 0
    %6461 = vmatpush2.bf16.msra.mxu0 %v6268
    %6462 = vmatprep.subr.bf16.mxu0 0
    %6463 = vmatpush2.bf16.msra.mxu0 %v6267
    %6464 = vmatprep.subr.bf16.mxu0 0
    %6465 = vmatpush2.bf16.msra.mxu0 %v6266
    %6466 = vmatprep.mubr.bf16.mxu0 %v5832
    %6467 = vmatmul.mubr.bf16.gmra.mxu0 %v5831
    %v6468 = vpop.f32.mrf.mxu0
    %v6469 = vadd.f32 %v6429, %v6468
    %v6470 = vpop.f32.mrf.mxu0
    %v6471 = vpop.f32.mrf.mxu0
    %v6472 = vpop.f32.mrf.mxu0
    %6473 = vdwg.mxu0
    %6474 = vmatprep.subr.bf16.mxu0 0
    %6475 = vmatpush1.bf16.msra.mxu0 %v6281
    %6476 = vmatprep.subr.bf16.mxu0 0
    %6477 = vmatpush1.bf16.msra.mxu0 %v6280
    %6478 = vmatprep.subr.bf16.mxu0 0
    %6479 = vmatpush1.bf16.msra.mxu0 %v6279
    %6480 = vmatprep.subr.bf16.mxu0 0
    %6481 = vmatpush1.bf16.msra.mxu0 %v6278
    %6482 = vmatprep.subr.bf16.mxu0 0
    %6483 = vmatpush1.bf16.msra.mxu0 %v6277
    %6484 = vmatprep.subr.bf16.mxu0 0
    %6485 = vmatpush1.bf16.msra.mxu0 %v6276
    %6486 = vmatprep.subr.bf16.mxu0 0
    %6487 = vmatpush1.bf16.msra.mxu0 %v6275
    %6488 = vmatprep.subr.bf16.mxu0 0
    %6489 = vmatpush1.bf16.msra.mxu0 %v6274
    %6490 = vmatprep.subr.bf16.mxu0 0
    %6491 = vmatpush2.bf16.msra.mxu0 %v6289
    %6492 = vmatprep.subr.bf16.mxu0 0
    %6493 = vmatpush2.bf16.msra.mxu0 %v6288
    %6494 = vmatprep.subr.bf16.mxu0 0
    %6495 = vmatpush2.bf16.msra.mxu0 %v6287
    %6496 = vmatprep.subr.bf16.mxu0 0
    %6497 = vmatpush2.bf16.msra.mxu0 %v6286
    %6498 = vmatprep.subr.bf16.mxu0 0
    %6499 = vmatpush2.bf16.msra.mxu0 %v6285
    %6500 = vmatprep.subr.bf16.mxu0 0
    %6501 = vmatpush2.bf16.msra.mxu0 %v6284
    %6502 = vmatprep.subr.bf16.mxu0 0
    %6503 = vmatpush2.bf16.msra.mxu0 %v6283
    %6504 = vmatprep.subr.bf16.mxu0 0
    %6505 = vmatpush2.bf16.msra.mxu0 %v6282
    %6506 = vmatprep.mubr.bf16.mxu0 %v5834
    %6507 = vmatmul.mubr.bf16.gmra.mxu0 %v5833
    %v6508 = vpop.f32.mrf.mxu0
    %v6509 = vadd.f32 %v6469, %v6508
    %v6510 = vpop.f32.mrf.mxu0
    %v6511 = vpop.f32.mrf.mxu0
    %v6512 = vpop.f32.mrf.mxu0
    %6513 = vdwg.mxu0
    %v6514 = vmax.f32 %v6509, 0.0
    %6515 = vst [vmem:[#allocation14] sm:$0xff] %v6514
    // Predicated region
    $region58: #{tpu_custom_call.1} parent=1 // pred_check
      _
    $region59: #{tpu_custom_call.1} parent=1 // pred_check_branch
      %6517 = sbr.rel (0) target = $region61
    $region60: #{tpu_custom_call.1} parent=1 // pred_region
      %s6519 = ssub.s32 128, 128
      %6520 = vsyncadd [#allocation4], %s6519
      %s6522 = sshll.u32 [#allocation14], 4
      %s6523 = int_to_ptr.vmem [resolvable:$true] %s6522
      %6525 = dma.vmem_to_hbm [thread:$0]  %s6523, 128, %s7, [#allocation4]
    $region61: #{tpu_custom_call.1} parent=1 // pred_fallthru
      _
    // Predicated region
    $region62: #{tpu_custom_call.1} parent=1 // pred_check
      _
    $region63: #{tpu_custom_call.1} parent=1 // pred_check_branch
      %6527 = sbr.rel (0) target = $region65
    $region64: #{tpu_custom_call.1} parent=1 // pred_region
      %6528 = dma.done [#allocation4], 128
    $region65: #{tpu_custom_call.1} parent=1 // pred_fallthru
      _
    %6529 = vsyncpa [#allocation3], 1
    %6530 = vsyncpa [#allocation6], 1
    %6531 = vsyncpa [#allocation9], 1
    %6532 = vsyncpa [#allocation12], 1
    %6533 = vsyncpa [#allocation4], 1

// kernel: tpu_custom_call.1
$region0: #{tpu_custom_call.1}
  #allocation0 [shape = 'u32[]', space=smem, size = 0x4, offset = 0x4, fixed_abs, tag = 'smem constant byte address 0x4 - core index']
  #allocation1 [shape = 'u32[144,128]{1,0:T(1,128)}', space=vmem, size = 0x12000, scoped, tag = 'internal scratch']
  %s0 = inlined_call_operand.hbm [shape: bf16[8,1024], index: 0, kind: input, shape index: {}]
  %s1 = inlined_call_operand.hbm [shape: bf16[1024,768], index: 1, kind: input, shape index: {}]
  %s2 = inlined_call_operand.hbm [shape: f32[1,768], index: 2, kind: input, shape index: {}]
  %s3 = inlined_call_operand.hbm [shape: bf16[768,1024], index: 3, kind: input, shape index: {}]
  %s4 = inlined_call_operand.hbm [shape: f32[1,1024], index: 4, kind: input, shape index: {}]
  %s5 = inlined_call_operand.hbm [shape: bf16[1024,128], index: 5, kind: input, shape index: {}]
  %s6 = inlined_call_operand.hbm [shape: f32[1,128], index: 6, kind: input, shape index: {}]
  %s7 = inlined_call_operand.hbm [shape: f32[8,128], index: 7, kind: output, shape index: {}]
  %s8 = sld [smem:[#allocation0]]
  $region66: #{tpu_custom_call.1} parent=0
    _
  %s10 = ssub.s32 1, %s8
  %s11 = scalar_select 0, %s10, %s8
  $region1: #{tpu_custom_call.1} parent=0
    #allocation2 [shape = 'u8[16384]{0}', space=vmem, size = 0x4000, scoped, tag = 'input window, operand 0, single buffered']
    #allocation3 [shape = 's32[1]{0}', space=sflag, size = 0x4, scoped, tag = 'scoped memory for tpu_custom_call.1']
    #allocation4 [shape = 's32[1]{0}', space=sflag, size = 0x4, scoped, tag = 'scoped memory for tpu_custom_call.1']
    #allocation5 [shape = 'u8[1572864]{0}', space=vmem, size = 0x180000, scoped, tag = 'input window, operand 1, single buffered']
    #allocation6 [shape = 's32[1]{0}', space=sflag, size = 0x4, scoped, tag = 'scoped memory for tpu_custom_call.1']
    #allocation7 [shape = 'u8[3072]{0}', space=vmem, size = 0xc00, scoped, tag = 'input window, operand 2, single buffered']
    #allocation8 [shape = 'u8[1572864]{0}', space=vmem, size = 0x180000, scoped, tag = 'input window, operand 3, single buffered']
    #allocation9 [shape = 's32[1]{0}', space=sflag, size = 0x4, scoped, tag = 'scoped memory for tpu_custom_call.1']
    #allocation10 [shape = 'u8[4096]{0}', space=vmem, size = 0x1000, scoped, tag = 'input window, operand 4, single buffered']
    #allocation11 [shape = 'u8[262144]{0}', space=vmem, size = 0x40000, scoped, tag = 'input window, operand 5, single buffered']
    #allocation12 [shape = 's32[1]{0}', space=sflag, size = 0x4, scoped, tag = 'scoped memory for tpu_custom_call.1']
    #allocation13 [shape = 'u8[512]{0}', space=vmem, size = 0x400, scoped, tag = 'input window, operand 6, single buffered']
    #allocation14 [shape = 'u8[4096]{0}', space=vmem, size = 0x1000, scoped, tag = 'output window, operand 0, single buffered']
    %12 = vsyncpa [#allocation3], 0
    %13 = vsyncpa [#allocation6], 0
    %14 = vsyncpa [#allocation9], 0
    %15 = vsyncpa [#allocation12], 0
    %16 = vsyncpa [#allocation4], 0
    // Predicated region
    $region2: #{tpu_custom_call.1} parent=1 // pred_check
      _
    $region3: #{tpu_custom_call.1} parent=1 // pred_check_branch
      %18 = sbr.rel (0) target = $region5
    $region4: #{tpu_custom_call.1} parent=1 // pred_region
      %s20 = ssub.s32 512, 512
      %21 = vsyncadd [#allocation3], %s20
      %s23 = sshll.u32 [#allocation2], 4
      %s24 = int_to_ptr.vmem [resolvable:$true] %s23
      %26 = dma.hbm_to_vmem [thread:$0]  %s0, 512, %s24, [#allocation3]
    $region5: #{tpu_custom_call.1} parent=1 // pred_fallthru
      _
    // Predicated region
    $region6: #{tpu_custom_call.1} parent=1 // pred_check
      _
    $region7: #{tpu_custom_call.1} parent=1 // pred_check_branch
      %28 = sbr.rel (0) target = $region9
    $region8: #{tpu_custom_call.1} parent=1 // pred_region
      %s30 = ssub.s32 49152, 49152
      %31 = vsyncadd [#allocation6], %s30
      %s32 = sshll.u32 [#allocation5], 4
      %s33 = int_to_ptr.vmem [resolvable:$true] %s32
      %38 = dma.hbm_to_vmem [thread:$0]  %s1, 49152, %s33, [#allocation6], 384, 384, 24
    $region9: #{tpu_custom_call.1} parent=1 // pred_fallthru
      _
    // Predicated region
    $region10: #{tpu_custom_call.1} parent=1 // pred_check
      _
    $region11: #{tpu_custom_call.1} parent=1 // pred_check_branch
      %40 = sbr.rel (0) target = $region13
    $region12: #{tpu_custom_call.1} parent=1 // pred_region
      %s42 = ssub.s32 96, 96
      %43 = vsyncadd [#allocation6], %s42
      %s45 = sshll.u32 [#allocation7], 4
      %s46 = int_to_ptr.vmem [resolvable:$true] %s45
      %48 = dma.hbm_to_vmem [thread:$0]  %s2, 96, %s46, [#allocation6]
    $region13: #{tpu_custom_call.1} parent=1 // pred_fallthru
      _
    // Predicated region
    $region14: #{tpu_custom_call.1} parent=1 // pred_check
      _
    $region15: #{tpu_custom_call.1} parent=1 // pred_check_branch
      %50 = sbr.rel (0) target = $region17
    $region16: #{tpu_custom_call.1} parent=1 // pred_region
      %s52 = ssub.s32 49152, 49152
      %53 = vsyncadd [#allocation9], %s52
      %s54 = sshll.u32 [#allocation8], 4
      %s55 = int_to_ptr.vmem [resolvable:$true] %s54
      %60 = dma.hbm_to_vmem [thread:$0]  %s3, 49152, %s55, [#allocation9], 512, 512, 32
    $region17: #{tpu_custom_call.1} parent=1 // pred_fallthru
      _
    // Predicated region
    $region18: #{tpu_custom_call.1} parent=1 // pred_check
      _
    $region19: #{tpu_custom_call.1} parent=1 // pred_check_branch
      %62 = sbr.rel (0) target = $region21
    $region20: #{tpu_custom_call.1} parent=1 // pred_region
      %s64 = ssub.s32 128, 128
      %65 = vsyncadd [#allocation9], %s64
      %s67 = sshll.u32 [#allocation10], 4
      %s68 = int_to_ptr.vmem [resolvable:$true] %s67
      %70 = dma.hbm_to_vmem [thread:$0]  %s4, 128, %s68, [#allocation9]
    $region21: #{tpu_custom_call.1} parent=1 // pred_fallthru
      _
    // Predicated region
    $region22: #{tpu_custom_call.1} parent=1 // pred_check
      _
    $region23: #{tpu_custom_call.1} parent=1 // pred_check_branch
      %72 = sbr.rel (0) target = $region25
    $region24: #{tpu_custom_call.1} parent=1 // pred_region
      %s74 = ssub.s32 8192, 8192
      %75 = vsyncadd [#allocation12], %s74
      %s76 = sshll.u32 [#allocation11], 4
      %s77 = int_to_ptr.vmem [resolvable:$true] %s76
      %82 = dma.hbm_to_vmem [thread:$0]  %s5, 8192, %s77, [#allocation12], 64, 64, 4
    $region25: #{tpu_custom_call.1} parent=1 // pred_fallthru
      _
    // Predicated region
    $region26: #{tpu_custom_call.1} parent=1 // pred_check
      _
    $region27: #{tpu_custom_call.1} parent=1 // pred_check_branch
      %84 = sbr.rel (0) target = $region29
    $region28: #{tpu_custom_call.1} parent=1 // pred_region
      %s86 = ssub.s32 16, 16
      %87 = vsyncadd [#allocation12], %s86
      %s89 = sshll.u32 [#allocation13], 4
      %s90 = int_to_ptr.vmem [resolvable:$true] %s89
      %92 = dma.hbm_to_vmem [thread:$0]  %s6, 16, %s90, [#allocation12]
    $region29: #{tpu_custom_call.1} parent=1 // pred_fallthru
      _
    // Predicated region
    $region30: #{tpu_custom_call.1} parent=1 // pred_check
      _
    $region31: #{tpu_custom_call.1} parent=1 // pred_check_branch
      %94 = sbr.rel (0) target = $region33
    $region32: #{tpu_custom_call.1} parent=1 // pred_region
      %95 = dma.done [#allocation3], 512
    $region33: #{tpu_custom_call.1} parent=1 // pred_fallthru
      _
    // Predicated region
    $region34: #{tpu_custom_call.1} parent=1 // pred_check
      _
    $region35: #{tpu_custom_call.1} parent=1 // pred_check_branch
      %97 = sbr.rel (0) target = $region37
    $region36: #{tpu_custom_call.1} parent=1 // pred_region
      %98 = dma.done [#allocation6], 49152
    $region37: #{tpu_custom_call.1} parent=1 // pred_fallthru
      _
    // Predicated region
    $region38: #{tpu_custom_call.1} parent=1 // pred_check
      _
    $region39: #{tpu_custom_call.1} parent=1 // pred_check_branch
      %100 = sbr.rel (0) target = $region41
    $region40: #{tpu_custom_call.1} parent=1 // pred_region
      %101 = dma.done [#allocation6], 96
    $region41: #{tpu_custom_call.1} parent=1 // pred_fallthru
      _
    // Predicated region
    $region42: #{tpu_custom_call.1} parent=1 // pred_check
      _
    $region43: #{tpu_custom_call.1} parent=1 // pred_check_branch
      %103 = sbr.rel (0) target = $region45
    $region44: #{tpu_custom_call.1} parent=1 // pred_region
      %104 = dma.done [#allocation9], 49152
    $region45: #{tpu_custom_call.1} parent=1 // pred_fallthru
      _
    // Predicated region
    $region46: #{tpu_custom_call.1} parent=1 // pred_check
      _
    $region47: #{tpu_custom_call.1} parent=1 // pred_check_branch
      %106 = sbr.rel (0) target = $region49
    $region48: #{tpu_custom_call.1} parent=1 // pred_region
      %107 = dma.done [#allocation9], 128
    $region49: #{tpu_custom_call.1} parent=1 // pred_fallthru
      _
    // Predicated region
    $region50: #{tpu_custom_call.1} parent=1 // pred_check
      _
    $region51: #{tpu_custom_call.1} parent=1 // pred_check_branch
      %109 = sbr.rel (0) target = $region53
    $region52: #{tpu_custom_call.1} parent=1 // pred_region
      %110 = dma.done [#allocation12], 8192
    $region53: #{tpu_custom_call.1} parent=1 // pred_fallthru
      _
    // Predicated region
    $region54: #{tpu_custom_call.1} parent=1 // pred_check
      _
    $region55: #{tpu_custom_call.1} parent=1 // pred_check_branch
      %112 = sbr.rel (0) target = $region57
    $region56: #{tpu_custom_call.1} parent=1 // pred_region
      %113 = dma.done [#allocation12], 16
    $region57: #{tpu_custom_call.1} parent=1 // pred_fallthru
      _
    %v115 = vld [vmem:[#allocation2] sm:$0xff]
    %v116 = vld [vmem:[#allocation2 + $0x8] sm:$0xff]
    %v117 = vld [vmem:[#allocation2 + $0x10] sm:$0xff]
    %v118 = vld [vmem:[#allocation2 + $0x18] sm:$0xff]
    %v119 = vld [vmem:[#allocation5] sm:$0xff]
    %v120 = vld [vmem:[#allocation5 + $0x8] sm:$0xff]
    %v121 = vld [vmem:[#allocation5 + $0x10] sm:$0xff]
    %v122 = vld [vmem:[#allocation5 + $0x18] sm:$0xff]
    %v123 = vld [vmem:[#allocation5 + $0x20] sm:$0xff]
    %v124 = vld [vmem:[#allocation5 + $0x28] sm:$0xff]
    %v125 = vld [vmem:[#allocation5 + $0x30] sm:$0xff]
    %v126 = vld [vmem:[#allocation5 + $0x38] sm:$0xff]
    %v127 = vld [vmem:[#allocation5 + $0x40] sm:$0xff]
    %v128 = vld [vmem:[#allocation5 + $0x48] sm:$0xff]
    %v129 = vld [vmem:[#allocation5 + $0x50] sm:$0xff]
    %v130 = vld [vmem:[#allocation5 + $0x58] sm:$0xff]
    %v131 = vld [vmem:[#allocation5 + $0x60] sm:$0xff]
    %v132 = vld [vmem:[#allocation5 + $0x68] sm:$0xff]
    %v133 = vld [vmem:[#allocation5 + $0x70] sm:$0xff]
    %v134 = vld [vmem:[#allocation5 + $0x78] sm:$0xff]
    %v135 = vld [vmem:[#allocation5 + $0x80] sm:$0xff]
    %v136 = vld [vmem:[#allocation5 + $0x88] sm:$0xff]
    %v137 = vld [vmem:[#allocation5 + $0x90] sm:$0xff]
    %v138 = vld [vmem:[#allocation5 + $0x98] sm:$0xff]
    %v139 = vld [vmem:[#allocation5 + $0xa0] sm:$0xff]
    %v140 = vld [vmem:[#allocation5 + $0xa8] sm:$0xff]
    %v141 = vld [vmem:[#allocation5 + $0xb0] sm:$0xff]
    %v142 = vld [vmem:[#allocation5 + $0xb8] sm:$0xff]
    %v143 = vld [vmem:[#allocation5 + $0xc0] sm:$0xff]
    %v144 = vld [vmem:[#allocation5 + $0xc8] sm:$0xff]
    %v145 = vld [vmem:[#allocation5 + $0xd0] sm:$0xff]
    %v146 = vld [vmem:[#allocation5 + $0xd8] sm:$0xff]
    %v147 = vld [vmem:[#allocation5 + $0xe0] sm:$0xff]
    %v148 = vld [vmem:[#allocation5 + $0xe8] sm:$0xff]
    %v149 = vld [vmem:[#allocation5 + $0xf0] sm:$0xff]
    %v150 = vld [vmem:[#allocation5 + $0xf8] sm:$0xff]
    %v151 = vld [vmem:[#allocation5 + $0x100] sm:$0xff]
    %v152 = vld [vmem:[#allocation5 + $0x108] sm:$0xff]
    %v153 = vld [vmem:[#allocation5 + $0x110] sm:$0xff]
    %v154 = vld [vmem:[#allocation5 + $0x118] sm:$0xff]
    %v155 = vld [vmem:[#allocation5 + $0x120] sm:$0xff]
    %v156 = vld [vmem:[#allocation5 + $0x128] sm:$0xff]
    %v157 = vld [vmem:[#allocation5 + $0x130] sm:$0xff]
    %v158 = vld [vmem:[#allocation5 + $0x138] sm:$0xff]
    %v159 = vld [vmem:[#allocation5 + $0x140] sm:$0xff]
    %v160 = vld [vmem:[#allocation5 + $0x148] sm:$0xff]
    %v161 = vld [vmem:[#allocation5 + $0x150] sm:$0xff]
    %v162 = vld [vmem:[#allocation5 + $0x158] sm:$0xff]
    %v163 = vld [vmem:[#allocation5 + $0x160] sm:$0xff]
    %v164 = vld [vmem:[#allocation5 + $0x168] sm:$0xff]
    %v165 = vld [vmem:[#allocation5 + $0x170] sm:$0xff]
    %v166 = vld [vmem:[#allocation5 + $0x178] sm:$0xff]
    %v167 = vld [vmem:[#allocation5 + $0x180] sm:$0xff]
    %v168 = vld [vmem:[#allocation5 + $0x188] sm:$0xff]
    %v169 = vld [vmem:[#allocation5 + $0x190] sm:$0xff]
    %v170 = vld [vmem:[#allocation5 + $0x198] sm:$0xff]
    %v171 = vld [vmem:[#allocation5 + $0x1a0] sm:$0xff]
    %v172 = vld [vmem:[#allocation5 + $0x1a8] sm:$0xff]
    %v173 = vld [vmem:[#allocation5 + $0x1b0] sm:$0xff]
    %v174 = vld [vmem:[#allocation5 + $0x1b8] sm:$0xff]
    %v175 = vld [vmem:[#allocation5 + $0x1c0] sm:$0xff]
    %v176 = vld [vmem:[#allocation5 + $0x1c8] sm:$0xff]
    %v177 = vld [vmem:[#allocation5 + $0x1d0] sm:$0xff]
    %v178 = vld [vmem:[#allocation5 + $0x1d8] sm:$0xff]
    %v179 = vld [vmem:[#allocation5 + $0x1e0] sm:$0xff]
    %v180 = vld [vmem:[#allocation5 + $0x1e8] sm:$0xff]
    %v181 = vld [vmem:[#allocation5 + $0x1f0] sm:$0xff]
    %v182 = vld [vmem:[#allocation5 + $0x1f8] sm:$0xff]
    %v183 = vld [vmem:[#allocation5 + $0x200] sm:$0xff]
    %v184 = vld [vmem:[#allocation5 + $0x208] sm:$0xff]
    %v185 = vld [vmem:[#allocation5 + $0x210] sm:$0xff]
    %v186 = vld [vmem:[#allocation5 + $0x218] sm:$0xff]
    %v187 = vld [vmem:[#allocation5 + $0x220] sm:$0xff]
    %v188 = vld [vmem:[#allocation5 + $0x228] sm:$0xff]
    %v189 = vld [vmem:[#allocation5 + $0x230] sm:$0xff]
    %v190 = vld [vmem:[#allocation5 + $0x238] sm:$0xff]
    %v191 = vld [vmem:[#allocation5 + $0x240] sm:$0xff]
    %v192 = vld [vmem:[#allocation5 + $0x248] sm:$0xff]
    %v193 = vld [vmem:[#allocation5 + $0x250] sm:$0xff]
    %v194 = vld [vmem:[#allocation5 + $0x258] sm:$0xff]
    %v195 = vld [vmem:[#allocation5 + $0x260] sm:$0xff]
    %v196 = vld [vmem:[#allocation5 + $0x268] sm:$0xff]
    %v197 = vld [vmem:[#allocation5 + $0x270] sm:$0xff]
    %v198 = vld [vmem:[#allocation5 + $0x278] sm:$0xff]
    %v199 = vld [vmem:[#allocation5 + $0x280] sm:$0xff]
    %v200 = vld [vmem:[#allocation5 + $0x288] sm:$0xff]
    %v201 = vld [vmem:[#allocation5 + $0x290] sm:$0xff]
    %v202 = vld [vmem:[#allocation5 + $0x298] sm:$0xff]
    %v203 = vld [vmem:[#allocation5 + $0x2a0] sm:$0xff]
    %v204 = vld [vmem:[#allocation5 + $0x2a8] sm:$0xff]
    %v205 = vld [vmem:[#allocation5 + $0x2b0] sm:$0xff]
    %v206 = vld [vmem:[#allocation5 + $0x2b8] sm:$0xff]
    %v207 = vld [vmem:[#allocation5 + $0x2c0] sm:$0xff]
    %v208 = vld [vmem:[#allocation5 + $0x2c8] sm:$0xff]
    %v209 = vld [vmem:[#allocation5 + $0x2d0] sm:$0xff]
    %v210 = vld [vmem:[#allocation5 + $0x2d8] sm:$0xff]
    %v211 = vld [vmem:[#allocation5 + $0x2e0] sm:$0xff]
    %v212 = vld [vmem:[#allocation5 + $0x2e8] sm:$0xff]
    %v213 = vld [vmem:[#allocation5 + $0x2f0] sm:$0xff]
    %v214 = vld [vmem:[#allocation5 + $0x2f8] sm:$0xff]
    %v215 = vld [vmem:[#allocation5 + $0x300] sm:$0xff]
    %v216 = vld [vmem:[#allocation5 + $0x308] sm:$0xff]
    %v217 = vld [vmem:[#allocation5 + $0x310] sm:$0xff]
    %v218 = vld [vmem:[#allocation5 + $0x318] sm:$0xff]
    %v219 = vld [vmem:[#allocation5 + $0x320] sm:$0xff]
    %v220 = vld [vmem:[#allocation5 + $0x328] sm:$0xff]
    %v221 = vld [vmem:[#allocation5 + $0x330] sm:$0xff]
    %v222 = vld [vmem:[#allocation5 + $0x338] sm:$0xff]
    %v223 = vld [vmem:[#allocation5 + $0x340] sm:$0xff]
    %v224 = vld [vmem:[#allocation5 + $0x348] sm:$0xff]
    %v225 = vld [vmem:[#allocation5 + $0x350] sm:$0xff]
    %v226 = vld [vmem:[#allocation5 + $0x358] sm:$0xff]
    %v227 = vld [vmem:[#allocation5 + $0x360] sm:$0xff]
    %v228 = vld [vmem:[#allocation5 + $0x368] sm:$0xff]
    %v229 = vld [vmem:[#allocation5 + $0x370] sm:$0xff]
    %v230 = vld [vmem:[#allocation5 + $0x378] sm:$0xff]
    %v231 = vld [vmem:[#allocation5 + $0x380] sm:$0xff]
    %v232 = vld [vmem:[#allocation5 + $0x388] sm:$0xff]
    %v233 = vld [vmem:[#allocation5 + $0x390] sm:$0xff]
    %v234 = vld [vmem:[#allocation5 + $0x398] sm:$0xff]
    %v235 = vld [vmem:[#allocation5 + $0x3a0] sm:$0xff]
    %v236 = vld [vmem:[#allocation5 + $0x3a8] sm:$0xff]
    %v237 = vld [vmem:[#allocation5 + $0x3b0] sm:$0xff]
    %v238 = vld [vmem:[#allocation5 + $0x3b8] sm:$0xff]
    %v239 = vld [vmem:[#allocation5 + $0x3c0] sm:$0xff]
    %v240 = vld [vmem:[#allocation5 + $0x3c8] sm:$0xff]
    %v241 = vld [vmem:[#allocation5 + $0x3d0] sm:$0xff]
    %v242 = vld [vmem:[#allocation5 + $0x3d8] sm:$0xff]
    %v243 = vld [vmem:[#allocation5 + $0x3e0] sm:$0xff]
    %v244 = vld [vmem:[#allocation5 + $0x3e8] sm:$0xff]
    %v245 = vld [vmem:[#allocation5 + $0x3f0] sm:$0xff]
    %v246 = vld [vmem:[#allocation5 + $0x3f8] sm:$0xff]
    %v247 = vld [vmem:[#allocation5 + $0x400] sm:$0xff]
    %v248 = vld [vmem:[#allocation5 + $0x408] sm:$0xff]
    %v249 = vld [vmem:[#allocation5 + $0x410] sm:$0xff]
    %v250 = vld [vmem:[#allocation5 + $0x418] sm:$0xff]
    %v251 = vld [vmem:[#allocation5 + $0x420] sm:$0xff]
    %v252 = vld [vmem:[#allocation5 + $0x428] sm:$0xff]
    %v253 = vld [vmem:[#allocation5 + $0x430] sm:$0xff]
    %v254 = vld [vmem:[#allocation5 + $0x438] sm:$0xff]
    %v255 = vld [vmem:[#allocation5 + $0x440] sm:$0xff]
    %v256 = vld [vmem:[#allocation5 + $0x448] sm:$0xff]
    %v257 = vld [vmem:[#allocation5 + $0x450] sm:$0xff]
    %v258 = vld [vmem:[#allocation5 + $0x458] sm:$0xff]
    %v259 = vld [vmem:[#allocation5 + $0x460] sm:$0xff]
    %v260 = vld [vmem:[#allocation5 + $0x468] sm:$0xff]
    %v261 = vld [vmem:[#allocation5 + $0x470] sm:$0xff]
    %v262 = vld [vmem:[#allocation5 + $0x478] sm:$0xff]
    %v263 = vld [vmem:[#allocation5 + $0x480] sm:$0xff]
    %v264 = vld [vmem:[#allocation5 + $0x488] sm:$0xff]
    %v265 = vld [vmem:[#allocation5 + $0x490] sm:$0xff]
    %v266 = vld [vmem:[#allocation5 + $0x498] sm:$0xff]
    %v267 = vld [vmem:[#allocation5 + $0x4a0] sm:$0xff]
    %v268 = vld [vmem:[#allocation5 + $0x4a8] sm:$0xff]
    %v269 = vld [vmem:[#allocation5 + $0x4b0] sm:$0xff]
    %v270 = vld [vmem:[#allocation5 + $0x4b8] sm:$0xff]
    %v271 = vld [vmem:[#allocation5 + $0x4c0] sm:$0xff]
    %v272 = vld [vmem:[#allocation5 + $0x4c8] sm:$0xff]
    %v273 = vld [vmem:[#allocation5 + $0x4d0] sm:$0xff]
    %v274 = vld [vmem:[#allocation5 + $0x4d8] sm:$0xff]
    %v275 = vld [vmem:[#allocation5 + $0x4e0] sm:$0xff]
    %v276 = vld [vmem:[#allocation5 + $0x4e8] sm:$0xff]
    %v277 = vld [vmem:[#allocation5 + $0x4f0] sm:$0xff]
    %v278 = vld [vmem:[#allocation5 + $0x4f8] sm:$0xff]
    %v279 = vld [vmem:[#allocation5 + $0x500] sm:$0xff]
    %v280 = vld [vmem:[#allocation5 + $0x508] sm:$0xff]
    %v281 = vld [vmem:[#allocation5 + $0x510] sm:$0xff]
    %v282 = vld [vmem:[#allocation5 + $0x518] sm:$0xff]
    %v283 = vld [vmem:[#allocation5 + $0x520] sm:$0xff]
    %v284 = vld [vmem:[#allocation5 + $0x528] sm:$0xff]
    %v285 = vld [vmem:[#allocation5 + $0x530] sm:$0xff]
    %v286 = vld [vmem:[#allocation5 + $0x538] sm:$0xff]
    %v287 = vld [vmem:[#allocation5 + $0x540] sm:$0xff]
    %v288 = vld [vmem:[#allocation5 + $0x548] sm:$0xff]
    %v289 = vld [vmem:[#allocation5 + $0x550] sm:$0xff]
    %v290 = vld [vmem:[#allocation5 + $0x558] sm:$0xff]
    %v291 = vld [vmem:[#allocation5 + $0x560] sm:$0xff]
    %v292 = vld [vmem:[#allocation5 + $0x568] sm:$0xff]
    %v293 = vld [vmem:[#allocation5 + $0x570] sm:$0xff]
    %v294 = vld [vmem:[#allocation5 + $0x578] sm:$0xff]
    %v295 = vld [vmem:[#allocation5 + $0x580] sm:$0xff]
    %v296 = vld [vmem:[#allocation5 + $0x588] sm:$0xff]
    %v297 = vld [vmem:[#allocation5 + $0x590] sm:$0xff]
    %v298 = vld [vmem:[#allocation5 + $0x598] sm:$0xff]
    %v299 = vld [vmem:[#allocation5 + $0x5a0] sm:$0xff]
    %v300 = vld [vmem:[#allocation5 + $0x5a8] sm:$0xff]
    %v301 = vld [vmem:[#allocation5 + $0x5b0] sm:$0xff]
    %v302 = vld [vmem:[#allocation5 + $0x5b8] sm:$0xff]
    %v303 = vld [vmem:[#allocation5 + $0x5c0] sm:$0xff]
    %v304 = vld [vmem:[#allocation5 + $0x5c8] sm:$0xff]
    %v305 = vld [vmem:[#allocation5 + $0x5d0] sm:$0xff]
    %v306 = vld [vmem:[#allocation5 + $0x5d8] sm:$0xff]
    %v307 = vld [vmem:[#allocation5 + $0x5e0] sm:$0xff]
    %v308 = vld [vmem:[#allocation5 + $0x5e8] sm:$0xff]
    %v309 = vld [vmem:[#allocation5 + $0x5f0] sm:$0xff]
    %v310 = vld [vmem:[#allocation5 + $0x5f8] sm:$0xff]
    %v311 = vld [vmem:[#allocation5 + $0x600] sm:$0xff]
    %v312 = vld [vmem:[#allocation5 + $0x608] sm:$0xff]
    %v313 = vld [vmem:[#allocation5 + $0x610] sm:$0xff]
    %v314 = vld [vmem:[#allocation5 + $0x618] sm:$0xff]
    %v315 = vld [vmem:[#allocation5 + $0x620] sm:$0xff]
    %v316 = vld [vmem:[#allocation5 + $0x628] sm:$0xff]
    %v317 = vld [vmem:[#allocation5 + $0x630] sm:$0xff]
    %v318 = vld [vmem:[#allocation5 + $0x638] sm:$0xff]
    %v319 = vld [vmem:[#allocation5 + $0x640] sm:$0xff]
    %v320 = vld [vmem:[#allocation5 + $0x648] sm:$0xff]
    %v321 = vld [vmem:[#allocation5 + $0x650] sm:$0xff]
    %v322 = vld [vmem:[#allocation5 + $0x658] sm:$0xff]
    %v323 = vld [vmem:[#allocation5 + $0x660] sm:$0xff]
    %v324 = vld [vmem:[#allocation5 + $0x668] sm:$0xff]
    %v325 = vld [vmem:[#allocation5 + $0x670] sm:$0xff]
    %v326 = vld [vmem:[#allocation5 + $0x678] sm:$0xff]
    %v327 = vld [vmem:[#allocation5 + $0x680] sm:$0xff]
    %v328 = vld [vmem:[#allocation5 + $0x688] sm:$0xff]
    %v329 = vld [vmem:[#allocation5 + $0x690] sm:$0xff]
    %v330 = vld [vmem:[#allocation5 + $0x698] sm:$0xff]
    %v331 = vld [vmem:[#allocation5 + $0x6a0] sm:$0xff]
    %v332 = vld [vmem:[#allocation5 + $0x6a8] sm:$0xff]
    %v333 = vld [vmem:[#allocation5 + $0x6b0] sm:$0xff]
    %v334 = vld [vmem:[#allocation5 + $0x6b8] sm:$0xff]
    %v335 = vld [vmem:[#allocation5 + $0x6c0] sm:$0xff]
    %v336 = vld [vmem:[#allocation5 + $0x6c8] sm:$0xff]
    %v337 = vld [vmem:[#allocation5 + $0x6d0] sm:$0xff]
    %v338 = vld [vmem:[#allocation5 + $0x6d8] sm:$0xff]
    %v339 = vld [vmem:[#allocation5 + $0x6e0] sm:$0xff]
    %v340 = vld [vmem:[#allocation5 + $0x6e8] sm:$0xff]
    %v341 = vld [vmem:[#allocation5 + $0x6f0] sm:$0xff]
    %v342 = vld [vmem:[#allocation5 + $0x6f8] sm:$0xff]
    %v343 = vld [vmem:[#allocation5 + $0x700] sm:$0xff]
    %v344 = vld [vmem:[#allocation5 + $0x708] sm:$0xff]
    %v345 = vld [vmem:[#allocation5 + $0x710] sm:$0xff]
    %v346 = vld [vmem:[#allocation5 + $0x718] sm:$0xff]
    %v347 = vld [vmem:[#allocation5 + $0x720] sm:$0xff]
    %v348 = vld [vmem:[#allocation5 + $0x728] sm:$0xff]
    %v349 = vld [vmem:[#allocation5 + $0x730] sm:$0xff]
    %v350 = vld [vmem:[#allocation5 + $0x738] sm:$0xff]
    %v351 = vld [vmem:[#allocation5 + $0x740] sm:$0xff]
    %v352 = vld [vmem:[#allocation5 + $0x748] sm:$0xff]
    %v353 = vld [vmem:[#allocation5 + $0x750] sm:$0xff]
    %v354 = vld [vmem:[#allocation5 + $0x758] sm:$0xff]
    %v355 = vld [vmem:[#allocation5 + $0x760] sm:$0xff]
    %v356 = vld [vmem:[#allocation5 + $0x768] sm:$0xff]
    %v357 = vld [vmem:[#allocation5 + $0x770] sm:$0xff]
    %v358 = vld [vmem:[#allocation5 + $0x778] sm:$0xff]
    %v359 = vld [vmem:[#allocation5 + $0x780] sm:$0xff]
    %v360 = vld [vmem:[#allocation5 + $0x788] sm:$0xff]
    %v361 = vld [vmem:[#allocation5 + $0x790] sm:$0xff]
    %v362 = vld [vmem:[#allocation5 + $0x798] sm:$0xff]
    %v363 = vld [vmem:[#allocation5 + $0x7a0] sm:$0xff]
    %v364 = vld [vmem:[#allocation5 + $0x7a8] sm:$0xff]
    %v365 = vld [vmem:[#allocation5 + $0x7b0] sm:$0xff]
    %v366 = vld [vmem:[#allocation5 + $0x7b8] sm:$0xff]
    %v367 = vld [vmem:[#allocation5 + $0x7c0] sm:$0xff]
    %v368 = vld [vmem:[#allocation5 + $0x7c8] sm:$0xff]
    %v369 = vld [vmem:[#allocation5 + $0x7d0] sm:$0xff]
    %v370 = vld [vmem:[#allocation5 + $0x7d8] sm:$0xff]
    %v371 = vld [vmem:[#allocation5 + $0x7e0] sm:$0xff]
    %v372 = vld [vmem:[#allocation5 + $0x7e8] sm:$0xff]
    %v373 = vld [vmem:[#allocation5 + $0x7f0] sm:$0xff]
    %v374 = vld [vmem:[#allocation5 + $0x7f8] sm:$0xff]
    %v375 = vld [vmem:[#allocation5 + $0x800] sm:$0xff]
    %v376 = vld [vmem:[#allocation5 + $0x808] sm:$0xff]
    %v377 = vld [vmem:[#allocation5 + $0x810] sm:$0xff]
    %v378 = vld [vmem:[#allocation5 + $0x818] sm:$0xff]
    %v379 = vld [vmem:[#allocation5 + $0x820] sm:$0xff]
    %v380 = vld [vmem:[#allocation5 + $0x828] sm:$0xff]
    %v381 = vld [vmem:[#allocation5 + $0x830] sm:$0xff]
    %v382 = vld [vmem:[#allocation5 + $0x838] sm:$0xff]
    %v383 = vld [vmem:[#allocation5 + $0x840] sm:$0xff]
    %v384 = vld [vmem:[#allocation5 + $0x848] sm:$0xff]
    %v385 = vld [vmem:[#allocation5 + $0x850] sm:$0xff]
    %v386 = vld [vmem:[#allocation5 + $0x858] sm:$0xff]
    %v387 = vld [vmem:[#allocation5 + $0x860] sm:$0xff]
    %v388 = vld [vmem:[#allocation5 + $0x868] sm:$0xff]
    %v389 = vld [vmem:[#allocation5 + $0x870] sm:$0xff]
    %v390 = vld [vmem:[#allocation5 + $0x878] sm:$0xff]
    %v391 = vld [vmem:[#allocation5 + $0x880] sm:$0xff]
    %v392 = vld [vmem:[#allocation5 + $0x888] sm:$0xff]
    %v393 = vld [vmem:[#allocation5 + $0x890] sm:$0xff]
    %v394 = vld [vmem:[#allocation5 + $0x898] sm:$0xff]
    %v395 = vld [vmem:[#allocation5 + $0x8a0] sm:$0xff]
    %v396 = vld [vmem:[#allocation5 + $0x8a8] sm:$0xff]
    %v397 = vld [vmem:[#allocation5 + $0x8b0] sm:$0xff]
    %v398 = vld [vmem:[#allocation5 + $0x8b8] sm:$0xff]
    %v399 = vld [vmem:[#allocation5 + $0x8c0] sm:$0xff]
    %v400 = vld [vmem:[#allocation5 + $0x8c8] sm:$0xff]
    %v401 = vld [vmem:[#allocation5 + $0x8d0] sm:$0xff]
    %v402 = vld [vmem:[#allocation5 + $0x8d8] sm:$0xff]
    %v403 = vld [vmem:[#allocation5 + $0x8e0] sm:$0xff]
    %v404 = vld [vmem:[#allocation5 + $0x8e8] sm:$0xff]
    %v405 = vld [vmem:[#allocation5 + $0x8f0] sm:$0xff]
    %v406 = vld [vmem:[#allocation5 + $0x8f8] sm:$0xff]
    %v407 = vld [vmem:[#allocation5 + $0x900] sm:$0xff]
    %v408 = vld [vmem:[#allocation5 + $0x908] sm:$0xff]
    %v409 = vld [vmem:[#allocation5 + $0x910] sm:$0xff]
    %v410 = vld [vmem:[#allocation5 + $0x918] sm:$0xff]
    %v411 = vld [vmem:[#allocation5 + $0x920] sm:$0xff]
    %v412 = vld [vmem:[#allocation5 + $0x928] sm:$0xff]
    %v413 = vld [vmem:[#allocation5 + $0x930] sm:$0xff]
    %v414 = vld [vmem:[#allocation5 + $0x938] sm:$0xff]
    %v415 = vld [vmem:[#allocation5 + $0x940] sm:$0xff]
    %v416 = vld [vmem:[#allocation5 + $0x948] sm:$0xff]
    %v417 = vld [vmem:[#allocation5 + $0x950] sm:$0xff]
    %v418 = vld [vmem:[#allocation5 + $0x958] sm:$0xff]
    %v419 = vld [vmem:[#allocation5 + $0x960] sm:$0xff]
    %v420 = vld [vmem:[#allocation5 + $0x968] sm:$0xff]
    %v421 = vld [vmem:[#allocation5 + $0x970] sm:$0xff]
    %v422 = vld [vmem:[#allocation5 + $0x978] sm:$0xff]
    %v423 = vld [vmem:[#allocation5 + $0x980] sm:$0xff]
    %v424 = vld [vmem:[#allocation5 + $0x988] sm:$0xff]
    %v425 = vld [vmem:[#allocation5 + $0x990] sm:$0xff]
    %v426 = vld [vmem:[#allocation5 + $0x998] sm:$0xff]
    %v427 = vld [vmem:[#allocation5 + $0x9a0] sm:$0xff]
    %v428 = vld [vmem:[#allocation5 + $0x9a8] sm:$0xff]
    %v429 = vld [vmem:[#allocation5 + $0x9b0] sm:$0xff]
    %v430 = vld [vmem:[#allocation5 + $0x9b8] sm:$0xff]
    %v431 = vld [vmem:[#allocation5 + $0x9c0] sm:$0xff]
    %v432 = vld [vmem:[#allocation5 + $0x9c8] sm:$0xff]
    %v433 = vld [vmem:[#allocation5 + $0x9d0] sm:$0xff]
    %v434 = vld [vmem:[#allocation5 + $0x9d8] sm:$0xff]
    %v435 = vld [vmem:[#allocation5 + $0x9e0] sm:$0xff]
    %v436 = vld [vmem:[#allocation5 + $0x9e8] sm:$0xff]
    %v437 = vld [vmem:[#allocation5 + $0x9f0] sm:$0xff]
    %v438 = vld [vmem:[#allocation5 + $0x9f8] sm:$0xff]
    %v439 = vld [vmem:[#allocation5 + $0xa00] sm:$0xff]
    %v440 = vld [vmem:[#allocation5 + $0xa08] sm:$0xff]
    %v441 = vld [vmem:[#allocation5 + $0xa10] sm:$0xff]
    %v442 = vld [vmem:[#allocation5 + $0xa18] sm:$0xff]
    %v443 = vld [vmem:[#allocation5 + $0xa20] sm:$0xff]
    %v444 = vld [vmem:[#allocation5 + $0xa28] sm:$0xff]
    %v445 = vld [vmem:[#allocation5 + $0xa30] sm:$0xff]
    %v446 = vld [vmem:[#allocation5 + $0xa38] sm:$0xff]
    %v447 = vld [vmem:[#allocation5 + $0xa40] sm:$0xff]
    %v448 = vld [vmem:[#allocation5 + $0xa48] sm:$0xff]
    %v449 = vld [vmem:[#allocation5 + $0xa50] sm:$0xff]
    %v450 = vld [vmem:[#allocation5 + $0xa58] sm:$0xff]
    %v451 = vld [vmem:[#allocation5 + $0xa60] sm:$0xff]
    %v452 = vld [vmem:[#allocation5 + $0xa68] sm:$0xff]
    %v453 = vld [vmem:[#allocation5 + $0xa70] sm:$0xff]
    %v454 = vld [vmem:[#allocation5 + $0xa78] sm:$0xff]
    %v455 = vld [vmem:[#allocation5 + $0xa80] sm:$0xff]
    %v456 = vld [vmem:[#allocation5 + $0xa88] sm:$0xff]
    %v457 = vld [vmem:[#allocation5 + $0xa90] sm:$0xff]
    %v458 = vld [vmem:[#allocation5 + $0xa98] sm:$0xff]
    %v459 = vld [vmem:[#allocation5 + $0xaa0] sm:$0xff]
    %v460 = vld [vmem:[#allocation5 + $0xaa8] sm:$0xff]
    %v461 = vld [vmem:[#allocation5 + $0xab0] sm:$0xff]
    %v462 = vld [vmem:[#allocation5 + $0xab8] sm:$0xff]
    %v463 = vld [vmem:[#allocation5 + $0xac0] sm:$0xff]
    %v464 = vld [vmem:[#allocation5 + $0xac8] sm:$0xff]
    %v465 = vld [vmem:[#allocation5 + $0xad0] sm:$0xff]
    %v466 = vld [vmem:[#allocation5 + $0xad8] sm:$0xff]
    %v467 = vld [vmem:[#allocation5 + $0xae0] sm:$0xff]
    %v468 = vld [vmem:[#allocation5 + $0xae8] sm:$0xff]
    %v469 = vld [vmem:[#allocation5 + $0xaf0] sm:$0xff]
    %v470 = vld [vmem:[#allocation5 + $0xaf8] sm:$0xff]
    %v471 = vld [vmem:[#allocation5 + $0xb00] sm:$0xff]
    %v472 = vld [vmem:[#allocation5 + $0xb08] sm:$0xff]
    %v473 = vld [vmem:[#allocation5 + $0xb10] sm:$0xff]
    %v474 = vld [vmem:[#allocation5 + $0xb18] sm:$0xff]
    %v475 = vld [vmem:[#allocation5 + $0xb20] sm:$0xff]
    %v476 = vld [vmem:[#allocation5 + $0xb28] sm:$0xff]
    %v477 = vld [vmem:[#allocation5 + $0xb30] sm:$0xff]
    %v478 = vld [vmem:[#allocation5 + $0xb38] sm:$0xff]
    %v479 = vld [vmem:[#allocation5 + $0xb40] sm:$0xff]
    %v480 = vld [vmem:[#allocation5 + $0xb48] sm:$0xff]
    %v481 = vld [vmem:[#allocation5 + $0xb50] sm:$0xff]
    %v482 = vld [vmem:[#allocation5 + $0xb58] sm:$0xff]
    %v483 = vld [vmem:[#allocation5 + $0xb60] sm:$0xff]
    %v484 = vld [vmem:[#allocation5 + $0xb68] sm:$0xff]
    %v485 = vld [vmem:[#allocation5 + $0xb70] sm:$0xff]
    %v486 = vld [vmem:[#allocation5 + $0xb78] sm:$0xff]
    %v487 = vld [vmem:[#allocation5 + $0xb80] sm:$0xff]
    %v488 = vld [vmem:[#allocation5 + $0xb88] sm:$0xff]
    %v489 = vld [vmem:[#allocation5 + $0xb90] sm:$0xff]
    %v490 = vld [vmem:[#allocation5 + $0xb98] sm:$0xff]
    %v491 = vld [vmem:[#allocation5 + $0xba0] sm:$0xff]
    %v492 = vld [vmem:[#allocation5 + $0xba8] sm:$0xff]
    %v493 = vld [vmem:[#allocation5 + $0xbb0] sm:$0xff]
    %v494 = vld [vmem:[#allocation5 + $0xbb8] sm:$0xff]
    %v495 = vld [vmem:[#allocation5 + $0xbc0] sm:$0xff]
    %v496 = vld [vmem:[#allocation5 + $0xbc8] sm:$0xff]
    %v497 = vld [vmem:[#allocation5 + $0xbd0] sm:$0xff]
    %v498 = vld [vmem:[#allocation5 + $0xbd8] sm:$0xff]
    %v499 = vld [vmem:[#allocation5 + $0xbe0] sm:$0xff]
    %v500 = vld [vmem:[#allocation5 + $0xbe8] sm:$0xff]
    %v501 = vld [vmem:[#allocation5 + $0xbf0] sm:$0xff]
    %v502 = vld [vmem:[#allocation5 + $0xbf8] sm:$0xff]
    %v503 = vld [vmem:[#allocation7] sm:$0x3f]
    %v505 = vlaneseq
    %v506 = vshrl.u32 %v505, 7
    %v507 = vsub.s32 0, %v506
    %v508 = vrot.slane %v503, %v507
    %v509 = vlaneseq
    %v510 = vshrl.u32 %v509, 7
    %v511 = vsub.s32 1, %v510
    %v512 = vrot.slane %v503, %v511
    %v513 = vlaneseq
    %v514 = vshrl.u32 %v513, 7
    %v515 = vsub.s32 2, %v514
    %v516 = vrot.slane %v503, %v515
    %v517 = vlaneseq
    %v518 = vshrl.u32 %v517, 7
    %v519 = vsub.s32 3, %v518
    %v520 = vrot.slane %v503, %v519
    %v521 = vlaneseq
    %v522 = vshrl.u32 %v521, 7
    %v523 = vsub.s32 4, %v522
    %v524 = vrot.slane %v503, %v523
    %v525 = vlaneseq
    %v526 = vshrl.u32 %v525, 7
    %v527 = vsub.s32 5, %v526
    %v528 = vrot.slane %v503, %v527
    %v539 = vunpack.c.l.b16 %v115
    %v540 = vunpack.c.h.b16 %v115
    %v541 = vunpack.c.l.b16 %v116
    %v542 = vunpack.c.h.b16 %v116
    %v543 = vunpack.c.l.b16 %v117
    %v544 = vunpack.c.h.b16 %v117
    %v545 = vunpack.c.l.b16 %v118
    %v546 = vunpack.c.h.b16 %v118
    %v547 = vpack.c.b16 %v539, %v539
    %v548 = vpack.c.b16 %v540, %v540
    %v549 = vpack.c.b16 %v541, %v541
    %v550 = vpack.c.b16 %v542, %v542
    %v551 = vpack.c.b16 %v543, %v543
    %v552 = vpack.c.b16 %v544, %v544
    %v553 = vpack.c.b16 %v545, %v545
    %v554 = vpack.c.b16 %v546, %v546
    %v947 = vunpack.c.l.b16 %v119
    %v948 = vunpack.c.h.b16 %v119
    %v949 = vunpack.c.l.b16 %v120
    %v950 = vunpack.c.h.b16 %v120
    %v951 = vunpack.c.l.b16 %v121
    %v952 = vunpack.c.h.b16 %v121
    %v953 = vunpack.c.l.b16 %v122
    %v954 = vunpack.c.h.b16 %v122
    %v955 = vunpack.c.l.b16 %v123
    %v956 = vunpack.c.h.b16 %v123
    %v957 = vunpack.c.l.b16 %v124
    %v958 = vunpack.c.h.b16 %v124
    %v959 = vunpack.c.l.b16 %v125
    %v960 = vunpack.c.h.b16 %v125
    %v961 = vunpack.c.l.b16 %v126
    %v962 = vunpack.c.h.b16 %v126
    %v963 = vunpack.c.l.b16 %v127
    %v964 = vunpack.c.h.b16 %v127
    %v965 = vunpack.c.l.b16 %v128
    %v966 = vunpack.c.h.b16 %v128
    %v967 = vunpack.c.l.b16 %v129
    %v968 = vunpack.c.h.b16 %v129
    %v969 = vunpack.c.l.b16 %v130
    %v970 = vunpack.c.h.b16 %v130
    %v971 = vunpack.c.l.b16 %v131
    %v972 = vunpack.c.h.b16 %v131
    %v973 = vunpack.c.l.b16 %v132
    %v974 = vunpack.c.h.b16 %v132
    %v975 = vunpack.c.l.b16 %v133
    %v976 = vunpack.c.h.b16 %v133
    %v977 = vunpack.c.l.b16 %v134
    %v978 = vunpack.c.h.b16 %v134
    %v979 = vunpack.c.l.b16 %v135
    %v980 = vunpack.c.h.b16 %v135
    %v981 = vunpack.c.l.b16 %v136
    %v982 = vunpack.c.h.b16 %v136
    %v983 = vunpack.c.l.b16 %v137
    %v984 = vunpack.c.h.b16 %v137
    %v985 = vunpack.c.l.b16 %v138
    %v986 = vunpack.c.h.b16 %v138
    %v987 = vunpack.c.l.b16 %v139
    %v988 = vunpack.c.h.b16 %v139
    %v989 = vunpack.c.l.b16 %v140
    %v990 = vunpack.c.h.b16 %v140
    %v991 = vunpack.c.l.b16 %v141
    %v992 = vunpack.c.h.b16 %v141
    %v993 = vunpack.c.l.b16 %v142
    %v994 = vunpack.c.h.b16 %v142
    %v995 = vunpack.c.l.b16 %v143
    %v996 = vunpack.c.h.b16 %v143
    %v997 = vunpack.c.l.b16 %v144
    %v998 = vunpack.c.h.b16 %v144
    %v999 = vunpack.c.l.b16 %v145
    %v1000 = vunpack.c.h.b16 %v145
    %v1001 = vunpack.c.l.b16 %v146
    %v1002 = vunpack.c.h.b16 %v146
    %v1003 = vunpack.c.l.b16 %v147
    %v1004 = vunpack.c.h.b16 %v147
    %v1005 = vunpack.c.l.b16 %v148
    %v1006 = vunpack.c.h.b16 %v148
    %v1007 = vunpack.c.l.b16 %v149
    %v1008 = vunpack.c.h.b16 %v149
    %v1009 = vunpack.c.l.b16 %v150
    %v1010 = vunpack.c.h.b16 %v150
    %v1011 = vunpack.c.l.b16 %v151
    %v1012 = vunpack.c.h.b16 %v151
    %v1013 = vunpack.c.l.b16 %v152
    %v1014 = vunpack.c.h.b16 %v152
    %v1015 = vunpack.c.l.b16 %v153
    %v1016 = vunpack.c.h.b16 %v153
    %v1017 = vunpack.c.l.b16 %v154
    %v1018 = vunpack.c.h.b16 %v154
    %v1019 = vunpack.c.l.b16 %v155
    %v1020 = vunpack.c.h.b16 %v155
    %v1021 = vunpack.c.l.b16 %v156
    %v1022 = vunpack.c.h.b16 %v156
    %v1023 = vunpack.c.l.b16 %v157
    %v1024 = vunpack.c.h.b16 %v157
    %v1025 = vunpack.c.l.b16 %v158
    %v1026 = vunpack.c.h.b16 %v158
    %v1027 = vunpack.c.l.b16 %v159
    %v1028 = vunpack.c.h.b16 %v159
    %v1029 = vunpack.c.l.b16 %v160
    %v1030 = vunpack.c.h.b16 %v160
    %v1031 = vunpack.c.l.b16 %v161
    %v1032 = vunpack.c.h.b16 %v161
    %v1033 = vunpack.c.l.b16 %v162
    %v1034 = vunpack.c.h.b16 %v162
    %v1035 = vunpack.c.l.b16 %v163
    %v1036 = vunpack.c.h.b16 %v163
    %v1037 = vunpack.c.l.b16 %v164
    %v1038 = vunpack.c.h.b16 %v164
    %v1039 = vunpack.c.l.b16 %v165
    %v1040 = vunpack.c.h.b16 %v165
    %v1041 = vunpack.c.l.b16 %v166
    %v1042 = vunpack.c.h.b16 %v166
    %v1043 = vunpack.c.l.b16 %v167
    %v1044 = vunpack.c.h.b16 %v167
    %v1045 = vunpack.c.l.b16 %v168
    %v1046 = vunpack.c.h.b16 %v168
    %v1047 = vunpack.c.l.b16 %v169
    %v1048 = vunpack.c.h.b16 %v169
    %v1049 = vunpack.c.l.b16 %v170
    %v1050 = vunpack.c.h.b16 %v170
    %v1051 = vunpack.c.l.b16 %v171
    %v1052 = vunpack.c.h.b16 %v171
    %v1053 = vunpack.c.l.b16 %v172
    %v1054 = vunpack.c.h.b16 %v172
    %v1055 = vunpack.c.l.b16 %v173
    %v1056 = vunpack.c.h.b16 %v173
    %v1057 = vunpack.c.l.b16 %v174
    %v1058 = vunpack.c.h.b16 %v174
    %v1059 = vunpack.c.l.b16 %v175
    %v1060 = vunpack.c.h.b16 %v175
    %v1061 = vunpack.c.l.b16 %v176
    %v1062 = vunpack.c.h.b16 %v176
    %v1063 = vunpack.c.l.b16 %v177
    %v1064 = vunpack.c.h.b16 %v177
    %v1065 = vunpack.c.l.b16 %v178
    %v1066 = vunpack.c.h.b16 %v178
    %v1067 = vunpack.c.l.b16 %v179
    %v1068 = vunpack.c.h.b16 %v179
    %v1069 = vunpack.c.l.b16 %v180
    %v1070 = vunpack.c.h.b16 %v180
    %v1071 = vunpack.c.l.b16 %v181
    %v1072 = vunpack.c.h.b16 %v181
    %v1073 = vunpack.c.l.b16 %v182
    %v1074 = vunpack.c.h.b16 %v182
    %v1075 = vunpack.c.l.b16 %v183
    %v1076 = vunpack.c.h.b16 %v183
    %v1077 = vunpack.c.l.b16 %v184
    %v1078 = vunpack.c.h.b16 %v184
    %v1079 = vunpack.c.l.b16 %v185
    %v1080 = vunpack.c.h.b16 %v185
    %v1081 = vunpack.c.l.b16 %v186
    %v1082 = vunpack.c.h.b16 %v186
    %v1083 = vunpack.c.l.b16 %v187
    %v1084 = vunpack.c.h.b16 %v187
    %v1085 = vunpack.c.l.b16 %v188
    %v1086 = vunpack.c.h.b16 %v188
    %v1087 = vunpack.c.l.b16 %v189
    %v1088 = vunpack.c.h.b16 %v189
    %v1089 = vunpack.c.l.b16 %v190
    %v1090 = vunpack.c.h.b16 %v190
    %v1091 = vunpack.c.l.b16 %v191
    %v1092 = vunpack.c.h.b16 %v191
    %v1093 = vunpack.c.l.b16 %v192
    %v1094 = vunpack.c.h.b16 %v192
    %v1095 = vunpack.c.l.b16 %v193
    %v1096 = vunpack.c.h.b16 %v193
    %v1097 = vunpack.c.l.b16 %v194
    %v1098 = vunpack.c.h.b16 %v194
    %v1099 = vunpack.c.l.b16 %v195
    %v1100 = vunpack.c.h.b16 %v195
    %v1101 = vunpack.c.l.b16 %v196
    %v1102 = vunpack.c.h.b16 %v196
    %v1103 = vunpack.c.l.b16 %v197
    %v1104 = vunpack.c.h.b16 %v197
    %v1105 = vunpack.c.l.b16 %v198
    %v1106 = vunpack.c.h.b16 %v198
    %v1107 = vunpack.c.l.b16 %v199
    %v1108 = vunpack.c.h.b16 %v199
    %v1109 = vunpack.c.l.b16 %v200
    %v1110 = vunpack.c.h.b16 %v200
    %v1111 = vunpack.c.l.b16 %v201
    %v1112 = vunpack.c.h.b16 %v201
    %v1113 = vunpack.c.l.b16 %v202
    %v1114 = vunpack.c.h.b16 %v202
    %v1115 = vunpack.c.l.b16 %v203
    %v1116 = vunpack.c.h.b16 %v203
    %v1117 = vunpack.c.l.b16 %v204
    %v1118 = vunpack.c.h.b16 %v204
    %v1119 = vunpack.c.l.b16 %v205
    %v1120 = vunpack.c.h.b16 %v205
    %v1121 = vunpack.c.l.b16 %v206
    %v1122 = vunpack.c.h.b16 %v206
    %v1123 = vunpack.c.l.b16 %v207
    %v1124 = vunpack.c.h.b16 %v207
    %v1125 = vunpack.c.l.b16 %v208
    %v1126 = vunpack.c.h.b16 %v208
    %v1127 = vunpack.c.l.b16 %v209
    %v1128 = vunpack.c.h.b16 %v209
    %v1129 = vunpack.c.l.b16 %v210
    %v1130 = vunpack.c.h.b16 %v210
    %v1131 = vunpack.c.l.b16 %v211
    %v1132 = vunpack.c.h.b16 %v211
    %v1133 = vunpack.c.l.b16 %v212
    %v1134 = vunpack.c.h.b16 %v212
    %v1135 = vunpack.c.l.b16 %v213
    %v1136 = vunpack.c.h.b16 %v213
    %v1137 = vunpack.c.l.b16 %v214
    %v1138 = vunpack.c.h.b16 %v214
    %v1139 = vunpack.c.l.b16 %v215
    %v1140 = vunpack.c.h.b16 %v215
    %v1141 = vunpack.c.l.b16 %v216
    %v1142 = vunpack.c.h.b16 %v216
    %v1143 = vunpack.c.l.b16 %v217
    %v1144 = vunpack.c.h.b16 %v217
    %v1145 = vunpack.c.l.b16 %v218
    %v1146 = vunpack.c.h.b16 %v218
    %v1147 = vunpack.c.l.b16 %v219
    %v1148 = vunpack.c.h.b16 %v219
    %v1149 = vunpack.c.l.b16 %v220
    %v1150 = vunpack.c.h.b16 %v220
    %v1151 = vunpack.c.l.b16 %v221
    %v1152 = vunpack.c.h.b16 %v221
    %v1153 = vunpack.c.l.b16 %v222
    %v1154 = vunpack.c.h.b16 %v222
    %v1155 = vunpack.c.l.b16 %v223
    %v1156 = vunpack.c.h.b16 %v223
    %v1157 = vunpack.c.l.b16 %v224
    %v1158 = vunpack.c.h.b16 %v224
    %v1159 = vunpack.c.l.b16 %v225
    %v1160 = vunpack.c.h.b16 %v225
    %v1161 = vunpack.c.l.b16 %v226
    %v1162 = vunpack.c.h.b16 %v226
    %v1163 = vunpack.c.l.b16 %v227
    %v1164 = vunpack.c.h.b16 %v227
    %v1165 = vunpack.c.l.b16 %v228
    %v1166 = vunpack.c.h.b16 %v228
    %v1167 = vunpack.c.l.b16 %v229
    %v1168 = vunpack.c.h.b16 %v229
    %v1169 = vunpack.c.l.b16 %v230
    %v1170 = vunpack.c.h.b16 %v230
    %v1171 = vunpack.c.l.b16 %v231
    %v1172 = vunpack.c.h.b16 %v231
    %v1173 = vunpack.c.l.b16 %v232
    %v1174 = vunpack.c.h.b16 %v232
    %v1175 = vunpack.c.l.b16 %v233
    %v1176 = vunpack.c.h.b16 %v233
    %v1177 = vunpack.c.l.b16 %v234
    %v1178 = vunpack.c.h.b16 %v234
    %v1179 = vunpack.c.l.b16 %v235
    %v1180 = vunpack.c.h.b16 %v235
    %v1181 = vunpack.c.l.b16 %v236
    %v1182 = vunpack.c.h.b16 %v236
    %v1183 = vunpack.c.l.b16 %v237
    %v1184 = vunpack.c.h.b16 %v237
    %v1185 = vunpack.c.l.b16 %v238
    %v1186 = vunpack.c.h.b16 %v238
    %v1187 = vunpack.c.l.b16 %v239
    %v1188 = vunpack.c.h.b16 %v239
    %v1189 = vunpack.c.l.b16 %v240
    %v1190 = vunpack.c.h.b16 %v240
    %v1191 = vunpack.c.l.b16 %v241
    %v1192 = vunpack.c.h.b16 %v241
    %v1193 = vunpack.c.l.b16 %v242
    %v1194 = vunpack.c.h.b16 %v242
    %v1195 = vunpack.c.l.b16 %v243
    %v1196 = vunpack.c.h.b16 %v243
    %v1197 = vunpack.c.l.b16 %v244
    %v1198 = vunpack.c.h.b16 %v244
    %v1199 = vunpack.c.l.b16 %v245
    %v1200 = vunpack.c.h.b16 %v245
    %v1201 = vunpack.c.l.b16 %v246
    %v1202 = vunpack.c.h.b16 %v246
    %v1203 = vunpack.c.l.b16 %v247
    %v1204 = vunpack.c.h.b16 %v247
    %v1205 = vunpack.c.l.b16 %v248
    %v1206 = vunpack.c.h.b16 %v248
    %v1207 = vunpack.c.l.b16 %v249
    %v1208 = vunpack.c.h.b16 %v249
    %v1209 = vunpack.c.l.b16 %v250
    %v1210 = vunpack.c.h.b16 %v250
    %v1211 = vunpack.c.l.b16 %v251
    %v1212 = vunpack.c.h.b16 %v251
    %v1213 = vunpack.c.l.b16 %v252
    %v1214 = vunpack.c.h.b16 %v252
    %v1215 = vunpack.c.l.b16 %v253
    %v1216 = vunpack.c.h.b16 %v253
    %v1217 = vunpack.c.l.b16 %v254
    %v1218 = vunpack.c.h.b16 %v254
    %v1219 = vunpack.c.l.b16 %v255
    %v1220 = vunpack.c.h.b16 %v255
    %v1221 = vunpack.c.l.b16 %v256
    %v1222 = vunpack.c.h.b16 %v256
    %v1223 = vunpack.c.l.b16 %v257
    %v1224 = vunpack.c.h.b16 %v257
    %v1225 = vunpack.c.l.b16 %v258
    %v1226 = vunpack.c.h.b16 %v258
    %v1227 = vunpack.c.l.b16 %v259
    %v1228 = vunpack.c.h.b16 %v259
    %v1229 = vunpack.c.l.b16 %v260
    %v1230 = vunpack.c.h.b16 %v260
    %v1231 = vunpack.c.l.b16 %v261
    %v1232 = vunpack.c.h.b16 %v261
    %v1233 = vunpack.c.l.b16 %v262
    %v1234 = vunpack.c.h.b16 %v262
    %v1235 = vunpack.c.l.b16 %v263
    %v1236 = vunpack.c.h.b16 %v263
    %v1237 = vunpack.c.l.b16 %v264
    %v1238 = vunpack.c.h.b16 %v264
    %v1239 = vunpack.c.l.b16 %v265
    %v1240 = vunpack.c.h.b16 %v265
    %v1241 = vunpack.c.l.b16 %v266
    %v1242 = vunpack.c.h.b16 %v266
    %v1243 = vunpack.c.l.b16 %v267
    %v1244 = vunpack.c.h.b16 %v267
    %v1245 = vunpack.c.l.b16 %v268
    %v1246 = vunpack.c.h.b16 %v268
    %v1247 = vunpack.c.l.b16 %v269
    %v1248 = vunpack.c.h.b16 %v269
    %v1249 = vunpack.c.l.b16 %v270
    %v1250 = vunpack.c.h.b16 %v270
    %v1251 = vunpack.c.l.b16 %v271
    %v1252 = vunpack.c.h.b16 %v271
    %v1253 = vunpack.c.l.b16 %v272
    %v1254 = vunpack.c.h.b16 %v272
    %v1255 = vunpack.c.l.b16 %v273
    %v1256 = vunpack.c.h.b16 %v273
    %v1257 = vunpack.c.l.b16 %v274
    %v1258 = vunpack.c.h.b16 %v274
    %v1259 = vunpack.c.l.b16 %v275
    %v1260 = vunpack.c.h.b16 %v275
    %v1261 = vunpack.c.l.b16 %v276
    %v1262 = vunpack.c.h.b16 %v276
    %v1263 = vunpack.c.l.b16 %v277
    %v1264 = vunpack.c.h.b16 %v277
    %v1265 = vunpack.c.l.b16 %v278
    %v1266 = vunpack.c.h.b16 %v278
    %v1267 = vunpack.c.l.b16 %v279
    %v1268 = vunpack.c.h.b16 %v279
    %v1269 = vunpack.c.l.b16 %v280
    %v1270 = vunpack.c.h.b16 %v280
    %v1271 = vunpack.c.l.b16 %v281
    %v1272 = vunpack.c.h.b16 %v281
    %v1273 = vunpack.c.l.b16 %v282
    %v1274 = vunpack.c.h.b16 %v282
    %v1275 = vunpack.c.l.b16 %v283
    %v1276 = vunpack.c.h.b16 %v283
    %v1277 = vunpack.c.l.b16 %v284
    %v1278 = vunpack.c.h.b16 %v284
    %v1279 = vunpack.c.l.b16 %v285
    %v1280 = vunpack.c.h.b16 %v285
    %v1281 = vunpack.c.l.b16 %v286
    %v1282 = vunpack.c.h.b16 %v286
    %v1283 = vunpack.c.l.b16 %v287
    %v1284 = vunpack.c.h.b16 %v287
    %v1285 = vunpack.c.l.b16 %v288
    %v1286 = vunpack.c.h.b16 %v288
    %v1287 = vunpack.c.l.b16 %v289
    %v1288 = vunpack.c.h.b16 %v289
    %v1289 = vunpack.c.l.b16 %v290
    %v1290 = vunpack.c.h.b16 %v290
    %v1291 = vunpack.c.l.b16 %v291
    %v1292 = vunpack.c.h.b16 %v291
    %v1293 = vunpack.c.l.b16 %v292
    %v1294 = vunpack.c.h.b16 %v292
    %v1295 = vunpack.c.l.b16 %v293
    %v1296 = vunpack.c.h.b16 %v293
    %v1297 = vunpack.c.l.b16 %v294
    %v1298 = vunpack.c.h.b16 %v294
    %v1299 = vunpack.c.l.b16 %v295
    %v1300 = vunpack.c.h.b16 %v295
    %v1301 = vunpack.c.l.b16 %v296
    %v1302 = vunpack.c.h.b16 %v296
    %v1303 = vunpack.c.l.b16 %v297
    %v1304 = vunpack.c.h.b16 %v297
    %v1305 = vunpack.c.l.b16 %v298
    %v1306 = vunpack.c.h.b16 %v298
    %v1307 = vunpack.c.l.b16 %v299
    %v1308 = vunpack.c.h.b16 %v299
    %v1309 = vunpack.c.l.b16 %v300
    %v1310 = vunpack.c.h.b16 %v300
    %v1311 = vunpack.c.l.b16 %v301
    %v1312 = vunpack.c.h.b16 %v301
    %v1313 = vunpack.c.l.b16 %v302
    %v1314 = vunpack.c.h.b16 %v302
    %v1315 = vunpack.c.l.b16 %v303
    %v1316 = vunpack.c.h.b16 %v303
    %v1317 = vunpack.c.l.b16 %v304
    %v1318 = vunpack.c.h.b16 %v304
    %v1319 = vunpack.c.l.b16 %v305
    %v1320 = vunpack.c.h.b16 %v305
    %v1321 = vunpack.c.l.b16 %v306
    %v1322 = vunpack.c.h.b16 %v306
    %v1323 = vunpack.c.l.b16 %v307
    %v1324 = vunpack.c.h.b16 %v307
    %v1325 = vunpack.c.l.b16 %v308
    %v1326 = vunpack.c.h.b16 %v308
    %v1327 = vunpack.c.l.b16 %v309
    %v1328 = vunpack.c.h.b16 %v309
    %v1329 = vunpack.c.l.b16 %v310
    %v1330 = vunpack.c.h.b16 %v310
    %v1331 = vunpack.c.l.b16 %v311
    %v1332 = vunpack.c.h.b16 %v311
    %v1333 = vunpack.c.l.b16 %v312
    %v1334 = vunpack.c.h.b16 %v312
    %v1335 = vunpack.c.l.b16 %v313
    %v1336 = vunpack.c.h.b16 %v313
    %v1337 = vunpack.c.l.b16 %v314
    %v1338 = vunpack.c.h.b16 %v314
    %v1339 = vunpack.c.l.b16 %v315
    %v1340 = vunpack.c.h.b16 %v315
    %v1341 = vunpack.c.l.b16 %v316
    %v1342 = vunpack.c.h.b16 %v316
    %v1343 = vunpack.c.l.b16 %v317
    %v1344 = vunpack.c.h.b16 %v317
    %v1345 = vunpack.c.l.b16 %v318
    %v1346 = vunpack.c.h.b16 %v318
    %v1347 = vunpack.c.l.b16 %v319
    %v1348 = vunpack.c.h.b16 %v319
    %v1349 = vunpack.c.l.b16 %v320
    %v1350 = vunpack.c.h.b16 %v320
    %v1351 = vunpack.c.l.b16 %v321
    %v1352 = vunpack.c.h.b16 %v321
    %v1353 = vunpack.c.l.b16 %v322
    %v1354 = vunpack.c.h.b16 %v322
    %v1355 = vunpack.c.l.b16 %v323
    %v1356 = vunpack.c.h.b16 %v323
    %v1357 = vunpack.c.l.b16 %v324
    %v1358 = vunpack.c.h.b16 %v324
    %v1359 = vunpack.c.l.b16 %v325
    %v1360 = vunpack.c.h.b16 %v325
    %v1361 = vunpack.c.l.b16 %v326
    %v1362 = vunpack.c.h.b16 %v326
    %v1363 = vunpack.c.l.b16 %v327
    %v1364 = vunpack.c.h.b16 %v327
    %v1365 = vunpack.c.l.b16 %v328
    %v1366 = vunpack.c.h.b16 %v328
    %v1367 = vunpack.c.l.b16 %v329
    %v1368 = vunpack.c.h.b16 %v329
    %v1369 = vunpack.c.l.b16 %v330
    %v1370 = vunpack.c.h.b16 %v330
    %v1371 = vunpack.c.l.b16 %v331
    %v1372 = vunpack.c.h.b16 %v331
    %v1373 = vunpack.c.l.b16 %v332
    %v1374 = vunpack.c.h.b16 %v332
    %v1375 = vunpack.c.l.b16 %v333
    %v1376 = vunpack.c.h.b16 %v333
    %v1377 = vunpack.c.l.b16 %v334
    %v1378 = vunpack.c.h.b16 %v334
    %v1379 = vunpack.c.l.b16 %v335
    %v1380 = vunpack.c.h.b16 %v335
    %v1381 = vunpack.c.l.b16 %v336
    %v1382 = vunpack.c.h.b16 %v336
    %v1383 = vunpack.c.l.b16 %v337
    %v1384 = vunpack.c.h.b16 %v337
    %v1385 = vunpack.c.l.b16 %v338
    %v1386 = vunpack.c.h.b16 %v338
    %v1387 = vunpack.c.l.b16 %v339
    %v1388 = vunpack.c.h.b16 %v339
    %v1389 = vunpack.c.l.b16 %v340
    %v1390 = vunpack.c.h.b16 %v340
    %v1391 = vunpack.c.l.b16 %v341
    %v1392 = vunpack.c.h.b16 %v341
    %v1393 = vunpack.c.l.b16 %v342
    %v1394 = vunpack.c.h.b16 %v342
    %v1395 = vunpack.c.l.b16 %v343
    %v1396 = vunpack.c.h.b16 %v343
    %v1397 = vunpack.c.l.b16 %v344
    %v1398 = vunpack.c.h.b16 %v344
    %v1399 = vunpack.c.l.b16 %v345
    %v1400 = vunpack.c.h.b16 %v345
    %v1401 = vunpack.c.l.b16 %v346
    %v1402 = vunpack.c.h.b16 %v346
    %v1403 = vunpack.c.l.b16 %v347
    %v1404 = vunpack.c.h.b16 %v347
    %v1405 = vunpack.c.l.b16 %v348
    %v1406 = vunpack.c.h.b16 %v348
    %v1407 = vunpack.c.l.b16 %v349
    %v1408 = vunpack.c.h.b16 %v349
    %v1409 = vunpack.c.l.b16 %v350
    %v1410 = vunpack.c.h.b16 %v350
    %v1411 = vunpack.c.l.b16 %v351
    %v1412 = vunpack.c.h.b16 %v351
    %v1413 = vunpack.c.l.b16 %v352
    %v1414 = vunpack.c.h.b16 %v352
    %v1415 = vunpack.c.l.b16 %v353
    %v1416 = vunpack.c.h.b16 %v353
    %v1417 = vunpack.c.l.b16 %v354
    %v1418 = vunpack.c.h.b16 %v354
    %v1419 = vunpack.c.l.b16 %v355
    %v1420 = vunpack.c.h.b16 %v355
    %v1421 = vunpack.c.l.b16 %v356
    %v1422 = vunpack.c.h.b16 %v356
    %v1423 = vunpack.c.l.b16 %v357
    %v1424 = vunpack.c.h.b16 %v357
    %v1425 = vunpack.c.l.b16 %v358
    %v1426 = vunpack.c.h.b16 %v358
    %v1427 = vunpack.c.l.b16 %v359
    %v1428 = vunpack.c.h.b16 %v359
    %v1429 = vunpack.c.l.b16 %v360
    %v1430 = vunpack.c.h.b16 %v360
    %v1431 = vunpack.c.l.b16 %v361
    %v1432 = vunpack.c.h.b16 %v361
    %v1433 = vunpack.c.l.b16 %v362
    %v1434 = vunpack.c.h.b16 %v362
    %v1435 = vunpack.c.l.b16 %v363
    %v1436 = vunpack.c.h.b16 %v363
    %v1437 = vunpack.c.l.b16 %v364
    %v1438 = vunpack.c.h.b16 %v364
    %v1439 = vunpack.c.l.b16 %v365
    %v1440 = vunpack.c.h.b16 %v365
    %v1441 = vunpack.c.l.b16 %v366
    %v1442 = vunpack.c.h.b16 %v366
    %v1443 = vunpack.c.l.b16 %v367
    %v1444 = vunpack.c.h.b16 %v367
    %v1445 = vunpack.c.l.b16 %v368
    %v1446 = vunpack.c.h.b16 %v368
    %v1447 = vunpack.c.l.b16 %v369
    %v1448 = vunpack.c.h.b16 %v369
    %v1449 = vunpack.c.l.b16 %v370
    %v1450 = vunpack.c.h.b16 %v370
    %v1451 = vunpack.c.l.b16 %v371
    %v1452 = vunpack.c.h.b16 %v371
    %v1453 = vunpack.c.l.b16 %v372
    %v1454 = vunpack.c.h.b16 %v372
    %v1455 = vunpack.c.l.b16 %v373
    %v1456 = vunpack.c.h.b16 %v373
    %v1457 = vunpack.c.l.b16 %v374
    %v1458 = vunpack.c.h.b16 %v374
    %v1459 = vunpack.c.l.b16 %v375
    %v1460 = vunpack.c.h.b16 %v375
    %v1461 = vunpack.c.l.b16 %v376
    %v1462 = vunpack.c.h.b16 %v376
    %v1463 = vunpack.c.l.b16 %v377
    %v1464 = vunpack.c.h.b16 %v377
    %v1465 = vunpack.c.l.b16 %v378
    %v1466 = vunpack.c.h.b16 %v378
    %v1467 = vunpack.c.l.b16 %v379
    %v1468 = vunpack.c.h.b16 %v379
    %v1469 = vunpack.c.l.b16 %v380
    %v1470 = vunpack.c.h.b16 %v380
    %v1471 = vunpack.c.l.b16 %v381
    %v1472 = vunpack.c.h.b16 %v381
    %v1473 = vunpack.c.l.b16 %v382
    %v1474 = vunpack.c.h.b16 %v382
    %v1475 = vunpack.c.l.b16 %v383
    %v1476 = vunpack.c.h.b16 %v383
    %v1477 = vunpack.c.l.b16 %v384
    %v1478 = vunpack.c.h.b16 %v384
    %v1479 = vunpack.c.l.b16 %v385
    %v1480 = vunpack.c.h.b16 %v385
    %v1481 = vunpack.c.l.b16 %v386
    %v1482 = vunpack.c.h.b16 %v386
    %v1483 = vunpack.c.l.b16 %v387
    %v1484 = vunpack.c.h.b16 %v387
    %v1485 = vunpack.c.l.b16 %v388
    %v1486 = vunpack.c.h.b16 %v388
    %v1487 = vunpack.c.l.b16 %v389
    %v1488 = vunpack.c.h.b16 %v389
    %v1489 = vunpack.c.l.b16 %v390
    %v1490 = vunpack.c.h.b16 %v390
    %v1491 = vunpack.c.l.b16 %v391
    %v1492 = vunpack.c.h.b16 %v391
    %v1493 = vunpack.c.l.b16 %v392
    %v1494 = vunpack.c.h.b16 %v392
    %v1495 = vunpack.c.l.b16 %v393
    %v1496 = vunpack.c.h.b16 %v393
    %v1497 = vunpack.c.l.b16 %v394
    %v1498 = vunpack.c.h.b16 %v394
    %v1499 = vunpack.c.l.b16 %v395
    %v1500 = vunpack.c.h.b16 %v395
    %v1501 = vunpack.c.l.b16 %v396
    %v1502 = vunpack.c.h.b16 %v396
    %v1503 = vunpack.c.l.b16 %v397
    %v1504 = vunpack.c.h.b16 %v397
    %v1505 = vunpack.c.l.b16 %v398
    %v1506 = vunpack.c.h.b16 %v398
    %v1507 = vunpack.c.l.b16 %v399
    %v1508 = vunpack.c.h.b16 %v399
    %v1509 = vunpack.c.l.b16 %v400
    %v1510 = vunpack.c.h.b16 %v400
    %v1511 = vunpack.c.l.b16 %v401
    %v1512 = vunpack.c.h.b16 %v401
    %v1513 = vunpack.c.l.b16 %v402
    %v1514 = vunpack.c.h.b16 %v402
    %v1515 = vunpack.c.l.b16 %v403
    %v1516 = vunpack.c.h.b16 %v403
    %v1517 = vunpack.c.l.b16 %v404
    %v1518 = vunpack.c.h.b16 %v404
    %v1519 = vunpack.c.l.b16 %v405
    %v1520 = vunpack.c.h.b16 %v405
    %v1521 = vunpack.c.l.b16 %v406
    %v1522 = vunpack.c.h.b16 %v406
    %v1523 = vunpack.c.l.b16 %v407
    %v1524 = vunpack.c.h.b16 %v407
    %v1525 = vunpack.c.l.b16 %v408
    %v1526 = vunpack.c.h.b16 %v408
    %v1527 = vunpack.c.l.b16 %v409
    %v1528 = vunpack.c.h.b16 %v409
    %v1529 = vunpack.c.l.b16 %v410
    %v1530 = vunpack.c.h.b16 %v410
    %v1531 = vunpack.c.l.b16 %v411
    %v1532 = vunpack.c.h.b16 %v411
    %v1533 = vunpack.c.l.b16 %v412
    %v1534 = vunpack.c.h.b16 %v412
    %v1535 = vunpack.c.l.b16 %v413
    %v1536 = vunpack.c.h.b16 %v413
    %v1537 = vunpack.c.l.b16 %v414
    %v1538 = vunpack.c.h.b16 %v414
    %v1539 = vunpack.c.l.b16 %v415
    %v1540 = vunpack.c.h.b16 %v415
    %v1541 = vunpack.c.l.b16 %v416
    %v1542 = vunpack.c.h.b16 %v416
    %v1543 = vunpack.c.l.b16 %v417
    %v1544 = vunpack.c.h.b16 %v417
    %v1545 = vunpack.c.l.b16 %v418
    %v1546 = vunpack.c.h.b16 %v418
    %v1547 = vunpack.c.l.b16 %v419
    %v1548 = vunpack.c.h.b16 %v419
    %v1549 = vunpack.c.l.b16 %v420
    %v1550 = vunpack.c.h.b16 %v420
    %v1551 = vunpack.c.l.b16 %v421
    %v1552 = vunpack.c.h.b16 %v421
    %v1553 = vunpack.c.l.b16 %v422
    %v1554 = vunpack.c.h.b16 %v422
    %v1555 = vunpack.c.l.b16 %v423
    %v1556 = vunpack.c.h.b16 %v423
    %v1557 = vunpack.c.l.b16 %v424
    %v1558 = vunpack.c.h.b16 %v424
    %v1559 = vunpack.c.l.b16 %v425
    %v1560 = vunpack.c.h.b16 %v425
    %v1561 = vunpack.c.l.b16 %v426
    %v1562 = vunpack.c.h.b16 %v426
    %v1563 = vunpack.c.l.b16 %v427
    %v1564 = vunpack.c.h.b16 %v427
    %v1565 = vunpack.c.l.b16 %v428
    %v1566 = vunpack.c.h.b16 %v428
    %v1567 = vunpack.c.l.b16 %v429
    %v1568 = vunpack.c.h.b16 %v429
    %v1569 = vunpack.c.l.b16 %v430
    %v1570 = vunpack.c.h.b16 %v430
    %v1571 = vunpack.c.l.b16 %v431
    %v1572 = vunpack.c.h.b16 %v431
    %v1573 = vunpack.c.l.b16 %v432
    %v1574 = vunpack.c.h.b16 %v432
    %v1575 = vunpack.c.l.b16 %v433
    %v1576 = vunpack.c.h.b16 %v433
    %v1577 = vunpack.c.l.b16 %v434
    %v1578 = vunpack.c.h.b16 %v434
    %v1579 = vunpack.c.l.b16 %v435
    %v1580 = vunpack.c.h.b16 %v435
    %v1581 = vunpack.c.l.b16 %v436
    %v1582 = vunpack.c.h.b16 %v436
    %v1583 = vunpack.c.l.b16 %v437
    %v1584 = vunpack.c.h.b16 %v437
    %v1585 = vunpack.c.l.b16 %v438
    %v1586 = vunpack.c.h.b16 %v438
    %v1587 = vunpack.c.l.b16 %v439
    %v1588 = vunpack.c.h.b16 %v439
    %v1589 = vunpack.c.l.b16 %v440
    %v1590 = vunpack.c.h.b16 %v440
    %v1591 = vunpack.c.l.b16 %v441
    %v1592 = vunpack.c.h.b16 %v441
    %v1593 = vunpack.c.l.b16 %v442
    %v1594 = vunpack.c.h.b16 %v442
    %v1595 = vunpack.c.l.b16 %v443
    %v1596 = vunpack.c.h.b16 %v443
    %v1597 = vunpack.c.l.b16 %v444
    %v1598 = vunpack.c.h.b16 %v444
    %v1599 = vunpack.c.l.b16 %v445
    %v1600 = vunpack.c.h.b16 %v445
    %v1601 = vunpack.c.l.b16 %v446
    %v1602 = vunpack.c.h.b16 %v446
    %v1603 = vunpack.c.l.b16 %v447
    %v1604 = vunpack.c.h.b16 %v447
    %v1605 = vunpack.c.l.b16 %v448
    %v1606 = vunpack.c.h.b16 %v448
    %v1607 = vunpack.c.l.b16 %v449
    %v1608 = vunpack.c.h.b16 %v449
    %v1609 = vunpack.c.l.b16 %v450
    %v1610 = vunpack.c.h.b16 %v450
    %v1611 = vunpack.c.l.b16 %v451
    %v1612 = vunpack.c.h.b16 %v451
    %v1613 = vunpack.c.l.b16 %v452
    %v1614 = vunpack.c.h.b16 %v452
    %v1615 = vunpack.c.l.b16 %v453
    %v1616 = vunpack.c.h.b16 %v453
    %v1617 = vunpack.c.l.b16 %v454
    %v1618 = vunpack.c.h.b16 %v454
    %v1619 = vunpack.c.l.b16 %v455
    %v1620 = vunpack.c.h.b16 %v455
    %v1621 = vunpack.c.l.b16 %v456
    %v1622 = vunpack.c.h.b16 %v456
    %v1623 = vunpack.c.l.b16 %v457
    %v1624 = vunpack.c.h.b16 %v457
    %v1625 = vunpack.c.l.b16 %v458
    %v1626 = vunpack.c.h.b16 %v458
    %v1627 = vunpack.c.l.b16 %v459
    %v1628 = vunpack.c.h.b16 %v459
    %v1629 = vunpack.c.l.b16 %v460
    %v1630 = vunpack.c.h.b16 %v460
    %v1631 = vunpack.c.l.b16 %v461
    %v1632 = vunpack.c.h.b16 %v461
    %v1633 = vunpack.c.l.b16 %v462
    %v1634 = vunpack.c.h.b16 %v462
    %v1635 = vunpack.c.l.b16 %v463
    %v1636 = vunpack.c.h.b16 %v463
    %v1637 = vunpack.c.l.b16 %v464
    %v1638 = vunpack.c.h.b16 %v464
    %v1639 = vunpack.c.l.b16 %v465
    %v1640 = vunpack.c.h.b16 %v465
    %v1641 = vunpack.c.l.b16 %v466
    %v1642 = vunpack.c.h.b16 %v466
    %v1643 = vunpack.c.l.b16 %v467
    %v1644 = vunpack.c.h.b16 %v467
    %v1645 = vunpack.c.l.b16 %v468
    %v1646 = vunpack.c.h.b16 %v468
    %v1647 = vunpack.c.l.b16 %v469
    %v1648 = vunpack.c.h.b16 %v469
    %v1649 = vunpack.c.l.b16 %v470
    %v1650 = vunpack.c.h.b16 %v470
    %v1651 = vunpack.c.l.b16 %v471
    %v1652 = vunpack.c.h.b16 %v471
    %v1653 = vunpack.c.l.b16 %v472
    %v1654 = vunpack.c.h.b16 %v472
    %v1655 = vunpack.c.l.b16 %v473
    %v1656 = vunpack.c.h.b16 %v473
    %v1657 = vunpack.c.l.b16 %v474
    %v1658 = vunpack.c.h.b16 %v474
    %v1659 = vunpack.c.l.b16 %v475
    %v1660 = vunpack.c.h.b16 %v475
    %v1661 = vunpack.c.l.b16 %v476
    %v1662 = vunpack.c.h.b16 %v476
    %v1663 = vunpack.c.l.b16 %v477
    %v1664 = vunpack.c.h.b16 %v477
    %v1665 = vunpack.c.l.b16 %v478
    %v1666 = vunpack.c.h.b16 %v478
    %v1667 = vunpack.c.l.b16 %v479
    %v1668 = vunpack.c.h.b16 %v479
    %v1669 = vunpack.c.l.b16 %v480
    %v1670 = vunpack.c.h.b16 %v480
    %v1671 = vunpack.c.l.b16 %v481
    %v1672 = vunpack.c.h.b16 %v481
    %v1673 = vunpack.c.l.b16 %v482
    %v1674 = vunpack.c.h.b16 %v482
    %v1675 = vunpack.c.l.b16 %v483
    %v1676 = vunpack.c.h.b16 %v483
    %v1677 = vunpack.c.l.b16 %v484
    %v1678 = vunpack.c.h.b16 %v484
    %v1679 = vunpack.c.l.b16 %v485
    %v1680 = vunpack.c.h.b16 %v485
    %v1681 = vunpack.c.l.b16 %v486
    %v1682 = vunpack.c.h.b16 %v486
    %v1683 = vunpack.c.l.b16 %v487
    %v1684 = vunpack.c.h.b16 %v487
    %v1685 = vunpack.c.l.b16 %v488
    %v1686 = vunpack.c.h.b16 %v488
    %v1687 = vunpack.c.l.b16 %v489
    %v1688 = vunpack.c.h.b16 %v489
    %v1689 = vunpack.c.l.b16 %v490
    %v1690 = vunpack.c.h.b16 %v490
    %v1691 = vunpack.c.l.b16 %v491
    %v1692 = vunpack.c.h.b16 %v491
    %v1693 = vunpack.c.l.b16 %v492
    %v1694 = vunpack.c.h.b16 %v492
    %v1695 = vunpack.c.l.b16 %v493
    %v1696 = vunpack.c.h.b16 %v493
    %v1697 = vunpack.c.l.b16 %v494
    %v1698 = vunpack.c.h.b16 %v494
    %v1699 = vunpack.c.l.b16 %v495
    %v1700 = vunpack.c.h.b16 %v495
    %v1701 = vunpack.c.l.b16 %v496
    %v1702 = vunpack.c.h.b16 %v496
    %v1703 = vunpack.c.l.b16 %v497
    %v1704 = vunpack.c.h.b16 %v497
    %v1705 = vunpack.c.l.b16 %v498
    %v1706 = vunpack.c.h.b16 %v498
    %v1707 = vunpack.c.l.b16 %v499
    %v1708 = vunpack.c.h.b16 %v499
    %v1709 = vunpack.c.l.b16 %v500
    %v1710 = vunpack.c.h.b16 %v500
    %v1711 = vunpack.c.l.b16 %v501
    %v1712 = vunpack.c.h.b16 %v501
    %v1713 = vunpack.c.l.b16 %v502
    %v1714 = vunpack.c.h.b16 %v502
    %v1715 = vpack.c.b16 %v953, %v947
    %v1716 = vpack.c.b16 %v954, %v948
    %v1717 = vpack.c.b16 %v955, %v949
    %v1718 = vpack.c.b16 %v956, %v950
    %v1719 = vpack.c.b16 %v957, %v951
    %v1720 = vpack.c.b16 %v958, %v952
    %v1721 = vpack.c.b16 %v965, %v959
    %v1722 = vpack.c.b16 %v966, %v960
    %v1723 = vpack.c.b16 %v967, %v961
    %v1724 = vpack.c.b16 %v968, %v962
    %v1725 = vpack.c.b16 %v969, %v963
    %v1726 = vpack.c.b16 %v970, %v964
    %v1727 = vpack.c.b16 %v977, %v971
    %v1728 = vpack.c.b16 %v978, %v972
    %v1729 = vpack.c.b16 %v979, %v973
    %v1730 = vpack.c.b16 %v980, %v974
    %v1731 = vpack.c.b16 %v981, %v975
    %v1732 = vpack.c.b16 %v982, %v976
    %v1733 = vpack.c.b16 %v989, %v983
    %v1734 = vpack.c.b16 %v990, %v984
    %v1735 = vpack.c.b16 %v991, %v985
    %v1736 = vpack.c.b16 %v992, %v986
    %v1737 = vpack.c.b16 %v993, %v987
    %v1738 = vpack.c.b16 %v994, %v988
    %v1739 = vpack.c.b16 %v1001, %v995
    %v1740 = vpack.c.b16 %v1002, %v996
    %v1741 = vpack.c.b16 %v1003, %v997
    %v1742 = vpack.c.b16 %v1004, %v998
    %v1743 = vpack.c.b16 %v1005, %v999
    %v1744 = vpack.c.b16 %v1006, %v1000
    %v1745 = vpack.c.b16 %v1013, %v1007
    %v1746 = vpack.c.b16 %v1014, %v1008
    %v1747 = vpack.c.b16 %v1015, %v1009
    %v1748 = vpack.c.b16 %v1016, %v1010
    %v1749 = vpack.c.b16 %v1017, %v1011
    %v1750 = vpack.c.b16 %v1018, %v1012
    %v1751 = vpack.c.b16 %v1025, %v1019
    %v1752 = vpack.c.b16 %v1026, %v1020
    %v1753 = vpack.c.b16 %v1027, %v1021
    %v1754 = vpack.c.b16 %v1028, %v1022
    %v1755 = vpack.c.b16 %v1029, %v1023
    %v1756 = vpack.c.b16 %v1030, %v1024
    %v1757 = vpack.c.b16 %v1037, %v1031
    %v1758 = vpack.c.b16 %v1038, %v1032
    %v1759 = vpack.c.b16 %v1039, %v1033
    %v1760 = vpack.c.b16 %v1040, %v1034
    %v1761 = vpack.c.b16 %v1041, %v1035
    %v1762 = vpack.c.b16 %v1042, %v1036
    %v1763 = vpack.c.b16 %v1049, %v1043
    %v1764 = vpack.c.b16 %v1050, %v1044
    %v1765 = vpack.c.b16 %v1051, %v1045
    %v1766 = vpack.c.b16 %v1052, %v1046
    %v1767 = vpack.c.b16 %v1053, %v1047
    %v1768 = vpack.c.b16 %v1054, %v1048
    %v1769 = vpack.c.b16 %v1061, %v1055
    %v1770 = vpack.c.b16 %v1062, %v1056
    %v1771 = vpack.c.b16 %v1063, %v1057
    %v1772 = vpack.c.b16 %v1064, %v1058
    %v1773 = vpack.c.b16 %v1065, %v1059
    %v1774 = vpack.c.b16 %v1066, %v1060
    %v1775 = vpack.c.b16 %v1073, %v1067
    %v1776 = vpack.c.b16 %v1074, %v1068
    %v1777 = vpack.c.b16 %v1075, %v1069
    %v1778 = vpack.c.b16 %v1076, %v1070
    %v1779 = vpack.c.b16 %v1077, %v1071
    %v1780 = vpack.c.b16 %v1078, %v1072
    %v1781 = vpack.c.b16 %v1085, %v1079
    %v1782 = vpack.c.b16 %v1086, %v1080
    %v1783 = vpack.c.b16 %v1087, %v1081
    %v1784 = vpack.c.b16 %v1088, %v1082
    %v1785 = vpack.c.b16 %v1089, %v1083
    %v1786 = vpack.c.b16 %v1090, %v1084
    %v1787 = vpack.c.b16 %v1097, %v1091
    %v1788 = vpack.c.b16 %v1098, %v1092
    %v1789 = vpack.c.b16 %v1099, %v1093
    %v1790 = vpack.c.b16 %v1100, %v1094
    %v1791 = vpack.c.b16 %v1101, %v1095
    %v1792 = vpack.c.b16 %v1102, %v1096
    %v1793 = vpack.c.b16 %v1109, %v1103
    %v1794 = vpack.c.b16 %v1110, %v1104
    %v1795 = vpack.c.b16 %v1111, %v1105
    %v1796 = vpack.c.b16 %v1112, %v1106
    %v1797 = vpack.c.b16 %v1113, %v1107
    %v1798 = vpack.c.b16 %v1114, %v1108
    %v1799 = vpack.c.b16 %v1121, %v1115
    %v1800 = vpack.c.b16 %v1122, %v1116
    %v1801 = vpack.c.b16 %v1123, %v1117
    %v1802 = vpack.c.b16 %v1124, %v1118
    %v1803 = vpack.c.b16 %v1125, %v1119
    %v1804 = vpack.c.b16 %v1126, %v1120
    %v1805 = vpack.c.b16 %v1133, %v1127
    %v1806 = vpack.c.b16 %v1134, %v1128
    %v1807 = vpack.c.b16 %v1135, %v1129
    %v1808 = vpack.c.b16 %v1136, %v1130
    %v1809 = vpack.c.b16 %v1137, %v1131
    %v1810 = vpack.c.b16 %v1138, %v1132
    %v1811 = vpack.c.b16 %v1145, %v1139
    %v1812 = vpack.c.b16 %v1146, %v1140
    %v1813 = vpack.c.b16 %v1147, %v1141
    %v1814 = vpack.c.b16 %v1148, %v1142
    %v1815 = vpack.c.b16 %v1149, %v1143
    %v1816 = vpack.c.b16 %v1150, %v1144
    %v1817 = vpack.c.b16 %v1157, %v1151
    %v1818 = vpack.c.b16 %v1158, %v1152
    %v1819 = vpack.c.b16 %v1159, %v1153
    %v1820 = vpack.c.b16 %v1160, %v1154
    %v1821 = vpack.c.b16 %v1161, %v1155
    %v1822 = vpack.c.b16 %v1162, %v1156
    %v1823 = vpack.c.b16 %v1169, %v1163
    %v1824 = vpack.c.b16 %v1170, %v1164
    %v1825 = vpack.c.b16 %v1171, %v1165
    %v1826 = vpack.c.b16 %v1172, %v1166
    %v1827 = vpack.c.b16 %v1173, %v1167
    %v1828 = vpack.c.b16 %v1174, %v1168
    %v1829 = vpack.c.b16 %v1181, %v1175
    %v1830 = vpack.c.b16 %v1182, %v1176
    %v1831 = vpack.c.b16 %v1183, %v1177
    %v1832 = vpack.c.b16 %v1184, %v1178
    %v1833 = vpack.c.b16 %v1185, %v1179
    %v1834 = vpack.c.b16 %v1186, %v1180
    %v1835 = vpack.c.b16 %v1193, %v1187
    %v1836 = vpack.c.b16 %v1194, %v1188
    %v1837 = vpack.c.b16 %v1195, %v1189
    %v1838 = vpack.c.b16 %v1196, %v1190
    %v1839 = vpack.c.b16 %v1197, %v1191
    %v1840 = vpack.c.b16 %v1198, %v1192
    %v1841 = vpack.c.b16 %v1205, %v1199
    %v1842 = vpack.c.b16 %v1206, %v1200
    %v1843 = vpack.c.b16 %v1207, %v1201
    %v1844 = vpack.c.b16 %v1208, %v1202
    %v1845 = vpack.c.b16 %v1209, %v1203
    %v1846 = vpack.c.b16 %v1210, %v1204
    %v1847 = vpack.c.b16 %v1217, %v1211
    %v1848 = vpack.c.b16 %v1218, %v1212
    %v1849 = vpack.c.b16 %v1219, %v1213
    %v1850 = vpack.c.b16 %v1220, %v1214
    %v1851 = vpack.c.b16 %v1221, %v1215
    %v1852 = vpack.c.b16 %v1222, %v1216
    %v1853 = vpack.c.b16 %v1229, %v1223
    %v1854 = vpack.c.b16 %v1230, %v1224
    %v1855 = vpack.c.b16 %v1231, %v1225
    %v1856 = vpack.c.b16 %v1232, %v1226
    %v1857 = vpack.c.b16 %v1233, %v1227
    %v1858 = vpack.c.b16 %v1234, %v1228
    %v1859 = vpack.c.b16 %v1241, %v1235
    %v1860 = vpack.c.b16 %v1242, %v1236
    %v1861 = vpack.c.b16 %v1243, %v1237
    %v1862 = vpack.c.b16 %v1244, %v1238
    %v1863 = vpack.c.b16 %v1245, %v1239
    %v1864 = vpack.c.b16 %v1246, %v1240
    %v1865 = vpack.c.b16 %v1253, %v1247
    %v1866 = vpack.c.b16 %v1254, %v1248
    %v1867 = vpack.c.b16 %v1255, %v1249
    %v1868 = vpack.c.b16 %v1256, %v1250
    %v1869 = vpack.c.b16 %v1257, %v1251
    %v1870 = vpack.c.b16 %v1258, %v1252
    %v1871 = vpack.c.b16 %v1265, %v1259
    %v1872 = vpack.c.b16 %v1266, %v1260
    %v1873 = vpack.c.b16 %v1267, %v1261
    %v1874 = vpack.c.b16 %v1268, %v1262
    %v1875 = vpack.c.b16 %v1269, %v1263
    %v1876 = vpack.c.b16 %v1270, %v1264
    %v1877 = vpack.c.b16 %v1277, %v1271
    %v1878 = vpack.c.b16 %v1278, %v1272
    %v1879 = vpack.c.b16 %v1279, %v1273
    %v1880 = vpack.c.b16 %v1280, %v1274
    %v1881 = vpack.c.b16 %v1281, %v1275
    %v1882 = vpack.c.b16 %v1282, %v1276
    %v1883 = vpack.c.b16 %v1289, %v1283
    %v1884 = vpack.c.b16 %v1290, %v1284
    %v1885 = vpack.c.b16 %v1291, %v1285
    %v1886 = vpack.c.b16 %v1292, %v1286
    %v1887 = vpack.c.b16 %v1293, %v1287
    %v1888 = vpack.c.b16 %v1294, %v1288
    %v1889 = vpack.c.b16 %v1301, %v1295
    %v1890 = vpack.c.b16 %v1302, %v1296
    %v1891 = vpack.c.b16 %v1303, %v1297
    %v1892 = vpack.c.b16 %v1304, %v1298
    %v1893 = vpack.c.b16 %v1305, %v1299
    %v1894 = vpack.c.b16 %v1306, %v1300
    %v1895 = vpack.c.b16 %v1313, %v1307
    %v1896 = vpack.c.b16 %v1314, %v1308
    %v1897 = vpack.c.b16 %v1315, %v1309
    %v1898 = vpack.c.b16 %v1316, %v1310
    %v1899 = vpack.c.b16 %v1317, %v1311
    %v1900 = vpack.c.b16 %v1318, %v1312
    %v1901 = vpack.c.b16 %v1325, %v1319
    %v1902 = vpack.c.b16 %v1326, %v1320
    %v1903 = vpack.c.b16 %v1327, %v1321
    %v1904 = vpack.c.b16 %v1328, %v1322
    %v1905 = vpack.c.b16 %v1329, %v1323
    %v1906 = vpack.c.b16 %v1330, %v1324
    %v1907 = vpack.c.b16 %v1337, %v1331
    %v1908 = vpack.c.b16 %v1338, %v1332
    %v1909 = vpack.c.b16 %v1339, %v1333
    %v1910 = vpack.c.b16 %v1340, %v1334
    %v1911 = vpack.c.b16 %v1341, %v1335
    %v1912 = vpack.c.b16 %v1342, %v1336
    %v1913 = vpack.c.b16 %v1349, %v1343
    %v1914 = vpack.c.b16 %v1350, %v1344
    %v1915 = vpack.c.b16 %v1351, %v1345
    %v1916 = vpack.c.b16 %v1352, %v1346
    %v1917 = vpack.c.b16 %v1353, %v1347
    %v1918 = vpack.c.b16 %v1354, %v1348
    %v1919 = vpack.c.b16 %v1361, %v1355
    %v1920 = vpack.c.b16 %v1362, %v1356
    %v1921 = vpack.c.b16 %v1363, %v1357
    %v1922 = vpack.c.b16 %v1364, %v1358
    %v1923 = vpack.c.b16 %v1365, %v1359
    %v1924 = vpack.c.b16 %v1366, %v1360
    %v1925 = vpack.c.b16 %v1373, %v1367
    %v1926 = vpack.c.b16 %v1374, %v1368
    %v1927 = vpack.c.b16 %v1375, %v1369
    %v1928 = vpack.c.b16 %v1376, %v1370
    %v1929 = vpack.c.b16 %v1377, %v1371
    %v1930 = vpack.c.b16 %v1378, %v1372
    %v1931 = vpack.c.b16 %v1385, %v1379
    %v1932 = vpack.c.b16 %v1386, %v1380
    %v1933 = vpack.c.b16 %v1387, %v1381
    %v1934 = vpack.c.b16 %v1388, %v1382
    %v1935 = vpack.c.b16 %v1389, %v1383
    %v1936 = vpack.c.b16 %v1390, %v1384
    %v1937 = vpack.c.b16 %v1397, %v1391
    %v1938 = vpack.c.b16 %v1398, %v1392
    %v1939 = vpack.c.b16 %v1399, %v1393
    %v1940 = vpack.c.b16 %v1400, %v1394
    %v1941 = vpack.c.b16 %v1401, %v1395
    %v1942 = vpack.c.b16 %v1402, %v1396
    %v1943 = vpack.c.b16 %v1409, %v1403
    %v1944 = vpack.c.b16 %v1410, %v1404
    %v1945 = vpack.c.b16 %v1411, %v1405
    %v1946 = vpack.c.b16 %v1412, %v1406
    %v1947 = vpack.c.b16 %v1413, %v1407
    %v1948 = vpack.c.b16 %v1414, %v1408
    %v1949 = vpack.c.b16 %v1421, %v1415
    %v1950 = vpack.c.b16 %v1422, %v1416
    %v1951 = vpack.c.b16 %v1423, %v1417
    %v1952 = vpack.c.b16 %v1424, %v1418
    %v1953 = vpack.c.b16 %v1425, %v1419
    %v1954 = vpack.c.b16 %v1426, %v1420
    %v1955 = vpack.c.b16 %v1433, %v1427
    %v1956 = vpack.c.b16 %v1434, %v1428
    %v1957 = vpack.c.b16 %v1435, %v1429
    %v1958 = vpack.c.b16 %v1436, %v1430
    %v1959 = vpack.c.b16 %v1437, %v1431
    %v1960 = vpack.c.b16 %v1438, %v1432
    %v1961 = vpack.c.b16 %v1445, %v1439
    %v1962 = vpack.c.b16 %v1446, %v1440
    %v1963 = vpack.c.b16 %v1447, %v1441
    %v1964 = vpack.c.b16 %v1448, %v1442
    %v1965 = vpack.c.b16 %v1449, %v1443
    %v1966 = vpack.c.b16 %v1450, %v1444
    %v1967 = vpack.c.b16 %v1457, %v1451
    %v1968 = vpack.c.b16 %v1458, %v1452
    %v1969 = vpack.c.b16 %v1459, %v1453
    %v1970 = vpack.c.b16 %v1460, %v1454
    %v1971 = vpack.c.b16 %v1461, %v1455
    %v1972 = vpack.c.b16 %v1462, %v1456
    %v1973 = vpack.c.b16 %v1469, %v1463
    %v1974 = vpack.c.b16 %v1470, %v1464
    %v1975 = vpack.c.b16 %v1471, %v1465
    %v1976 = vpack.c.b16 %v1472, %v1466
    %v1977 = vpack.c.b16 %v1473, %v1467
    %v1978 = vpack.c.b16 %v1474, %v1468
    %v1979 = vpack.c.b16 %v1481, %v1475
    %v1980 = vpack.c.b16 %v1482, %v1476
    %v1981 = vpack.c.b16 %v1483, %v1477
    %v1982 = vpack.c.b16 %v1484, %v1478
    %v1983 = vpack.c.b16 %v1485, %v1479
    %v1984 = vpack.c.b16 %v1486, %v1480
    %v1985 = vpack.c.b16 %v1493, %v1487
    %v1986 = vpack.c.b16 %v1494, %v1488
    %v1987 = vpack.c.b16 %v1495, %v1489
    %v1988 = vpack.c.b16 %v1496, %v1490
    %v1989 = vpack.c.b16 %v1497, %v1491
    %v1990 = vpack.c.b16 %v1498, %v1492
    %v1991 = vpack.c.b16 %v1505, %v1499
    %v1992 = vpack.c.b16 %v1506, %v1500
    %v1993 = vpack.c.b16 %v1507, %v1501
    %v1994 = vpack.c.b16 %v1508, %v1502
    %v1995 = vpack.c.b16 %v1509, %v1503
    %v1996 = vpack.c.b16 %v1510, %v1504
    %v1997 = vpack.c.b16 %v1517, %v1511
    %v1998 = vpack.c.b16 %v1518, %v1512
    %v1999 = vpack.c.b16 %v1519, %v1513
    %v2000 = vpack.c.b16 %v1520, %v1514
    %v2001 = vpack.c.b16 %v1521, %v1515
    %v2002 = vpack.c.b16 %v1522, %v1516
    %v2003 = vpack.c.b16 %v1529, %v1523
    %v2004 = vpack.c.b16 %v1530, %v1524
    %v2005 = vpack.c.b16 %v1531, %v1525
    %v2006 = vpack.c.b16 %v1532, %v1526
    %v2007 = vpack.c.b16 %v1533, %v1527
    %v2008 = vpack.c.b16 %v1534, %v1528
    %v2009 = vpack.c.b16 %v1541, %v1535
    %v2010 = vpack.c.b16 %v1542, %v1536
    %v2011 = vpack.c.b16 %v1543, %v1537
    %v2012 = vpack.c.b16 %v1544, %v1538
    %v2013 = vpack.c.b16 %v1545, %v1539
    %v2014 = vpack.c.b16 %v1546, %v1540
    %v2015 = vpack.c.b16 %v1553, %v1547
    %v2016 = vpack.c.b16 %v1554, %v1548
    %v2017 = vpack.c.b16 %v1555, %v1549
    %v2018 = vpack.c.b16 %v1556, %v1550
    %v2019 = vpack.c.b16 %v1557, %v1551
    %v2020 = vpack.c.b16 %v1558, %v1552
    %v2021 = vpack.c.b16 %v1565, %v1559
    %v2022 = vpack.c.b16 %v1566, %v1560
    %v2023 = vpack.c.b16 %v1567, %v1561
    %v2024 = vpack.c.b16 %v1568, %v1562
    %v2025 = vpack.c.b16 %v1569, %v1563
    %v2026 = vpack.c.b16 %v1570, %v1564
    %v2027 = vpack.c.b16 %v1577, %v1571
    %v2028 = vpack.c.b16 %v1578, %v1572
    %v2029 = vpack.c.b16 %v1579, %v1573
    %v2030 = vpack.c.b16 %v1580, %v1574
    %v2031 = vpack.c.b16 %v1581, %v1575
    %v2032 = vpack.c.b16 %v1582, %v1576
    %v2033 = vpack.c.b16 %v1589, %v1583
    %v2034 = vpack.c.b16 %v1590, %v1584
    %v2035 = vpack.c.b16 %v1591, %v1585
    %v2036 = vpack.c.b16 %v1592, %v1586
    %v2037 = vpack.c.b16 %v1593, %v1587
    %v2038 = vpack.c.b16 %v1594, %v1588
    %v2039 = vpack.c.b16 %v1601, %v1595
    %v2040 = vpack.c.b16 %v1602, %v1596
    %v2041 = vpack.c.b16 %v1603, %v1597
    %v2042 = vpack.c.b16 %v1604, %v1598
    %v2043 = vpack.c.b16 %v1605, %v1599
    %v2044 = vpack.c.b16 %v1606, %v1600
    %v2045 = vpack.c.b16 %v1613, %v1607
    %v2046 = vpack.c.b16 %v1614, %v1608
    %v2047 = vpack.c.b16 %v1615, %v1609
    %v2048 = vpack.c.b16 %v1616, %v1610
    %v2049 = vpack.c.b16 %v1617, %v1611
    %v2050 = vpack.c.b16 %v1618, %v1612
    %v2051 = vpack.c.b16 %v1625, %v1619
    %v2052 = vpack.c.b16 %v1626, %v1620
    %v2053 = vpack.c.b16 %v1627, %v1621
    %v2054 = vpack.c.b16 %v1628, %v1622
    %v2055 = vpack.c.b16 %v1629, %v1623
    %v2056 = vpack.c.b16 %v1630, %v1624
    %v2057 = vpack.c.b16 %v1637, %v1631
    %v2058 = vpack.c.b16 %v1638, %v1632
    %v2059 = vpack.c.b16 %v1639, %v1633
    %v2060 = vpack.c.b16 %v1640, %v1634
    %v2061 = vpack.c.b16 %v1641, %v1635
    %v2062 = vpack.c.b16 %v1642, %v1636
    %v2063 = vpack.c.b16 %v1649, %v1643
    %v2064 = vpack.c.b16 %v1650, %v1644
    %v2065 = vpack.c.b16 %v1651, %v1645
    %v2066 = vpack.c.b16 %v1652, %v1646
    %v2067 = vpack.c.b16 %v1653, %v1647
    %v2068 = vpack.c.b16 %v1654, %v1648
    %v2069 = vpack.c.b16 %v1661, %v1655
    %v2070 = vpack.c.b16 %v1662, %v1656
    %v2071 = vpack.c.b16 %v1663, %v1657
    %v2072 = vpack.c.b16 %v1664, %v1658
    %v2073 = vpack.c.b16 %v1665, %v1659
    %v2074 = vpack.c.b16 %v1666, %v1660
    %v2075 = vpack.c.b16 %v1673, %v1667
    %v2076 = vpack.c.b16 %v1674, %v1668
    %v2077 = vpack.c.b16 %v1675, %v1669
    %v2078 = vpack.c.b16 %v1676, %v1670
    %v2079 = vpack.c.b16 %v1677, %v1671
    %v2080 = vpack.c.b16 %v1678, %v1672
    %v2081 = vpack.c.b16 %v1685, %v1679
    %v2082 = vpack.c.b16 %v1686, %v1680
    %v2083 = vpack.c.b16 %v1687, %v1681
    %v2084 = vpack.c.b16 %v1688, %v1682
    %v2085 = vpack.c.b16 %v1689, %v1683
    %v2086 = vpack.c.b16 %v1690, %v1684
    %v2087 = vpack.c.b16 %v1697, %v1691
    %v2088 = vpack.c.b16 %v1698, %v1692
    %v2089 = vpack.c.b16 %v1699, %v1693
    %v2090 = vpack.c.b16 %v1700, %v1694
    %v2091 = vpack.c.b16 %v1701, %v1695
    %v2092 = vpack.c.b16 %v1702, %v1696
    %v2093 = vpack.c.b16 %v1709, %v1703
    %v2094 = vpack.c.b16 %v1710, %v1704
    %v2095 = vpack.c.b16 %v1711, %v1705
    %v2096 = vpack.c.b16 %v1712, %v1706
    %v2097 = vpack.c.b16 %v1713, %v1707
    %v2098 = vpack.c.b16 %v1714, %v1708
    %2483 = vmatprep.subr.bf16.mxu0 %v1758
    %2484 = vmatpush1.bf16.msra.mxu0 %v1757
    %2485 = vmatprep.subr.bf16.mxu0 %v1752
    %2486 = vmatpush1.bf16.msra.mxu0 %v1751
    %2487 = vmatprep.subr.bf16.mxu0 %v1746
    %2488 = vmatpush1.bf16.msra.mxu0 %v1745
    %2489 = vmatprep.subr.bf16.mxu0 %v1740
    %2490 = vmatpush1.bf16.msra.mxu0 %v1739
    %2491 = vmatprep.subr.bf16.mxu0 %v1734
    %2492 = vmatpush1.bf16.msra.mxu0 %v1733
    %2493 = vmatprep.subr.bf16.mxu0 %v1728
    %2494 = vmatpush1.bf16.msra.mxu0 %v1727
    %2495 = vmatprep.subr.bf16.mxu0 %v1722
    %2496 = vmatpush1.bf16.msra.mxu0 %v1721
    %2497 = vmatprep.subr.bf16.mxu0 %v1716
    %2498 = vmatpush1.bf16.msra.mxu0 %v1715
    %2499 = vmatprep.subr.bf16.mxu0 %v1806
    %2500 = vmatpush2.bf16.msra.mxu0 %v1805
    %2501 = vmatprep.subr.bf16.mxu0 %v1800
    %2502 = vmatpush2.bf16.msra.mxu0 %v1799
    %2503 = vmatprep.subr.bf16.mxu0 %v1794
    %2504 = vmatpush2.bf16.msra.mxu0 %v1793
    %2505 = vmatprep.subr.bf16.mxu0 %v1788
    %2506 = vmatpush2.bf16.msra.mxu0 %v1787
    %2507 = vmatprep.subr.bf16.mxu0 %v1782
    %2508 = vmatpush2.bf16.msra.mxu0 %v1781
    %2509 = vmatprep.subr.bf16.mxu0 %v1776
    %2510 = vmatpush2.bf16.msra.mxu0 %v1775
    %2511 = vmatprep.subr.bf16.mxu0 %v1770
    %2512 = vmatpush2.bf16.msra.mxu0 %v1769
    %2513 = vmatprep.subr.bf16.mxu0 %v1764
    %2514 = vmatpush2.bf16.msra.mxu0 %v1763
    %2515 = vmatprep.mubr.bf16.mxu0 %v548
    %2516 = vmatmul.mubr.bf16.gmra.mxu0 %v547
    %v2517 = vpop.f32.mrf.mxu0
    %v2518 = vadd.f32 %v508, %v2517
    %v2519 = vpop.f32.mrf.mxu0
    %v2520 = vadd.f32 %v512, %v2519
    %v2521 = vpop.f32.mrf.mxu0
    %v2522 = vpop.f32.mrf.mxu0
    %2523 = vdwg.mxu0
    %2524 = vmatprep.subr.bf16.mxu0 %v1854
    %2525 = vmatpush1.bf16.msra.mxu0 %v1853
    %2526 = vmatprep.subr.bf16.mxu0 %v1848
    %2527 = vmatpush1.bf16.msra.mxu0 %v1847
    %2528 = vmatprep.subr.bf16.mxu0 %v1842
    %2529 = vmatpush1.bf16.msra.mxu0 %v1841
    %2530 = vmatprep.subr.bf16.mxu0 %v1836
    %2531 = vmatpush1.bf16.msra.mxu0 %v1835
    %2532 = vmatprep.subr.bf16.mxu0 %v1830
    %2533 = vmatpush1.bf16.msra.mxu0 %v1829
    %2534 = vmatprep.subr.bf16.mxu0 %v1824
    %2535 = vmatpush1.bf16.msra.mxu0 %v1823
    %2536 = vmatprep.subr.bf16.mxu0 %v1818
    %2537 = vmatpush1.bf16.msra.mxu0 %v1817
    %2538 = vmatprep.subr.bf16.mxu0 %v1812
    %2539 = vmatpush1.bf16.msra.mxu0 %v1811
    %2540 = vmatprep.subr.bf16.mxu0 %v1902
    %2541 = vmatpush2.bf16.msra.mxu0 %v1901
    %2542 = vmatprep.subr.bf16.mxu0 %v1896
    %2543 = vmatpush2.bf16.msra.mxu0 %v1895
    %2544 = vmatprep.subr.bf16.mxu0 %v1890
    %2545 = vmatpush2.bf16.msra.mxu0 %v1889
    %2546 = vmatprep.subr.bf16.mxu0 %v1884
    %2547 = vmatpush2.bf16.msra.mxu0 %v1883
    %2548 = vmatprep.subr.bf16.mxu0 %v1878
    %2549 = vmatpush2.bf16.msra.mxu0 %v1877
    %2550 = vmatprep.subr.bf16.mxu0 %v1872
    %2551 = vmatpush2.bf16.msra.mxu0 %v1871
    %2552 = vmatprep.subr.bf16.mxu0 %v1866
    %2553 = vmatpush2.bf16.msra.mxu0 %v1865
    %2554 = vmatprep.subr.bf16.mxu0 %v1860
    %2555 = vmatpush2.bf16.msra.mxu0 %v1859
    %2556 = vmatprep.mubr.bf16.mxu0 %v550
    %2557 = vmatmul.mubr.bf16.gmra.mxu0 %v549
    %v2558 = vpop.f32.mrf.mxu0
    %v2559 = vadd.f32 %v2518, %v2558
    %v2560 = vpop.f32.mrf.mxu0
    %v2561 = vadd.f32 %v2520, %v2560
    %v2562 = vpop.f32.mrf.mxu0
    %v2563 = vpop.f32.mrf.mxu0
    %2564 = vdwg.mxu0
    %2565 = vmatprep.subr.bf16.mxu0 %v1950
    %2566 = vmatpush1.bf16.msra.mxu0 %v1949
    %2567 = vmatprep.subr.bf16.mxu0 %v1944
    %2568 = vmatpush1.bf16.msra.mxu0 %v1943
    %2569 = vmatprep.subr.bf16.mxu0 %v1938
    %2570 = vmatpush1.bf16.msra.mxu0 %v1937
    %2571 = vmatprep.subr.bf16.mxu0 %v1932
    %2572 = vmatpush1.bf16.msra.mxu0 %v1931
    %2573 = vmatprep.subr.bf16.mxu0 %v1926
    %2574 = vmatpush1.bf16.msra.mxu0 %v1925
    %2575 = vmatprep.subr.bf16.mxu0 %v1920
    %2576 = vmatpush1.bf16.msra.mxu0 %v1919
    %2577 = vmatprep.subr.bf16.mxu0 %v1914
    %2578 = vmatpush1.bf16.msra.mxu0 %v1913
    %2579 = vmatprep.subr.bf16.mxu0 %v1908
    %2580 = vmatpush1.bf16.msra.mxu0 %v1907
    %2581 = vmatprep.subr.bf16.mxu0 %v1998
    %2582 = vmatpush2.bf16.msra.mxu0 %v1997
    %2583 = vmatprep.subr.bf16.mxu0 %v1992
    %2584 = vmatpush2.bf16.msra.mxu0 %v1991
    %2585 = vmatprep.subr.bf16.mxu0 %v1986
    %2586 = vmatpush2.bf16.msra.mxu0 %v1985
    %2587 = vmatprep.subr.bf16.mxu0 %v1980
    %2588 = vmatpush2.bf16.msra.mxu0 %v1979
    %2589 = vmatprep.subr.bf16.mxu0 %v1974
    %2590 = vmatpush2.bf16.msra.mxu0 %v1973
    %2591 = vmatprep.subr.bf16.mxu0 %v1968
    %2592 = vmatpush2.bf16.msra.mxu0 %v1967
    %2593 = vmatprep.subr.bf16.mxu0 %v1962
    %2594 = vmatpush2.bf16.msra.mxu0 %v1961
    %2595 = vmatprep.subr.bf16.mxu0 %v1956
    %2596 = vmatpush2.bf16.msra.mxu0 %v1955
    %2597 = vmatprep.mubr.bf16.mxu0 %v552
    %2598 = vmatmul.mubr.bf16.gmra.mxu0 %v551
    %v2599 = vpop.f32.mrf.mxu0
    %v2600 = vadd.f32 %v2559, %v2599
    %v2601 = vpop.f32.mrf.mxu0
    %v2602 = vadd.f32 %v2561, %v2601
    %v2603 = vpop.f32.mrf.mxu0
    %v2604 = vpop.f32.mrf.mxu0
    %2605 = vdwg.mxu0
    %2606 = vmatprep.subr.bf16.mxu0 %v2046
    %2607 = vmatpush1.bf16.msra.mxu0 %v2045
    %2608 = vmatprep.subr.bf16.mxu0 %v2040
    %2609 = vmatpush1.bf16.msra.mxu0 %v2039
    %2610 = vmatprep.subr.bf16.mxu0 %v2034
    %2611 = vmatpush1.bf16.msra.mxu0 %v2033
    %2612 = vmatprep.subr.bf16.mxu0 %v2028
    %2613 = vmatpush1.bf16.msra.mxu0 %v2027
    %2614 = vmatprep.subr.bf16.mxu0 %v2022
    %2615 = vmatpush1.bf16.msra.mxu0 %v2021
    %2616 = vmatprep.subr.bf16.mxu0 %v2016
    %2617 = vmatpush1.bf16.msra.mxu0 %v2015
    %2618 = vmatprep.subr.bf16.mxu0 %v2010
    %2619 = vmatpush1.bf16.msra.mxu0 %v2009
    %2620 = vmatprep.subr.bf16.mxu0 %v2004
    %2621 = vmatpush1.bf16.msra.mxu0 %v2003
    %2622 = vmatprep.subr.bf16.mxu0 %v2094
    %2623 = vmatpush2.bf16.msra.mxu0 %v2093
    %2624 = vmatprep.subr.bf16.mxu0 %v2088
    %2625 = vmatpush2.bf16.msra.mxu0 %v2087
    %2626 = vmatprep.subr.bf16.mxu0 %v2082
    %2627 = vmatpush2.bf16.msra.mxu0 %v2081
    %2628 = vmatprep.subr.bf16.mxu0 %v2076
    %2629 = vmatpush2.bf16.msra.mxu0 %v2075
    %2630 = vmatprep.subr.bf16.mxu0 %v2070
    %2631 = vmatpush2.bf16.msra.mxu0 %v2069
    %2632 = vmatprep.subr.bf16.mxu0 %v2064
    %2633 = vmatpush2.bf16.msra.mxu0 %v2063
    %2634 = vmatprep.subr.bf16.mxu0 %v2058
    %2635 = vmatpush2.bf16.msra.mxu0 %v2057
    %2636 = vmatprep.subr.bf16.mxu0 %v2052
    %2637 = vmatpush2.bf16.msra.mxu0 %v2051
    %2638 = vmatprep.mubr.bf16.mxu0 %v554
    %2639 = vmatmul.mubr.bf16.gmra.mxu0 %v553
    %v2640 = vpop.f32.mrf.mxu0
    %v2641 = vadd.f32 %v2600, %v2640
    %v2642 = vpop.f32.mrf.mxu0
    %v2643 = vadd.f32 %v2602, %v2642
    %v2644 = vpop.f32.mrf.mxu0
    %v2645 = vpop.f32.mrf.mxu0
    %2646 = vdwg.mxu0
    %2647 = vmatprep.subr.bf16.mxu0 %v1760
    %2648 = vmatpush1.bf16.msra.mxu0 %v1759
    %2649 = vmatprep.subr.bf16.mxu0 %v1754
    %2650 = vmatpush1.bf16.msra.mxu0 %v1753
    %2651 = vmatprep.subr.bf16.mxu0 %v1748
    %2652 = vmatpush1.bf16.msra.mxu0 %v1747
    %2653 = vmatprep.subr.bf16.mxu0 %v1742
    %2654 = vmatpush1.bf16.msra.mxu0 %v1741
    %2655 = vmatprep.subr.bf16.mxu0 %v1736
    %2656 = vmatpush1.bf16.msra.mxu0 %v1735
    %2657 = vmatprep.subr.bf16.mxu0 %v1730
    %2658 = vmatpush1.bf16.msra.mxu0 %v1729
    %2659 = vmatprep.subr.bf16.mxu0 %v1724
    %2660 = vmatpush1.bf16.msra.mxu0 %v1723
    %2661 = vmatprep.subr.bf16.mxu0 %v1718
    %2662 = vmatpush1.bf16.msra.mxu0 %v1717
    %2663 = vmatprep.subr.bf16.mxu0 %v1808
    %2664 = vmatpush2.bf16.msra.mxu0 %v1807
    %2665 = vmatprep.subr.bf16.mxu0 %v1802
    %2666 = vmatpush2.bf16.msra.mxu0 %v1801
    %2667 = vmatprep.subr.bf16.mxu0 %v1796
    %2668 = vmatpush2.bf16.msra.mxu0 %v1795
    %2669 = vmatprep.subr.bf16.mxu0 %v1790
    %2670 = vmatpush2.bf16.msra.mxu0 %v1789
    %2671 = vmatprep.subr.bf16.mxu0 %v1784
    %2672 = vmatpush2.bf16.msra.mxu0 %v1783
    %2673 = vmatprep.subr.bf16.mxu0 %v1778
    %2674 = vmatpush2.bf16.msra.mxu0 %v1777
    %2675 = vmatprep.subr.bf16.mxu0 %v1772
    %2676 = vmatpush2.bf16.msra.mxu0 %v1771
    %2677 = vmatprep.subr.bf16.mxu0 %v1766
    %2678 = vmatpush2.bf16.msra.mxu0 %v1765
    %2679 = vmatprep.mubr.bf16.mxu0 %v548
    %2680 = vmatmul.mubr.bf16.gmra.mxu0 %v547
    %v2681 = vpop.f32.mrf.mxu0
    %v2682 = vadd.f32 %v516, %v2681
    %v2683 = vpop.f32.mrf.mxu0
    %v2684 = vadd.f32 %v520, %v2683
    %v2685 = vpop.f32.mrf.mxu0
    %v2686 = vpop.f32.mrf.mxu0
    %2687 = vdwg.mxu0
    %2688 = vmatprep.subr.bf16.mxu0 %v1856
    %2689 = vmatpush1.bf16.msra.mxu0 %v1855
    %2690 = vmatprep.subr.bf16.mxu0 %v1850
    %2691 = vmatpush1.bf16.msra.mxu0 %v1849
    %2692 = vmatprep.subr.bf16.mxu0 %v1844
    %2693 = vmatpush1.bf16.msra.mxu0 %v1843
    %2694 = vmatprep.subr.bf16.mxu0 %v1838
    %2695 = vmatpush1.bf16.msra.mxu0 %v1837
    %2696 = vmatprep.subr.bf16.mxu0 %v1832
    %2697 = vmatpush1.bf16.msra.mxu0 %v1831
    %2698 = vmatprep.subr.bf16.mxu0 %v1826
    %2699 = vmatpush1.bf16.msra.mxu0 %v1825
    %2700 = vmatprep.subr.bf16.mxu0 %v1820
    %2701 = vmatpush1.bf16.msra.mxu0 %v1819
    %2702 = vmatprep.subr.bf16.mxu0 %v1814
    %2703 = vmatpush1.bf16.msra.mxu0 %v1813
    %2704 = vmatprep.subr.bf16.mxu0 %v1904
    %2705 = vmatpush2.bf16.msra.mxu0 %v1903
    %2706 = vmatprep.subr.bf16.mxu0 %v1898
    %2707 = vmatpush2.bf16.msra.mxu0 %v1897
    %2708 = vmatprep.subr.bf16.mxu0 %v1892
    %2709 = vmatpush2.bf16.msra.mxu0 %v1891
    %2710 = vmatprep.subr.bf16.mxu0 %v1886
    %2711 = vmatpush2.bf16.msra.mxu0 %v1885
    %2712 = vmatprep.subr.bf16.mxu0 %v1880
    %2713 = vmatpush2.bf16.msra.mxu0 %v1879
    %2714 = vmatprep.subr.bf16.mxu0 %v1874
    %2715 = vmatpush2.bf16.msra.mxu0 %v1873
    %2716 = vmatprep.subr.bf16.mxu0 %v1868
    %2717 = vmatpush2.bf16.msra.mxu0 %v1867
    %2718 = vmatprep.subr.bf16.mxu0 %v1862
    %2719 = vmatpush2.bf16.msra.mxu0 %v1861
    %2720 = vmatprep.mubr.bf16.mxu0 %v550
    %2721 = vmatmul.mubr.bf16.gmra.mxu0 %v549
    %v2722 = vpop.f32.mrf.mxu0
    %v2723 = vadd.f32 %v2682, %v2722
    %v2724 = vpop.f32.mrf.mxu0
    %v2725 = vadd.f32 %v2684, %v2724
    %v2726 = vpop.f32.mrf.mxu0
    %v2727 = vpop.f32.mrf.mxu0
    %2728 = vdwg.mxu0
    %2729 = vmatprep.subr.bf16.mxu0 %v1952
    %2730 = vmatpush1.bf16.msra.mxu0 %v1951
    %2731 = vmatprep.subr.bf16.mxu0 %v1946
    %2732 = vmatpush1.bf16.msra.mxu0 %v1945
    %2733 = vmatprep.subr.bf16.mxu0 %v1940
    %2734 = vmatpush1.bf16.msra.mxu0 %v1939
    %2735 = vmatprep.subr.bf16.mxu0 %v1934
    %2736 = vmatpush1.bf16.msra.mxu0 %v1933
    %2737 = vmatprep.subr.bf16.mxu0 %v1928
    %2738 = vmatpush1.bf16.msra.mxu0 %v1927
    %2739 = vmatprep.subr.bf16.mxu0 %v1922
    %2740 = vmatpush1.bf16.msra.mxu0 %v1921
    %2741 = vmatprep.subr.bf16.mxu0 %v1916
    %2742 = vmatpush1.bf16.msra.mxu0 %v1915
    %2743 = vmatprep.subr.bf16.mxu0 %v1910
    %2744 = vmatpush1.bf16.msra.mxu0 %v1909
    %2745 = vmatprep.subr.bf16.mxu0 %v2000
    %2746 = vmatpush2.bf16.msra.mxu0 %v1999
    %2747 = vmatprep.subr.bf16.mxu0 %v1994
    %2748 = vmatpush2.bf16.msra.mxu0 %v1993
    %2749 = vmatprep.subr.bf16.mxu0 %v1988
    %2750 = vmatpush2.bf16.msra.mxu0 %v1987
    %2751 = vmatprep.subr.bf16.mxu0 %v1982
    %2752 = vmatpush2.bf16.msra.mxu0 %v1981
    %2753 = vmatprep.subr.bf16.mxu0 %v1976
    %2754 = vmatpush2.bf16.msra.mxu0 %v1975
    %2755 = vmatprep.subr.bf16.mxu0 %v1970
    %2756 = vmatpush2.bf16.msra.mxu0 %v1969
    %2757 = vmatprep.subr.bf16.mxu0 %v1964
    %2758 = vmatpush2.bf16.msra.mxu0 %v1963
    %2759 = vmatprep.subr.bf16.mxu0 %v1958
    %2760 = vmatpush2.bf16.msra.mxu0 %v1957
    %2761 = vmatprep.mubr.bf16.mxu0 %v552
    %2762 = vmatmul.mubr.bf16.gmra.mxu0 %v551
    %v2763 = vpop.f32.mrf.mxu0
    %v2764 = vadd.f32 %v2723, %v2763
    %v2765 = vpop.f32.mrf.mxu0
    %v2766 = vadd.f32 %v2725, %v2765
    %v2767 = vpop.f32.mrf.mxu0
    %v2768 = vpop.f32.mrf.mxu0
    %2769 = vdwg.mxu0
    %2770 = vmatprep.subr.bf16.mxu0 %v2048
    %2771 = vmatpush1.bf16.msra.mxu0 %v2047
    %2772 = vmatprep.subr.bf16.mxu0 %v2042
    %2773 = vmatpush1.bf16.msra.mxu0 %v2041
    %2774 = vmatprep.subr.bf16.mxu0 %v2036
    %2775 = vmatpush1.bf16.msra.mxu0 %v2035
    %2776 = vmatprep.subr.bf16.mxu0 %v2030
    %2777 = vmatpush1.bf16.msra.mxu0 %v2029
    %2778 = vmatprep.subr.bf16.mxu0 %v2024
    %2779 = vmatpush1.bf16.msra.mxu0 %v2023
    %2780 = vmatprep.subr.bf16.mxu0 %v2018
    %2781 = vmatpush1.bf16.msra.mxu0 %v2017
    %2782 = vmatprep.subr.bf16.mxu0 %v2012
    %2783 = vmatpush1.bf16.msra.mxu0 %v2011
    %2784 = vmatprep.subr.bf16.mxu0 %v2006
    %2785 = vmatpush1.bf16.msra.mxu0 %v2005
    %2786 = vmatprep.subr.bf16.mxu0 %v2096
    %2787 = vmatpush2.bf16.msra.mxu0 %v2095
    %2788 = vmatprep.subr.bf16.mxu0 %v2090
    %2789 = vmatpush2.bf16.msra.mxu0 %v2089
    %2790 = vmatprep.subr.bf16.mxu0 %v2084
    %2791 = vmatpush2.bf16.msra.mxu0 %v2083
    %2792 = vmatprep.subr.bf16.mxu0 %v2078
    %2793 = vmatpush2.bf16.msra.mxu0 %v2077
    %2794 = vmatprep.subr.bf16.mxu0 %v2072
    %2795 = vmatpush2.bf16.msra.mxu0 %v2071
    %2796 = vmatprep.subr.bf16.mxu0 %v2066
    %2797 = vmatpush2.bf16.msra.mxu0 %v2065
    %2798 = vmatprep.subr.bf16.mxu0 %v2060
    %2799 = vmatpush2.bf16.msra.mxu0 %v2059
    %2800 = vmatprep.subr.bf16.mxu0 %v2054
    %2801 = vmatpush2.bf16.msra.mxu0 %v2053
    %2802 = vmatprep.mubr.bf16.mxu0 %v554
    %2803 = vmatmul.mubr.bf16.gmra.mxu0 %v553
    %v2804 = vpop.f32.mrf.mxu0
    %v2805 = vadd.f32 %v2764, %v2804
    %v2806 = vpop.f32.mrf.mxu0
    %v2807 = vadd.f32 %v2766, %v2806
    %v2808 = vpop.f32.mrf.mxu0
    %v2809 = vpop.f32.mrf.mxu0
    %2810 = vdwg.mxu0
    %2811 = vmatprep.subr.bf16.mxu0 %v1762
    %2812 = vmatpush1.bf16.msra.mxu0 %v1761
    %2813 = vmatprep.subr.bf16.mxu0 %v1756
    %2814 = vmatpush1.bf16.msra.mxu0 %v1755
    %2815 = vmatprep.subr.bf16.mxu0 %v1750
    %2816 = vmatpush1.bf16.msra.mxu0 %v1749
    %2817 = vmatprep.subr.bf16.mxu0 %v1744
    %2818 = vmatpush1.bf16.msra.mxu0 %v1743
    %2819 = vmatprep.subr.bf16.mxu0 %v1738
    %2820 = vmatpush1.bf16.msra.mxu0 %v1737
    %2821 = vmatprep.subr.bf16.mxu0 %v1732
    %2822 = vmatpush1.bf16.msra.mxu0 %v1731
    %2823 = vmatprep.subr.bf16.mxu0 %v1726
    %2824 = vmatpush1.bf16.msra.mxu0 %v1725
    %2825 = vmatprep.subr.bf16.mxu0 %v1720
    %2826 = vmatpush1.bf16.msra.mxu0 %v1719
    %2827 = vmatprep.subr.bf16.mxu0 %v1810
    %2828 = vmatpush2.bf16.msra.mxu0 %v1809
    %2829 = vmatprep.subr.bf16.mxu0 %v1804
    %2830 = vmatpush2.bf16.msra.mxu0 %v1803
    %2831 = vmatprep.subr.bf16.mxu0 %v1798
    %2832 = vmatpush2.bf16.msra.mxu0 %v1797
    %2833 = vmatprep.subr.bf16.mxu0 %v1792
    %2834 = vmatpush2.bf16.msra.mxu0 %v1791
    %2835 = vmatprep.subr.bf16.mxu0 %v1786
    %2836 = vmatpush2.bf16.msra.mxu0 %v1785
    %2837 = vmatprep.subr.bf16.mxu0 %v1780
    %2838 = vmatpush2.bf16.msra.mxu0 %v1779
    %2839 = vmatprep.subr.bf16.mxu0 %v1774
    %2840 = vmatpush2.bf16.msra.mxu0 %v1773
    %2841 = vmatprep.subr.bf16.mxu0 %v1768
    %2842 = vmatpush2.bf16.msra.mxu0 %v1767
    %2843 = vmatprep.mubr.bf16.mxu0 %v548
    %2844 = vmatmul.mubr.bf16.gmra.mxu0 %v547
    %v2845 = vpop.f32.mrf.mxu0
    %v2846 = vadd.f32 %v524, %v2845
    %v2847 = vpop.f32.mrf.mxu0
    %v2848 = vadd.f32 %v528, %v2847
    %v2849 = vpop.f32.mrf.mxu0
    %v2850 = vpop.f32.mrf.mxu0
    %2851 = vdwg.mxu0
    %2852 = vmatprep.subr.bf16.mxu0 %v1858
    %2853 = vmatpush1.bf16.msra.mxu0 %v1857
    %2854 = vmatprep.subr.bf16.mxu0 %v1852
    %2855 = vmatpush1.bf16.msra.mxu0 %v1851
    %2856 = vmatprep.subr.bf16.mxu0 %v1846
    %2857 = vmatpush1.bf16.msra.mxu0 %v1845
    %2858 = vmatprep.subr.bf16.mxu0 %v1840
    %2859 = vmatpush1.bf16.msra.mxu0 %v1839
    %2860 = vmatprep.subr.bf16.mxu0 %v1834
    %2861 = vmatpush1.bf16.msra.mxu0 %v1833
    %2862 = vmatprep.subr.bf16.mxu0 %v1828
    %2863 = vmatpush1.bf16.msra.mxu0 %v1827
    %2864 = vmatprep.subr.bf16.mxu0 %v1822
    %2865 = vmatpush1.bf16.msra.mxu0 %v1821
    %2866 = vmatprep.subr.bf16.mxu0 %v1816
    %2867 = vmatpush1.bf16.msra.mxu0 %v1815
    %2868 = vmatprep.subr.bf16.mxu0 %v1906
    %2869 = vmatpush2.bf16.msra.mxu0 %v1905
    %2870 = vmatprep.subr.bf16.mxu0 %v1900
    %2871 = vmatpush2.bf16.msra.mxu0 %v1899
    %2872 = vmatprep.subr.bf16.mxu0 %v1894
    %2873 = vmatpush2.bf16.msra.mxu0 %v1893
    %2874 = vmatprep.subr.bf16.mxu0 %v1888
    %2875 = vmatpush2.bf16.msra.mxu0 %v1887
    %2876 = vmatprep.subr.bf16.mxu0 %v1882
    %2877 = vmatpush2.bf16.msra.mxu0 %v1881
    %2878 = vmatprep.subr.bf16.mxu0 %v1876
    %2879 = vmatpush2.bf16.msra.mxu0 %v1875
    %2880 = vmatprep.subr.bf16.mxu0 %v1870
    %2881 = vmatpush2.bf16.msra.mxu0 %v1869
    %2882 = vmatprep.subr.bf16.mxu0 %v1864
    %2883 = vmatpush2.bf16.msra.mxu0 %v1863
    %2884 = vmatprep.mubr.bf16.mxu0 %v550
    %2885 = vmatmul.mubr.bf16.gmra.mxu0 %v549
    %v2886 = vpop.f32.mrf.mxu0
    %v2887 = vadd.f32 %v2846, %v2886
    %v2888 = vpop.f32.mrf.mxu0
    %v2889 = vadd.f32 %v2848, %v2888
    %v2890 = vpop.f32.mrf.mxu0
    %v2891 = vpop.f32.mrf.mxu0
    %2892 = vdwg.mxu0
    %2893 = vmatprep.subr.bf16.mxu0 %v1954
    %2894 = vmatpush1.bf16.msra.mxu0 %v1953
    %2895 = vmatprep.subr.bf16.mxu0 %v1948
    %2896 = vmatpush1.bf16.msra.mxu0 %v1947
    %2897 = vmatprep.subr.bf16.mxu0 %v1942
    %2898 = vmatpush1.bf16.msra.mxu0 %v1941
    %2899 = vmatprep.subr.bf16.mxu0 %v1936
    %2900 = vmatpush1.bf16.msra.mxu0 %v1935
    %2901 = vmatprep.subr.bf16.mxu0 %v1930
    %2902 = vmatpush1.bf16.msra.mxu0 %v1929
    %2903 = vmatprep.subr.bf16.mxu0 %v1924
    %2904 = vmatpush1.bf16.msra.mxu0 %v1923
    %2905 = vmatprep.subr.bf16.mxu0 %v1918
    %2906 = vmatpush1.bf16.msra.mxu0 %v1917
    %2907 = vmatprep.subr.bf16.mxu0 %v1912
    %2908 = vmatpush1.bf16.msra.mxu0 %v1911
    %2909 = vmatprep.subr.bf16.mxu0 %v2002
    %2910 = vmatpush2.bf16.msra.mxu0 %v2001
    %2911 = vmatprep.subr.bf16.mxu0 %v1996
    %2912 = vmatpush2.bf16.msra.mxu0 %v1995
    %2913 = vmatprep.subr.bf16.mxu0 %v1990
    %2914 = vmatpush2.bf16.msra.mxu0 %v1989
    %2915 = vmatprep.subr.bf16.mxu0 %v1984
    %2916 = vmatpush2.bf16.msra.mxu0 %v1983
    %2917 = vmatprep.subr.bf16.mxu0 %v1978
    %2918 = vmatpush2.bf16.msra.mxu0 %v1977
    %2919 = vmatprep.subr.bf16.mxu0 %v1972
    %2920 = vmatpush2.bf16.msra.mxu0 %v1971
    %2921 = vmatprep.subr.bf16.mxu0 %v1966
    %2922 = vmatpush2.bf16.msra.mxu0 %v1965
    %2923 = vmatprep.subr.bf16.mxu0 %v1960
    %2924 = vmatpush2.bf16.msra.mxu0 %v1959
    %2925 = vmatprep.mubr.bf16.mxu0 %v552
    %2926 = vmatmul.mubr.bf16.gmra.mxu0 %v551
    %v2927 = vpop.f32.mrf.mxu0
    %v2928 = vadd.f32 %v2887, %v2927
    %v2929 = vpop.f32.mrf.mxu0
    %v2930 = vadd.f32 %v2889, %v2929
    %v2931 = vpop.f32.mrf.mxu0
    %v2932 = vpop.f32.mrf.mxu0
    %2933 = vdwg.mxu0
    %2934 = vmatprep.subr.bf16.mxu0 %v2050
    %2935 = vmatpush1.bf16.msra.mxu0 %v2049
    %2936 = vmatprep.subr.bf16.mxu0 %v2044
    %2937 = vmatpush1.bf16.msra.mxu0 %v2043
    %2938 = vmatprep.subr.bf16.mxu0 %v2038
    %2939 = vmatpush1.bf16.msra.mxu0 %v2037
    %2940 = vmatprep.subr.bf16.mxu0 %v2032
    %2941 = vmatpush1.bf16.msra.mxu0 %v2031
    %2942 = vmatprep.subr.bf16.mxu0 %v2026
    %2943 = vmatpush1.bf16.msra.mxu0 %v2025
    %2944 = vmatprep.subr.bf16.mxu0 %v2020
    %2945 = vmatpush1.bf16.msra.mxu0 %v2019
    %2946 = vmatprep.subr.bf16.mxu0 %v2014
    %2947 = vmatpush1.bf16.msra.mxu0 %v2013
    %2948 = vmatprep.subr.bf16.mxu0 %v2008
    %2949 = vmatpush1.bf16.msra.mxu0 %v2007
    %2950 = vmatprep.subr.bf16.mxu0 %v2098
    %2951 = vmatpush2.bf16.msra.mxu0 %v2097
    %2952 = vmatprep.subr.bf16.mxu0 %v2092
    %2953 = vmatpush2.bf16.msra.mxu0 %v2091
    %2954 = vmatprep.subr.bf16.mxu0 %v2086
    %2955 = vmatpush2.bf16.msra.mxu0 %v2085
    %2956 = vmatprep.subr.bf16.mxu0 %v2080
    %2957 = vmatpush2.bf16.msra.mxu0 %v2079
    %2958 = vmatprep.subr.bf16.mxu0 %v2074
    %2959 = vmatpush2.bf16.msra.mxu0 %v2073
    %2960 = vmatprep.subr.bf16.mxu0 %v2068
    %2961 = vmatpush2.bf16.msra.mxu0 %v2067
    %2962 = vmatprep.subr.bf16.mxu0 %v2062
    %2963 = vmatpush2.bf16.msra.mxu0 %v2061
    %2964 = vmatprep.subr.bf16.mxu0 %v2056
    %2965 = vmatpush2.bf16.msra.mxu0 %v2055
    %2966 = vmatprep.mubr.bf16.mxu0 %v554
    %2967 = vmatmul.mubr.bf16.gmra.mxu0 %v553
    %v2968 = vpop.f32.mrf.mxu0
    %v2969 = vadd.f32 %v2928, %v2968
    %v2970 = vpop.f32.mrf.mxu0
    %v2971 = vadd.f32 %v2930, %v2970
    %v2972 = vpop.f32.mrf.mxu0
    %v2973 = vpop.f32.mrf.mxu0
    %2974 = vdwg.mxu0
    %v2975 = vpack.c.bf16 %v2641, %v2641
    %v2976 = vpack.c.bf16 %v2643, %v2643
    %v2977 = vpack.c.bf16 %v2805, %v2805
    %v2978 = vpack.c.bf16 %v2807, %v2807
    %v2979 = vpack.c.bf16 %v2969, %v2969
    %v2980 = vpack.c.bf16 %v2971, %v2971
    %v2981 = vld [vmem:[#allocation8] sm:$0xff]
    %v2982 = vld [vmem:[#allocation8 + $0x8] sm:$0xff]
    %v2983 = vld [vmem:[#allocation8 + $0x10] sm:$0xff]
    %v2984 = vld [vmem:[#allocation8 + $0x18] sm:$0xff]
    %v2985 = vld [vmem:[#allocation8 + $0x20] sm:$0xff]
    %v2986 = vld [vmem:[#allocation8 + $0x28] sm:$0xff]
    %v2987 = vld [vmem:[#allocation8 + $0x30] sm:$0xff]
    %v2988 = vld [vmem:[#allocation8 + $0x38] sm:$0xff]
    %v2989 = vld [vmem:[#allocation8 + $0x40] sm:$0xff]
    %v2990 = vld [vmem:[#allocation8 + $0x48] sm:$0xff]
    %v2991 = vld [vmem:[#allocation8 + $0x50] sm:$0xff]
    %v2992 = vld [vmem:[#allocation8 + $0x58] sm:$0xff]
    %v2993 = vld [vmem:[#allocation8 + $0x60] sm:$0xff]
    %v2994 = vld [vmem:[#allocation8 + $0x68] sm:$0xff]
    %v2995 = vld [vmem:[#allocation8 + $0x70] sm:$0xff]
    %v2996 = vld [vmem:[#allocation8 + $0x78] sm:$0xff]
    %v2997 = vld [vmem:[#allocation8 + $0x80] sm:$0xff]
    %v2998 = vld [vmem:[#allocation8 + $0x88] sm:$0xff]
    %v2999 = vld [vmem:[#allocation8 + $0x90] sm:$0xff]
    %v3000 = vld [vmem:[#allocation8 + $0x98] sm:$0xff]
    %v3001 = vld [vmem:[#allocation8 + $0xa0] sm:$0xff]
    %v3002 = vld [vmem:[#allocation8 + $0xa8] sm:$0xff]
    %v3003 = vld [vmem:[#allocation8 + $0xb0] sm:$0xff]
    %v3004 = vld [vmem:[#allocation8 + $0xb8] sm:$0xff]
    %v3005 = vld [vmem:[#allocation8 + $0xc0] sm:$0xff]
    %v3006 = vld [vmem:[#allocation8 + $0xc8] sm:$0xff]
    %v3007 = vld [vmem:[#allocation8 + $0xd0] sm:$0xff]
    %v3008 = vld [vmem:[#allocation8 + $0xd8] sm:$0xff]
    %v3009 = vld [vmem:[#allocation8 + $0xe0] sm:$0xff]
    %v3010 = vld [vmem:[#allocation8 + $0xe8] sm:$0xff]
    %v3011 = vld [vmem:[#allocation8 + $0xf0] sm:$0xff]
    %v3012 = vld [vmem:[#allocation8 + $0xf8] sm:$0xff]
    %v3013 = vld [vmem:[#allocation8 + $0x100] sm:$0xff]
    %v3014 = vld [vmem:[#allocation8 + $0x108] sm:$0xff]
    %v3015 = vld [vmem:[#allocation8 + $0x110] sm:$0xff]
    %v3016 = vld [vmem:[#allocation8 + $0x118] sm:$0xff]
    %v3017 = vld [vmem:[#allocation8 + $0x120] sm:$0xff]
    %v3018 = vld [vmem:[#allocation8 + $0x128] sm:$0xff]
    %v3019 = vld [vmem:[#allocation8 + $0x130] sm:$0xff]
    %v3020 = vld [vmem:[#allocation8 + $0x138] sm:$0xff]
    %v3021 = vld [vmem:[#allocation8 + $0x140] sm:$0xff]
    %v3022 = vld [vmem:[#allocation8 + $0x148] sm:$0xff]
    %v3023 = vld [vmem:[#allocation8 + $0x150] sm:$0xff]
    %v3024 = vld [vmem:[#allocation8 + $0x158] sm:$0xff]
    %v3025 = vld [vmem:[#allocation8 + $0x160] sm:$0xff]
    %v3026 = vld [vmem:[#allocation8 + $0x168] sm:$0xff]
    %v3027 = vld [vmem:[#allocation8 + $0x170] sm:$0xff]
    %v3028 = vld [vmem:[#allocation8 + $0x178] sm:$0xff]
    %v3029 = vld [vmem:[#allocation8 + $0x180] sm:$0xff]
    %v3030 = vld [vmem:[#allocation8 + $0x188] sm:$0xff]
    %v3031 = vld [vmem:[#allocation8 + $0x190] sm:$0xff]
    %v3032 = vld [vmem:[#allocation8 + $0x198] sm:$0xff]
    %v3033 = vld [vmem:[#allocation8 + $0x1a0] sm:$0xff]
    %v3034 = vld [vmem:[#allocation8 + $0x1a8] sm:$0xff]
    %v3035 = vld [vmem:[#allocation8 + $0x1b0] sm:$0xff]
    %v3036 = vld [vmem:[#allocation8 + $0x1b8] sm:$0xff]
    %v3037 = vld [vmem:[#allocation8 + $0x1c0] sm:$0xff]
    %v3038 = vld [vmem:[#allocation8 + $0x1c8] sm:$0xff]
    %v3039 = vld [vmem:[#allocation8 + $0x1d0] sm:$0xff]
    %v3040 = vld [vmem:[#allocation8 + $0x1d8] sm:$0xff]
    %v3041 = vld [vmem:[#allocation8 + $0x1e0] sm:$0xff]
    %v3042 = vld [vmem:[#allocation8 + $0x1e8] sm:$0xff]
    %v3043 = vld [vmem:[#allocation8 + $0x1f0] sm:$0xff]
    %v3044 = vld [vmem:[#allocation8 + $0x1f8] sm:$0xff]
    %v3045 = vld [vmem:[#allocation8 + $0x200] sm:$0xff]
    %v3046 = vld [vmem:[#allocation8 + $0x208] sm:$0xff]
    %v3047 = vld [vmem:[#allocation8 + $0x210] sm:$0xff]
    %v3048 = vld [vmem:[#allocation8 + $0x218] sm:$0xff]
    %v3049 = vld [vmem:[#allocation8 + $0x220] sm:$0xff]
    %v3050 = vld [vmem:[#allocation8 + $0x228] sm:$0xff]
    %v3051 = vld [vmem:[#allocation8 + $0x230] sm:$0xff]
    %v3052 = vld [vmem:[#allocation8 + $0x238] sm:$0xff]
    %v3053 = vld [vmem:[#allocation8 + $0x240] sm:$0xff]
    %v3054 = vld [vmem:[#allocation8 + $0x248] sm:$0xff]
    %v3055 = vld [vmem:[#allocation8 + $0x250] sm:$0xff]
    %v3056 = vld [vmem:[#allocation8 + $0x258] sm:$0xff]
    %v3057 = vld [vmem:[#allocation8 + $0x260] sm:$0xff]
    %v3058 = vld [vmem:[#allocation8 + $0x268] sm:$0xff]
    %v3059 = vld [vmem:[#allocation8 + $0x270] sm:$0xff]
    %v3060 = vld [vmem:[#allocation8 + $0x278] sm:$0xff]
    %v3061 = vld [vmem:[#allocation8 + $0x280] sm:$0xff]
    %v3062 = vld [vmem:[#allocation8 + $0x288] sm:$0xff]
    %v3063 = vld [vmem:[#allocation8 + $0x290] sm:$0xff]
    %v3064 = vld [vmem:[#allocation8 + $0x298] sm:$0xff]
    %v3065 = vld [vmem:[#allocation8 + $0x2a0] sm:$0xff]
    %v3066 = vld [vmem:[#allocation8 + $0x2a8] sm:$0xff]
    %v3067 = vld [vmem:[#allocation8 + $0x2b0] sm:$0xff]
    %v3068 = vld [vmem:[#allocation8 + $0x2b8] sm:$0xff]
    %v3069 = vld [vmem:[#allocation8 + $0x2c0] sm:$0xff]
    %v3070 = vld [vmem:[#allocation8 + $0x2c8] sm:$0xff]
    %v3071 = vld [vmem:[#allocation8 + $0x2d0] sm:$0xff]
    %v3072 = vld [vmem:[#allocation8 + $0x2d8] sm:$0xff]
    %v3073 = vld [vmem:[#allocation8 + $0x2e0] sm:$0xff]
    %v3074 = vld [vmem:[#allocation8 + $0x2e8] sm:$0xff]
    %v3075 = vld [vmem:[#allocation8 + $0x2f0] sm:$0xff]
    %v3076 = vld [vmem:[#allocation8 + $0x2f8] sm:$0xff]
    %v3077 = vld [vmem:[#allocation8 + $0x300] sm:$0xff]
    %v3078 = vld [vmem:[#allocation8 + $0x308] sm:$0xff]
    %v3079 = vld [vmem:[#allocation8 + $0x310] sm:$0xff]
    %v3080 = vld [vmem:[#allocation8 + $0x318] sm:$0xff]
    %v3081 = vld [vmem:[#allocation8 + $0x320] sm:$0xff]
    %v3082 = vld [vmem:[#allocation8 + $0x328] sm:$0xff]
    %v3083 = vld [vmem:[#allocation8 + $0x330] sm:$0xff]
    %v3084 = vld [vmem:[#allocation8 + $0x338] sm:$0xff]
    %v3085 = vld [vmem:[#allocation8 + $0x340] sm:$0xff]
    %v3086 = vld [vmem:[#allocation8 + $0x348] sm:$0xff]
    %v3087 = vld [vmem:[#allocation8 + $0x350] sm:$0xff]
    %v3088 = vld [vmem:[#allocation8 + $0x358] sm:$0xff]
    %v3089 = vld [vmem:[#allocation8 + $0x360] sm:$0xff]
    %v3090 = vld [vmem:[#allocation8 + $0x368] sm:$0xff]
    %v3091 = vld [vmem:[#allocation8 + $0x370] sm:$0xff]
    %v3092 = vld [vmem:[#allocation8 + $0x378] sm:$0xff]
    %v3093 = vld [vmem:[#allocation8 + $0x380] sm:$0xff]
    %v3094 = vld [vmem:[#allocation8 + $0x388] sm:$0xff]
    %v3095 = vld [vmem:[#allocation8 + $0x390] sm:$0xff]
    %v3096 = vld [vmem:[#allocation8 + $0x398] sm:$0xff]
    %v3097 = vld [vmem:[#allocation8 + $0x3a0] sm:$0xff]
    %v3098 = vld [vmem:[#allocation8 + $0x3a8] sm:$0xff]
    %v3099 = vld [vmem:[#allocation8 + $0x3b0] sm:$0xff]
    %v3100 = vld [vmem:[#allocation8 + $0x3b8] sm:$0xff]
    %v3101 = vld [vmem:[#allocation8 + $0x3c0] sm:$0xff]
    %v3102 = vld [vmem:[#allocation8 + $0x3c8] sm:$0xff]
    %v3103 = vld [vmem:[#allocation8 + $0x3d0] sm:$0xff]
    %v3104 = vld [vmem:[#allocation8 + $0x3d8] sm:$0xff]
    %v3105 = vld [vmem:[#allocation8 + $0x3e0] sm:$0xff]
    %v3106 = vld [vmem:[#allocation8 + $0x3e8] sm:$0xff]
    %v3107 = vld [vmem:[#allocation8 + $0x3f0] sm:$0xff]
    %v3108 = vld [vmem:[#allocation8 + $0x3f8] sm:$0xff]
    %v3109 = vld [vmem:[#allocation8 + $0x400] sm:$0xff]
    %v3110 = vld [vmem:[#allocation8 + $0x408] sm:$0xff]
    %v3111 = vld [vmem:[#allocation8 + $0x410] sm:$0xff]
    %v3112 = vld [vmem:[#allocation8 + $0x418] sm:$0xff]
    %v3113 = vld [vmem:[#allocation8 + $0x420] sm:$0xff]
    %v3114 = vld [vmem:[#allocation8 + $0x428] sm:$0xff]
    %v3115 = vld [vmem:[#allocation8 + $0x430] sm:$0xff]
    %v3116 = vld [vmem:[#allocation8 + $0x438] sm:$0xff]
    %v3117 = vld [vmem:[#allocation8 + $0x440] sm:$0xff]
    %v3118 = vld [vmem:[#allocation8 + $0x448] sm:$0xff]
    %v3119 = vld [vmem:[#allocation8 + $0x450] sm:$0xff]
    %v3120 = vld [vmem:[#allocation8 + $0x458] sm:$0xff]
    %v3121 = vld [vmem:[#allocation8 + $0x460] sm:$0xff]
    %v3122 = vld [vmem:[#allocation8 + $0x468] sm:$0xff]
    %v3123 = vld [vmem:[#allocation8 + $0x470] sm:$0xff]
    %v3124 = vld [vmem:[#allocation8 + $0x478] sm:$0xff]
    %v3125 = vld [vmem:[#allocation8 + $0x480] sm:$0xff]
    %v3126 = vld [vmem:[#allocation8 + $0x488] sm:$0xff]
    %v3127 = vld [vmem:[#allocation8 + $0x490] sm:$0xff]
    %v3128 = vld [vmem:[#allocation8 + $0x498] sm:$0xff]
    %v3129 = vld [vmem:[#allocation8 + $0x4a0] sm:$0xff]
    %v3130 = vld [vmem:[#allocation8 + $0x4a8] sm:$0xff]
    %v3131 = vld [vmem:[#allocation8 + $0x4b0] sm:$0xff]
    %v3132 = vld [vmem:[#allocation8 + $0x4b8] sm:$0xff]
    %v3133 = vld [vmem:[#allocation8 + $0x4c0] sm:$0xff]
    %v3134 = vld [vmem:[#allocation8 + $0x4c8] sm:$0xff]
    %v3135 = vld [vmem:[#allocation8 + $0x4d0] sm:$0xff]
    %v3136 = vld [vmem:[#allocation8 + $0x4d8] sm:$0xff]
    %v3137 = vld [vmem:[#allocation8 + $0x4e0] sm:$0xff]
    %v3138 = vld [vmem:[#allocation8 + $0x4e8] sm:$0xff]
    %v3139 = vld [vmem:[#allocation8 + $0x4f0] sm:$0xff]
    %v3140 = vld [vmem:[#allocation8 + $0x4f8] sm:$0xff]
    %v3141 = vld [vmem:[#allocation8 + $0x500] sm:$0xff]
    %v3142 = vld [vmem:[#allocation8 + $0x508] sm:$0xff]
    %v3143 = vld [vmem:[#allocation8 + $0x510] sm:$0xff]
    %v3144 = vld [vmem:[#allocation8 + $0x518] sm:$0xff]
    %v3145 = vld [vmem:[#allocation8 + $0x520] sm:$0xff]
    %v3146 = vld [vmem:[#allocation8 + $0x528] sm:$0xff]
    %v3147 = vld [vmem:[#allocation8 + $0x530] sm:$0xff]
    %v3148 = vld [vmem:[#allocation8 + $0x538] sm:$0xff]
    %v3149 = vld [vmem:[#allocation8 + $0x540] sm:$0xff]
    %v3150 = vld [vmem:[#allocation8 + $0x548] sm:$0xff]
    %v3151 = vld [vmem:[#allocation8 + $0x550] sm:$0xff]
    %v3152 = vld [vmem:[#allocation8 + $0x558] sm:$0xff]
    %v3153 = vld [vmem:[#allocation8 + $0x560] sm:$0xff]
    %v3154 = vld [vmem:[#allocation8 + $0x568] sm:$0xff]
    %v3155 = vld [vmem:[#allocation8 + $0x570] sm:$0xff]
    %v3156 = vld [vmem:[#allocation8 + $0x578] sm:$0xff]
    %v3157 = vld [vmem:[#allocation8 + $0x580] sm:$0xff]
    %v3158 = vld [vmem:[#allocation8 + $0x588] sm:$0xff]
    %v3159 = vld [vmem:[#allocation8 + $0x590] sm:$0xff]
    %v3160 = vld [vmem:[#allocation8 + $0x598] sm:$0xff]
    %v3161 = vld [vmem:[#allocation8 + $0x5a0] sm:$0xff]
    %v3162 = vld [vmem:[#allocation8 + $0x5a8] sm:$0xff]
    %v3163 = vld [vmem:[#allocation8 + $0x5b0] sm:$0xff]
    %v3164 = vld [vmem:[#allocation8 + $0x5b8] sm:$0xff]
    %v3165 = vld [vmem:[#allocation8 + $0x5c0] sm:$0xff]
    %v3166 = vld [vmem:[#allocation8 + $0x5c8] sm:$0xff]
    %v3167 = vld [vmem:[#allocation8 + $0x5d0] sm:$0xff]
    %v3168 = vld [vmem:[#allocation8 + $0x5d8] sm:$0xff]
    %v3169 = vld [vmem:[#allocation8 + $0x5e0] sm:$0xff]
    %v3170 = vld [vmem:[#allocation8 + $0x5e8] sm:$0xff]
    %v3171 = vld [vmem:[#allocation8 + $0x5f0] sm:$0xff]
    %v3172 = vld [vmem:[#allocation8 + $0x5f8] sm:$0xff]
    %v3173 = vld [vmem:[#allocation8 + $0x600] sm:$0xff]
    %v3174 = vld [vmem:[#allocation8 + $0x608] sm:$0xff]
    %v3175 = vld [vmem:[#allocation8 + $0x610] sm:$0xff]
    %v3176 = vld [vmem:[#allocation8 + $0x618] sm:$0xff]
    %v3177 = vld [vmem:[#allocation8 + $0x620] sm:$0xff]
    %v3178 = vld [vmem:[#allocation8 + $0x628] sm:$0xff]
    %v3179 = vld [vmem:[#allocation8 + $0x630] sm:$0xff]
    %v3180 = vld [vmem:[#allocation8 + $0x638] sm:$0xff]
    %v3181 = vld [vmem:[#allocation8 + $0x640] sm:$0xff]
    %v3182 = vld [vmem:[#allocation8 + $0x648] sm:$0xff]
    %v3183 = vld [vmem:[#allocation8 + $0x650] sm:$0xff]
    %v3184 = vld [vmem:[#allocation8 + $0x658] sm:$0xff]
    %v3185 = vld [vmem:[#allocation8 + $0x660] sm:$0xff]
    %v3186 = vld [vmem:[#allocation8 + $0x668] sm:$0xff]
    %v3187 = vld [vmem:[#allocation8 + $0x670] sm:$0xff]
    %v3188 = vld [vmem:[#allocation8 + $0x678] sm:$0xff]
    %v3189 = vld [vmem:[#allocation8 + $0x680] sm:$0xff]
    %v3190 = vld [vmem:[#allocation8 + $0x688] sm:$0xff]
    %v3191 = vld [vmem:[#allocation8 + $0x690] sm:$0xff]
    %v3192 = vld [vmem:[#allocation8 + $0x698] sm:$0xff]
    %v3193 = vld [vmem:[#allocation8 + $0x6a0] sm:$0xff]
    %v3194 = vld [vmem:[#allocation8 + $0x6a8] sm:$0xff]
    %v3195 = vld [vmem:[#allocation8 + $0x6b0] sm:$0xff]
    %v3196 = vld [vmem:[#allocation8 + $0x6b8] sm:$0xff]
    %v3197 = vld [vmem:[#allocation8 + $0x6c0] sm:$0xff]
    %v3198 = vld [vmem:[#allocation8 + $0x6c8] sm:$0xff]
    %v3199 = vld [vmem:[#allocation8 + $0x6d0] sm:$0xff]
    %v3200 = vld [vmem:[#allocation8 + $0x6d8] sm:$0xff]
    %v3201 = vld [vmem:[#allocation8 + $0x6e0] sm:$0xff]
    %v3202 = vld [vmem:[#allocation8 + $0x6e8] sm:$0xff]
    %v3203 = vld [vmem:[#allocation8 + $0x6f0] sm:$0xff]
    %v3204 = vld [vmem:[#allocation8 + $0x6f8] sm:$0xff]
    %v3205 = vld [vmem:[#allocation8 + $0x700] sm:$0xff]
    %v3206 = vld [vmem:[#allocation8 + $0x708] sm:$0xff]
    %v3207 = vld [vmem:[#allocation8 + $0x710] sm:$0xff]
    %v3208 = vld [vmem:[#allocation8 + $0x718] sm:$0xff]
    %v3209 = vld [vmem:[#allocation8 + $0x720] sm:$0xff]
    %v3210 = vld [vmem:[#allocation8 + $0x728] sm:$0xff]
    %v3211 = vld [vmem:[#allocation8 + $0x730] sm:$0xff]
    %v3212 = vld [vmem:[#allocation8 + $0x738] sm:$0xff]
    %v3213 = vld [vmem:[#allocation8 + $0x740] sm:$0xff]
    %v3214 = vld [vmem:[#allocation8 + $0x748] sm:$0xff]
    %v3215 = vld [vmem:[#allocation8 + $0x750] sm:$0xff]
    %v3216 = vld [vmem:[#allocation8 + $0x758] sm:$0xff]
    %v3217 = vld [vmem:[#allocation8 + $0x760] sm:$0xff]
    %v3218 = vld [vmem:[#allocation8 + $0x768] sm:$0xff]
    %v3219 = vld [vmem:[#allocation8 + $0x770] sm:$0xff]
    %v3220 = vld [vmem:[#allocation8 + $0x778] sm:$0xff]
    %v3221 = vld [vmem:[#allocation8 + $0x780] sm:$0xff]
    %v3222 = vld [vmem:[#allocation8 + $0x788] sm:$0xff]
    %v3223 = vld [vmem:[#allocation8 + $0x790] sm:$0xff]
    %v3224 = vld [vmem:[#allocation8 + $0x798] sm:$0xff]
    %v3225 = vld [vmem:[#allocation8 + $0x7a0] sm:$0xff]
    %v3226 = vld [vmem:[#allocation8 + $0x7a8] sm:$0xff]
    %v3227 = vld [vmem:[#allocation8 + $0x7b0] sm:$0xff]
    %v3228 = vld [vmem:[#allocation8 + $0x7b8] sm:$0xff]
    %v3229 = vld [vmem:[#allocation8 + $0x7c0] sm:$0xff]
    %v3230 = vld [vmem:[#allocation8 + $0x7c8] sm:$0xff]
    %v3231 = vld [vmem:[#allocation8 + $0x7d0] sm:$0xff]
    %v3232 = vld [vmem:[#allocation8 + $0x7d8] sm:$0xff]
    %v3233 = vld [vmem:[#allocation8 + $0x7e0] sm:$0xff]
    %v3234 = vld [vmem:[#allocation8 + $0x7e8] sm:$0xff]
    %v3235 = vld [vmem:[#allocation8 + $0x7f0] sm:$0xff]
    %v3236 = vld [vmem:[#allocation8 + $0x7f8] sm:$0xff]
    %v3237 = vld [vmem:[#allocation8 + $0x800] sm:$0xff]
    %v3238 = vld [vmem:[#allocation8 + $0x808] sm:$0xff]
    %v3239 = vld [vmem:[#allocation8 + $0x810] sm:$0xff]
    %v3240 = vld [vmem:[#allocation8 + $0x818] sm:$0xff]
    %v3241 = vld [vmem:[#allocation8 + $0x820] sm:$0xff]
    %v3242 = vld [vmem:[#allocation8 + $0x828] sm:$0xff]
    %v3243 = vld [vmem:[#allocation8 + $0x830] sm:$0xff]
    %v3244 = vld [vmem:[#allocation8 + $0x838] sm:$0xff]
    %v3245 = vld [vmem:[#allocation8 + $0x840] sm:$0xff]
    %v3246 = vld [vmem:[#allocation8 + $0x848] sm:$0xff]
    %v3247 = vld [vmem:[#allocation8 + $0x850] sm:$0xff]
    %v3248 = vld [vmem:[#allocation8 + $0x858] sm:$0xff]
    %v3249 = vld [vmem:[#allocation8 + $0x860] sm:$0xff]
    %v3250 = vld [vmem:[#allocation8 + $0x868] sm:$0xff]
    %v3251 = vld [vmem:[#allocation8 + $0x870] sm:$0xff]
    %v3252 = vld [vmem:[#allocation8 + $0x878] sm:$0xff]
    %v3253 = vld [vmem:[#allocation8 + $0x880] sm:$0xff]
    %v3254 = vld [vmem:[#allocation8 + $0x888] sm:$0xff]
    %v3255 = vld [vmem:[#allocation8 + $0x890] sm:$0xff]
    %v3256 = vld [vmem:[#allocation8 + $0x898] sm:$0xff]
    %v3257 = vld [vmem:[#allocation8 + $0x8a0] sm:$0xff]
    %v3258 = vld [vmem:[#allocation8 + $0x8a8] sm:$0xff]
    %v3259 = vld [vmem:[#allocation8 + $0x8b0] sm:$0xff]
    %v3260 = vld [vmem:[#allocation8 + $0x8b8] sm:$0xff]
    %v3261 = vld [vmem:[#allocation8 + $0x8c0] sm:$0xff]
    %v3262 = vld [vmem:[#allocation8 + $0x8c8] sm:$0xff]
    %v3263 = vld [vmem:[#allocation8 + $0x8d0] sm:$0xff]
    %v3264 = vld [vmem:[#allocation8 + $0x8d8] sm:$0xff]
    %v3265 = vld [vmem:[#allocation8 + $0x8e0] sm:$0xff]
    %v3266 = vld [vmem:[#allocation8 + $0x8e8] sm:$0xff]
    %v3267 = vld [vmem:[#allocation8 + $0x8f0] sm:$0xff]
    %v3268 = vld [vmem:[#allocation8 + $0x8f8] sm:$0xff]
    %v3269 = vld [vmem:[#allocation8 + $0x900] sm:$0xff]
    %v3270 = vld [vmem:[#allocation8 + $0x908] sm:$0xff]
    %v3271 = vld [vmem:[#allocation8 + $0x910] sm:$0xff]
    %v3272 = vld [vmem:[#allocation8 + $0x918] sm:$0xff]
    %v3273 = vld [vmem:[#allocation8 + $0x920] sm:$0xff]
    %v3274 = vld [vmem:[#allocation8 + $0x928] sm:$0xff]
    %v3275 = vld [vmem:[#allocation8 + $0x930] sm:$0xff]
    %v3276 = vld [vmem:[#allocation8 + $0x938] sm:$0xff]
    %v3277 = vld [vmem:[#allocation8 + $0x940] sm:$0xff]
    %v3278 = vld [vmem:[#allocation8 + $0x948] sm:$0xff]
    %v3279 = vld [vmem:[#allocation8 + $0x950] sm:$0xff]
    %v3280 = vld [vmem:[#allocation8 + $0x958] sm:$0xff]
    %v3281 = vld [vmem:[#allocation8 + $0x960] sm:$0xff]
    %v3282 = vld [vmem:[#allocation8 + $0x968] sm:$0xff]
    %v3283 = vld [vmem:[#allocation8 + $0x970] sm:$0xff]
    %v3284 = vld [vmem:[#allocation8 + $0x978] sm:$0xff]
    %v3285 = vld [vmem:[#allocation8 + $0x980] sm:$0xff]
    %v3286 = vld [vmem:[#allocation8 + $0x988] sm:$0xff]
    %v3287 = vld [vmem:[#allocation8 + $0x990] sm:$0xff]
    %v3288 = vld [vmem:[#allocation8 + $0x998] sm:$0xff]
    %v3289 = vld [vmem:[#allocation8 + $0x9a0] sm:$0xff]
    %v3290 = vld [vmem:[#allocation8 + $0x9a8] sm:$0xff]
    %v3291 = vld [vmem:[#allocation8 + $0x9b0] sm:$0xff]
    %v3292 = vld [vmem:[#allocation8 + $0x9b8] sm:$0xff]
    %v3293 = vld [vmem:[#allocation8 + $0x9c0] sm:$0xff]
    %v3294 = vld [vmem:[#allocation8 + $0x9c8] sm:$0xff]
    %v3295 = vld [vmem:[#allocation8 + $0x9d0] sm:$0xff]
    %v3296 = vld [vmem:[#allocation8 + $0x9d8] sm:$0xff]
    %v3297 = vld [vmem:[#allocation8 + $0x9e0] sm:$0xff]
    %v3298 = vld [vmem:[#allocation8 + $0x9e8] sm:$0xff]
    %v3299 = vld [vmem:[#allocation8 + $0x9f0] sm:$0xff]
    %v3300 = vld [vmem:[#allocation8 + $0x9f8] sm:$0xff]
    %v3301 = vld [vmem:[#allocation8 + $0xa00] sm:$0xff]
    %v3302 = vld [vmem:[#allocation8 + $0xa08] sm:$0xff]
    %v3303 = vld [vmem:[#allocation8 + $0xa10] sm:$0xff]
    %v3304 = vld [vmem:[#allocation8 + $0xa18] sm:$0xff]
    %v3305 = vld [vmem:[#allocation8 + $0xa20] sm:$0xff]
    %v3306 = vld [vmem:[#allocation8 + $0xa28] sm:$0xff]
    %v3307 = vld [vmem:[#allocation8 + $0xa30] sm:$0xff]
    %v3308 = vld [vmem:[#allocation8 + $0xa38] sm:$0xff]
    %v3309 = vld [vmem:[#allocation8 + $0xa40] sm:$0xff]
    %v3310 = vld [vmem:[#allocation8 + $0xa48] sm:$0xff]
    %v3311 = vld [vmem:[#allocation8 + $0xa50] sm:$0xff]
    %v3312 = vld [vmem:[#allocation8 + $0xa58] sm:$0xff]
    %v3313 = vld [vmem:[#allocation8 + $0xa60] sm:$0xff]
    %v3314 = vld [vmem:[#allocation8 + $0xa68] sm:$0xff]
    %v3315 = vld [vmem:[#allocation8 + $0xa70] sm:$0xff]
    %v3316 = vld [vmem:[#allocation8 + $0xa78] sm:$0xff]
    %v3317 = vld [vmem:[#allocation8 + $0xa80] sm:$0xff]
    %v3318 = vld [vmem:[#allocation8 + $0xa88] sm:$0xff]
    %v3319 = vld [vmem:[#allocation8 + $0xa90] sm:$0xff]
    %v3320 = vld [vmem:[#allocation8 + $0xa98] sm:$0xff]
    %v3321 = vld [vmem:[#allocation8 + $0xaa0] sm:$0xff]
    %v3322 = vld [vmem:[#allocation8 + $0xaa8] sm:$0xff]
    %v3323 = vld [vmem:[#allocation8 + $0xab0] sm:$0xff]
    %v3324 = vld [vmem:[#allocation8 + $0xab8] sm:$0xff]
    %v3325 = vld [vmem:[#allocation8 + $0xac0] sm:$0xff]
    %v3326 = vld [vmem:[#allocation8 + $0xac8] sm:$0xff]
    %v3327 = vld [vmem:[#allocation8 + $0xad0] sm:$0xff]
    %v3328 = vld [vmem:[#allocation8 + $0xad8] sm:$0xff]
    %v3329 = vld [vmem:[#allocation8 + $0xae0] sm:$0xff]
    %v3330 = vld [vmem:[#allocation8 + $0xae8] sm:$0xff]
    %v3331 = vld [vmem:[#allocation8 + $0xaf0] sm:$0xff]
    %v3332 = vld [vmem:[#allocation8 + $0xaf8] sm:$0xff]
    %v3333 = vld [vmem:[#allocation8 + $0xb00] sm:$0xff]
    %v3334 = vld [vmem:[#allocation8 + $0xb08] sm:$0xff]
    %v3335 = vld [vmem:[#allocation8 + $0xb10] sm:$0xff]
    %v3336 = vld [vmem:[#allocation8 + $0xb18] sm:$0xff]
    %v3337 = vld [vmem:[#allocation8 + $0xb20] sm:$0xff]
    %v3338 = vld [vmem:[#allocation8 + $0xb28] sm:$0xff]
    %v3339 = vld [vmem:[#allocation8 + $0xb30] sm:$0xff]
    %v3340 = vld [vmem:[#allocation8 + $0xb38] sm:$0xff]
    %v3341 = vld [vmem:[#allocation8 + $0xb40] sm:$0xff]
    %v3342 = vld [vmem:[#allocation8 + $0xb48] sm:$0xff]
    %v3343 = vld [vmem:[#allocation8 + $0xb50] sm:$0xff]
    %v3344 = vld [vmem:[#allocation8 + $0xb58] sm:$0xff]
    %v3345 = vld [vmem:[#allocation8 + $0xb60] sm:$0xff]
    %v3346 = vld [vmem:[#allocation8 + $0xb68] sm:$0xff]
    %v3347 = vld [vmem:[#allocation8 + $0xb70] sm:$0xff]
    %v3348 = vld [vmem:[#allocation8 + $0xb78] sm:$0xff]
    %v3349 = vld [vmem:[#allocation8 + $0xb80] sm:$0xff]
    %v3350 = vld [vmem:[#allocation8 + $0xb88] sm:$0xff]
    %v3351 = vld [vmem:[#allocation8 + $0xb90] sm:$0xff]
    %v3352 = vld [vmem:[#allocation8 + $0xb98] sm:$0xff]
    %v3353 = vld [vmem:[#allocation8 + $0xba0] sm:$0xff]
    %v3354 = vld [vmem:[#allocation8 + $0xba8] sm:$0xff]
    %v3355 = vld [vmem:[#allocation8 + $0xbb0] sm:$0xff]
    %v3356 = vld [vmem:[#allocation8 + $0xbb8] sm:$0xff]
    %v3357 = vld [vmem:[#allocation8 + $0xbc0] sm:$0xff]
    %v3358 = vld [vmem:[#allocation8 + $0xbc8] sm:$0xff]
    %v3359 = vld [vmem:[#allocation8 + $0xbd0] sm:$0xff]
    %v3360 = vld [vmem:[#allocation8 + $0xbd8] sm:$0xff]
    %v3361 = vld [vmem:[#allocation8 + $0xbe0] sm:$0xff]
    %v3362 = vld [vmem:[#allocation8 + $0xbe8] sm:$0xff]
    %v3363 = vld [vmem:[#allocation8 + $0xbf0] sm:$0xff]
    %v3364 = vld [vmem:[#allocation8 + $0xbf8] sm:$0xff]
    %v3365 = vld [vmem:[#allocation10] sm:$0xff]
    %v3367 = vlaneseq
    %v3368 = vshrl.u32 %v3367, 7
    %v3369 = vsub.s32 0, %v3368
    %v3370 = vrot.slane %v3365, %v3369
    %v3371 = vlaneseq
    %v3372 = vshrl.u32 %v3371, 7
    %v3373 = vsub.s32 1, %v3372
    %v3374 = vrot.slane %v3365, %v3373
    %v3375 = vlaneseq
    %v3376 = vshrl.u32 %v3375, 7
    %v3377 = vsub.s32 2, %v3376
    %v3378 = vrot.slane %v3365, %v3377
    %v3379 = vlaneseq
    %v3380 = vshrl.u32 %v3379, 7
    %v3381 = vsub.s32 3, %v3380
    %v3382 = vrot.slane %v3365, %v3381
    %v3383 = vlaneseq
    %v3384 = vshrl.u32 %v3383, 7
    %v3385 = vsub.s32 4, %v3384
    %v3386 = vrot.slane %v3365, %v3385
    %v3387 = vlaneseq
    %v3388 = vshrl.u32 %v3387, 7
    %v3389 = vsub.s32 5, %v3388
    %v3390 = vrot.slane %v3365, %v3389
    %v3391 = vlaneseq
    %v3392 = vshrl.u32 %v3391, 7
    %v3393 = vsub.s32 6, %v3392
    %v3394 = vrot.slane %v3365, %v3393
    %v3395 = vlaneseq
    %v3396 = vshrl.u32 %v3395, 7
    %v3397 = vsub.s32 7, %v3396
    %v3398 = vrot.slane %v3365, %v3397
    %v3791 = vunpack.c.l.b16 %v2981
    %v3792 = vunpack.c.h.b16 %v2981
    %v3793 = vunpack.c.l.b16 %v2982
    %v3794 = vunpack.c.h.b16 %v2982
    %v3795 = vunpack.c.l.b16 %v2983
    %v3796 = vunpack.c.h.b16 %v2983
    %v3797 = vunpack.c.l.b16 %v2984
    %v3798 = vunpack.c.h.b16 %v2984
    %v3799 = vunpack.c.l.b16 %v2985
    %v3800 = vunpack.c.h.b16 %v2985
    %v3801 = vunpack.c.l.b16 %v2986
    %v3802 = vunpack.c.h.b16 %v2986
    %v3803 = vunpack.c.l.b16 %v2987
    %v3804 = vunpack.c.h.b16 %v2987
    %v3805 = vunpack.c.l.b16 %v2988
    %v3806 = vunpack.c.h.b16 %v2988
    %v3807 = vunpack.c.l.b16 %v2989
    %v3808 = vunpack.c.h.b16 %v2989
    %v3809 = vunpack.c.l.b16 %v2990
    %v3810 = vunpack.c.h.b16 %v2990
    %v3811 = vunpack.c.l.b16 %v2991
    %v3812 = vunpack.c.h.b16 %v2991
    %v3813 = vunpack.c.l.b16 %v2992
    %v3814 = vunpack.c.h.b16 %v2992
    %v3815 = vunpack.c.l.b16 %v2993
    %v3816 = vunpack.c.h.b16 %v2993
    %v3817 = vunpack.c.l.b16 %v2994
    %v3818 = vunpack.c.h.b16 %v2994
    %v3819 = vunpack.c.l.b16 %v2995
    %v3820 = vunpack.c.h.b16 %v2995
    %v3821 = vunpack.c.l.b16 %v2996
    %v3822 = vunpack.c.h.b16 %v2996
    %v3823 = vunpack.c.l.b16 %v2997
    %v3824 = vunpack.c.h.b16 %v2997
    %v3825 = vunpack.c.l.b16 %v2998
    %v3826 = vunpack.c.h.b16 %v2998
    %v3827 = vunpack.c.l.b16 %v2999
    %v3828 = vunpack.c.h.b16 %v2999
    %v3829 = vunpack.c.l.b16 %v3000
    %v3830 = vunpack.c.h.b16 %v3000
    %v3831 = vunpack.c.l.b16 %v3001
    %v3832 = vunpack.c.h.b16 %v3001
    %v3833 = vunpack.c.l.b16 %v3002
    %v3834 = vunpack.c.h.b16 %v3002
    %v3835 = vunpack.c.l.b16 %v3003
    %v3836 = vunpack.c.h.b16 %v3003
    %v3837 = vunpack.c.l.b16 %v3004
    %v3838 = vunpack.c.h.b16 %v3004
    %v3839 = vunpack.c.l.b16 %v3005
    %v3840 = vunpack.c.h.b16 %v3005
    %v3841 = vunpack.c.l.b16 %v3006
    %v3842 = vunpack.c.h.b16 %v3006
    %v3843 = vunpack.c.l.b16 %v3007
    %v3844 = vunpack.c.h.b16 %v3007
    %v3845 = vunpack.c.l.b16 %v3008
    %v3846 = vunpack.c.h.b16 %v3008
    %v3847 = vunpack.c.l.b16 %v3009
    %v3848 = vunpack.c.h.b16 %v3009
    %v3849 = vunpack.c.l.b16 %v3010
    %v3850 = vunpack.c.h.b16 %v3010
    %v3851 = vunpack.c.l.b16 %v3011
    %v3852 = vunpack.c.h.b16 %v3011
    %v3853 = vunpack.c.l.b16 %v3012
    %v3854 = vunpack.c.h.b16 %v3012
    %v3855 = vunpack.c.l.b16 %v3013
    %v3856 = vunpack.c.h.b16 %v3013
    %v3857 = vunpack.c.l.b16 %v3014
    %v3858 = vunpack.c.h.b16 %v3014
    %v3859 = vunpack.c.l.b16 %v3015
    %v3860 = vunpack.c.h.b16 %v3015
    %v3861 = vunpack.c.l.b16 %v3016
    %v3862 = vunpack.c.h.b16 %v3016
    %v3863 = vunpack.c.l.b16 %v3017
    %v3864 = vunpack.c.h.b16 %v3017
    %v3865 = vunpack.c.l.b16 %v3018
    %v3866 = vunpack.c.h.b16 %v3018
    %v3867 = vunpack.c.l.b16 %v3019
    %v3868 = vunpack.c.h.b16 %v3019
    %v3869 = vunpack.c.l.b16 %v3020
    %v3870 = vunpack.c.h.b16 %v3020
    %v3871 = vunpack.c.l.b16 %v3021
    %v3872 = vunpack.c.h.b16 %v3021
    %v3873 = vunpack.c.l.b16 %v3022
    %v3874 = vunpack.c.h.b16 %v3022
    %v3875 = vunpack.c.l.b16 %v3023
    %v3876 = vunpack.c.h.b16 %v3023
    %v3877 = vunpack.c.l.b16 %v3024
    %v3878 = vunpack.c.h.b16 %v3024
    %v3879 = vunpack.c.l.b16 %v3025
    %v3880 = vunpack.c.h.b16 %v3025
    %v3881 = vunpack.c.l.b16 %v3026
    %v3882 = vunpack.c.h.b16 %v3026
    %v3883 = vunpack.c.l.b16 %v3027
    %v3884 = vunpack.c.h.b16 %v3027
    %v3885 = vunpack.c.l.b16 %v3028
    %v3886 = vunpack.c.h.b16 %v3028
    %v3887 = vunpack.c.l.b16 %v3029
    %v3888 = vunpack.c.h.b16 %v3029
    %v3889 = vunpack.c.l.b16 %v3030
    %v3890 = vunpack.c.h.b16 %v3030
    %v3891 = vunpack.c.l.b16 %v3031
    %v3892 = vunpack.c.h.b16 %v3031
    %v3893 = vunpack.c.l.b16 %v3032
    %v3894 = vunpack.c.h.b16 %v3032
    %v3895 = vunpack.c.l.b16 %v3033
    %v3896 = vunpack.c.h.b16 %v3033
    %v3897 = vunpack.c.l.b16 %v3034
    %v3898 = vunpack.c.h.b16 %v3034
    %v3899 = vunpack.c.l.b16 %v3035
    %v3900 = vunpack.c.h.b16 %v3035
    %v3901 = vunpack.c.l.b16 %v3036
    %v3902 = vunpack.c.h.b16 %v3036
    %v3903 = vunpack.c.l.b16 %v3037
    %v3904 = vunpack.c.h.b16 %v3037
    %v3905 = vunpack.c.l.b16 %v3038
    %v3906 = vunpack.c.h.b16 %v3038
    %v3907 = vunpack.c.l.b16 %v3039
    %v3908 = vunpack.c.h.b16 %v3039
    %v3909 = vunpack.c.l.b16 %v3040
    %v3910 = vunpack.c.h.b16 %v3040
    %v3911 = vunpack.c.l.b16 %v3041
    %v3912 = vunpack.c.h.b16 %v3041
    %v3913 = vunpack.c.l.b16 %v3042
    %v3914 = vunpack.c.h.b16 %v3042
    %v3915 = vunpack.c.l.b16 %v3043
    %v3916 = vunpack.c.h.b16 %v3043
    %v3917 = vunpack.c.l.b16 %v3044
    %v3918 = vunpack.c.h.b16 %v3044
    %v3919 = vunpack.c.l.b16 %v3045
    %v3920 = vunpack.c.h.b16 %v3045
    %v3921 = vunpack.c.l.b16 %v3046
    %v3922 = vunpack.c.h.b16 %v3046
    %v3923 = vunpack.c.l.b16 %v3047
    %v3924 = vunpack.c.h.b16 %v3047
    %v3925 = vunpack.c.l.b16 %v3048
    %v3926 = vunpack.c.h.b16 %v3048
    %v3927 = vunpack.c.l.b16 %v3049
    %v3928 = vunpack.c.h.b16 %v3049
    %v3929 = vunpack.c.l.b16 %v3050
    %v3930 = vunpack.c.h.b16 %v3050
    %v3931 = vunpack.c.l.b16 %v3051
    %v3932 = vunpack.c.h.b16 %v3051
    %v3933 = vunpack.c.l.b16 %v3052
    %v3934 = vunpack.c.h.b16 %v3052
    %v3935 = vunpack.c.l.b16 %v3053
    %v3936 = vunpack.c.h.b16 %v3053
    %v3937 = vunpack.c.l.b16 %v3054
    %v3938 = vunpack.c.h.b16 %v3054
    %v3939 = vunpack.c.l.b16 %v3055
    %v3940 = vunpack.c.h.b16 %v3055
    %v3941 = vunpack.c.l.b16 %v3056
    %v3942 = vunpack.c.h.b16 %v3056
    %v3943 = vunpack.c.l.b16 %v3057
    %v3944 = vunpack.c.h.b16 %v3057
    %v3945 = vunpack.c.l.b16 %v3058
    %v3946 = vunpack.c.h.b16 %v3058
    %v3947 = vunpack.c.l.b16 %v3059
    %v3948 = vunpack.c.h.b16 %v3059
    %v3949 = vunpack.c.l.b16 %v3060
    %v3950 = vunpack.c.h.b16 %v3060
    %v3951 = vunpack.c.l.b16 %v3061
    %v3952 = vunpack.c.h.b16 %v3061
    %v3953 = vunpack.c.l.b16 %v3062
    %v3954 = vunpack.c.h.b16 %v3062
    %v3955 = vunpack.c.l.b16 %v3063
    %v3956 = vunpack.c.h.b16 %v3063
    %v3957 = vunpack.c.l.b16 %v3064
    %v3958 = vunpack.c.h.b16 %v3064
    %v3959 = vunpack.c.l.b16 %v3065
    %v3960 = vunpack.c.h.b16 %v3065
    %v3961 = vunpack.c.l.b16 %v3066
    %v3962 = vunpack.c.h.b16 %v3066
    %v3963 = vunpack.c.l.b16 %v3067
    %v3964 = vunpack.c.h.b16 %v3067
    %v3965 = vunpack.c.l.b16 %v3068
    %v3966 = vunpack.c.h.b16 %v3068
    %v3967 = vunpack.c.l.b16 %v3069
    %v3968 = vunpack.c.h.b16 %v3069
    %v3969 = vunpack.c.l.b16 %v3070
    %v3970 = vunpack.c.h.b16 %v3070
    %v3971 = vunpack.c.l.b16 %v3071
    %v3972 = vunpack.c.h.b16 %v3071
    %v3973 = vunpack.c.l.b16 %v3072
    %v3974 = vunpack.c.h.b16 %v3072
    %v3975 = vunpack.c.l.b16 %v3073
    %v3976 = vunpack.c.h.b16 %v3073
    %v3977 = vunpack.c.l.b16 %v3074
    %v3978 = vunpack.c.h.b16 %v3074
    %v3979 = vunpack.c.l.b16 %v3075
    %v3980 = vunpack.c.h.b16 %v3075
    %v3981 = vunpack.c.l.b16 %v3076
    %v3982 = vunpack.c.h.b16 %v3076
    %v3983 = vunpack.c.l.b16 %v3077
    %v3984 = vunpack.c.h.b16 %v3077
    %v3985 = vunpack.c.l.b16 %v3078
    %v3986 = vunpack.c.h.b16 %v3078
    %v3987 = vunpack.c.l.b16 %v3079
    %v3988 = vunpack.c.h.b16 %v3079
    %v3989 = vunpack.c.l.b16 %v3080
    %v3990 = vunpack.c.h.b16 %v3080
    %v3991 = vunpack.c.l.b16 %v3081
    %v3992 = vunpack.c.h.b16 %v3081
    %v3993 = vunpack.c.l.b16 %v3082
    %v3994 = vunpack.c.h.b16 %v3082
    %v3995 = vunpack.c.l.b16 %v3083
    %v3996 = vunpack.c.h.b16 %v3083
    %v3997 = vunpack.c.l.b16 %v3084
    %v3998 = vunpack.c.h.b16 %v3084
    %v3999 = vunpack.c.l.b16 %v3085
    %v4000 = vunpack.c.h.b16 %v3085
    %v4001 = vunpack.c.l.b16 %v3086
    %v4002 = vunpack.c.h.b16 %v3086
    %v4003 = vunpack.c.l.b16 %v3087
    %v4004 = vunpack.c.h.b16 %v3087
    %v4005 = vunpack.c.l.b16 %v3088
    %v4006 = vunpack.c.h.b16 %v3088
    %v4007 = vunpack.c.l.b16 %v3089
    %v4008 = vunpack.c.h.b16 %v3089
    %v4009 = vunpack.c.l.b16 %v3090
    %v4010 = vunpack.c.h.b16 %v3090
    %v4011 = vunpack.c.l.b16 %v3091
    %v4012 = vunpack.c.h.b16 %v3091
    %v4013 = vunpack.c.l.b16 %v3092
    %v4014 = vunpack.c.h.b16 %v3092
    %v4015 = vunpack.c.l.b16 %v3093
    %v4016 = vunpack.c.h.b16 %v3093
    %v4017 = vunpack.c.l.b16 %v3094
    %v4018 = vunpack.c.h.b16 %v3094
    %v4019 = vunpack.c.l.b16 %v3095
    %v4020 = vunpack.c.h.b16 %v3095
    %v4021 = vunpack.c.l.b16 %v3096
    %v4022 = vunpack.c.h.b16 %v3096
    %v4023 = vunpack.c.l.b16 %v3097
    %v4024 = vunpack.c.h.b16 %v3097
    %v4025 = vunpack.c.l.b16 %v3098
    %v4026 = vunpack.c.h.b16 %v3098
    %v4027 = vunpack.c.l.b16 %v3099
    %v4028 = vunpack.c.h.b16 %v3099
    %v4029 = vunpack.c.l.b16 %v3100
    %v4030 = vunpack.c.h.b16 %v3100
    %v4031 = vunpack.c.l.b16 %v3101
    %v4032 = vunpack.c.h.b16 %v3101
    %v4033 = vunpack.c.l.b16 %v3102
    %v4034 = vunpack.c.h.b16 %v3102
    %v4035 = vunpack.c.l.b16 %v3103
    %v4036 = vunpack.c.h.b16 %v3103
    %v4037 = vunpack.c.l.b16 %v3104
    %v4038 = vunpack.c.h.b16 %v3104
    %v4039 = vunpack.c.l.b16 %v3105
    %v4040 = vunpack.c.h.b16 %v3105
    %v4041 = vunpack.c.l.b16 %v3106
    %v4042 = vunpack.c.h.b16 %v3106
    %v4043 = vunpack.c.l.b16 %v3107
    %v4044 = vunpack.c.h.b16 %v3107
    %v4045 = vunpack.c.l.b16 %v3108
    %v4046 = vunpack.c.h.b16 %v3108
    %v4047 = vunpack.c.l.b16 %v3109
    %v4048 = vunpack.c.h.b16 %v3109
    %v4049 = vunpack.c.l.b16 %v3110
    %v4050 = vunpack.c.h.b16 %v3110
    %v4051 = vunpack.c.l.b16 %v3111
    %v4052 = vunpack.c.h.b16 %v3111
    %v4053 = vunpack.c.l.b16 %v3112
    %v4054 = vunpack.c.h.b16 %v3112
    %v4055 = vunpack.c.l.b16 %v3113
    %v4056 = vunpack.c.h.b16 %v3113
    %v4057 = vunpack.c.l.b16 %v3114
    %v4058 = vunpack.c.h.b16 %v3114
    %v4059 = vunpack.c.l.b16 %v3115
    %v4060 = vunpack.c.h.b16 %v3115
    %v4061 = vunpack.c.l.b16 %v3116
    %v4062 = vunpack.c.h.b16 %v3116
    %v4063 = vunpack.c.l.b16 %v3117
    %v4064 = vunpack.c.h.b16 %v3117
    %v4065 = vunpack.c.l.b16 %v3118
    %v4066 = vunpack.c.h.b16 %v3118
    %v4067 = vunpack.c.l.b16 %v3119
    %v4068 = vunpack.c.h.b16 %v3119
    %v4069 = vunpack.c.l.b16 %v3120
    %v4070 = vunpack.c.h.b16 %v3120
    %v4071 = vunpack.c.l.b16 %v3121
    %v4072 = vunpack.c.h.b16 %v3121
    %v4073 = vunpack.c.l.b16 %v3122
    %v4074 = vunpack.c.h.b16 %v3122
    %v4075 = vunpack.c.l.b16 %v3123
    %v4076 = vunpack.c.h.b16 %v3123
    %v4077 = vunpack.c.l.b16 %v3124
    %v4078 = vunpack.c.h.b16 %v3124
    %v4079 = vunpack.c.l.b16 %v3125
    %v4080 = vunpack.c.h.b16 %v3125
    %v4081 = vunpack.c.l.b16 %v3126
    %v4082 = vunpack.c.h.b16 %v3126
    %v4083 = vunpack.c.l.b16 %v3127
    %v4084 = vunpack.c.h.b16 %v3127
    %v4085 = vunpack.c.l.b16 %v3128
    %v4086 = vunpack.c.h.b16 %v3128
    %v4087 = vunpack.c.l.b16 %v3129
    %v4088 = vunpack.c.h.b16 %v3129
    %v4089 = vunpack.c.l.b16 %v3130
    %v4090 = vunpack.c.h.b16 %v3130
    %v4091 = vunpack.c.l.b16 %v3131
    %v4092 = vunpack.c.h.b16 %v3131
    %v4093 = vunpack.c.l.b16 %v3132
    %v4094 = vunpack.c.h.b16 %v3132
    %v4095 = vunpack.c.l.b16 %v3133
    %v4096 = vunpack.c.h.b16 %v3133
    %v4097 = vunpack.c.l.b16 %v3134
    %v4098 = vunpack.c.h.b16 %v3134
    %v4099 = vunpack.c.l.b16 %v3135
    %v4100 = vunpack.c.h.b16 %v3135
    %v4101 = vunpack.c.l.b16 %v3136
    %v4102 = vunpack.c.h.b16 %v3136
    %v4103 = vunpack.c.l.b16 %v3137
    %v4104 = vunpack.c.h.b16 %v3137
    %v4105 = vunpack.c.l.b16 %v3138
    %v4106 = vunpack.c.h.b16 %v3138
    %v4107 = vunpack.c.l.b16 %v3139
    %v4108 = vunpack.c.h.b16 %v3139
    %v4109 = vunpack.c.l.b16 %v3140
    %v4110 = vunpack.c.h.b16 %v3140
    %v4111 = vunpack.c.l.b16 %v3141
    %v4112 = vunpack.c.h.b16 %v3141
    %v4113 = vunpack.c.l.b16 %v3142
    %v4114 = vunpack.c.h.b16 %v3142
    %v4115 = vunpack.c.l.b16 %v3143
    %v4116 = vunpack.c.h.b16 %v3143
    %v4117 = vunpack.c.l.b16 %v3144
    %v4118 = vunpack.c.h.b16 %v3144
    %v4119 = vunpack.c.l.b16 %v3145
    %v4120 = vunpack.c.h.b16 %v3145
    %v4121 = vunpack.c.l.b16 %v3146
    %v4122 = vunpack.c.h.b16 %v3146
    %v4123 = vunpack.c.l.b16 %v3147
    %v4124 = vunpack.c.h.b16 %v3147
    %v4125 = vunpack.c.l.b16 %v3148
    %v4126 = vunpack.c.h.b16 %v3148
    %v4127 = vunpack.c.l.b16 %v3149
    %v4128 = vunpack.c.h.b16 %v3149
    %v4129 = vunpack.c.l.b16 %v3150
    %v4130 = vunpack.c.h.b16 %v3150
    %v4131 = vunpack.c.l.b16 %v3151
    %v4132 = vunpack.c.h.b16 %v3151
    %v4133 = vunpack.c.l.b16 %v3152
    %v4134 = vunpack.c.h.b16 %v3152
    %v4135 = vunpack.c.l.b16 %v3153
    %v4136 = vunpack.c.h.b16 %v3153
    %v4137 = vunpack.c.l.b16 %v3154
    %v4138 = vunpack.c.h.b16 %v3154
    %v4139 = vunpack.c.l.b16 %v3155
    %v4140 = vunpack.c.h.b16 %v3155
    %v4141 = vunpack.c.l.b16 %v3156
    %v4142 = vunpack.c.h.b16 %v3156
    %v4143 = vunpack.c.l.b16 %v3157
    %v4144 = vunpack.c.h.b16 %v3157
    %v4145 = vunpack.c.l.b16 %v3158
    %v4146 = vunpack.c.h.b16 %v3158
    %v4147 = vunpack.c.l.b16 %v3159
    %v4148 = vunpack.c.h.b16 %v3159
    %v4149 = vunpack.c.l.b16 %v3160
    %v4150 = vunpack.c.h.b16 %v3160
    %v4151 = vunpack.c.l.b16 %v3161
    %v4152 = vunpack.c.h.b16 %v3161
    %v4153 = vunpack.c.l.b16 %v3162
    %v4154 = vunpack.c.h.b16 %v3162
    %v4155 = vunpack.c.l.b16 %v3163
    %v4156 = vunpack.c.h.b16 %v3163
    %v4157 = vunpack.c.l.b16 %v3164
    %v4158 = vunpack.c.h.b16 %v3164
    %v4159 = vunpack.c.l.b16 %v3165
    %v4160 = vunpack.c.h.b16 %v3165
    %v4161 = vunpack.c.l.b16 %v3166
    %v4162 = vunpack.c.h.b16 %v3166
    %v4163 = vunpack.c.l.b16 %v3167
    %v4164 = vunpack.c.h.b16 %v3167
    %v4165 = vunpack.c.l.b16 %v3168
    %v4166 = vunpack.c.h.b16 %v3168
    %v4167 = vunpack.c.l.b16 %v3169
    %v4168 = vunpack.c.h.b16 %v3169
    %v4169 = vunpack.c.l.b16 %v3170
    %v4170 = vunpack.c.h.b16 %v3170
    %v4171 = vunpack.c.l.b16 %v3171
    %v4172 = vunpack.c.h.b16 %v3171
    %v4173 = vunpack.c.l.b16 %v3172
    %v4174 = vunpack.c.h.b16 %v3172
    %v4175 = vunpack.c.l.b16 %v3173
    %v4176 = vunpack.c.h.b16 %v3173
    %v4177 = vunpack.c.l.b16 %v3174
    %v4178 = vunpack.c.h.b16 %v3174
    %v4179 = vunpack.c.l.b16 %v3175
    %v4180 = vunpack.c.h.b16 %v3175
    %v4181 = vunpack.c.l.b16 %v3176
    %v4182 = vunpack.c.h.b16 %v3176
    %v4183 = vunpack.c.l.b16 %v3177
    %v4184 = vunpack.c.h.b16 %v3177
    %v4185 = vunpack.c.l.b16 %v3178
    %v4186 = vunpack.c.h.b16 %v3178
    %v4187 = vunpack.c.l.b16 %v3179
    %v4188 = vunpack.c.h.b16 %v3179
    %v4189 = vunpack.c.l.b16 %v3180
    %v4190 = vunpack.c.h.b16 %v3180
    %v4191 = vunpack.c.l.b16 %v3181
    %v4192 = vunpack.c.h.b16 %v3181
    %v4193 = vunpack.c.l.b16 %v3182
    %v4194 = vunpack.c.h.b16 %v3182
    %v4195 = vunpack.c.l.b16 %v3183
    %v4196 = vunpack.c.h.b16 %v3183
    %v4197 = vunpack.c.l.b16 %v3184
    %v4198 = vunpack.c.h.b16 %v3184
    %v4199 = vunpack.c.l.b16 %v3185
    %v4200 = vunpack.c.h.b16 %v3185
    %v4201 = vunpack.c.l.b16 %v3186
    %v4202 = vunpack.c.h.b16 %v3186
    %v4203 = vunpack.c.l.b16 %v3187
    %v4204 = vunpack.c.h.b16 %v3187
    %v4205 = vunpack.c.l.b16 %v3188
    %v4206 = vunpack.c.h.b16 %v3188
    %v4207 = vunpack.c.l.b16 %v3189
    %v4208 = vunpack.c.h.b16 %v3189
    %v4209 = vunpack.c.l.b16 %v3190
    %v4210 = vunpack.c.h.b16 %v3190
    %v4211 = vunpack.c.l.b16 %v3191
    %v4212 = vunpack.c.h.b16 %v3191
    %v4213 = vunpack.c.l.b16 %v3192
    %v4214 = vunpack.c.h.b16 %v3192
    %v4215 = vunpack.c.l.b16 %v3193
    %v4216 = vunpack.c.h.b16 %v3193
    %v4217 = vunpack.c.l.b16 %v3194
    %v4218 = vunpack.c.h.b16 %v3194
    %v4219 = vunpack.c.l.b16 %v3195
    %v4220 = vunpack.c.h.b16 %v3195
    %v4221 = vunpack.c.l.b16 %v3196
    %v4222 = vunpack.c.h.b16 %v3196
    %v4223 = vunpack.c.l.b16 %v3197
    %v4224 = vunpack.c.h.b16 %v3197
    %v4225 = vunpack.c.l.b16 %v3198
    %v4226 = vunpack.c.h.b16 %v3198
    %v4227 = vunpack.c.l.b16 %v3199
    %v4228 = vunpack.c.h.b16 %v3199
    %v4229 = vunpack.c.l.b16 %v3200
    %v4230 = vunpack.c.h.b16 %v3200
    %v4231 = vunpack.c.l.b16 %v3201
    %v4232 = vunpack.c.h.b16 %v3201
    %v4233 = vunpack.c.l.b16 %v3202
    %v4234 = vunpack.c.h.b16 %v3202
    %v4235 = vunpack.c.l.b16 %v3203
    %v4236 = vunpack.c.h.b16 %v3203
    %v4237 = vunpack.c.l.b16 %v3204
    %v4238 = vunpack.c.h.b16 %v3204
    %v4239 = vunpack.c.l.b16 %v3205
    %v4240 = vunpack.c.h.b16 %v3205
    %v4241 = vunpack.c.l.b16 %v3206
    %v4242 = vunpack.c.h.b16 %v3206
    %v4243 = vunpack.c.l.b16 %v3207
    %v4244 = vunpack.c.h.b16 %v3207
    %v4245 = vunpack.c.l.b16 %v3208
    %v4246 = vunpack.c.h.b16 %v3208
    %v4247 = vunpack.c.l.b16 %v3209
    %v4248 = vunpack.c.h.b16 %v3209
    %v4249 = vunpack.c.l.b16 %v3210
    %v4250 = vunpack.c.h.b16 %v3210
    %v4251 = vunpack.c.l.b16 %v3211
    %v4252 = vunpack.c.h.b16 %v3211
    %v4253 = vunpack.c.l.b16 %v3212
    %v4254 = vunpack.c.h.b16 %v3212
    %v4255 = vunpack.c.l.b16 %v3213
    %v4256 = vunpack.c.h.b16 %v3213
    %v4257 = vunpack.c.l.b16 %v3214
    %v4258 = vunpack.c.h.b16 %v3214
    %v4259 = vunpack.c.l.b16 %v3215
    %v4260 = vunpack.c.h.b16 %v3215
    %v4261 = vunpack.c.l.b16 %v3216
    %v4262 = vunpack.c.h.b16 %v3216
    %v4263 = vunpack.c.l.b16 %v3217
    %v4264 = vunpack.c.h.b16 %v3217
    %v4265 = vunpack.c.l.b16 %v3218
    %v4266 = vunpack.c.h.b16 %v3218
    %v4267 = vunpack.c.l.b16 %v3219
    %v4268 = vunpack.c.h.b16 %v3219
    %v4269 = vunpack.c.l.b16 %v3220
    %v4270 = vunpack.c.h.b16 %v3220
    %v4271 = vunpack.c.l.b16 %v3221
    %v4272 = vunpack.c.h.b16 %v3221
    %v4273 = vunpack.c.l.b16 %v3222
    %v4274 = vunpack.c.h.b16 %v3222
    %v4275 = vunpack.c.l.b16 %v3223
    %v4276 = vunpack.c.h.b16 %v3223
    %v4277 = vunpack.c.l.b16 %v3224
    %v4278 = vunpack.c.h.b16 %v3224
    %v4279 = vunpack.c.l.b16 %v3225
    %v4280 = vunpack.c.h.b16 %v3225
    %v4281 = vunpack.c.l.b16 %v3226
    %v4282 = vunpack.c.h.b16 %v3226
    %v4283 = vunpack.c.l.b16 %v3227
    %v4284 = vunpack.c.h.b16 %v3227
    %v4285 = vunpack.c.l.b16 %v3228
    %v4286 = vunpack.c.h.b16 %v3228
    %v4287 = vunpack.c.l.b16 %v3229
    %v4288 = vunpack.c.h.b16 %v3229
    %v4289 = vunpack.c.l.b16 %v3230
    %v4290 = vunpack.c.h.b16 %v3230
    %v4291 = vunpack.c.l.b16 %v3231
    %v4292 = vunpack.c.h.b16 %v3231
    %v4293 = vunpack.c.l.b16 %v3232
    %v4294 = vunpack.c.h.b16 %v3232
    %v4295 = vunpack.c.l.b16 %v3233
    %v4296 = vunpack.c.h.b16 %v3233
    %v4297 = vunpack.c.l.b16 %v3234
    %v4298 = vunpack.c.h.b16 %v3234
    %v4299 = vunpack.c.l.b16 %v3235
    %v4300 = vunpack.c.h.b16 %v3235
    %v4301 = vunpack.c.l.b16 %v3236
    %v4302 = vunpack.c.h.b16 %v3236
    %v4303 = vunpack.c.l.b16 %v3237
    %v4304 = vunpack.c.h.b16 %v3237
    %v4305 = vunpack.c.l.b16 %v3238
    %v4306 = vunpack.c.h.b16 %v3238
    %v4307 = vunpack.c.l.b16 %v3239
    %v4308 = vunpack.c.h.b16 %v3239
    %v4309 = vunpack.c.l.b16 %v3240
    %v4310 = vunpack.c.h.b16 %v3240
    %v4311 = vunpack.c.l.b16 %v3241
    %v4312 = vunpack.c.h.b16 %v3241
    %v4313 = vunpack.c.l.b16 %v3242
    %v4314 = vunpack.c.h.b16 %v3242
    %v4315 = vunpack.c.l.b16 %v3243
    %v4316 = vunpack.c.h.b16 %v3243
    %v4317 = vunpack.c.l.b16 %v3244
    %v4318 = vunpack.c.h.b16 %v3244
    %v4319 = vunpack.c.l.b16 %v3245
    %v4320 = vunpack.c.h.b16 %v3245
    %v4321 = vunpack.c.l.b16 %v3246
    %v4322 = vunpack.c.h.b16 %v3246
    %v4323 = vunpack.c.l.b16 %v3247
    %v4324 = vunpack.c.h.b16 %v3247
    %v4325 = vunpack.c.l.b16 %v3248
    %v4326 = vunpack.c.h.b16 %v3248
    %v4327 = vunpack.c.l.b16 %v3249
    %v4328 = vunpack.c.h.b16 %v3249
    %v4329 = vunpack.c.l.b16 %v3250
    %v4330 = vunpack.c.h.b16 %v3250
    %v4331 = vunpack.c.l.b16 %v3251
    %v4332 = vunpack.c.h.b16 %v3251
    %v4333 = vunpack.c.l.b16 %v3252
    %v4334 = vunpack.c.h.b16 %v3252
    %v4335 = vunpack.c.l.b16 %v3253
    %v4336 = vunpack.c.h.b16 %v3253
    %v4337 = vunpack.c.l.b16 %v3254
    %v4338 = vunpack.c.h.b16 %v3254
    %v4339 = vunpack.c.l.b16 %v3255
    %v4340 = vunpack.c.h.b16 %v3255
    %v4341 = vunpack.c.l.b16 %v3256
    %v4342 = vunpack.c.h.b16 %v3256
    %v4343 = vunpack.c.l.b16 %v3257
    %v4344 = vunpack.c.h.b16 %v3257
    %v4345 = vunpack.c.l.b16 %v3258
    %v4346 = vunpack.c.h.b16 %v3258
    %v4347 = vunpack.c.l.b16 %v3259
    %v4348 = vunpack.c.h.b16 %v3259
    %v4349 = vunpack.c.l.b16 %v3260
    %v4350 = vunpack.c.h.b16 %v3260
    %v4351 = vunpack.c.l.b16 %v3261
    %v4352 = vunpack.c.h.b16 %v3261
    %v4353 = vunpack.c.l.b16 %v3262
    %v4354 = vunpack.c.h.b16 %v3262
    %v4355 = vunpack.c.l.b16 %v3263
    %v4356 = vunpack.c.h.b16 %v3263
    %v4357 = vunpack.c.l.b16 %v3264
    %v4358 = vunpack.c.h.b16 %v3264
    %v4359 = vunpack.c.l.b16 %v3265
    %v4360 = vunpack.c.h.b16 %v3265
    %v4361 = vunpack.c.l.b16 %v3266
    %v4362 = vunpack.c.h.b16 %v3266
    %v4363 = vunpack.c.l.b16 %v3267
    %v4364 = vunpack.c.h.b16 %v3267
    %v4365 = vunpack.c.l.b16 %v3268
    %v4366 = vunpack.c.h.b16 %v3268
    %v4367 = vunpack.c.l.b16 %v3269
    %v4368 = vunpack.c.h.b16 %v3269
    %v4369 = vunpack.c.l.b16 %v3270
    %v4370 = vunpack.c.h.b16 %v3270
    %v4371 = vunpack.c.l.b16 %v3271
    %v4372 = vunpack.c.h.b16 %v3271
    %v4373 = vunpack.c.l.b16 %v3272
    %v4374 = vunpack.c.h.b16 %v3272
    %v4375 = vunpack.c.l.b16 %v3273
    %v4376 = vunpack.c.h.b16 %v3273
    %v4377 = vunpack.c.l.b16 %v3274
    %v4378 = vunpack.c.h.b16 %v3274
    %v4379 = vunpack.c.l.b16 %v3275
    %v4380 = vunpack.c.h.b16 %v3275
    %v4381 = vunpack.c.l.b16 %v3276
    %v4382 = vunpack.c.h.b16 %v3276
    %v4383 = vunpack.c.l.b16 %v3277
    %v4384 = vunpack.c.h.b16 %v3277
    %v4385 = vunpack.c.l.b16 %v3278
    %v4386 = vunpack.c.h.b16 %v3278
    %v4387 = vunpack.c.l.b16 %v3279
    %v4388 = vunpack.c.h.b16 %v3279
    %v4389 = vunpack.c.l.b16 %v3280
    %v4390 = vunpack.c.h.b16 %v3280
    %v4391 = vunpack.c.l.b16 %v3281
    %v4392 = vunpack.c.h.b16 %v3281
    %v4393 = vunpack.c.l.b16 %v3282
    %v4394 = vunpack.c.h.b16 %v3282
    %v4395 = vunpack.c.l.b16 %v3283
    %v4396 = vunpack.c.h.b16 %v3283
    %v4397 = vunpack.c.l.b16 %v3284
    %v4398 = vunpack.c.h.b16 %v3284
    %v4399 = vunpack.c.l.b16 %v3285
    %v4400 = vunpack.c.h.b16 %v3285
    %v4401 = vunpack.c.l.b16 %v3286
    %v4402 = vunpack.c.h.b16 %v3286
    %v4403 = vunpack.c.l.b16 %v3287
    %v4404 = vunpack.c.h.b16 %v3287
    %v4405 = vunpack.c.l.b16 %v3288
    %v4406 = vunpack.c.h.b16 %v3288
    %v4407 = vunpack.c.l.b16 %v3289
    %v4408 = vunpack.c.h.b16 %v3289
    %v4409 = vunpack.c.l.b16 %v3290
    %v4410 = vunpack.c.h.b16 %v3290
    %v4411 = vunpack.c.l.b16 %v3291
    %v4412 = vunpack.c.h.b16 %v3291
    %v4413 = vunpack.c.l.b16 %v3292
    %v4414 = vunpack.c.h.b16 %v3292
    %v4415 = vunpack.c.l.b16 %v3293
    %v4416 = vunpack.c.h.b16 %v3293
    %v4417 = vunpack.c.l.b16 %v3294
    %v4418 = vunpack.c.h.b16 %v3294
    %v4419 = vunpack.c.l.b16 %v3295
    %v4420 = vunpack.c.h.b16 %v3295
    %v4421 = vunpack.c.l.b16 %v3296
    %v4422 = vunpack.c.h.b16 %v3296
    %v4423 = vunpack.c.l.b16 %v3297
    %v4424 = vunpack.c.h.b16 %v3297
    %v4425 = vunpack.c.l.b16 %v3298
    %v4426 = vunpack.c.h.b16 %v3298
    %v4427 = vunpack.c.l.b16 %v3299
    %v4428 = vunpack.c.h.b16 %v3299
    %v4429 = vunpack.c.l.b16 %v3300
    %v4430 = vunpack.c.h.b16 %v3300
    %v4431 = vunpack.c.l.b16 %v3301
    %v4432 = vunpack.c.h.b16 %v3301
    %v4433 = vunpack.c.l.b16 %v3302
    %v4434 = vunpack.c.h.b16 %v3302
    %v4435 = vunpack.c.l.b16 %v3303
    %v4436 = vunpack.c.h.b16 %v3303
    %v4437 = vunpack.c.l.b16 %v3304
    %v4438 = vunpack.c.h.b16 %v3304
    %v4439 = vunpack.c.l.b16 %v3305
    %v4440 = vunpack.c.h.b16 %v3305
    %v4441 = vunpack.c.l.b16 %v3306
    %v4442 = vunpack.c.h.b16 %v3306
    %v4443 = vunpack.c.l.b16 %v3307
    %v4444 = vunpack.c.h.b16 %v3307
    %v4445 = vunpack.c.l.b16 %v3308
    %v4446 = vunpack.c.h.b16 %v3308
    %v4447 = vunpack.c.l.b16 %v3309
    %v4448 = vunpack.c.h.b16 %v3309
    %v4449 = vunpack.c.l.b16 %v3310
    %v4450 = vunpack.c.h.b16 %v3310
    %v4451 = vunpack.c.l.b16 %v3311
    %v4452 = vunpack.c.h.b16 %v3311
    %v4453 = vunpack.c.l.b16 %v3312
    %v4454 = vunpack.c.h.b16 %v3312
    %v4455 = vunpack.c.l.b16 %v3313
    %v4456 = vunpack.c.h.b16 %v3313
    %v4457 = vunpack.c.l.b16 %v3314
    %v4458 = vunpack.c.h.b16 %v3314
    %v4459 = vunpack.c.l.b16 %v3315
    %v4460 = vunpack.c.h.b16 %v3315
    %v4461 = vunpack.c.l.b16 %v3316
    %v4462 = vunpack.c.h.b16 %v3316
    %v4463 = vunpack.c.l.b16 %v3317
    %v4464 = vunpack.c.h.b16 %v3317
    %v4465 = vunpack.c.l.b16 %v3318
    %v4466 = vunpack.c.h.b16 %v3318
    %v4467 = vunpack.c.l.b16 %v3319
    %v4468 = vunpack.c.h.b16 %v3319
    %v4469 = vunpack.c.l.b16 %v3320
    %v4470 = vunpack.c.h.b16 %v3320
    %v4471 = vunpack.c.l.b16 %v3321
    %v4472 = vunpack.c.h.b16 %v3321
    %v4473 = vunpack.c.l.b16 %v3322
    %v4474 = vunpack.c.h.b16 %v3322
    %v4475 = vunpack.c.l.b16 %v3323
    %v4476 = vunpack.c.h.b16 %v3323
    %v4477 = vunpack.c.l.b16 %v3324
    %v4478 = vunpack.c.h.b16 %v3324
    %v4479 = vunpack.c.l.b16 %v3325
    %v4480 = vunpack.c.h.b16 %v3325
    %v4481 = vunpack.c.l.b16 %v3326
    %v4482 = vunpack.c.h.b16 %v3326
    %v4483 = vunpack.c.l.b16 %v3327
    %v4484 = vunpack.c.h.b16 %v3327
    %v4485 = vunpack.c.l.b16 %v3328
    %v4486 = vunpack.c.h.b16 %v3328
    %v4487 = vunpack.c.l.b16 %v3329
    %v4488 = vunpack.c.h.b16 %v3329
    %v4489 = vunpack.c.l.b16 %v3330
    %v4490 = vunpack.c.h.b16 %v3330
    %v4491 = vunpack.c.l.b16 %v3331
    %v4492 = vunpack.c.h.b16 %v3331
    %v4493 = vunpack.c.l.b16 %v3332
    %v4494 = vunpack.c.h.b16 %v3332
    %v4495 = vunpack.c.l.b16 %v3333
    %v4496 = vunpack.c.h.b16 %v3333
    %v4497 = vunpack.c.l.b16 %v3334
    %v4498 = vunpack.c.h.b16 %v3334
    %v4499 = vunpack.c.l.b16 %v3335
    %v4500 = vunpack.c.h.b16 %v3335
    %v4501 = vunpack.c.l.b16 %v3336
    %v4502 = vunpack.c.h.b16 %v3336
    %v4503 = vunpack.c.l.b16 %v3337
    %v4504 = vunpack.c.h.b16 %v3337
    %v4505 = vunpack.c.l.b16 %v3338
    %v4506 = vunpack.c.h.b16 %v3338
    %v4507 = vunpack.c.l.b16 %v3339
    %v4508 = vunpack.c.h.b16 %v3339
    %v4509 = vunpack.c.l.b16 %v3340
    %v4510 = vunpack.c.h.b16 %v3340
    %v4511 = vunpack.c.l.b16 %v3341
    %v4512 = vunpack.c.h.b16 %v3341
    %v4513 = vunpack.c.l.b16 %v3342
    %v4514 = vunpack.c.h.b16 %v3342
    %v4515 = vunpack.c.l.b16 %v3343
    %v4516 = vunpack.c.h.b16 %v3343
    %v4517 = vunpack.c.l.b16 %v3344
    %v4518 = vunpack.c.h.b16 %v3344
    %v4519 = vunpack.c.l.b16 %v3345
    %v4520 = vunpack.c.h.b16 %v3345
    %v4521 = vunpack.c.l.b16 %v3346
    %v4522 = vunpack.c.h.b16 %v3346
    %v4523 = vunpack.c.l.b16 %v3347
    %v4524 = vunpack.c.h.b16 %v3347
    %v4525 = vunpack.c.l.b16 %v3348
    %v4526 = vunpack.c.h.b16 %v3348
    %v4527 = vunpack.c.l.b16 %v3349
    %v4528 = vunpack.c.h.b16 %v3349
    %v4529 = vunpack.c.l.b16 %v3350
    %v4530 = vunpack.c.h.b16 %v3350
    %v4531 = vunpack.c.l.b16 %v3351
    %v4532 = vunpack.c.h.b16 %v3351
    %v4533 = vunpack.c.l.b16 %v3352
    %v4534 = vunpack.c.h.b16 %v3352
    %v4535 = vunpack.c.l.b16 %v3353
    %v4536 = vunpack.c.h.b16 %v3353
    %v4537 = vunpack.c.l.b16 %v3354
    %v4538 = vunpack.c.h.b16 %v3354
    %v4539 = vunpack.c.l.b16 %v3355
    %v4540 = vunpack.c.h.b16 %v3355
    %v4541 = vunpack.c.l.b16 %v3356
    %v4542 = vunpack.c.h.b16 %v3356
    %v4543 = vunpack.c.l.b16 %v3357
    %v4544 = vunpack.c.h.b16 %v3357
    %v4545 = vunpack.c.l.b16 %v3358
    %v4546 = vunpack.c.h.b16 %v3358
    %v4547 = vunpack.c.l.b16 %v3359
    %v4548 = vunpack.c.h.b16 %v3359
    %v4549 = vunpack.c.l.b16 %v3360
    %v4550 = vunpack.c.h.b16 %v3360
    %v4551 = vunpack.c.l.b16 %v3361
    %v4552 = vunpack.c.h.b16 %v3361
    %v4553 = vunpack.c.l.b16 %v3362
    %v4554 = vunpack.c.h.b16 %v3362
    %v4555 = vunpack.c.l.b16 %v3363
    %v4556 = vunpack.c.h.b16 %v3363
    %v4557 = vunpack.c.l.b16 %v3364
    %v4558 = vunpack.c.h.b16 %v3364
    %v4559 = vpack.c.b16 %v3799, %v3791
    %v4560 = vpack.c.b16 %v3800, %v3792
    %v4561 = vpack.c.b16 %v3801, %v3793
    %v4562 = vpack.c.b16 %v3802, %v3794
    %v4563 = vpack.c.b16 %v3803, %v3795
    %v4564 = vpack.c.b16 %v3804, %v3796
    %v4565 = vpack.c.b16 %v3805, %v3797
    %v4566 = vpack.c.b16 %v3806, %v3798
    %v4567 = vpack.c.b16 %v3815, %v3807
    %v4568 = vpack.c.b16 %v3816, %v3808
    %v4569 = vpack.c.b16 %v3817, %v3809
    %v4570 = vpack.c.b16 %v3818, %v3810
    %v4571 = vpack.c.b16 %v3819, %v3811
    %v4572 = vpack.c.b16 %v3820, %v3812
    %v4573 = vpack.c.b16 %v3821, %v3813
    %v4574 = vpack.c.b16 %v3822, %v3814
    %v4575 = vpack.c.b16 %v3831, %v3823
    %v4576 = vpack.c.b16 %v3832, %v3824
    %v4577 = vpack.c.b16 %v3833, %v3825
    %v4578 = vpack.c.b16 %v3834, %v3826
    %v4579 = vpack.c.b16 %v3835, %v3827
    %v4580 = vpack.c.b16 %v3836, %v3828
    %v4581 = vpack.c.b16 %v3837, %v3829
    %v4582 = vpack.c.b16 %v3838, %v3830
    %v4583 = vpack.c.b16 %v3847, %v3839
    %v4584 = vpack.c.b16 %v3848, %v3840
    %v4585 = vpack.c.b16 %v3849, %v3841
    %v4586 = vpack.c.b16 %v3850, %v3842
    %v4587 = vpack.c.b16 %v3851, %v3843
    %v4588 = vpack.c.b16 %v3852, %v3844
    %v4589 = vpack.c.b16 %v3853, %v3845
    %v4590 = vpack.c.b16 %v3854, %v3846
    %v4591 = vpack.c.b16 %v3863, %v3855
    %v4592 = vpack.c.b16 %v3864, %v3856
    %v4593 = vpack.c.b16 %v3865, %v3857
    %v4594 = vpack.c.b16 %v3866, %v3858
    %v4595 = vpack.c.b16 %v3867, %v3859
    %v4596 = vpack.c.b16 %v3868, %v3860
    %v4597 = vpack.c.b16 %v3869, %v3861
    %v4598 = vpack.c.b16 %v3870, %v3862
    %v4599 = vpack.c.b16 %v3879, %v3871
    %v4600 = vpack.c.b16 %v3880, %v3872
    %v4601 = vpack.c.b16 %v3881, %v3873
    %v4602 = vpack.c.b16 %v3882, %v3874
    %v4603 = vpack.c.b16 %v3883, %v3875
    %v4604 = vpack.c.b16 %v3884, %v3876
    %v4605 = vpack.c.b16 %v3885, %v3877
    %v4606 = vpack.c.b16 %v3886, %v3878
    %v4607 = vpack.c.b16 %v3895, %v3887
    %v4608 = vpack.c.b16 %v3896, %v3888
    %v4609 = vpack.c.b16 %v3897, %v3889
    %v4610 = vpack.c.b16 %v3898, %v3890
    %v4611 = vpack.c.b16 %v3899, %v3891
    %v4612 = vpack.c.b16 %v3900, %v3892
    %v4613 = vpack.c.b16 %v3901, %v3893
    %v4614 = vpack.c.b16 %v3902, %v3894
    %v4615 = vpack.c.b16 %v3911, %v3903
    %v4616 = vpack.c.b16 %v3912, %v3904
    %v4617 = vpack.c.b16 %v3913, %v3905
    %v4618 = vpack.c.b16 %v3914, %v3906
    %v4619 = vpack.c.b16 %v3915, %v3907
    %v4620 = vpack.c.b16 %v3916, %v3908
    %v4621 = vpack.c.b16 %v3917, %v3909
    %v4622 = vpack.c.b16 %v3918, %v3910
    %v4623 = vpack.c.b16 %v3927, %v3919
    %v4624 = vpack.c.b16 %v3928, %v3920
    %v4625 = vpack.c.b16 %v3929, %v3921
    %v4626 = vpack.c.b16 %v3930, %v3922
    %v4627 = vpack.c.b16 %v3931, %v3923
    %v4628 = vpack.c.b16 %v3932, %v3924
    %v4629 = vpack.c.b16 %v3933, %v3925
    %v4630 = vpack.c.b16 %v3934, %v3926
    %v4631 = vpack.c.b16 %v3943, %v3935
    %v4632 = vpack.c.b16 %v3944, %v3936
    %v4633 = vpack.c.b16 %v3945, %v3937
    %v4634 = vpack.c.b16 %v3946, %v3938
    %v4635 = vpack.c.b16 %v3947, %v3939
    %v4636 = vpack.c.b16 %v3948, %v3940
    %v4637 = vpack.c.b16 %v3949, %v3941
    %v4638 = vpack.c.b16 %v3950, %v3942
    %v4639 = vpack.c.b16 %v3959, %v3951
    %v4640 = vpack.c.b16 %v3960, %v3952
    %v4641 = vpack.c.b16 %v3961, %v3953
    %v4642 = vpack.c.b16 %v3962, %v3954
    %v4643 = vpack.c.b16 %v3963, %v3955
    %v4644 = vpack.c.b16 %v3964, %v3956
    %v4645 = vpack.c.b16 %v3965, %v3957
    %v4646 = vpack.c.b16 %v3966, %v3958
    %v4647 = vpack.c.b16 %v3975, %v3967
    %v4648 = vpack.c.b16 %v3976, %v3968
    %v4649 = vpack.c.b16 %v3977, %v3969
    %v4650 = vpack.c.b16 %v3978, %v3970
    %v4651 = vpack.c.b16 %v3979, %v3971
    %v4652 = vpack.c.b16 %v3980, %v3972
    %v4653 = vpack.c.b16 %v3981, %v3973
    %v4654 = vpack.c.b16 %v3982, %v3974
    %v4655 = vpack.c.b16 %v3991, %v3983
    %v4656 = vpack.c.b16 %v3992, %v3984
    %v4657 = vpack.c.b16 %v3993, %v3985
    %v4658 = vpack.c.b16 %v3994, %v3986
    %v4659 = vpack.c.b16 %v3995, %v3987
    %v4660 = vpack.c.b16 %v3996, %v3988
    %v4661 = vpack.c.b16 %v3997, %v3989
    %v4662 = vpack.c.b16 %v3998, %v3990
    %v4663 = vpack.c.b16 %v4007, %v3999
    %v4664 = vpack.c.b16 %v4008, %v4000
    %v4665 = vpack.c.b16 %v4009, %v4001
    %v4666 = vpack.c.b16 %v4010, %v4002
    %v4667 = vpack.c.b16 %v4011, %v4003
    %v4668 = vpack.c.b16 %v4012, %v4004
    %v4669 = vpack.c.b16 %v4013, %v4005
    %v4670 = vpack.c.b16 %v4014, %v4006
    %v4671 = vpack.c.b16 %v4023, %v4015
    %v4672 = vpack.c.b16 %v4024, %v4016
    %v4673 = vpack.c.b16 %v4025, %v4017
    %v4674 = vpack.c.b16 %v4026, %v4018
    %v4675 = vpack.c.b16 %v4027, %v4019
    %v4676 = vpack.c.b16 %v4028, %v4020
    %v4677 = vpack.c.b16 %v4029, %v4021
    %v4678 = vpack.c.b16 %v4030, %v4022
    %v4679 = vpack.c.b16 %v4039, %v4031
    %v4680 = vpack.c.b16 %v4040, %v4032
    %v4681 = vpack.c.b16 %v4041, %v4033
    %v4682 = vpack.c.b16 %v4042, %v4034
    %v4683 = vpack.c.b16 %v4043, %v4035
    %v4684 = vpack.c.b16 %v4044, %v4036
    %v4685 = vpack.c.b16 %v4045, %v4037
    %v4686 = vpack.c.b16 %v4046, %v4038
    %v4687 = vpack.c.b16 %v4055, %v4047
    %v4688 = vpack.c.b16 %v4056, %v4048
    %v4689 = vpack.c.b16 %v4057, %v4049
    %v4690 = vpack.c.b16 %v4058, %v4050
    %v4691 = vpack.c.b16 %v4059, %v4051
    %v4692 = vpack.c.b16 %v4060, %v4052
    %v4693 = vpack.c.b16 %v4061, %v4053
    %v4694 = vpack.c.b16 %v4062, %v4054
    %v4695 = vpack.c.b16 %v4071, %v4063
    %v4696 = vpack.c.b16 %v4072, %v4064
    %v4697 = vpack.c.b16 %v4073, %v4065
    %v4698 = vpack.c.b16 %v4074, %v4066
    %v4699 = vpack.c.b16 %v4075, %v4067
    %v4700 = vpack.c.b16 %v4076, %v4068
    %v4701 = vpack.c.b16 %v4077, %v4069
    %v4702 = vpack.c.b16 %v4078, %v4070
    %v4703 = vpack.c.b16 %v4087, %v4079
    %v4704 = vpack.c.b16 %v4088, %v4080
    %v4705 = vpack.c.b16 %v4089, %v4081
    %v4706 = vpack.c.b16 %v4090, %v4082
    %v4707 = vpack.c.b16 %v4091, %v4083
    %v4708 = vpack.c.b16 %v4092, %v4084
    %v4709 = vpack.c.b16 %v4093, %v4085
    %v4710 = vpack.c.b16 %v4094, %v4086
    %v4711 = vpack.c.b16 %v4103, %v4095
    %v4712 = vpack.c.b16 %v4104, %v4096
    %v4713 = vpack.c.b16 %v4105, %v4097
    %v4714 = vpack.c.b16 %v4106, %v4098
    %v4715 = vpack.c.b16 %v4107, %v4099
    %v4716 = vpack.c.b16 %v4108, %v4100
    %v4717 = vpack.c.b16 %v4109, %v4101
    %v4718 = vpack.c.b16 %v4110, %v4102
    %v4719 = vpack.c.b16 %v4119, %v4111
    %v4720 = vpack.c.b16 %v4120, %v4112
    %v4721 = vpack.c.b16 %v4121, %v4113
    %v4722 = vpack.c.b16 %v4122, %v4114
    %v4723 = vpack.c.b16 %v4123, %v4115
    %v4724 = vpack.c.b16 %v4124, %v4116
    %v4725 = vpack.c.b16 %v4125, %v4117
    %v4726 = vpack.c.b16 %v4126, %v4118
    %v4727 = vpack.c.b16 %v4135, %v4127
    %v4728 = vpack.c.b16 %v4136, %v4128
    %v4729 = vpack.c.b16 %v4137, %v4129
    %v4730 = vpack.c.b16 %v4138, %v4130
    %v4731 = vpack.c.b16 %v4139, %v4131
    %v4732 = vpack.c.b16 %v4140, %v4132
    %v4733 = vpack.c.b16 %v4141, %v4133
    %v4734 = vpack.c.b16 %v4142, %v4134
    %v4735 = vpack.c.b16 %v4151, %v4143
    %v4736 = vpack.c.b16 %v4152, %v4144
    %v4737 = vpack.c.b16 %v4153, %v4145
    %v4738 = vpack.c.b16 %v4154, %v4146
    %v4739 = vpack.c.b16 %v4155, %v4147
    %v4740 = vpack.c.b16 %v4156, %v4148
    %v4741 = vpack.c.b16 %v4157, %v4149
    %v4742 = vpack.c.b16 %v4158, %v4150
    %v4743 = vpack.c.b16 %v4167, %v4159
    %v4744 = vpack.c.b16 %v4168, %v4160
    %v4745 = vpack.c.b16 %v4169, %v4161
    %v4746 = vpack.c.b16 %v4170, %v4162
    %v4747 = vpack.c.b16 %v4171, %v4163
    %v4748 = vpack.c.b16 %v4172, %v4164
    %v4749 = vpack.c.b16 %v4173, %v4165
    %v4750 = vpack.c.b16 %v4174, %v4166
    %v4751 = vpack.c.b16 %v4183, %v4175
    %v4752 = vpack.c.b16 %v4184, %v4176
    %v4753 = vpack.c.b16 %v4185, %v4177
    %v4754 = vpack.c.b16 %v4186, %v4178
    %v4755 = vpack.c.b16 %v4187, %v4179
    %v4756 = vpack.c.b16 %v4188, %v4180
    %v4757 = vpack.c.b16 %v4189, %v4181
    %v4758 = vpack.c.b16 %v4190, %v4182
    %v4759 = vpack.c.b16 %v4199, %v4191
    %v4760 = vpack.c.b16 %v4200, %v4192
    %v4761 = vpack.c.b16 %v4201, %v4193
    %v4762 = vpack.c.b16 %v4202, %v4194
    %v4763 = vpack.c.b16 %v4203, %v4195
    %v4764 = vpack.c.b16 %v4204, %v4196
    %v4765 = vpack.c.b16 %v4205, %v4197
    %v4766 = vpack.c.b16 %v4206, %v4198
    %v4767 = vpack.c.b16 %v4215, %v4207
    %v4768 = vpack.c.b16 %v4216, %v4208
    %v4769 = vpack.c.b16 %v4217, %v4209
    %v4770 = vpack.c.b16 %v4218, %v4210
    %v4771 = vpack.c.b16 %v4219, %v4211
    %v4772 = vpack.c.b16 %v4220, %v4212
    %v4773 = vpack.c.b16 %v4221, %v4213
    %v4774 = vpack.c.b16 %v4222, %v4214
    %v4775 = vpack.c.b16 %v4231, %v4223
    %v4776 = vpack.c.b16 %v4232, %v4224
    %v4777 = vpack.c.b16 %v4233, %v4225
    %v4778 = vpack.c.b16 %v4234, %v4226
    %v4779 = vpack.c.b16 %v4235, %v4227
    %v4780 = vpack.c.b16 %v4236, %v4228
    %v4781 = vpack.c.b16 %v4237, %v4229
    %v4782 = vpack.c.b16 %v4238, %v4230
    %v4783 = vpack.c.b16 %v4247, %v4239
    %v4784 = vpack.c.b16 %v4248, %v4240
    %v4785 = vpack.c.b16 %v4249, %v4241
    %v4786 = vpack.c.b16 %v4250, %v4242
    %v4787 = vpack.c.b16 %v4251, %v4243
    %v4788 = vpack.c.b16 %v4252, %v4244
    %v4789 = vpack.c.b16 %v4253, %v4245
    %v4790 = vpack.c.b16 %v4254, %v4246
    %v4791 = vpack.c.b16 %v4263, %v4255
    %v4792 = vpack.c.b16 %v4264, %v4256
    %v4793 = vpack.c.b16 %v4265, %v4257
    %v4794 = vpack.c.b16 %v4266, %v4258
    %v4795 = vpack.c.b16 %v4267, %v4259
    %v4796 = vpack.c.b16 %v4268, %v4260
    %v4797 = vpack.c.b16 %v4269, %v4261
    %v4798 = vpack.c.b16 %v4270, %v4262
    %v4799 = vpack.c.b16 %v4279, %v4271
    %v4800 = vpack.c.b16 %v4280, %v4272
    %v4801 = vpack.c.b16 %v4281, %v4273
    %v4802 = vpack.c.b16 %v4282, %v4274
    %v4803 = vpack.c.b16 %v4283, %v4275
    %v4804 = vpack.c.b16 %v4284, %v4276
    %v4805 = vpack.c.b16 %v4285, %v4277
    %v4806 = vpack.c.b16 %v4286, %v4278
    %v4807 = vpack.c.b16 %v4295, %v4287
    %v4808 = vpack.c.b16 %v4296, %v4288
    %v4809 = vpack.c.b16 %v4297, %v4289
    %v4810 = vpack.c.b16 %v4298, %v4290
    %v4811 = vpack.c.b16 %v4299, %v4291
    %v4812 = vpack.c.b16 %v4300, %v4292
    %v4813 = vpack.c.b16 %v4301, %v4293
    %v4814 = vpack.c.b16 %v4302, %v4294
    %v4815 = vpack.c.b16 %v4311, %v4303
    %v4816 = vpack.c.b16 %v4312, %v4304
    %v4817 = vpack.c.b16 %v4313, %v4305
    %v4818 = vpack.c.b16 %v4314, %v4306
    %v4819 = vpack.c.b16 %v4315, %v4307
    %v4820 = vpack.c.b16 %v4316, %v4308
    %v4821 = vpack.c.b16 %v4317, %v4309
    %v4822 = vpack.c.b16 %v4318, %v4310
    %v4823 = vpack.c.b16 %v4327, %v4319
    %v4824 = vpack.c.b16 %v4328, %v4320
    %v4825 = vpack.c.b16 %v4329, %v4321
    %v4826 = vpack.c.b16 %v4330, %v4322
    %v4827 = vpack.c.b16 %v4331, %v4323
    %v4828 = vpack.c.b16 %v4332, %v4324
    %v4829 = vpack.c.b16 %v4333, %v4325
    %v4830 = vpack.c.b16 %v4334, %v4326
    %v4831 = vpack.c.b16 %v4343, %v4335
    %v4832 = vpack.c.b16 %v4344, %v4336
    %v4833 = vpack.c.b16 %v4345, %v4337
    %v4834 = vpack.c.b16 %v4346, %v4338
    %v4835 = vpack.c.b16 %v4347, %v4339
    %v4836 = vpack.c.b16 %v4348, %v4340
    %v4837 = vpack.c.b16 %v4349, %v4341
    %v4838 = vpack.c.b16 %v4350, %v4342
    %v4839 = vpack.c.b16 %v4359, %v4351
    %v4840 = vpack.c.b16 %v4360, %v4352
    %v4841 = vpack.c.b16 %v4361, %v4353
    %v4842 = vpack.c.b16 %v4362, %v4354
    %v4843 = vpack.c.b16 %v4363, %v4355
    %v4844 = vpack.c.b16 %v4364, %v4356
    %v4845 = vpack.c.b16 %v4365, %v4357
    %v4846 = vpack.c.b16 %v4366, %v4358
    %v4847 = vpack.c.b16 %v4375, %v4367
    %v4848 = vpack.c.b16 %v4376, %v4368
    %v4849 = vpack.c.b16 %v4377, %v4369
    %v4850 = vpack.c.b16 %v4378, %v4370
    %v4851 = vpack.c.b16 %v4379, %v4371
    %v4852 = vpack.c.b16 %v4380, %v4372
    %v4853 = vpack.c.b16 %v4381, %v4373
    %v4854 = vpack.c.b16 %v4382, %v4374
    %v4855 = vpack.c.b16 %v4391, %v4383
    %v4856 = vpack.c.b16 %v4392, %v4384
    %v4857 = vpack.c.b16 %v4393, %v4385
    %v4858 = vpack.c.b16 %v4394, %v4386
    %v4859 = vpack.c.b16 %v4395, %v4387
    %v4860 = vpack.c.b16 %v4396, %v4388
    %v4861 = vpack.c.b16 %v4397, %v4389
    %v4862 = vpack.c.b16 %v4398, %v4390
    %v4863 = vpack.c.b16 %v4407, %v4399
    %v4864 = vpack.c.b16 %v4408, %v4400
    %v4865 = vpack.c.b16 %v4409, %v4401
    %v4866 = vpack.c.b16 %v4410, %v4402
    %v4867 = vpack.c.b16 %v4411, %v4403
    %v4868 = vpack.c.b16 %v4412, %v4404
    %v4869 = vpack.c.b16 %v4413, %v4405
    %v4870 = vpack.c.b16 %v4414, %v4406
    %v4871 = vpack.c.b16 %v4423, %v4415
    %v4872 = vpack.c.b16 %v4424, %v4416
    %v4873 = vpack.c.b16 %v4425, %v4417
    %v4874 = vpack.c.b16 %v4426, %v4418
    %v4875 = vpack.c.b16 %v4427, %v4419
    %v4876 = vpack.c.b16 %v4428, %v4420
    %v4877 = vpack.c.b16 %v4429, %v4421
    %v4878 = vpack.c.b16 %v4430, %v4422
    %v4879 = vpack.c.b16 %v4439, %v4431
    %v4880 = vpack.c.b16 %v4440, %v4432
    %v4881 = vpack.c.b16 %v4441, %v4433
    %v4882 = vpack.c.b16 %v4442, %v4434
    %v4883 = vpack.c.b16 %v4443, %v4435
    %v4884 = vpack.c.b16 %v4444, %v4436
    %v4885 = vpack.c.b16 %v4445, %v4437
    %v4886 = vpack.c.b16 %v4446, %v4438
    %v4887 = vpack.c.b16 %v4455, %v4447
    %v4888 = vpack.c.b16 %v4456, %v4448
    %v4889 = vpack.c.b16 %v4457, %v4449
    %v4890 = vpack.c.b16 %v4458, %v4450
    %v4891 = vpack.c.b16 %v4459, %v4451
    %v4892 = vpack.c.b16 %v4460, %v4452
    %v4893 = vpack.c.b16 %v4461, %v4453
    %v4894 = vpack.c.b16 %v4462, %v4454
    %v4895 = vpack.c.b16 %v4471, %v4463
    %v4896 = vpack.c.b16 %v4472, %v4464
    %v4897 = vpack.c.b16 %v4473, %v4465
    %v4898 = vpack.c.b16 %v4474, %v4466
    %v4899 = vpack.c.b16 %v4475, %v4467
    %v4900 = vpack.c.b16 %v4476, %v4468
    %v4901 = vpack.c.b16 %v4477, %v4469
    %v4902 = vpack.c.b16 %v4478, %v4470
    %v4903 = vpack.c.b16 %v4487, %v4479
    %v4904 = vpack.c.b16 %v4488, %v4480
    %v4905 = vpack.c.b16 %v4489, %v4481
    %v4906 = vpack.c.b16 %v4490, %v4482
    %v4907 = vpack.c.b16 %v4491, %v4483
    %v4908 = vpack.c.b16 %v4492, %v4484
    %v4909 = vpack.c.b16 %v4493, %v4485
    %v4910 = vpack.c.b16 %v4494, %v4486
    %v4911 = vpack.c.b16 %v4503, %v4495
    %v4912 = vpack.c.b16 %v4504, %v4496
    %v4913 = vpack.c.b16 %v4505, %v4497
    %v4914 = vpack.c.b16 %v4506, %v4498
    %v4915 = vpack.c.b16 %v4507, %v4499
    %v4916 = vpack.c.b16 %v4508, %v4500
    %v4917 = vpack.c.b16 %v4509, %v4501
    %v4918 = vpack.c.b16 %v4510, %v4502
    %v4919 = vpack.c.b16 %v4519, %v4511
    %v4920 = vpack.c.b16 %v4520, %v4512
    %v4921 = vpack.c.b16 %v4521, %v4513
    %v4922 = vpack.c.b16 %v4522, %v4514
    %v4923 = vpack.c.b16 %v4523, %v4515
    %v4924 = vpack.c.b16 %v4524, %v4516
    %v4925 = vpack.c.b16 %v4525, %v4517
    %v4926 = vpack.c.b16 %v4526, %v4518
    %v4927 = vpack.c.b16 %v4535, %v4527
    %v4928 = vpack.c.b16 %v4536, %v4528
    %v4929 = vpack.c.b16 %v4537, %v4529
    %v4930 = vpack.c.b16 %v4538, %v4530
    %v4931 = vpack.c.b16 %v4539, %v4531
    %v4932 = vpack.c.b16 %v4540, %v4532
    %v4933 = vpack.c.b16 %v4541, %v4533
    %v4934 = vpack.c.b16 %v4542, %v4534
    %v4935 = vpack.c.b16 %v4551, %v4543
    %v4936 = vpack.c.b16 %v4552, %v4544
    %v4937 = vpack.c.b16 %v4553, %v4545
    %v4938 = vpack.c.b16 %v4554, %v4546
    %v4939 = vpack.c.b16 %v4555, %v4547
    %v4940 = vpack.c.b16 %v4556, %v4548
    %v4941 = vpack.c.b16 %v4557, %v4549
    %v4942 = vpack.c.b16 %v4558, %v4550
    %5327 = vmatprep.subr.bf16.mxu0 %v4616
    %5328 = vmatpush1.bf16.msra.mxu0 %v4615
    %5329 = vmatprep.subr.bf16.mxu0 %v4608
    %5330 = vmatpush1.bf16.msra.mxu0 %v4607
    %5331 = vmatprep.subr.bf16.mxu0 %v4600
    %5332 = vmatpush1.bf16.msra.mxu0 %v4599
    %5333 = vmatprep.subr.bf16.mxu0 %v4592
    %5334 = vmatpush1.bf16.msra.mxu0 %v4591
    %5335 = vmatprep.subr.bf16.mxu0 %v4584
    %5336 = vmatpush1.bf16.msra.mxu0 %v4583
    %5337 = vmatprep.subr.bf16.mxu0 %v4576
    %5338 = vmatpush1.bf16.msra.mxu0 %v4575
    %5339 = vmatprep.subr.bf16.mxu0 %v4568
    %5340 = vmatpush1.bf16.msra.mxu0 %v4567
    %5341 = vmatprep.subr.bf16.mxu0 %v4560
    %5342 = vmatpush1.bf16.msra.mxu0 %v4559
    %5343 = vmatprep.subr.bf16.mxu0 %v4680
    %5344 = vmatpush2.bf16.msra.mxu0 %v4679
    %5345 = vmatprep.subr.bf16.mxu0 %v4672
    %5346 = vmatpush2.bf16.msra.mxu0 %v4671
    %5347 = vmatprep.subr.bf16.mxu0 %v4664
    %5348 = vmatpush2.bf16.msra.mxu0 %v4663
    %5349 = vmatprep.subr.bf16.mxu0 %v4656
    %5350 = vmatpush2.bf16.msra.mxu0 %v4655
    %5351 = vmatprep.subr.bf16.mxu0 %v4648
    %5352 = vmatpush2.bf16.msra.mxu0 %v4647
    %5353 = vmatprep.subr.bf16.mxu0 %v4640
    %5354 = vmatpush2.bf16.msra.mxu0 %v4639
    %5355 = vmatprep.subr.bf16.mxu0 %v4632
    %5356 = vmatpush2.bf16.msra.mxu0 %v4631
    %5357 = vmatprep.subr.bf16.mxu0 %v4624
    %5358 = vmatpush2.bf16.msra.mxu0 %v4623
    %5359 = vmatprep.mubr.bf16.mxu0 %v2976
    %5360 = vmatmul.mubr.bf16.gmra.mxu0 %v2975
    %v5361 = vpop.f32.mrf.mxu0
    %v5362 = vadd.f32 %v3370, %v5361
    %v5363 = vpop.f32.mrf.mxu0
    %v5364 = vadd.f32 %v3374, %v5363
    %v5365 = vpop.f32.mrf.mxu0
    %v5366 = vpop.f32.mrf.mxu0
    %5367 = vdwg.mxu0
    %5368 = vmatprep.subr.bf16.mxu0 %v4744
    %5369 = vmatpush1.bf16.msra.mxu0 %v4743
    %5370 = vmatprep.subr.bf16.mxu0 %v4736
    %5371 = vmatpush1.bf16.msra.mxu0 %v4735
    %5372 = vmatprep.subr.bf16.mxu0 %v4728
    %5373 = vmatpush1.bf16.msra.mxu0 %v4727
    %5374 = vmatprep.subr.bf16.mxu0 %v4720
    %5375 = vmatpush1.bf16.msra.mxu0 %v4719
    %5376 = vmatprep.subr.bf16.mxu0 %v4712
    %5377 = vmatpush1.bf16.msra.mxu0 %v4711
    %5378 = vmatprep.subr.bf16.mxu0 %v4704
    %5379 = vmatpush1.bf16.msra.mxu0 %v4703
    %5380 = vmatprep.subr.bf16.mxu0 %v4696
    %5381 = vmatpush1.bf16.msra.mxu0 %v4695
    %5382 = vmatprep.subr.bf16.mxu0 %v4688
    %5383 = vmatpush1.bf16.msra.mxu0 %v4687
    %5384 = vmatprep.subr.bf16.mxu0 %v4808
    %5385 = vmatpush2.bf16.msra.mxu0 %v4807
    %5386 = vmatprep.subr.bf16.mxu0 %v4800
    %5387 = vmatpush2.bf16.msra.mxu0 %v4799
    %5388 = vmatprep.subr.bf16.mxu0 %v4792
    %5389 = vmatpush2.bf16.msra.mxu0 %v4791
    %5390 = vmatprep.subr.bf16.mxu0 %v4784
    %5391 = vmatpush2.bf16.msra.mxu0 %v4783
    %5392 = vmatprep.subr.bf16.mxu0 %v4776
    %5393 = vmatpush2.bf16.msra.mxu0 %v4775
    %5394 = vmatprep.subr.bf16.mxu0 %v4768
    %5395 = vmatpush2.bf16.msra.mxu0 %v4767
    %5396 = vmatprep.subr.bf16.mxu0 %v4760
    %5397 = vmatpush2.bf16.msra.mxu0 %v4759
    %5398 = vmatprep.subr.bf16.mxu0 %v4752
    %5399 = vmatpush2.bf16.msra.mxu0 %v4751
    %5400 = vmatprep.mubr.bf16.mxu0 %v2978
    %5401 = vmatmul.mubr.bf16.gmra.mxu0 %v2977
    %v5402 = vpop.f32.mrf.mxu0
    %v5403 = vadd.f32 %v5362, %v5402
    %v5404 = vpop.f32.mrf.mxu0
    %v5405 = vadd.f32 %v5364, %v5404
    %v5406 = vpop.f32.mrf.mxu0
    %v5407 = vpop.f32.mrf.mxu0
    %5408 = vdwg.mxu0
    %5409 = vmatprep.subr.bf16.mxu0 %v4872
    %5410 = vmatpush1.bf16.msra.mxu0 %v4871
    %5411 = vmatprep.subr.bf16.mxu0 %v4864
    %5412 = vmatpush1.bf16.msra.mxu0 %v4863
    %5413 = vmatprep.subr.bf16.mxu0 %v4856
    %5414 = vmatpush1.bf16.msra.mxu0 %v4855
    %5415 = vmatprep.subr.bf16.mxu0 %v4848
    %5416 = vmatpush1.bf16.msra.mxu0 %v4847
    %5417 = vmatprep.subr.bf16.mxu0 %v4840
    %5418 = vmatpush1.bf16.msra.mxu0 %v4839
    %5419 = vmatprep.subr.bf16.mxu0 %v4832
    %5420 = vmatpush1.bf16.msra.mxu0 %v4831
    %5421 = vmatprep.subr.bf16.mxu0 %v4824
    %5422 = vmatpush1.bf16.msra.mxu0 %v4823
    %5423 = vmatprep.subr.bf16.mxu0 %v4816
    %5424 = vmatpush1.bf16.msra.mxu0 %v4815
    %5425 = vmatprep.subr.bf16.mxu0 %v4936
    %5426 = vmatpush2.bf16.msra.mxu0 %v4935
    %5427 = vmatprep.subr.bf16.mxu0 %v4928
    %5428 = vmatpush2.bf16.msra.mxu0 %v4927
    %5429 = vmatprep.subr.bf16.mxu0 %v4920
    %5430 = vmatpush2.bf16.msra.mxu0 %v4919
    %5431 = vmatprep.subr.bf16.mxu0 %v4912
    %5432 = vmatpush2.bf16.msra.mxu0 %v4911
    %5433 = vmatprep.subr.bf16.mxu0 %v4904
    %5434 = vmatpush2.bf16.msra.mxu0 %v4903
    %5435 = vmatprep.subr.bf16.mxu0 %v4896
    %5436 = vmatpush2.bf16.msra.mxu0 %v4895
    %5437 = vmatprep.subr.bf16.mxu0 %v4888
    %5438 = vmatpush2.bf16.msra.mxu0 %v4887
    %5439 = vmatprep.subr.bf16.mxu0 %v4880
    %5440 = vmatpush2.bf16.msra.mxu0 %v4879
    %5441 = vmatprep.mubr.bf16.mxu0 %v2980
    %5442 = vmatmul.mubr.bf16.gmra.mxu0 %v2979
    %v5443 = vpop.f32.mrf.mxu0
    %v5444 = vadd.f32 %v5403, %v5443
    %v5445 = vpop.f32.mrf.mxu0
    %v5446 = vadd.f32 %v5405, %v5445
    %v5447 = vpop.f32.mrf.mxu0
    %v5448 = vpop.f32.mrf.mxu0
    %5449 = vdwg.mxu0
    %5450 = vmatprep.subr.bf16.mxu0 %v4618
    %5451 = vmatpush1.bf16.msra.mxu0 %v4617
    %5452 = vmatprep.subr.bf16.mxu0 %v4610
    %5453 = vmatpush1.bf16.msra.mxu0 %v4609
    %5454 = vmatprep.subr.bf16.mxu0 %v4602
    %5455 = vmatpush1.bf16.msra.mxu0 %v4601
    %5456 = vmatprep.subr.bf16.mxu0 %v4594
    %5457 = vmatpush1.bf16.msra.mxu0 %v4593
    %5458 = vmatprep.subr.bf16.mxu0 %v4586
    %5459 = vmatpush1.bf16.msra.mxu0 %v4585
    %5460 = vmatprep.subr.bf16.mxu0 %v4578
    %5461 = vmatpush1.bf16.msra.mxu0 %v4577
    %5462 = vmatprep.subr.bf16.mxu0 %v4570
    %5463 = vmatpush1.bf16.msra.mxu0 %v4569
    %5464 = vmatprep.subr.bf16.mxu0 %v4562
    %5465 = vmatpush1.bf16.msra.mxu0 %v4561
    %5466 = vmatprep.subr.bf16.mxu0 %v4682
    %5467 = vmatpush2.bf16.msra.mxu0 %v4681
    %5468 = vmatprep.subr.bf16.mxu0 %v4674
    %5469 = vmatpush2.bf16.msra.mxu0 %v4673
    %5470 = vmatprep.subr.bf16.mxu0 %v4666
    %5471 = vmatpush2.bf16.msra.mxu0 %v4665
    %5472 = vmatprep.subr.bf16.mxu0 %v4658
    %5473 = vmatpush2.bf16.msra.mxu0 %v4657
    %5474 = vmatprep.subr.bf16.mxu0 %v4650
    %5475 = vmatpush2.bf16.msra.mxu0 %v4649
    %5476 = vmatprep.subr.bf16.mxu0 %v4642
    %5477 = vmatpush2.bf16.msra.mxu0 %v4641
    %5478 = vmatprep.subr.bf16.mxu0 %v4634
    %5479 = vmatpush2.bf16.msra.mxu0 %v4633
    %5480 = vmatprep.subr.bf16.mxu0 %v4626
    %5481 = vmatpush2.bf16.msra.mxu0 %v4625
    %5482 = vmatprep.mubr.bf16.mxu0 %v2976
    %5483 = vmatmul.mubr.bf16.gmra.mxu0 %v2975
    %v5484 = vpop.f32.mrf.mxu0
    %v5485 = vadd.f32 %v3378, %v5484
    %v5486 = vpop.f32.mrf.mxu0
    %v5487 = vadd.f32 %v3382, %v5486
    %v5488 = vpop.f32.mrf.mxu0
    %v5489 = vpop.f32.mrf.mxu0
    %5490 = vdwg.mxu0
    %5491 = vmatprep.subr.bf16.mxu0 %v4746
    %5492 = vmatpush1.bf16.msra.mxu0 %v4745
    %5493 = vmatprep.subr.bf16.mxu0 %v4738
    %5494 = vmatpush1.bf16.msra.mxu0 %v4737
    %5495 = vmatprep.subr.bf16.mxu0 %v4730
    %5496 = vmatpush1.bf16.msra.mxu0 %v4729
    %5497 = vmatprep.subr.bf16.mxu0 %v4722
    %5498 = vmatpush1.bf16.msra.mxu0 %v4721
    %5499 = vmatprep.subr.bf16.mxu0 %v4714
    %5500 = vmatpush1.bf16.msra.mxu0 %v4713
    %5501 = vmatprep.subr.bf16.mxu0 %v4706
    %5502 = vmatpush1.bf16.msra.mxu0 %v4705
    %5503 = vmatprep.subr.bf16.mxu0 %v4698
    %5504 = vmatpush1.bf16.msra.mxu0 %v4697
    %5505 = vmatprep.subr.bf16.mxu0 %v4690
    %5506 = vmatpush1.bf16.msra.mxu0 %v4689
    %5507 = vmatprep.subr.bf16.mxu0 %v4810
    %5508 = vmatpush2.bf16.msra.mxu0 %v4809
    %5509 = vmatprep.subr.bf16.mxu0 %v4802
    %5510 = vmatpush2.bf16.msra.mxu0 %v4801
    %5511 = vmatprep.subr.bf16.mxu0 %v4794
    %5512 = vmatpush2.bf16.msra.mxu0 %v4793
    %5513 = vmatprep.subr.bf16.mxu0 %v4786
    %5514 = vmatpush2.bf16.msra.mxu0 %v4785
    %5515 = vmatprep.subr.bf16.mxu0 %v4778
    %5516 = vmatpush2.bf16.msra.mxu0 %v4777
    %5517 = vmatprep.subr.bf16.mxu0 %v4770
    %5518 = vmatpush2.bf16.msra.mxu0 %v4769
    %5519 = vmatprep.subr.bf16.mxu0 %v4762
    %5520 = vmatpush2.bf16.msra.mxu0 %v4761
    %5521 = vmatprep.subr.bf16.mxu0 %v4754
    %5522 = vmatpush2.bf16.msra.mxu0 %v4753
    %5523 = vmatprep.mubr.bf16.mxu0 %v2978
    %5524 = vmatmul.mubr.bf16.gmra.mxu0 %v2977
    %v5525 = vpop.f32.mrf.mxu0
    %v5526 = vadd.f32 %v5485, %v5525
    %v5527 = vpop.f32.mrf.mxu0
    %v5528 = vadd.f32 %v5487, %v5527
    %v5529 = vpop.f32.mrf.mxu0
    %v5530 = vpop.f32.mrf.mxu0
    %5531 = vdwg.mxu0
    %5532 = vmatprep.subr.bf16.mxu0 %v4874
    %5533 = vmatpush1.bf16.msra.mxu0 %v4873
    %5534 = vmatprep.subr.bf16.mxu0 %v4866
    %5535 = vmatpush1.bf16.msra.mxu0 %v4865
    %5536 = vmatprep.subr.bf16.mxu0 %v4858
    %5537 = vmatpush1.bf16.msra.mxu0 %v4857
    %5538 = vmatprep.subr.bf16.mxu0 %v4850
    %5539 = vmatpush1.bf16.msra.mxu0 %v4849
    %5540 = vmatprep.subr.bf16.mxu0 %v4842
    %5541 = vmatpush1.bf16.msra.mxu0 %v4841
    %5542 = vmatprep.subr.bf16.mxu0 %v4834
    %5543 = vmatpush1.bf16.msra.mxu0 %v4833
    %5544 = vmatprep.subr.bf16.mxu0 %v4826
    %5545 = vmatpush1.bf16.msra.mxu0 %v4825
    %5546 = vmatprep.subr.bf16.mxu0 %v4818
    %5547 = vmatpush1.bf16.msra.mxu0 %v4817
    %5548 = vmatprep.subr.bf16.mxu0 %v4938
    %5549 = vmatpush2.bf16.msra.mxu0 %v4937
    %5550 = vmatprep.subr.bf16.mxu0 %v4930
    %5551 = vmatpush2.bf16.msra.mxu0 %v4929
    %5552 = vmatprep.subr.bf16.mxu0 %v4922
    %5553 = vmatpush2.bf16.msra.mxu0 %v4921
    %5554 = vmatprep.subr.bf16.mxu0 %v4914
    %5555 = vmatpush2.bf16.msra.mxu0 %v4913
    %5556 = vmatprep.subr.bf16.mxu0 %v4906
    %5557 = vmatpush2.bf16.msra.mxu0 %v4905
    %5558 = vmatprep.subr.bf16.mxu0 %v4898
    %5559 = vmatpush2.bf16.msra.mxu0 %v4897
    %5560 = vmatprep.subr.bf16.mxu0 %v4890
    %5561 = vmatpush2.bf16.msra.mxu0 %v4889
    %5562 = vmatprep.subr.bf16.mxu0 %v4882
    %5563 = vmatpush2.bf16.msra.mxu0 %v4881
    %5564 = vmatprep.mubr.bf16.mxu0 %v2980
    %5565 = vmatmul.mubr.bf16.gmra.mxu0 %v2979
    %v5566 = vpop.f32.mrf.mxu0
    %v5567 = vadd.f32 %v5526, %v5566
    %v5568 = vpop.f32.mrf.mxu0
    %v5569 = vadd.f32 %v5528, %v5568
    %v5570 = vpop.f32.mrf.mxu0
    %v5571 = vpop.f32.mrf.mxu0
    %5572 = vdwg.mxu0
    %5573 = vmatprep.subr.bf16.mxu0 %v4620
    %5574 = vmatpush1.bf16.msra.mxu0 %v4619
    %5575 = vmatprep.subr.bf16.mxu0 %v4612
    %5576 = vmatpush1.bf16.msra.mxu0 %v4611
    %5577 = vmatprep.subr.bf16.mxu0 %v4604
    %5578 = vmatpush1.bf16.msra.mxu0 %v4603
    %5579 = vmatprep.subr.bf16.mxu0 %v4596
    %5580 = vmatpush1.bf16.msra.mxu0 %v4595
    %5581 = vmatprep.subr.bf16.mxu0 %v4588
    %5582 = vmatpush1.bf16.msra.mxu0 %v4587
    %5583 = vmatprep.subr.bf16.mxu0 %v4580
    %5584 = vmatpush1.bf16.msra.mxu0 %v4579
    %5585 = vmatprep.subr.bf16.mxu0 %v4572
    %5586 = vmatpush1.bf16.msra.mxu0 %v4571
    %5587 = vmatprep.subr.bf16.mxu0 %v4564
    %5588 = vmatpush1.bf16.msra.mxu0 %v4563
    %5589 = vmatprep.subr.bf16.mxu0 %v4684
    %5590 = vmatpush2.bf16.msra.mxu0 %v4683
    %5591 = vmatprep.subr.bf16.mxu0 %v4676
    %5592 = vmatpush2.bf16.msra.mxu0 %v4675
    %5593 = vmatprep.subr.bf16.mxu0 %v4668
    %5594 = vmatpush2.bf16.msra.mxu0 %v4667
    %5595 = vmatprep.subr.bf16.mxu0 %v4660
    %5596 = vmatpush2.bf16.msra.mxu0 %v4659
    %5597 = vmatprep.subr.bf16.mxu0 %v4652
    %5598 = vmatpush2.bf16.msra.mxu0 %v4651
    %5599 = vmatprep.subr.bf16.mxu0 %v4644
    %5600 = vmatpush2.bf16.msra.mxu0 %v4643
    %5601 = vmatprep.subr.bf16.mxu0 %v4636
    %5602 = vmatpush2.bf16.msra.mxu0 %v4635
    %5603 = vmatprep.subr.bf16.mxu0 %v4628
    %5604 = vmatpush2.bf16.msra.mxu0 %v4627
    %5605 = vmatprep.mubr.bf16.mxu0 %v2976
    %5606 = vmatmul.mubr.bf16.gmra.mxu0 %v2975
    %v5607 = vpop.f32.mrf.mxu0
    %v5608 = vadd.f32 %v3386, %v5607
    %v5609 = vpop.f32.mrf.mxu0
    %v5610 = vadd.f32 %v3390, %v5609
    %v5611 = vpop.f32.mrf.mxu0
    %v5612 = vpop.f32.mrf.mxu0
    %5613 = vdwg.mxu0
    %5614 = vmatprep.subr.bf16.mxu0 %v4748
    %5615 = vmatpush1.bf16.msra.mxu0 %v4747
    %5616 = vmatprep.subr.bf16.mxu0 %v4740
    %5617 = vmatpush1.bf16.msra.mxu0 %v4739
    %5618 = vmatprep.subr.bf16.mxu0 %v4732
    %5619 = vmatpush1.bf16.msra.mxu0 %v4731
    %5620 = vmatprep.subr.bf16.mxu0 %v4724
    %5621 = vmatpush1.bf16.msra.mxu0 %v4723
    %5622 = vmatprep.subr.bf16.mxu0 %v4716
    %5623 = vmatpush1.bf16.msra.mxu0 %v4715
    %5624 = vmatprep.subr.bf16.mxu0 %v4708
    %5625 = vmatpush1.bf16.msra.mxu0 %v4707
    %5626 = vmatprep.subr.bf16.mxu0 %v4700
    %5627 = vmatpush1.bf16.msra.mxu0 %v4699
    %5628 = vmatprep.subr.bf16.mxu0 %v4692
    %5629 = vmatpush1.bf16.msra.mxu0 %v4691
    %5630 = vmatprep.subr.bf16.mxu0 %v4812
    %5631 = vmatpush2.bf16.msra.mxu0 %v4811
    %5632 = vmatprep.subr.bf16.mxu0 %v4804
    %5633 = vmatpush2.bf16.msra.mxu0 %v4803
    %5634 = vmatprep.subr.bf16.mxu0 %v4796
    %5635 = vmatpush2.bf16.msra.mxu0 %v4795
    %5636 = vmatprep.subr.bf16.mxu0 %v4788
    %5637 = vmatpush2.bf16.msra.mxu0 %v4787
    %5638 = vmatprep.subr.bf16.mxu0 %v4780
    %5639 = vmatpush2.bf16.msra.mxu0 %v4779
    %5640 = vmatprep.subr.bf16.mxu0 %v4772
    %5641 = vmatpush2.bf16.msra.mxu0 %v4771
    %5642 = vmatprep.subr.bf16.mxu0 %v4764
    %5643 = vmatpush2.bf16.msra.mxu0 %v4763
    %5644 = vmatprep.subr.bf16.mxu0 %v4756
    %5645 = vmatpush2.bf16.msra.mxu0 %v4755
    %5646 = vmatprep.mubr.bf16.mxu0 %v2978
    %5647 = vmatmul.mubr.bf16.gmra.mxu0 %v2977
    %v5648 = vpop.f32.mrf.mxu0
    %v5649 = vadd.f32 %v5608, %v5648
    %v5650 = vpop.f32.mrf.mxu0
    %v5651 = vadd.f32 %v5610, %v5650
    %v5652 = vpop.f32.mrf.mxu0
    %v5653 = vpop.f32.mrf.mxu0
    %5654 = vdwg.mxu0
    %5655 = vmatprep.subr.bf16.mxu0 %v4876
    %5656 = vmatpush1.bf16.msra.mxu0 %v4875
    %5657 = vmatprep.subr.bf16.mxu0 %v4868
    %5658 = vmatpush1.bf16.msra.mxu0 %v4867
    %5659 = vmatprep.subr.bf16.mxu0 %v4860
    %5660 = vmatpush1.bf16.msra.mxu0 %v4859
    %5661 = vmatprep.subr.bf16.mxu0 %v4852
    %5662 = vmatpush1.bf16.msra.mxu0 %v4851
    %5663 = vmatprep.subr.bf16.mxu0 %v4844
    %5664 = vmatpush1.bf16.msra.mxu0 %v4843
    %5665 = vmatprep.subr.bf16.mxu0 %v4836
    %5666 = vmatpush1.bf16.msra.mxu0 %v4835
    %5667 = vmatprep.subr.bf16.mxu0 %v4828
    %5668 = vmatpush1.bf16.msra.mxu0 %v4827
    %5669 = vmatprep.subr.bf16.mxu0 %v4820
    %5670 = vmatpush1.bf16.msra.mxu0 %v4819
    %5671 = vmatprep.subr.bf16.mxu0 %v4940
    %5672 = vmatpush2.bf16.msra.mxu0 %v4939
    %5673 = vmatprep.subr.bf16.mxu0 %v4932
    %5674 = vmatpush2.bf16.msra.mxu0 %v4931
    %5675 = vmatprep.subr.bf16.mxu0 %v4924
    %5676 = vmatpush2.bf16.msra.mxu0 %v4923
    %5677 = vmatprep.subr.bf16.mxu0 %v4916
    %5678 = vmatpush2.bf16.msra.mxu0 %v4915
    %5679 = vmatprep.subr.bf16.mxu0 %v4908
    %5680 = vmatpush2.bf16.msra.mxu0 %v4907
    %5681 = vmatprep.subr.bf16.mxu0 %v4900
    %5682 = vmatpush2.bf16.msra.mxu0 %v4899
    %5683 = vmatprep.subr.bf16.mxu0 %v4892
    %5684 = vmatpush2.bf16.msra.mxu0 %v4891
    %5685 = vmatprep.subr.bf16.mxu0 %v4884
    %5686 = vmatpush2.bf16.msra.mxu0 %v4883
    %5687 = vmatprep.mubr.bf16.mxu0 %v2980
    %5688 = vmatmul.mubr.bf16.gmra.mxu0 %v2979
    %v5689 = vpop.f32.mrf.mxu0
    %v5690 = vadd.f32 %v5649, %v5689
    %v5691 = vpop.f32.mrf.mxu0
    %v5692 = vadd.f32 %v5651, %v5691
    %v5693 = vpop.f32.mrf.mxu0
    %v5694 = vpop.f32.mrf.mxu0
    %5695 = vdwg.mxu0
    %5696 = vmatprep.subr.bf16.mxu0 %v4622
    %5697 = vmatpush1.bf16.msra.mxu0 %v4621
    %5698 = vmatprep.subr.bf16.mxu0 %v4614
    %5699 = vmatpush1.bf16.msra.mxu0 %v4613
    %5700 = vmatprep.subr.bf16.mxu0 %v4606
    %5701 = vmatpush1.bf16.msra.mxu0 %v4605
    %5702 = vmatprep.subr.bf16.mxu0 %v4598
    %5703 = vmatpush1.bf16.msra.mxu0 %v4597
    %5704 = vmatprep.subr.bf16.mxu0 %v4590
    %5705 = vmatpush1.bf16.msra.mxu0 %v4589
    %5706 = vmatprep.subr.bf16.mxu0 %v4582
    %5707 = vmatpush1.bf16.msra.mxu0 %v4581
    %5708 = vmatprep.subr.bf16.mxu0 %v4574
    %5709 = vmatpush1.bf16.msra.mxu0 %v4573
    %5710 = vmatprep.subr.bf16.mxu0 %v4566
    %5711 = vmatpush1.bf16.msra.mxu0 %v4565
    %5712 = vmatprep.subr.bf16.mxu0 %v4686
    %5713 = vmatpush2.bf16.msra.mxu0 %v4685
    %5714 = vmatprep.subr.bf16.mxu0 %v4678
    %5715 = vmatpush2.bf16.msra.mxu0 %v4677
    %5716 = vmatprep.subr.bf16.mxu0 %v4670
    %5717 = vmatpush2.bf16.msra.mxu0 %v4669
    %5718 = vmatprep.subr.bf16.mxu0 %v4662
    %5719 = vmatpush2.bf16.msra.mxu0 %v4661
    %5720 = vmatprep.subr.bf16.mxu0 %v4654
    %5721 = vmatpush2.bf16.msra.mxu0 %v4653
    %5722 = vmatprep.subr.bf16.mxu0 %v4646
    %5723 = vmatpush2.bf16.msra.mxu0 %v4645
    %5724 = vmatprep.subr.bf16.mxu0 %v4638
    %5725 = vmatpush2.bf16.msra.mxu0 %v4637
    %5726 = vmatprep.subr.bf16.mxu0 %v4630
    %5727 = vmatpush2.bf16.msra.mxu0 %v4629
    %5728 = vmatprep.mubr.bf16.mxu0 %v2976
    %5729 = vmatmul.mubr.bf16.gmra.mxu0 %v2975
    %v5730 = vpop.f32.mrf.mxu0
    %v5731 = vadd.f32 %v3394, %v5730
    %v5732 = vpop.f32.mrf.mxu0
    %v5733 = vadd.f32 %v3398, %v5732
    %v5734 = vpop.f32.mrf.mxu0
    %v5735 = vpop.f32.mrf.mxu0
    %5736 = vdwg.mxu0
    %5737 = vmatprep.subr.bf16.mxu0 %v4750
    %5738 = vmatpush1.bf16.msra.mxu0 %v4749
    %5739 = vmatprep.subr.bf16.mxu0 %v4742
    %5740 = vmatpush1.bf16.msra.mxu0 %v4741
    %5741 = vmatprep.subr.bf16.mxu0 %v4734
    %5742 = vmatpush1.bf16.msra.mxu0 %v4733
    %5743 = vmatprep.subr.bf16.mxu0 %v4726
    %5744 = vmatpush1.bf16.msra.mxu0 %v4725
    %5745 = vmatprep.subr.bf16.mxu0 %v4718
    %5746 = vmatpush1.bf16.msra.mxu0 %v4717
    %5747 = vmatprep.subr.bf16.mxu0 %v4710
    %5748 = vmatpush1.bf16.msra.mxu0 %v4709
    %5749 = vmatprep.subr.bf16.mxu0 %v4702
    %5750 = vmatpush1.bf16.msra.mxu0 %v4701
    %5751 = vmatprep.subr.bf16.mxu0 %v4694
    %5752 = vmatpush1.bf16.msra.mxu0 %v4693
    %5753 = vmatprep.subr.bf16.mxu0 %v4814
    %5754 = vmatpush2.bf16.msra.mxu0 %v4813
    %5755 = vmatprep.subr.bf16.mxu0 %v4806
    %5756 = vmatpush2.bf16.msra.mxu0 %v4805
    %5757 = vmatprep.subr.bf16.mxu0 %v4798
    %5758 = vmatpush2.bf16.msra.mxu0 %v4797
    %5759 = vmatprep.subr.bf16.mxu0 %v4790
    %5760 = vmatpush2.bf16.msra.mxu0 %v4789
    %5761 = vmatprep.subr.bf16.mxu0 %v4782
    %5762 = vmatpush2.bf16.msra.mxu0 %v4781
    %5763 = vmatprep.subr.bf16.mxu0 %v4774
    %5764 = vmatpush2.bf16.msra.mxu0 %v4773
    %5765 = vmatprep.subr.bf16.mxu0 %v4766
    %5766 = vmatpush2.bf16.msra.mxu0 %v4765
    %5767 = vmatprep.subr.bf16.mxu0 %v4758
    %5768 = vmatpush2.bf16.msra.mxu0 %v4757
    %5769 = vmatprep.mubr.bf16.mxu0 %v2978
    %5770 = vmatmul.mubr.bf16.gmra.mxu0 %v2977
    %v5771 = vpop.f32.mrf.mxu0
    %v5772 = vadd.f32 %v5731, %v5771
    %v5773 = vpop.f32.mrf.mxu0
    %v5774 = vadd.f32 %v5733, %v5773
    %v5775 = vpop.f32.mrf.mxu0
    %v5776 = vpop.f32.mrf.mxu0
    %5777 = vdwg.mxu0
    %5778 = vmatprep.subr.bf16.mxu0 %v4878
    %5779 = vmatpush1.bf16.msra.mxu0 %v4877
    %5780 = vmatprep.subr.bf16.mxu0 %v4870
    %5781 = vmatpush1.bf16.msra.mxu0 %v4869
    %5782 = vmatprep.subr.bf16.mxu0 %v4862
    %5783 = vmatpush1.bf16.msra.mxu0 %v4861
    %5784 = vmatprep.subr.bf16.mxu0 %v4854
    %5785 = vmatpush1.bf16.msra.mxu0 %v4853
    %5786 = vmatprep.subr.bf16.mxu0 %v4846
    %5787 = vmatpush1.bf16.msra.mxu0 %v4845
    %5788 = vmatprep.subr.bf16.mxu0 %v4838
    %5789 = vmatpush1.bf16.msra.mxu0 %v4837
    %5790 = vmatprep.subr.bf16.mxu0 %v4830
    %5791 = vmatpush1.bf16.msra.mxu0 %v4829
    %5792 = vmatprep.subr.bf16.mxu0 %v4822
    %5793 = vmatpush1.bf16.msra.mxu0 %v4821
    %5794 = vmatprep.subr.bf16.mxu0 %v4942
    %5795 = vmatpush2.bf16.msra.mxu0 %v4941
    %5796 = vmatprep.subr.bf16.mxu0 %v4934
    %5797 = vmatpush2.bf16.msra.mxu0 %v4933
    %5798 = vmatprep.subr.bf16.mxu0 %v4926
    %5799 = vmatpush2.bf16.msra.mxu0 %v4925
    %5800 = vmatprep.subr.bf16.mxu0 %v4918
    %5801 = vmatpush2.bf16.msra.mxu0 %v4917
    %5802 = vmatprep.subr.bf16.mxu0 %v4910
    %5803 = vmatpush2.bf16.msra.mxu0 %v4909
    %5804 = vmatprep.subr.bf16.mxu0 %v4902
    %5805 = vmatpush2.bf16.msra.mxu0 %v4901
    %5806 = vmatprep.subr.bf16.mxu0 %v4894
    %5807 = vmatpush2.bf16.msra.mxu0 %v4893
    %5808 = vmatprep.subr.bf16.mxu0 %v4886
    %5809 = vmatpush2.bf16.msra.mxu0 %v4885
    %5810 = vmatprep.mubr.bf16.mxu0 %v2980
    %5811 = vmatmul.mubr.bf16.gmra.mxu0 %v2979
    %v5812 = vpop.f32.mrf.mxu0
    %v5813 = vadd.f32 %v5772, %v5812
    %v5814 = vpop.f32.mrf.mxu0
    %v5815 = vadd.f32 %v5774, %v5814
    %v5816 = vpop.f32.mrf.mxu0
    %v5817 = vpop.f32.mrf.mxu0
    %5818 = vdwg.mxu0
    %v5819 = vmax.f32 %v5444, 0.0
    %v5820 = vmax.f32 %v5446, 0.0
    %v5821 = vmax.f32 %v5567, 0.0
    %v5822 = vmax.f32 %v5569, 0.0
    %v5823 = vmax.f32 %v5690, 0.0
    %v5824 = vmax.f32 %v5692, 0.0
    %v5825 = vmax.f32 %v5813, 0.0
    %v5826 = vmax.f32 %v5815, 0.0
    %v5827 = vpack.c.bf16 %v5819, %v5819
    %v5828 = vpack.c.bf16 %v5820, %v5820
    %v5829 = vpack.c.bf16 %v5821, %v5821
    %v5830 = vpack.c.bf16 %v5822, %v5822
    %v5831 = vpack.c.bf16 %v5823, %v5823
    %v5832 = vpack.c.bf16 %v5824, %v5824
    %v5833 = vpack.c.bf16 %v5825, %v5825
    %v5834 = vpack.c.bf16 %v5826, %v5826
    %v5835 = vld [vmem:[#allocation11] sm:$0xf]
    %v5836 = vld [vmem:[#allocation11 + $0x4] sm:$0xf]
    %v5837 = vld [vmem:[#allocation11 + $0x8] sm:$0xf]
    %v5838 = vld [vmem:[#allocation11 + $0xc] sm:$0xf]
    %v5839 = vld [vmem:[#allocation11 + $0x10] sm:$0xf]
    %v5840 = vld [vmem:[#allocation11 + $0x14] sm:$0xf]
    %v5841 = vld [vmem:[#allocation11 + $0x18] sm:$0xf]
    %v5842 = vld [vmem:[#allocation11 + $0x1c] sm:$0xf]
    %v5843 = vld [vmem:[#allocation11 + $0x20] sm:$0xf]
    %v5844 = vld [vmem:[#allocation11 + $0x24] sm:$0xf]
    %v5845 = vld [vmem:[#allocation11 + $0x28] sm:$0xf]
    %v5846 = vld [vmem:[#allocation11 + $0x2c] sm:$0xf]
    %v5847 = vld [vmem:[#allocation11 + $0x30] sm:$0xf]
    %v5848 = vld [vmem:[#allocation11 + $0x34] sm:$0xf]
    %v5849 = vld [vmem:[#allocation11 + $0x38] sm:$0xf]
    %v5850 = vld [vmem:[#allocation11 + $0x3c] sm:$0xf]
    %v5851 = vld [vmem:[#allocation11 + $0x40] sm:$0xf]
    %v5852 = vld [vmem:[#allocation11 + $0x44] sm:$0xf]
    %v5853 = vld [vmem:[#allocation11 + $0x48] sm:$0xf]
    %v5854 = vld [vmem:[#allocation11 + $0x4c] sm:$0xf]
    %v5855 = vld [vmem:[#allocation11 + $0x50] sm:$0xf]
    %v5856 = vld [vmem:[#allocation11 + $0x54] sm:$0xf]
    %v5857 = vld [vmem:[#allocation11 + $0x58] sm:$0xf]
    %v5858 = vld [vmem:[#allocation11 + $0x5c] sm:$0xf]
    %v5859 = vld [vmem:[#allocation11 + $0x60] sm:$0xf]
    %v5860 = vld [vmem:[#allocation11 + $0x64] sm:$0xf]
    %v5861 = vld [vmem:[#allocation11 + $0x68] sm:$0xf]
    %v5862 = vld [vmem:[#allocation11 + $0x6c] sm:$0xf]
    %v5863 = vld [vmem:[#allocation11 + $0x70] sm:$0xf]
    %v5864 = vld [vmem:[#allocation11 + $0x74] sm:$0xf]
    %v5865 = vld [vmem:[#allocation11 + $0x78] sm:$0xf]
    %v5866 = vld [vmem:[#allocation11 + $0x7c] sm:$0xf]
    %v5867 = vld [vmem:[#allocation11 + $0x80] sm:$0xf]
    %v5868 = vld [vmem:[#allocation11 + $0x84] sm:$0xf]
    %v5869 = vld [vmem:[#allocation11 + $0x88] sm:$0xf]
    %v5870 = vld [vmem:[#allocation11 + $0x8c] sm:$0xf]
    %v5871 = vld [vmem:[#allocation11 + $0x90] sm:$0xf]
    %v5872 = vld [vmem:[#allocation11 + $0x94] sm:$0xf]
    %v5873 = vld [vmem:[#allocation11 + $0x98] sm:$0xf]
    %v5874 = vld [vmem:[#allocation11 + $0x9c] sm:$0xf]
    %v5875 = vld [vmem:[#allocation11 + $0xa0] sm:$0xf]
    %v5876 = vld [vmem:[#allocation11 + $0xa4] sm:$0xf]
    %v5877 = vld [vmem:[#allocation11 + $0xa8] sm:$0xf]
    %v5878 = vld [vmem:[#allocation11 + $0xac] sm:$0xf]
    %v5879 = vld [vmem:[#allocation11 + $0xb0] sm:$0xf]
    %v5880 = vld [vmem:[#allocation11 + $0xb4] sm:$0xf]
    %v5881 = vld [vmem:[#allocation11 + $0xb8] sm:$0xf]
    %v5882 = vld [vmem:[#allocation11 + $0xbc] sm:$0xf]
    %v5883 = vld [vmem:[#allocation11 + $0xc0] sm:$0xf]
    %v5884 = vld [vmem:[#allocation11 + $0xc4] sm:$0xf]
    %v5885 = vld [vmem:[#allocation11 + $0xc8] sm:$0xf]
    %v5886 = vld [vmem:[#allocation11 + $0xcc] sm:$0xf]
    %v5887 = vld [vmem:[#allocation11 + $0xd0] sm:$0xf]
    %v5888 = vld [vmem:[#allocation11 + $0xd4] sm:$0xf]
    %v5889 = vld [vmem:[#allocation11 + $0xd8] sm:$0xf]
    %v5890 = vld [vmem:[#allocation11 + $0xdc] sm:$0xf]
    %v5891 = vld [vmem:[#allocation11 + $0xe0] sm:$0xf]
    %v5892 = vld [vmem:[#allocation11 + $0xe4] sm:$0xf]
    %v5893 = vld [vmem:[#allocation11 + $0xe8] sm:$0xf]
    %v5894 = vld [vmem:[#allocation11 + $0xec] sm:$0xf]
    %v5895 = vld [vmem:[#allocation11 + $0xf0] sm:$0xf]
    %v5896 = vld [vmem:[#allocation11 + $0xf4] sm:$0xf]
    %v5897 = vld [vmem:[#allocation11 + $0xf8] sm:$0xf]
    %v5898 = vld [vmem:[#allocation11 + $0xfc] sm:$0xf]
    %v5899 = vld [vmem:[#allocation11 + $0x100] sm:$0xf]
    %v5900 = vld [vmem:[#allocation11 + $0x104] sm:$0xf]
    %v5901 = vld [vmem:[#allocation11 + $0x108] sm:$0xf]
    %v5902 = vld [vmem:[#allocation11 + $0x10c] sm:$0xf]
    %v5903 = vld [vmem:[#allocation11 + $0x110] sm:$0xf]
    %v5904 = vld [vmem:[#allocation11 + $0x114] sm:$0xf]
    %v5905 = vld [vmem:[#allocation11 + $0x118] sm:$0xf]
    %v5906 = vld [vmem:[#allocation11 + $0x11c] sm:$0xf]
    %v5907 = vld [vmem:[#allocation11 + $0x120] sm:$0xf]
    %v5908 = vld [vmem:[#allocation11 + $0x124] sm:$0xf]
    %v5909 = vld [vmem:[#allocation11 + $0x128] sm:$0xf]
    %v5910 = vld [vmem:[#allocation11 + $0x12c] sm:$0xf]
    %v5911 = vld [vmem:[#allocation11 + $0x130] sm:$0xf]
    %v5912 = vld [vmem:[#allocation11 + $0x134] sm:$0xf]
    %v5913 = vld [vmem:[#allocation11 + $0x138] sm:$0xf]
    %v5914 = vld [vmem:[#allocation11 + $0x13c] sm:$0xf]
    %v5915 = vld [vmem:[#allocation11 + $0x140] sm:$0xf]
    %v5916 = vld [vmem:[#allocation11 + $0x144] sm:$0xf]
    %v5917 = vld [vmem:[#allocation11 + $0x148] sm:$0xf]
    %v5918 = vld [vmem:[#allocation11 + $0x14c] sm:$0xf]
    %v5919 = vld [vmem:[#allocation11 + $0x150] sm:$0xf]
    %v5920 = vld [vmem:[#allocation11 + $0x154] sm:$0xf]
    %v5921 = vld [vmem:[#allocation11 + $0x158] sm:$0xf]
    %v5922 = vld [vmem:[#allocation11 + $0x15c] sm:$0xf]
    %v5923 = vld [vmem:[#allocation11 + $0x160] sm:$0xf]
    %v5924 = vld [vmem:[#allocation11 + $0x164] sm:$0xf]
    %v5925 = vld [vmem:[#allocation11 + $0x168] sm:$0xf]
    %v5926 = vld [vmem:[#allocation11 + $0x16c] sm:$0xf]
    %v5927 = vld [vmem:[#allocation11 + $0x170] sm:$0xf]
    %v5928 = vld [vmem:[#allocation11 + $0x174] sm:$0xf]
    %v5929 = vld [vmem:[#allocation11 + $0x178] sm:$0xf]
    %v5930 = vld [vmem:[#allocation11 + $0x17c] sm:$0xf]
    %v5931 = vld [vmem:[#allocation11 + $0x180] sm:$0xf]
    %v5932 = vld [vmem:[#allocation11 + $0x184] sm:$0xf]
    %v5933 = vld [vmem:[#allocation11 + $0x188] sm:$0xf]
    %v5934 = vld [vmem:[#allocation11 + $0x18c] sm:$0xf]
    %v5935 = vld [vmem:[#allocation11 + $0x190] sm:$0xf]
    %v5936 = vld [vmem:[#allocation11 + $0x194] sm:$0xf]
    %v5937 = vld [vmem:[#allocation11 + $0x198] sm:$0xf]
    %v5938 = vld [vmem:[#allocation11 + $0x19c] sm:$0xf]
    %v5939 = vld [vmem:[#allocation11 + $0x1a0] sm:$0xf]
    %v5940 = vld [vmem:[#allocation11 + $0x1a4] sm:$0xf]
    %v5941 = vld [vmem:[#allocation11 + $0x1a8] sm:$0xf]
    %v5942 = vld [vmem:[#allocation11 + $0x1ac] sm:$0xf]
    %v5943 = vld [vmem:[#allocation11 + $0x1b0] sm:$0xf]
    %v5944 = vld [vmem:[#allocation11 + $0x1b4] sm:$0xf]
    %v5945 = vld [vmem:[#allocation11 + $0x1b8] sm:$0xf]
    %v5946 = vld [vmem:[#allocation11 + $0x1bc] sm:$0xf]
    %v5947 = vld [vmem:[#allocation11 + $0x1c0] sm:$0xf]
    %v5948 = vld [vmem:[#allocation11 + $0x1c4] sm:$0xf]
    %v5949 = vld [vmem:[#allocation11 + $0x1c8] sm:$0xf]
    %v5950 = vld [vmem:[#allocation11 + $0x1cc] sm:$0xf]
    %v5951 = vld [vmem:[#allocation11 + $0x1d0] sm:$0xf]
    %v5952 = vld [vmem:[#allocation11 + $0x1d4] sm:$0xf]
    %v5953 = vld [vmem:[#allocation11 + $0x1d8] sm:$0xf]
    %v5954 = vld [vmem:[#allocation11 + $0x1dc] sm:$0xf]
    %v5955 = vld [vmem:[#allocation11 + $0x1e0] sm:$0xf]
    %v5956 = vld [vmem:[#allocation11 + $0x1e4] sm:$0xf]
    %v5957 = vld [vmem:[#allocation11 + $0x1e8] sm:$0xf]
    %v5958 = vld [vmem:[#allocation11 + $0x1ec] sm:$0xf]
    %v5959 = vld [vmem:[#allocation11 + $0x1f0] sm:$0xf]
    %v5960 = vld [vmem:[#allocation11 + $0x1f4] sm:$0xf]
    %v5961 = vld [vmem:[#allocation11 + $0x1f8] sm:$0xf]
    %v5962 = vld [vmem:[#allocation11 + $0x1fc] sm:$0xf]
    %v5963 = vld [vmem:[#allocation13] sm:$0x1]
    %v5965 = vlaneseq
    %v5966 = vshrl.u32 %v5965, 7
    %v5967 = vsub.s32 0, %v5966
    %v5968 = vrot.slane %v5963, %v5967
    %v6098 = vunpack.c.l.b16 %v5835
    %v6099 = vunpack.c.l.b16 %v5836
    %v6100 = vunpack.c.l.b16 %v5837
    %v6101 = vunpack.c.l.b16 %v5838
    %v6102 = vunpack.c.l.b16 %v5839
    %v6103 = vunpack.c.l.b16 %v5840
    %v6104 = vunpack.c.l.b16 %v5841
    %v6105 = vunpack.c.l.b16 %v5842
    %v6106 = vunpack.c.l.b16 %v5843
    %v6107 = vunpack.c.l.b16 %v5844
    %v6108 = vunpack.c.l.b16 %v5845
    %v6109 = vunpack.c.l.b16 %v5846
    %v6110 = vunpack.c.l.b16 %v5847
    %v6111 = vunpack.c.l.b16 %v5848
    %v6112 = vunpack.c.l.b16 %v5849
    %v6113 = vunpack.c.l.b16 %v5850
    %v6114 = vunpack.c.l.b16 %v5851
    %v6115 = vunpack.c.l.b16 %v5852
    %v6116 = vunpack.c.l.b16 %v5853
    %v6117 = vunpack.c.l.b16 %v5854
    %v6118 = vunpack.c.l.b16 %v5855
    %v6119 = vunpack.c.l.b16 %v5856
    %v6120 = vunpack.c.l.b16 %v5857
    %v6121 = vunpack.c.l.b16 %v5858
    %v6122 = vunpack.c.l.b16 %v5859
    %v6123 = vunpack.c.l.b16 %v5860
    %v6124 = vunpack.c.l.b16 %v5861
    %v6125 = vunpack.c.l.b16 %v5862
    %v6126 = vunpack.c.l.b16 %v5863
    %v6127 = vunpack.c.l.b16 %v5864
    %v6128 = vunpack.c.l.b16 %v5865
    %v6129 = vunpack.c.l.b16 %v5866
    %v6130 = vunpack.c.l.b16 %v5867
    %v6131 = vunpack.c.l.b16 %v5868
    %v6132 = vunpack.c.l.b16 %v5869
    %v6133 = vunpack.c.l.b16 %v5870
    %v6134 = vunpack.c.l.b16 %v5871
    %v6135 = vunpack.c.l.b16 %v5872
    %v6136 = vunpack.c.l.b16 %v5873
    %v6137 = vunpack.c.l.b16 %v5874
    %v6138 = vunpack.c.l.b16 %v5875
    %v6139 = vunpack.c.l.b16 %v5876
    %v6140 = vunpack.c.l.b16 %v5877
    %v6141 = vunpack.c.l.b16 %v5878
    %v6142 = vunpack.c.l.b16 %v5879
    %v6143 = vunpack.c.l.b16 %v5880
    %v6144 = vunpack.c.l.b16 %v5881
    %v6145 = vunpack.c.l.b16 %v5882
    %v6146 = vunpack.c.l.b16 %v5883
    %v6147 = vunpack.c.l.b16 %v5884
    %v6148 = vunpack.c.l.b16 %v5885
    %v6149 = vunpack.c.l.b16 %v5886
    %v6150 = vunpack.c.l.b16 %v5887
    %v6151 = vunpack.c.l.b16 %v5888
    %v6152 = vunpack.c.l.b16 %v5889
    %v6153 = vunpack.c.l.b16 %v5890
    %v6154 = vunpack.c.l.b16 %v5891
    %v6155 = vunpack.c.l.b16 %v5892
    %v6156 = vunpack.c.l.b16 %v5893
    %v6157 = vunpack.c.l.b16 %v5894
    %v6158 = vunpack.c.l.b16 %v5895
    %v6159 = vunpack.c.l.b16 %v5896
    %v6160 = vunpack.c.l.b16 %v5897
    %v6161 = vunpack.c.l.b16 %v5898
    %v6162 = vunpack.c.l.b16 %v5899
    %v6163 = vunpack.c.l.b16 %v5900
    %v6164 = vunpack.c.l.b16 %v5901
    %v6165 = vunpack.c.l.b16 %v5902
    %v6166 = vunpack.c.l.b16 %v5903
    %v6167 = vunpack.c.l.b16 %v5904
    %v6168 = vunpack.c.l.b16 %v5905
    %v6169 = vunpack.c.l.b16 %v5906
    %v6170 = vunpack.c.l.b16 %v5907
    %v6171 = vunpack.c.l.b16 %v5908
    %v6172 = vunpack.c.l.b16 %v5909
    %v6173 = vunpack.c.l.b16 %v5910
    %v6174 = vunpack.c.l.b16 %v5911
    %v6175 = vunpack.c.l.b16 %v5912
    %v6176 = vunpack.c.l.b16 %v5913
    %v6177 = vunpack.c.l.b16 %v5914
    %v6178 = vunpack.c.l.b16 %v5915
    %v6179 = vunpack.c.l.b16 %v5916
    %v6180 = vunpack.c.l.b16 %v5917
    %v6181 = vunpack.c.l.b16 %v5918
    %v6182 = vunpack.c.l.b16 %v5919
    %v6183 = vunpack.c.l.b16 %v5920
    %v6184 = vunpack.c.l.b16 %v5921
    %v6185 = vunpack.c.l.b16 %v5922
    %v6186 = vunpack.c.l.b16 %v5923
    %v6187 = vunpack.c.l.b16 %v5924
    %v6188 = vunpack.c.l.b16 %v5925
    %v6189 = vunpack.c.l.b16 %v5926
    %v6190 = vunpack.c.l.b16 %v5927
    %v6191 = vunpack.c.l.b16 %v5928
    %v6192 = vunpack.c.l.b16 %v5929
    %v6193 = vunpack.c.l.b16 %v5930
    %v6194 = vunpack.c.l.b16 %v5931
    %v6195 = vunpack.c.l.b16 %v5932
    %v6196 = vunpack.c.l.b16 %v5933
    %v6197 = vunpack.c.l.b16 %v5934
    %v6198 = vunpack.c.l.b16 %v5935
    %v6199 = vunpack.c.l.b16 %v5936
    %v6200 = vunpack.c.l.b16 %v5937
    %v6201 = vunpack.c.l.b16 %v5938
    %v6202 = vunpack.c.l.b16 %v5939
    %v6203 = vunpack.c.l.b16 %v5940
    %v6204 = vunpack.c.l.b16 %v5941
    %v6205 = vunpack.c.l.b16 %v5942
    %v6206 = vunpack.c.l.b16 %v5943
    %v6207 = vunpack.c.l.b16 %v5944
    %v6208 = vunpack.c.l.b16 %v5945
    %v6209 = vunpack.c.l.b16 %v5946
    %v6210 = vunpack.c.l.b16 %v5947
    %v6211 = vunpack.c.l.b16 %v5948
    %v6212 = vunpack.c.l.b16 %v5949
    %v6213 = vunpack.c.l.b16 %v5950
    %v6214 = vunpack.c.l.b16 %v5951
    %v6215 = vunpack.c.l.b16 %v5952
    %v6216 = vunpack.c.l.b16 %v5953
    %v6217 = vunpack.c.l.b16 %v5954
    %v6218 = vunpack.c.l.b16 %v5955
    %v6219 = vunpack.c.l.b16 %v5956
    %v6220 = vunpack.c.l.b16 %v5957
    %v6221 = vunpack.c.l.b16 %v5958
    %v6222 = vunpack.c.l.b16 %v5959
    %v6223 = vunpack.c.l.b16 %v5960
    %v6224 = vunpack.c.l.b16 %v5961
    %v6225 = vunpack.c.l.b16 %v5962
    %v6226 = vpack.c.b16 %v6099, %v6098
    %v6227 = vpack.c.b16 %v6101, %v6100
    %v6228 = vpack.c.b16 %v6103, %v6102
    %v6229 = vpack.c.b16 %v6105, %v6104
    %v6230 = vpack.c.b16 %v6107, %v6106
    %v6231 = vpack.c.b16 %v6109, %v6108
    %v6232 = vpack.c.b16 %v6111, %v6110
    %v6233 = vpack.c.b16 %v6113, %v6112
    %v6234 = vpack.c.b16 %v6115, %v6114
    %v6235 = vpack.c.b16 %v6117, %v6116
    %v6236 = vpack.c.b16 %v6119, %v6118
    %v6237 = vpack.c.b16 %v6121, %v6120
    %v6238 = vpack.c.b16 %v6123, %v6122
    %v6239 = vpack.c.b16 %v6125, %v6124
    %v6240 = vpack.c.b16 %v6127, %v6126
    %v6241 = vpack.c.b16 %v6129, %v6128
    %v6242 = vpack.c.b16 %v6131, %v6130
    %v6243 = vpack.c.b16 %v6133, %v6132
    %v6244 = vpack.c.b16 %v6135, %v6134
    %v6245 = vpack.c.b16 %v6137, %v6136
    %v6246 = vpack.c.b16 %v6139, %v6138
    %v6247 = vpack.c.b16 %v6141, %v6140
    %v6248 = vpack.c.b16 %v6143, %v6142
    %v6249 = vpack.c.b16 %v6145, %v6144
    %v6250 = vpack.c.b16 %v6147, %v6146
    %v6251 = vpack.c.b16 %v6149, %v6148
    %v6252 = vpack.c.b16 %v6151, %v6150
    %v6253 = vpack.c.b16 %v6153, %v6152
    %v6254 = vpack.c.b16 %v6155, %v6154
    %v6255 = vpack.c.b16 %v6157, %v6156
    %v6256 = vpack.c.b16 %v6159, %v6158
    %v6257 = vpack.c.b16 %v6161, %v6160
    %v6258 = vpack.c.b16 %v6163, %v6162
    %v6259 = vpack.c.b16 %v6165, %v6164
    %v6260 = vpack.c.b16 %v6167, %v6166
    %v6261 = vpack.c.b16 %v6169, %v6168
    %v6262 = vpack.c.b16 %v6171, %v6170
    %v6263 = vpack.c.b16 %v6173, %v6172
    %v6264 = vpack.c.b16 %v6175, %v6174
    %v6265 = vpack.c.b16 %v6177, %v6176
    %v6266 = vpack.c.b16 %v6179, %v6178
    %v6267 = vpack.c.b16 %v6181, %v6180
    %v6268 = vpack.c.b16 %v6183, %v6182
    %v6269 = vpack.c.b16 %v6185, %v6184
    %v6270 = vpack.c.b16 %v6187, %v6186
    %v6271 = vpack.c.b16 %v6189, %v6188
    %v6272 = vpack.c.b16 %v6191, %v6190
    %v6273 = vpack.c.b16 %v6193, %v6192
    %v6274 = vpack.c.b16 %v6195, %v6194
    %v6275 = vpack.c.b16 %v6197, %v6196
    %v6276 = vpack.c.b16 %v6199, %v6198
    %v6277 = vpack.c.b16 %v6201, %v6200
    %v6278 = vpack.c.b16 %v6203, %v6202
    %v6279 = vpack.c.b16 %v6205, %v6204
    %v6280 = vpack.c.b16 %v6207, %v6206
    %v6281 = vpack.c.b16 %v6209, %v6208
    %v6282 = vpack.c.b16 %v6211, %v6210
    %v6283 = vpack.c.b16 %v6213, %v6212
    %v6284 = vpack.c.b16 %v6215, %v6214
    %v6285 = vpack.c.b16 %v6217, %v6216
    %v6286 = vpack.c.b16 %v6219, %v6218
    %v6287 = vpack.c.b16 %v6221, %v6220
    %v6288 = vpack.c.b16 %v6223, %v6222
    %v6289 = vpack.c.b16 %v6225, %v6224
    %6354 = vmatprep.subr.bf16.mxu0 0
    %6355 = vmatpush1.bf16.msra.mxu0 %v6233
    %6356 = vmatprep.subr.bf16.mxu0 0
    %6357 = vmatpush1.bf16.msra.mxu0 %v6232
    %6358 = vmatprep.subr.bf16.mxu0 0
    %6359 = vmatpush1.bf16.msra.mxu0 %v6231
    %6360 = vmatprep.subr.bf16.mxu0 0
    %6361 = vmatpush1.bf16.msra.mxu0 %v6230
    %6362 = vmatprep.subr.bf16.mxu0 0
    %6363 = vmatpush1.bf16.msra.mxu0 %v6229
    %6364 = vmatprep.subr.bf16.mxu0 0
    %6365 = vmatpush1.bf16.msra.mxu0 %v6228
    %6366 = vmatprep.subr.bf16.mxu0 0
    %6367 = vmatpush1.bf16.msra.mxu0 %v6227
    %6368 = vmatprep.subr.bf16.mxu0 0
    %6369 = vmatpush1.bf16.msra.mxu0 %v6226
    %6370 = vmatprep.subr.bf16.mxu0 0
    %6371 = vmatpush2.bf16.msra.mxu0 %v6241
    %6372 = vmatprep.subr.bf16.mxu0 0
    %6373 = vmatpush2.bf16.msra.mxu0 %v6240
    %6374 = vmatprep.subr.bf16.mxu0 0
    %6375 = vmatpush2.bf16.msra.mxu0 %v6239
    %6376 = vmatprep.subr.bf16.mxu0 0
    %6377 = vmatpush2.bf16.msra.mxu0 %v6238
    %6378 = vmatprep.subr.bf16.mxu0 0
    %6379 = vmatpush2.bf16.msra.mxu0 %v6237
    %6380 = vmatprep.subr.bf16.mxu0 0
    %6381 = vmatpush2.bf16.msra.mxu0 %v6236
    %6382 = vmatprep.subr.bf16.mxu0 0
    %6383 = vmatpush2.bf16.msra.mxu0 %v6235
    %6384 = vmatprep.subr.bf16.mxu0 0
    %6385 = vmatpush2.bf16.msra.mxu0 %v6234
    %6386 = vmatprep.mubr.bf16.mxu0 %v5828
    %6387 = vmatmul.mubr.bf16.gmra.mxu0 %v5827
    %v6388 = vpop.f32.mrf.mxu0
    %v6389 = vadd.f32 %v5968, %v6388
    %v6390 = vpop.f32.mrf.mxu0
    %v6391 = vpop.f32.mrf.mxu0
    %v6392 = vpop.f32.mrf.mxu0
    %6393 = vdwg.mxu0
    %6394 = vmatprep.subr.bf16.mxu0 0
    %6395 = vmatpush1.bf16.msra.mxu0 %v6249
    %6396 = vmatprep.subr.bf16.mxu0 0
    %6397 = vmatpush1.bf16.msra.mxu0 %v6248
    %6398 = vmatprep.subr.bf16.mxu0 0
    %6399 = vmatpush1.bf16.msra.mxu0 %v6247
    %6400 = vmatprep.subr.bf16.mxu0 0
    %6401 = vmatpush1.bf16.msra.mxu0 %v6246
    %6402 = vmatprep.subr.bf16.mxu0 0
    %6403 = vmatpush1.bf16.msra.mxu0 %v6245
    %6404 = vmatprep.subr.bf16.mxu0 0
    %6405 = vmatpush1.bf16.msra.mxu0 %v6244
    %6406 = vmatprep.subr.bf16.mxu0 0
    %6407 = vmatpush1.bf16.msra.mxu0 %v6243
    %6408 = vmatprep.subr.bf16.mxu0 0
    %6409 = vmatpush1.bf16.msra.mxu0 %v6242
    %6410 = vmatprep.subr.bf16.mxu0 0
    %6411 = vmatpush2.bf16.msra.mxu0 %v6257
    %6412 = vmatprep.subr.bf16.mxu0 0
    %6413 = vmatpush2.bf16.msra.mxu0 %v6256
    %6414 = vmatprep.subr.bf16.mxu0 0
    %6415 = vmatpush2.bf16.msra.mxu0 %v6255
    %6416 = vmatprep.subr.bf16.mxu0 0
    %6417 = vmatpush2.bf16.msra.mxu0 %v6254
    %6418 = vmatprep.subr.bf16.mxu0 0
    %6419 = vmatpush2.bf16.msra.mxu0 %v6253
    %6420 = vmatprep.subr.bf16.mxu0 0
    %6421 = vmatpush2.bf16.msra.mxu0 %v6252
    %6422 = vmatprep.subr.bf16.mxu0 0
    %6423 = vmatpush2.bf16.msra.mxu0 %v6251
    %6424 = vmatprep.subr.bf16.mxu0 0
    %6425 = vmatpush2.bf16.msra.mxu0 %v6250
    %6426 = vmatprep.mubr.bf16.mxu0 %v5830
    %6427 = vmatmul.mubr.bf16.gmra.mxu0 %v5829
    %v6428 = vpop.f32.mrf.mxu0
    %v6429 = vadd.f32 %v6389, %v6428
    %v6430 = vpop.f32.mrf.mxu0
    %v6431 = vpop.f32.mrf.mxu0
    %v6432 = vpop.f32.mrf.mxu0
    %6433 = vdwg.mxu0
    %6434 = vmatprep.subr.bf16.mxu0 0
    %6435 = vmatpush1.bf16.msra.mxu0 %v6265
    %6436 = vmatprep.subr.bf16.mxu0 0
    %6437 = vmatpush1.bf16.msra.mxu0 %v6264
    %6438 = vmatprep.subr.bf16.mxu0 0
    %6439 = vmatpush1.bf16.msra.mxu0 %v6263
    %6440 = vmatprep.subr.bf16.mxu0 0
    %6441 = vmatpush1.bf16.msra.mxu0 %v6262
    %6442 = vmatprep.subr.bf16.mxu0 0
    %6443 = vmatpush1.bf16.msra.mxu0 %v6261
    %6444 = vmatprep.subr.bf16.mxu0 0
    %6445 = vmatpush1.bf16.msra.mxu0 %v6260
    %6446 = vmatprep.subr.bf16.mxu0 0
    %6447 = vmatpush1.bf16.msra.mxu0 %v6259
    %6448 = vmatprep.subr.bf16.mxu0 0
    %6449 = vmatpush1.bf16.msra.mxu0 %v6258
    %6450 = vmatprep.subr.bf16.mxu0 0
    %6451 = vmatpush2.bf16.msra.mxu0 %v6273
    %6452 = vmatprep.subr.bf16.mxu0 0
    %6453 = vmatpush2.bf16.msra.mxu0 %v6272
    %6454 = vmatprep.subr.bf16.mxu0 0
    %6455 = vmatpush2.bf16.msra.mxu0 %v6271
    %6456 = vmatprep.subr.bf16.mxu0 0
    %6457 = vmatpush2.bf16.msra.mxu0 %v6270
    %6458 = vmatprep.subr.bf16.mxu0 0
    %6459 = vmatpush2.bf16.msra.mxu0 %v6269
    %6460 = vmatprep.subr.bf16.mxu0 0
    %6461 = vmatpush2.bf16.msra.mxu0 %v6268
    %6462 = vmatprep.subr.bf16.mxu0 0
    %6463 = vmatpush2.bf16.msra.mxu0 %v6267
    %6464 = vmatprep.subr.bf16.mxu0 0
    %6465 = vmatpush2.bf16.msra.mxu0 %v6266
    %6466 = vmatprep.mubr.bf16.mxu0 %v5832
    %6467 = vmatmul.mubr.bf16.gmra.mxu0 %v5831
    %v6468 = vpop.f32.mrf.mxu0
    %v6469 = vadd.f32 %v6429, %v6468
    %v6470 = vpop.f32.mrf.mxu0
    %v6471 = vpop.f32.mrf.mxu0
    %v6472 = vpop.f32.mrf.mxu0
    %6473 = vdwg.mxu0
    %6474 = vmatprep.subr.bf16.mxu0 0
    %6475 = vmatpush1.bf16.msra.mxu0 %v6281
    %6476 = vmatprep.subr.bf16.mxu0 0
    %6477 = vmatpush1.bf16.msra.mxu0 %v6280
    %6478 = vmatprep.subr.bf16.mxu0 0
    %6479 = vmatpush1.bf16.msra.mxu0 %v6279
    %6480 = vmatprep.subr.bf16.mxu0 0
    %6481 = vmatpush1.bf16.msra.mxu0 %v6278
    %6482 = vmatprep.subr.bf16.mxu0 0
    %6483 = vmatpush1.bf16.msra.mxu0 %v6277
    %6484 = vmatprep.subr.bf16.mxu0 0
    %6485 = vmatpush1.bf16.msra.mxu0 %v6276
    %6486 = vmatprep.subr.bf16.mxu0 0
    %6487 = vmatpush1.bf16.msra.mxu0 %v6275
    %6488 = vmatprep.subr.bf16.mxu0 0
    %6489 = vmatpush1.bf16.msra.mxu0 %v6274
    %6490 = vmatprep.subr.bf16.mxu0 0
    %6491 = vmatpush2.bf16.msra.mxu0 %v6289
    %6492 = vmatprep.subr.bf16.mxu0 0
    %6493 = vmatpush2.bf16.msra.mxu0 %v6288
    %6494 = vmatprep.subr.bf16.mxu0 0
    %6495 = vmatpush2.bf16.msra.mxu0 %v6287
    %6496 = vmatprep.subr.bf16.mxu0 0
    %6497 = vmatpush2.bf16.msra.mxu0 %v6286
    %6498 = vmatprep.subr.bf16.mxu0 0
    %6499 = vmatpush2.bf16.msra.mxu0 %v6285
    %6500 = vmatprep.subr.bf16.mxu0 0
    %6501 = vmatpush2.bf16.msra.mxu0 %v6284
    %6502 = vmatprep.subr.bf16.mxu0 0
    %6503 = vmatpush2.bf16.msra.mxu0 %v6283
    %6504 = vmatprep.subr.bf16.mxu0 0
    %6505 = vmatpush2.bf16.msra.mxu0 %v6282
    %6506 = vmatprep.mubr.bf16.mxu0 %v5834
    %6507 = vmatmul.mubr.bf16.gmra.mxu0 %v5833
    %v6508 = vpop.f32.mrf.mxu0
    %v6509 = vadd.f32 %v6469, %v6508
    %v6510 = vpop.f32.mrf.mxu0
    %v6511 = vpop.f32.mrf.mxu0
    %v6512 = vpop.f32.mrf.mxu0
    %6513 = vdwg.mxu0
    %v6514 = vmax.f32 %v6509, 0.0
    %6515 = vst [vmem:[#allocation14] sm:$0xff] %v6514
    // Predicated region
    $region58: #{tpu_custom_call.1} parent=1 // pred_check
      _
    $region59: #{tpu_custom_call.1} parent=1 // pred_check_branch
      %6517 = sbr.rel (0) target = $region61
    $region60: #{tpu_custom_call.1} parent=1 // pred_region
      %s6519 = ssub.s32 128, 128
      %6520 = vsyncadd [#allocation4], %s6519
      %s6522 = sshll.u32 [#allocation14], 4
      %s6523 = int_to_ptr.vmem [resolvable:$true] %s6522
      %6525 = dma.vmem_to_hbm [thread:$0]  %s6523, 128, %s7, [#allocation4]
    $region61: #{tpu_custom_call.1} parent=1 // pred_fallthru
      _
    // Predicated region
    $region62: #{tpu_custom_call.1} parent=1 // pred_check
      _
    $region63: #{tpu_custom_call.1} parent=1 // pred_check_branch
      %6527 = sbr.rel (0) target = $region65
    $region64: #{tpu_custom_call.1} parent=1 // pred_region
      %6528 = dma.done [#allocation4], 128
    $region65: #{tpu_custom_call.1} parent=1 // pred_fallthru
      _
    %6529 = vsyncpa [#allocation3], 1
    %6530 = vsyncpa [#allocation6], 1
    %6531 = vsyncpa [#allocation9], 1
    %6532 = vsyncpa [#allocation12], 1
    %6533 = vsyncpa [#allocation4], 1

</llo_original>
